<compile_context>
chip_gen: v6e
topology: v6e:2x2x1
jax: 0.10.0
libtpu: 0.0.40
codegen_flags: <defaults>
</compile_context>

<pallas_src>
import jax
import jax.numpy as jnp
import numpy as np
from jax import lax
from jax.experimental import pallas as pl
from jax.experimental.pallas import tpu as pltpu


# ----------------------------------------------------------------------------
# Pallas kernel: fused embedding gather + bi-LSTM + FC epilogue
# ----------------------------------------------------------------------------
def _encoder_kernel(tok_ref, emb_ref, wih_ref, whh_ref, b_ref, fcw_ref, fcb_ref,
                    y_ref, fc_ref, gm_sc, yh_sc):
    """One-shot fused encoder.

    tok_ref: (B*T,)     int32 token ids (SMEM scalar prefetch, row-major (B,T))
    emb_ref: (V, 1, E)  embedding table (VMEM; leading-dim dynamic gather)
    wih_ref: (E, 8H)    gate-type-contiguous fused input weights
    whh_ref: (2H, 8H)   block-diagonal fused recurrent weights
    b_ref:   (1, 8H)    fused bias
    fcw_ref: (H, H)     [hid_w | cell_w]
    fcb_ref: (1, H)     [hid_b | cell_b]
    y_ref:   (T, B*2H)  lane-dense LSTM output (time-major, b-major per row)
    fc_ref:  (4B, H)    [relu(h_f);relu(h_b);relu(c_f);relu(c_b)] @ [hid_w|cell_w]
    Gate order per direction follows PyTorch: i, f, g, o.
    Fused state layout: h = [h_fwd | h_bwd] on 2H lanes, same for c.
    """
    T, B, H2 = yh_sc.shape
    H = H2 // 2
    G = 8 * H

    # ---- (a) embedding gather + input projection + fwd/bwd lane merge ------
    #      (hoisted: runs once, off the serial recurrence)
    wih = wih_ref[...]
    bias = b_ref[...]

    def gates_x(t):
        rows = [emb_ref[tok_ref[b * T + t]] for b in range(B)]      # B x (1, E)
        x_t = rows[0] if B == 1 else jnp.concatenate(rows, axis=0)  # (B, E)
        # Off the critical path -> keep fp32 contract precision for numerics.
        return jnp.dot(x_t, wih, preferred_element_type=jnp.float32,
                       precision=jax.lax.Precision.HIGHEST) + bias  # (B, 8H)

    fwd_g = lax.broadcasted_iota(jnp.int32, (B, G), 1) % (2 * H) < H
    for t in range((T + 1) // 2):           # pairs (t, T-1-t): merged in place
        tr = T - 1 - t
        ga = gates_x(t)
        if tr == t:
            gm_sc[t] = ga
        else:
            gb = gates_x(tr)
            gm_sc[t] = jnp.where(fwd_g, ga, gb)   # fwd lanes: time t, bwd: T-1-t
            gm_sc[tr] = jnp.where(fwd_g, gb, ga)

    # ---- (b) fused-direction recurrence (serial critical path) -------------
    whh_bf = whh_ref[...].astype(jnp.bfloat16)    # hoisted bf16 operand
    h = jnp.zeros((B, 2 * H), jnp.float32)        # [h_fwd | h_bwd]
    c = jnp.zeros((B, 2 * H), jnp.float32)
    for t in range(T):                            # T small & static: unroll
        # Single-pass bf16 MXU dot, f32 accumulate; state stays f32.
        gates = gm_sc[t] + jnp.dot(h.astype(jnp.bfloat16), whh_bf,
                                   preferred_element_type=jnp.float32)
        i = jax.nn.sigmoid(gates[:, 0:2 * H])
        f = jax.nn.sigmoid(gates[:, 2 * H:4 * H])
        g = jnp.tanh(gates[:, 4 * H:6 * H])
        o = jax.nn.sigmoid(gates[:, 6 * H:8 * H])
        c = f * c + i * g
        h = o * jnp.tanh(c)
        yh_sc[t] = h                              # aligned leading-dim store

    # ---- (c) lane-dense y emission: one (T, B*2H) slab, single store -------
    fwd_h = lax.broadcasted_iota(jnp.int32, (B, 2 * H), 1) < H
    rows = []
    for t in range(T):
        # fwd lanes valid at loop step t, bwd lanes valid at loop step T-1-t.
        m_t = jnp.where(fwd_h, yh_sc[t], yh_sc[T - 1 - t])          # (B, 2H)
        if B > 1:
            rows.append(jnp.concatenate([m_t[b:b + 1, :] for b in range(B)],
                                        axis=1))                    # (1, B*2H)
        else:
            rows.append(m_t)
    y_ref[...] = jnp.concatenate(rows, axis=0)                      # (T, B*2H)

    # ---- (d) fused hidden_fc / cell_fc epilogue (dropout == identity) ------
    x_fc = jnp.maximum(
        jnp.concatenate([h[:, 0:H], h[:, H:2 * H],
                         c[:, 0:H], c[:, H:2 * H]], axis=0), 0.0)   # (4B, H)
    fc_ref[...] = jnp.dot(x_fc, fcw_ref[...],
                          preferred_element_type=jnp.float32,
                          precision=jax.lax.Precision.HIGHEST) + fcb_ref[...]


# ----------------------------------------------------------------------------
# One-time weight re-layout (plain JAX, outside the jitted forward)
# ----------------------------------------------------------------------------
def _fuse_gate_cols(wf, wb, H):
    """(*,4H)+(*,4H) -> (*,8H) laid out [i_f i_b | f_f f_b | g_f g_b | o_f o_b]."""
    parts = []
    for gi in range(4):
        parts.append(wf[..., gi * H:(gi + 1) * H])
        parts.append(wb[..., gi * H:(gi + 1) * H])
    return jnp.concatenate(parts, axis=-1)


def _fuse_hh_block(whf, whb, H):
    """(H,4H)+(H,4H) -> block-diagonal (2H,8H): rows 0:H feed fwd gates, H:2H bwd."""
    z = jnp.zeros((H, H), jnp.float32)
    parts = []
    for gi in range(4):
        parts.append(jnp.concatenate([whf[:, gi * H:(gi + 1) * H], z], axis=0))
        parts.append(jnp.concatenate([z, whb[:, gi * H:(gi + 1) * H]], axis=0))
    return jnp.concatenate(parts, axis=1)


def fuse_encoder_params(params):
    H = params['w_hh_f'].shape[0]
    V, E = params['emb'].shape
    return {
        'emb3': params['emb'].reshape(V, 1, E),
        'wih': _fuse_gate_cols(params['w_ih_f'], params['w_ih_b'], H),      # (E,8H)
        'whh': _fuse_hh_block(params['w_hh_f'], params['w_hh_b'], H),       # (2H,8H)
        'bias': _fuse_gate_cols(params['b_f'], params['b_b'], H),           # (1,8H)
        'fcw': jnp.concatenate([params['hid_w'], params['cell_w']], axis=1),  # (H,H)
        'fcb': jnp.concatenate([params['hid_b'], params['cell_b']], axis=1),  # (1,H)
    }


# ----------------------------------------------------------------------------
# Encoder forward: ONE pallas_call + output reshapes
# ----------------------------------------------------------------------------
def _full_spec(shape):
    nd = len(shape)
    # index_map receives (grid_idx, *scalar_prefetch_refs).
    return pl.BlockSpec(shape, lambda i, tok, _nd=nd: (0,) * _nd)


@jax.jit
def encoder_forward_pallas(fused, tokens):
    B, T = tokens.shape
    H = fused['whh'].shape[0] // 2

    tok_flat = tokens.reshape(B * T).astype(jnp.int32)
    operands = (fused['emb3'], fused['wih'], fused['whh'], fused['bias'],
                fused['fcw'], fused['fcb'])

    y, fc = pl.pallas_call(
        _encoder_kernel,
        grid_spec=pltpu.PrefetchScalarGridSpec(
            num_scalar_prefetch=1,
            grid=(1,),
            in_specs=[_full_spec(a.shape) for a in operands],
            out_specs=(_full_spec((T, B * 2 * H)),
                       _full_spec((4 * B, H))),
            scratch_shapes=[pltpu.VMEM((T, B, 8 * H), jnp.float32),  # merged gates_x
                            pltpu.VMEM((T, B, 2 * H), jnp.float32)]  # per-step h
        ),
        out_shape=(jax.ShapeDtypeStruct((T, B * 2 * H), jnp.float32),
                   jax.ShapeDtypeStruct((4 * B, H), jnp.float32)),
        compiler_params=pltpu.CompilerParams(
            dimension_semantics=("arbitrary",)),
    )(tok_flat, *operands)

    output = y.reshape(T, B, 2 * H).transpose(1, 0, 2)      # (B, T, 2H) batch_first
    hidden = fc[0:2 * B, 0:H // 2].reshape(2, B, H // 2)    # hidden_fc(relu(h_n))
    cell = fc[2 * B:4 * B, H // 2:H].reshape(2, B, H // 2)  # cell_fc(relu(c_n))
    return output, (hidden, cell)


# ----------------------------------------------------------------------------
# Pure-JAX reference (mirrors PyTorch semantics, full f32)
# ----------------------------------------------------------------------------
def _lstm_dir_ref(x_tm, w_ih, w_hh, b, H):
    B = x_tm.shape[1]
    PH = jax.lax.Precision.HIGHEST

    def step(carry, x_t):
        h, c = carry
        gates = (jnp.dot(x_t, w_ih, precision=PH)
                 + jnp.dot(h, w_hh, precision=PH) + b)
        i = jax.nn.sigmoid(gates[:, 0:H])
        f = jax.nn.sigmoid(gates[:, H:2 * H])
        g = jnp.tanh(gates[:, 2 * H:3 * H])
        o = jax.nn.sigmoid(gates[:, 3 * H:4 * H])
        c = f * c + i * g
        h = o * jnp.tanh(c)
        return (h, c), h

    init = (jnp.zeros((B, H), jnp.float32), jnp.zeros((B, H), jnp.float32))
    (hT, cT), ys = lax.scan(step, init, x_tm)
    return ys, hT, cT


def encoder_forward_ref(params, tokens):
    PH = jax.lax.Precision.HIGHEST
    H = params['w_hh_f'].shape[0]
    x = jnp.take(params['emb'], tokens, axis=0)               # (B, T, E)
    x_tm = jnp.transpose(x, (1, 0, 2))                        # (T, B, E)
    yf, hf, cf = _lstm_dir_ref(x_tm, params['w_ih_f'], params['w_hh_f'],
                               params['b_f'], H)
    yb, hb, cb = _lstm_dir_ref(x_tm[::-1], params['w_ih_b'], params['w_hh_b'],
                               params['b_b'], H)
    y = jnp.concatenate([yf, yb[::-1]], axis=-1)              # (T, B, 2H)
    output = jnp.transpose(y, (1, 0, 2))                      # (B, T, 2H)
    h_n = jnp.stack([hf, hb], axis=0)                         # (2, B, H)
    c_n = jnp.stack([cf, cb], axis=0)
    hidden = jnp.dot(jnp.maximum(h_n, 0.0), params['hid_w'],
                     precision=PH) + params['hid_b']
    cell = jnp.dot(jnp.maximum(c_n, 0.0), params['cell_w'],
                   precision=PH) + params['cell_b']
    return output, (hidden, cell)


# ----------------------------------------------------------------------------
# Deterministic parameter initialization (shapes from Encoder.__init__)
# ----------------------------------------------------------------------------
def init_params(key, cfg):
    E, H, V = cfg['embed_dim'], cfg['hidden_size'], cfg['input_size']
    keys = iter(jax.random.split(key, 16))

    def nrm(shape, scale=0.1):
        return (scale * jax.random.normal(next(keys), shape)).astype(jnp.float32)

    return {
        'emb': nrm((V, E), 1.0),
        'w_ih_f': nrm((E, 4 * H)), 'w_hh_f': nrm((H, 4 * H)), 'b_f': nrm((1, 4 * H)),
        'w_ih_b': nrm((E, 4 * H)), 'w_hh_b': nrm((H, 4 * H)), 'b_b': nrm((1, 4 * H)),
        'hid_w': nrm((H, H // 2)), 'hid_b': nrm((1, H // 2)),
        'cell_w': nrm((H, H // 2)), 'cell_b': nrm((1, H // 2)),
    }


# ----------------------------------------------------------------------------
if __name__ == "__main__":
    cfg = dict(embed_dim=32, hidden_size=32, n_layers=1, dropout=0.3,
               input_size=50)

    key = jax.random.PRNGKey(0)
    pkey, dkey = jax.random.split(key)
    params = init_params(pkey, cfg)
    fused = fuse_encoder_params(params)        # one-time weight re-layout

    B, T = 2, 8
    tokens = jax.random.randint(dkey, (B, T), 0, cfg['input_size'],
                                dtype=jnp.int32)

    out, (hid, cel) = encoder_forward_pallas(fused, tokens)
    out, hid, cel = jax.block_until_ready((out, hid, cel))

    r_out, (r_hid, r_cel) = encoder_forward_ref(params, tokens)

    H = cfg['hidden_size']
    assert out.shape == (B, T, 2 * H), out.shape
    assert hid.shape == (2, B, H // 2), hid.shape
    assert cel.shape == (2, B, H // 2), cel.shape

    # Tolerances reflect the single-pass bf16 MXU recurrent matmul (per the
    # perf review) compared against a full-f32 reference.
    np.testing.assert_allclose(np.asarray(out), np.asarray(r_out),
                               rtol=1e-2, atol=3e-3)
    np.testing.assert_allclose(np.asarray(hid), np.asarray(r_hid),
                               rtol=1e-2, atol=3e-3)
    np.testing.assert_allclose(np.asarray(cel), np.asarray(r_cel),
                               rtol=1e-2, atol=3e-3)
    print("KERNEL_OK")
</pallas_src>

<mosaic_0001>
module attributes {stable_mosaic.version = 11 : i64} {
  func.func @_encoder_kernel(%arg0: i32, %arg1: memref<16xi32, #tpu.memory_space<smem>>, %arg2: memref<50x1x32xf32, #tpu.memory_space<vmem>>, %arg3: memref<32x256xf32, #tpu.memory_space<vmem>>, %arg4: memref<64x256xf32, #tpu.memory_space<vmem>>, %arg5: memref<1x256xf32, #tpu.memory_space<vmem>>, %arg6: memref<32x32xf32, #tpu.memory_space<vmem>>, %arg7: memref<1x32xf32, #tpu.memory_space<vmem>>, %arg8: memref<8x128xf32, #tpu.memory_space<vmem>>, %arg9: memref<8x32xf32, #tpu.memory_space<vmem>>, %arg10: memref<8x2x256xf32, #tpu.memory_space<vmem>>, %arg11: memref<8x2x64xf32, #tpu.memory_space<vmem>>) attributes {dimension_semantics = [#tpu.dimension_semantics<arbitrary>], iteration_bounds = array<i64: 1>, scalar_prefetch = 1 : i64, scratch_operands = 2 : i64, tpu.core_type = #tpu.core_type<tc>, window_params = [{pipeline_mode = #tpu.pipeline_mode<synchronous>, transform_indices = @transform_0, window_bounds = array<i64: 50, 1, 32>}, {pipeline_mode = #tpu.pipeline_mode<synchronous>, transform_indices = @transform_1, window_bounds = array<i64: 32, 256>}, {pipeline_mode = #tpu.pipeline_mode<synchronous>, transform_indices = @transform_2, window_bounds = array<i64: 64, 256>}, {pipeline_mode = #tpu.pipeline_mode<synchronous>, transform_indices = @transform_3, window_bounds = array<i64: 1, 256>}, {pipeline_mode = #tpu.pipeline_mode<synchronous>, transform_indices = @transform_4, window_bounds = array<i64: 32, 32>}, {pipeline_mode = #tpu.pipeline_mode<synchronous>, transform_indices = @transform_5, window_bounds = array<i64: 1, 32>}, {pipeline_mode = #tpu.pipeline_mode<synchronous>, transform_indices = @transform_6, window_bounds = array<i64: 8, 128>}, {pipeline_mode = #tpu.pipeline_mode<synchronous>, transform_indices = @transform_7, window_bounds = array<i64: 8, 32>}]} {
    %c0 = arith.constant 0 : index
    %c0_0 = arith.constant 0 : index
    %0 = vector.load %arg3[%c0, %c0_0] : memref<32x256xf32, #tpu.memory_space<vmem>>, vector<32x256xf32>
    %c0_1 = arith.constant 0 : index
    %c0_2 = arith.constant 0 : index
    %1 = vector.load %arg5[%c0_1, %c0_2] : memref<1x256xf32, #tpu.memory_space<vmem>>, vector<1x256xf32>
    %2 = tpu.iota {dimensions = array<i32: 1>} : vector<2x256xi32>
    %c64_i32 = arith.constant 64 : i32
    %c0_i32 = arith.constant 0 : i32
    %3 = arith.cmpi eq, %c64_i32, %c0_i32 : i32
    %c1_i32 = arith.constant 1 : i32
    %4 = arith.select %3, %c1_i32, %c64_i32 : i32
    %5 = vector.broadcast %4 : i32 to vector<2x256xi32>
    %6 = arith.remsi %2, %5 : vector<2x256xi32>
    %c0_i32_3 = arith.constant 0 : i32
    %7 = vector.broadcast %c0_i32_3 : i32 to vector<2x256xi32>
    %8 = arith.cmpi ne, %6, %7 : vector<2x256xi32>
    %c0_i32_4 = arith.constant 0 : i32
    %9 = vector.broadcast %c0_i32_4 : i32 to vector<2x256xi32>
    %10 = arith.cmpi slt, %6, %9 : vector<2x256xi32>
    %c0_i32_5 = arith.constant 0 : i32
    %11 = arith.cmpi slt, %4, %c0_i32_5 : i32
    %12 = vector.broadcast %11 : i1 to vector<2x256xi1>
    %13 = vector.broadcast %12 : vector<2x256xi1> to vector<2x256xi1>
    %14 = arith.xori %10, %13 : vector<2x256xi1>
    %15 = arith.andi %14, %8 : vector<2x256xi1>
    %16 = vector.broadcast %4 : i32 to vector<2x256xi32>
    %17 = arith.addi %6, %16 : vector<2x256xi32>
    %18 = arith.select %15, %17, %6 : vector<2x256xi1>, vector<2x256xi32>
    %c32_i32 = arith.constant 32 : i32
    %19 = vector.broadcast %c32_i32 : i32 to vector<2x256xi32>
    %20 = arith.cmpi slt, %18, %19 : vector<2x256xi32>
    %c0_6 = arith.constant 0 : index
    %21 = memref.load %arg1[%c0_6] : memref<16xi32, #tpu.memory_space<smem>>
    %22 = arith.index_cast %21 : i32 to index
    %c0_7 = arith.constant 0 : index
    %c0_8 = arith.constant 0 : index
    %23 = vector.load %arg2[%22, %c0_7, %c0_8] : memref<50x1x32xf32, #tpu.memory_space<vmem>>, vector<1x1x32xf32>
    %24 = vector.shape_cast %23 : vector<1x1x32xf32> to vector<1x32xf32>
    %c8 = arith.constant 8 : index
    %25 = memref.load %arg1[%c8] : memref<16xi32, #tpu.memory_space<smem>>
    %26 = arith.index_cast %25 : i32 to index
    %c0_9 = arith.constant 0 : index
    %c0_10 = arith.constant 0 : index
    %27 = vector.load %arg2[%26, %c0_9, %c0_10] : memref<50x1x32xf32, #tpu.memory_space<vmem>>, vector<1x1x32xf32>
    %28 = vector.shape_cast %27 : vector<1x1x32xf32> to vector<1x32xf32>
    %29 = tpu.concatenate %24, %28 in 0 : vector<1x32xf32>, vector<1x32xf32> -> vector<2x32xf32>
    %cst = arith.constant dense<0.000000e+00> : vector<2x256xf32>
    %30 = tpu.matmul %29, %0, %cst {dimension_numbers = #tpu.dot_dimension_numbers<[1], [0], [0], [1], [0, 0, 1, 1], [], []>, precision = #tpu.contract_precision<fp32>} : vector<2x32xf32>, vector<32x256xf32>, vector<2x256xf32> -> vector<2x256xf32>
    %31 = vector.broadcast %1 : vector<1x256xf32> to vector<2x256xf32>
    %32 = arith.addf %30, %31 : vector<2x256xf32>
    %c7 = arith.constant 7 : index
    %33 = memref.load %arg1[%c7] : memref<16xi32, #tpu.memory_space<smem>>
    %34 = arith.index_cast %33 : i32 to index
    %c0_11 = arith.constant 0 : index
    %c0_12 = arith.constant 0 : index
    %35 = vector.load %arg2[%34, %c0_11, %c0_12] : memref<50x1x32xf32, #tpu.memory_space<vmem>>, vector<1x1x32xf32>
    %36 = vector.shape_cast %35 : vector<1x1x32xf32> to vector<1x32xf32>
    %c15 = arith.constant 15 : index
    %37 = memref.load %arg1[%c15] : memref<16xi32, #tpu.memory_space<smem>>
    %38 = arith.index_cast %37 : i32 to index
    %c0_13 = arith.constant 0 : index
    %c0_14 = arith.constant 0 : index
    %39 = vector.load %arg2[%38, %c0_13, %c0_14] : memref<50x1x32xf32, #tpu.memory_space<vmem>>, vector<1x1x32xf32>
    %40 = vector.shape_cast %39 : vector<1x1x32xf32> to vector<1x32xf32>
    %41 = tpu.concatenate %36, %40 in 0 : vector<1x32xf32>, vector<1x32xf32> -> vector<2x32xf32>
    %cst_15 = arith.constant dense<0.000000e+00> : vector<2x256xf32>
    %42 = tpu.matmul %41, %0, %cst_15 {dimension_numbers = #tpu.dot_dimension_numbers<[1], [0], [0], [1], [0, 0, 1, 1], [], []>, precision = #tpu.contract_precision<fp32>} : vector<2x32xf32>, vector<32x256xf32>, vector<2x256xf32> -> vector<2x256xf32>
    %43 = vector.broadcast %1 : vector<1x256xf32> to vector<2x256xf32>
    %44 = arith.addf %42, %43 : vector<2x256xf32>
    %45 = arith.select %20, %32, %44 : vector<2x256xi1>, vector<2x256xf32>
    %c0_16 = arith.constant 0 : index
    %c0_17 = arith.constant 0 : index
    %c0_18 = arith.constant 0 : index
    %46 = vector.load %arg10[%c0_16, %c0_17, %c0_18] : memref<8x2x256xf32, #tpu.memory_space<vmem>>, vector<1x2x256xf32>
    %47 = vector.shape_cast %46 : vector<1x2x256xf32> to vector<2x256xf32>
    %48 = vector.shape_cast %45 : vector<2x256xf32> to vector<1x2x256xf32>
    tpu.vector_store %arg10[%c0_16, %c0_17, %c0_18], %48 {strides = array<i32>} : memref<8x2x256xf32, #tpu.memory_space<vmem>>, vector<1x2x256xf32>,
    %49 = arith.select %20, %44, %32 : vector<2x256xi1>, vector<2x256xf32>
    %c7_19 = arith.constant 7 : index
    %c0_20 = arith.constant 0 : index
    %c0_21 = arith.constant 0 : index
    %50 = vector.load %arg10[%c7_19, %c0_20, %c0_21] : memref<8x2x256xf32, #tpu.memory_space<vmem>>, vector<1x2x256xf32>
    %51 = vector.shape_cast %50 : vector<1x2x256xf32> to vector<2x256xf32>
    %52 = vector.shape_cast %49 : vector<2x256xf32> to vector<1x2x256xf32>
    tpu.vector_store %arg10[%c7_19, %c0_20, %c0_21], %52 {strides = array<i32>} : memref<8x2x256xf32, #tpu.memory_space<vmem>>, vector<1x2x256xf32>,
    %c1 = arith.constant 1 : index
    %53 = memref.load %arg1[%c1] : memref<16xi32, #tpu.memory_space<smem>>
    %54 = arith.index_cast %53 : i32 to index
    %c0_22 = arith.constant 0 : index
    %c0_23 = arith.constant 0 : index
    %55 = vector.load %arg2[%54, %c0_22, %c0_23] : memref<50x1x32xf32, #tpu.memory_space<vmem>>, vector<1x1x32xf32>
    %56 = vector.shape_cast %55 : vector<1x1x32xf32> to vector<1x32xf32>
    %c9 = arith.constant 9 : index
    %57 = memref.load %arg1[%c9] : memref<16xi32, #tpu.memory_space<smem>>
    %58 = arith.index_cast %57 : i32 to index
    %c0_24 = arith.constant 0 : index
    %c0_25 = arith.constant 0 : index
    %59 = vector.load %arg2[%58, %c0_24, %c0_25] : memref<50x1x32xf32, #tpu.memory_space<vmem>>, vector<1x1x32xf32>
    %60 = vector.shape_cast %59 : vector<1x1x32xf32> to vector<1x32xf32>
    %61 = tpu.concatenate %56, %60 in 0 : vector<1x32xf32>, vector<1x32xf32> -> vector<2x32xf32>
    %cst_26 = arith.constant dense<0.000000e+00> : vector<2x256xf32>
    %62 = tpu.matmul %61, %0, %cst_26 {dimension_numbers = #tpu.dot_dimension_numbers<[1], [0], [0], [1], [0, 0, 1, 1], [], []>, precision = #tpu.contract_precision<fp32>} : vector<2x32xf32>, vector<32x256xf32>, vector<2x256xf32> -> vector<2x256xf32>
    %63 = vector.broadcast %1 : vector<1x256xf32> to vector<2x256xf32>
    %64 = arith.addf %62, %63 : vector<2x256xf32>
    %c6 = arith.constant 6 : index
    %65 = memref.load %arg1[%c6] : memref<16xi32, #tpu.memory_space<smem>>
    %66 = arith.index_cast %65 : i32 to index
    %c0_27 = arith.constant 0 : index
    %c0_28 = arith.constant 0 : index
    %67 = vector.load %arg2[%66, %c0_27, %c0_28] : memref<50x1x32xf32, #tpu.memory_space<vmem>>, vector<1x1x32xf32>
    %68 = vector.shape_cast %67 : vector<1x1x32xf32> to vector<1x32xf32>
    %c14 = arith.constant 14 : index
    %69 = memref.load %arg1[%c14] : memref<16xi32, #tpu.memory_space<smem>>
    %70 = arith.index_cast %69 : i32 to index
    %c0_29 = arith.constant 0 : index
    %c0_30 = arith.constant 0 : index
    %71 = vector.load %arg2[%70, %c0_29, %c0_30] : memref<50x1x32xf32, #tpu.memory_space<vmem>>, vector<1x1x32xf32>
    %72 = vector.shape_cast %71 : vector<1x1x32xf32> to vector<1x32xf32>
    %73 = tpu.concatenate %68, %72 in 0 : vector<1x32xf32>, vector<1x32xf32> -> vector<2x32xf32>
    %cst_31 = arith.constant dense<0.000000e+00> : vector<2x256xf32>
    %74 = tpu.matmul %73, %0, %cst_31 {dimension_numbers = #tpu.dot_dimension_numbers<[1], [0], [0], [1], [0, 0, 1, 1], [], []>, precision = #tpu.contract_precision<fp32>} : vector<2x32xf32>, vector<32x256xf32>, vector<2x256xf32> -> vector<2x256xf32>
    %75 = vector.broadcast %1 : vector<1x256xf32> to vector<2x256xf32>
    %76 = arith.addf %74, %75 : vector<2x256xf32>
    %77 = arith.select %20, %64, %76 : vector<2x256xi1>, vector<2x256xf32>
    %c1_32 = arith.constant 1 : index
    %c0_33 = arith.constant 0 : index
    %c0_34 = arith.constant 0 : index
    %78 = vector.load %arg10[%c1_32, %c0_33, %c0_34] : memref<8x2x256xf32, #tpu.memory_space<vmem>>, vector<1x2x256xf32>
    %79 = vector.shape_cast %78 : vector<1x2x256xf32> to vector<2x256xf32>
    %80 = vector.shape_cast %77 : vector<2x256xf32> to vector<1x2x256xf32>
    tpu.vector_store %arg10[%c1_32, %c0_33, %c0_34], %80 {strides = array<i32>} : memref<8x2x256xf32, #tpu.memory_space<vmem>>, vector<1x2x256xf32>,
    %81 = arith.select %20, %76, %64 : vector<2x256xi1>, vector<2x256xf32>
    %c6_35 = arith.constant 6 : index
    %c0_36 = arith.constant 0 : index
    %c0_37 = arith.constant 0 : index
    %82 = vector.load %arg10[%c6_35, %c0_36, %c0_37] : memref<8x2x256xf32, #tpu.memory_space<vmem>>, vector<1x2x256xf32>
    %83 = vector.shape_cast %82 : vector<1x2x256xf32> to vector<2x256xf32>
    %84 = vector.shape_cast %81 : vector<2x256xf32> to vector<1x2x256xf32>
    tpu.vector_store %arg10[%c6_35, %c0_36, %c0_37], %84 {strides = array<i32>} : memref<8x2x256xf32, #tpu.memory_space<vmem>>, vector<1x2x256xf32>,
    %c2 = arith.constant 2 : index
    %85 = memref.load %arg1[%c2] : memref<16xi32, #tpu.memory_space<smem>>
    %86 = arith.index_cast %85 : i32 to index
    %c0_38 = arith.constant 0 : index
    %c0_39 = arith.constant 0 : index
    %87 = vector.load %arg2[%86, %c0_38, %c0_39] : memref<50x1x32xf32, #tpu.memory_space<vmem>>, vector<1x1x32xf32>
    %88 = vector.shape_cast %87 : vector<1x1x32xf32> to vector<1x32xf32>
    %c10 = arith.constant 10 : index
    %89 = memref.load %arg1[%c10] : memref<16xi32, #tpu.memory_space<smem>>
    %90 = arith.index_cast %89 : i32 to index
    %c0_40 = arith.constant 0 : index
    %c0_41 = arith.constant 0 : index
    %91 = vector.load %arg2[%90, %c0_40, %c0_41] : memref<50x1x32xf32, #tpu.memory_space<vmem>>, vector<1x1x32xf32>
    %92 = vector.shape_cast %91 : vector<1x1x32xf32> to vector<1x32xf32>
    %93 = tpu.concatenate %88, %92 in 0 : vector<1x32xf32>, vector<1x32xf32> -> vector<2x32xf32>
    %cst_42 = arith.constant dense<0.000000e+00> : vector<2x256xf32>
    %94 = tpu.matmul %93, %0, %cst_42 {dimension_numbers = #tpu.dot_dimension_numbers<[1], [0], [0], [1], [0, 0, 1, 1], [], []>, precision = #tpu.contract_precision<fp32>} : vector<2x32xf32>, vector<32x256xf32>, vector<2x256xf32> -> vector<2x256xf32>
    %95 = vector.broadcast %1 : vector<1x256xf32> to vector<2x256xf32>
    %96 = arith.addf %94, %95 : vector<2x256xf32>
    %c5 = arith.constant 5 : index
    %97 = memref.load %arg1[%c5] : memref<16xi32, #tpu.memory_space<smem>>
    %98 = arith.index_cast %97 : i32 to index
    %c0_43 = arith.constant 0 : index
    %c0_44 = arith.constant 0 : index
    %99 = vector.load %arg2[%98, %c0_43, %c0_44] : memref<50x1x32xf32, #tpu.memory_space<vmem>>, vector<1x1x32xf32>
    %100 = vector.shape_cast %99 : vector<1x1x32xf32> to vector<1x32xf32>
    %c13 = arith.constant 13 : index
    %101 = memref.load %arg1[%c13] : memref<16xi32, #tpu.memory_space<smem>>
    %102 = arith.index_cast %101 : i32 to index
    %c0_45 = arith.constant 0 : index
    %c0_46 = arith.constant 0 : index
    %103 = vector.load %arg2[%102, %c0_45, %c0_46] : memref<50x1x32xf32, #tpu.memory_space<vmem>>, vector<1x1x32xf32>
    %104 = vector.shape_cast %103 : vector<1x1x32xf32> to vector<1x32xf32>
    %105 = tpu.concatenate %100, %104 in 0 : vector<1x32xf32>, vector<1x32xf32> -> vector<2x32xf32>
    %cst_47 = arith.constant dense<0.000000e+00> : vector<2x256xf32>
    %106 = tpu.matmul %105, %0, %cst_47 {dimension_numbers = #tpu.dot_dimension_numbers<[1], [0], [0], [1], [0, 0, 1, 1], [], []>, precision = #tpu.contract_precision<fp32>} : vector<2x32xf32>, vector<32x256xf32>, vector<2x256xf32> -> vector<2x256xf32>
    %107 = vector.broadcast %1 : vector<1x256xf32> to vector<2x256xf32>
    %108 = arith.addf %106, %107 : vector<2x256xf32>
    %109 = arith.select %20, %96, %108 : vector<2x256xi1>, vector<2x256xf32>
    %c2_48 = arith.constant 2 : index
    %c0_49 = arith.constant 0 : index
    %c0_50 = arith.constant 0 : index
    %110 = vector.load %arg10[%c2_48, %c0_49, %c0_50] : memref<8x2x256xf32, #tpu.memory_space<vmem>>, vector<1x2x256xf32>
    %111 = vector.shape_cast %110 : vector<1x2x256xf32> to vector<2x256xf32>
    %112 = vector.shape_cast %109 : vector<2x256xf32> to vector<1x2x256xf32>
    tpu.vector_store %arg10[%c2_48, %c0_49, %c0_50], %112 {strides = array<i32>} : memref<8x2x256xf32, #tpu.memory_space<vmem>>, vector<1x2x256xf32>,
    %113 = arith.select %20, %108, %96 : vector<2x256xi1>, vector<2x256xf32>
    %c5_51 = arith.constant 5 : index
    %c0_52 = arith.constant 0 : index
    %c0_53 = arith.constant 0 : index
    %114 = vector.load %arg10[%c5_51, %c0_52, %c0_53] : memref<8x2x256xf32, #tpu.memory_space<vmem>>, vector<1x2x256xf32>
    %115 = vector.shape_cast %114 : vector<1x2x256xf32> to vector<2x256xf32>
    %116 = vector.shape_cast %113 : vector<2x256xf32> to vector<1x2x256xf32>
    tpu.vector_store %arg10[%c5_51, %c0_52, %c0_53], %116 {strides = array<i32>} : memref<8x2x256xf32, #tpu.memory_space<vmem>>, vector<1x2x256xf32>,
    %c3 = arith.constant 3 : index
    %117 = memref.load %arg1[%c3] : memref<16xi32, #tpu.memory_space<smem>>
    %118 = arith.index_cast %117 : i32 to index
    %c0_54 = arith.constant 0 : index
    %c0_55 = arith.constant 0 : index
    %119 = vector.load %arg2[%118, %c0_54, %c0_55] : memref<50x1x32xf32, #tpu.memory_space<vmem>>, vector<1x1x32xf32>
    %120 = vector.shape_cast %119 : vector<1x1x32xf32> to vector<1x32xf32>
    %c11 = arith.constant 11 : index
    %121 = memref.load %arg1[%c11] : memref<16xi32, #tpu.memory_space<smem>>
    %122 = arith.index_cast %121 : i32 to index
    %c0_56 = arith.constant 0 : index
    %c0_57 = arith.constant 0 : index
    %123 = vector.load %arg2[%122, %c0_56, %c0_57] : memref<50x1x32xf32, #tpu.memory_space<vmem>>, vector<1x1x32xf32>
    %124 = vector.shape_cast %123 : vector<1x1x32xf32> to vector<1x32xf32>
    %125 = tpu.concatenate %120, %124 in 0 : vector<1x32xf32>, vector<1x32xf32> -> vector<2x32xf32>
    %cst_58 = arith.constant dense<0.000000e+00> : vector<2x256xf32>
    %126 = tpu.matmul %125, %0, %cst_58 {dimension_numbers = #tpu.dot_dimension_numbers<[1], [0], [0], [1], [0, 0, 1, 1], [], []>, precision = #tpu.contract_precision<fp32>} : vector<2x32xf32>, vector<32x256xf32>, vector<2x256xf32> -> vector<2x256xf32>
    %127 = vector.broadcast %1 : vector<1x256xf32> to vector<2x256xf32>
    %128 = arith.addf %126, %127 : vector<2x256xf32>
    %c4 = arith.constant 4 : index
    %129 = memref.load %arg1[%c4] : memref<16xi32, #tpu.memory_space<smem>>
    %130 = arith.index_cast %129 : i32 to index
    %c0_59 = arith.constant 0 : index
    %c0_60 = arith.constant 0 : index
    %131 = vector.load %arg2[%130, %c0_59, %c0_60] : memref<50x1x32xf32, #tpu.memory_space<vmem>>, vector<1x1x32xf32>
    %132 = vector.shape_cast %131 : vector<1x1x32xf32> to vector<1x32xf32>
    %c12 = arith.constant 12 : index
    %133 = memref.load %arg1[%c12] : memref<16xi32, #tpu.memory_space<smem>>
    %134 = arith.index_cast %133 : i32 to index
    %c0_61 = arith.constant 0 : index
    %c0_62 = arith.constant 0 : index
    %135 = vector.load %arg2[%134, %c0_61, %c0_62] : memref<50x1x32xf32, #tpu.memory_space<vmem>>, vector<1x1x32xf32>
    %136 = vector.shape_cast %135 : vector<1x1x32xf32> to vector<1x32xf32>
    %137 = tpu.concatenate %132, %136 in 0 : vector<1x32xf32>, vector<1x32xf32> -> vector<2x32xf32>
    %cst_63 = arith.constant dense<0.000000e+00> : vector<2x256xf32>
    %138 = tpu.matmul %137, %0, %cst_63 {dimension_numbers = #tpu.dot_dimension_numbers<[1], [0], [0], [1], [0, 0, 1, 1], [], []>, precision = #tpu.contract_precision<fp32>} : vector<2x32xf32>, vector<32x256xf32>, vector<2x256xf32> -> vector<2x256xf32>
    %139 = vector.broadcast %1 : vector<1x256xf32> to vector<2x256xf32>
    %140 = arith.addf %138, %139 : vector<2x256xf32>
    %141 = arith.select %20, %128, %140 : vector<2x256xi1>, vector<2x256xf32>
    %c3_64 = arith.constant 3 : index
    %c0_65 = arith.constant 0 : index
    %c0_66 = arith.constant 0 : index
    %142 = vector.load %arg10[%c3_64, %c0_65, %c0_66] : memref<8x2x256xf32, #tpu.memory_space<vmem>>, vector<1x2x256xf32>
    %143 = vector.shape_cast %142 : vector<1x2x256xf32> to vector<2x256xf32>
    %144 = vector.shape_cast %141 : vector<2x256xf32> to vector<1x2x256xf32>
    tpu.vector_store %arg10[%c3_64, %c0_65, %c0_66], %144 {strides = array<i32>} : memref<8x2x256xf32, #tpu.memory_space<vmem>>, vector<1x2x256xf32>,
    %145 = arith.select %20, %140, %128 : vector<2x256xi1>, vector<2x256xf32>
    %c4_67 = arith.constant 4 : index
    %c0_68 = arith.constant 0 : index
    %c0_69 = arith.constant 0 : index
    %146 = vector.load %arg10[%c4_67, %c0_68, %c0_69] : memref<8x2x256xf32, #tpu.memory_space<vmem>>, vector<1x2x256xf32>
    %147 = vector.shape_cast %146 : vector<1x2x256xf32> to vector<2x256xf32>
    %148 = vector.shape_cast %145 : vector<2x256xf32> to vector<1x2x256xf32>
    tpu.vector_store %arg10[%c4_67, %c0_68, %c0_69], %148 {strides = array<i32>} : memref<8x2x256xf32, #tpu.memory_space<vmem>>, vector<1x2x256xf32>,
    %c0_70 = arith.constant 0 : index
    %c0_71 = arith.constant 0 : index
    %149 = vector.load %arg4[%c0_70, %c0_71] : memref<64x256xf32, #tpu.memory_space<vmem>>, vector<64x256xf32>
    %150 = arith.truncf %149 : vector<64x256xf32> to vector<64x256xbf16>
    %cst_72 = arith.constant 0.000000e+00 : f32
    %151 = vector.broadcast %cst_72 : f32 to vector<2x64xf32>
    %cst_73 = arith.constant 0.000000e+00 : f32
    %152 = vector.broadcast %cst_73 : f32 to vector<2x64xf32>
    %c0_74 = arith.constant 0 : index
    %c0_75 = arith.constant 0 : index
    %c0_76 = arith.constant 0 : index
    %153 = vector.load %arg10[%c0_74, %c0_75, %c0_76] : memref<8x2x256xf32, #tpu.memory_space<vmem>>, vector<1x2x256xf32>
    %154 = vector.shape_cast %153 : vector<1x2x256xf32> to vector<2x256xf32>
    %155 = arith.truncf %151 : vector<2x64xf32> to vector<2x64xbf16>
    %cst_77 = arith.constant dense<0.000000e+00> : vector<2x256xf32>
    %156 = tpu.matmul %155, %150, %cst_77 {dimension_numbers = #tpu.dot_dimension_numbers<[1], [0], [0], [1], [0, 0, 1, 1], [], []>} : vector<2x64xbf16>, vector<64x256xbf16>, vector<2x256xf32> -> vector<2x256xf32>
    %157 = arith.addf %154, %156 : vector<2x256xf32>
    %158 = vector.extract_strided_slice %157 {offsets = [0, 0], sizes = [2, 64], strides = [1, 1]} : vector<2x256xf32> to vector<2x64xf32>
    %159 = arith.negf %158 : vector<2x64xf32>
    %160 = math.exp %159 : vector<2x64xf32>
    %cst_78 = arith.constant 1.000000e+00 : f32
    %161 = vector.broadcast %cst_78 : f32 to vector<2x64xf32>
    %162 = arith.addf %161, %160 : vector<2x64xf32>
    %163 = arith.divf %161, %162 : vector<2x64xf32>
    %164 = vector.extract_strided_slice %157 {offsets = [0, 64], sizes = [2, 64], strides = [1, 1]} : vector<2x256xf32> to vector<2x64xf32>
    %165 = arith.negf %164 : vector<2x64xf32>
    %166 = math.exp %165 : vector<2x64xf32>
    %cst_79 = arith.constant 1.000000e+00 : f32
    %167 = vector.broadcast %cst_79 : f32 to vector<2x64xf32>
    %168 = arith.addf %167, %166 : vector<2x64xf32>
    %169 = arith.divf %167, %168 : vector<2x64xf32>
    %170 = vector.extract_strided_slice %157 {offsets = [0, 128], sizes = [2, 64], strides = [1, 1]} : vector<2x256xf32> to vector<2x64xf32>
    %171 = math.tanh %170 : vector<2x64xf32>
    %172 = vector.extract_strided_slice %157 {offsets = [0, 192], sizes = [2, 64], strides = [1, 1]} : vector<2x256xf32> to vector<2x64xf32>
    %173 = arith.negf %172 : vector<2x64xf32>
    %174 = math.exp %173 : vector<2x64xf32>
    %cst_80 = arith.constant 1.000000e+00 : f32
    %175 = vector.broadcast %cst_80 : f32 to vector<2x64xf32>
    %176 = arith.addf %175, %174 : vector<2x64xf32>
    %177 = arith.divf %175, %176 : vector<2x64xf32>
    %178 = arith.mulf %169, %152 : vector<2x64xf32>
    %179 = arith.mulf %163, %171 : vector<2x64xf32>
    %180 = arith.addf %178, %179 : vector<2x64xf32>
    %181 = math.tanh %180 : vector<2x64xf32>
    %182 = arith.mulf %177, %181 : vector<2x64xf32>
    %c0_81 = arith.constant 0 : index
    %c0_82 = arith.constant 0 : index
    %c0_83 = arith.constant 0 : index
    %183 = vector.load %arg11[%c0_81, %c0_82, %c0_83] : memref<8x2x64xf32, #tpu.memory_space<vmem>>, vector<1x2x64xf32>
    %184 = vector.shape_cast %183 : vector<1x2x64xf32> to vector<2x64xf32>
    %185 = vector.shape_cast %182 : vector<2x64xf32> to vector<1x2x64xf32>
    tpu.vector_store %arg11[%c0_81, %c0_82, %c0_83], %185 {strides = array<i32>} : memref<8x2x64xf32, #tpu.memory_space<vmem>>, vector<1x2x64xf32>,
    %c1_84 = arith.constant 1 : index
    %c0_85 = arith.constant 0 : index
    %c0_86 = arith.constant 0 : index
    %186 = vector.load %arg10[%c1_84, %c0_85, %c0_86] : memref<8x2x256xf32, #tpu.memory_space<vmem>>, vector<1x2x256xf32>
    %187 = vector.shape_cast %186 : vector<1x2x256xf32> to vector<2x256xf32>
    %188 = arith.truncf %182 : vector<2x64xf32> to vector<2x64xbf16>
    %cst_87 = arith.constant dense<0.000000e+00> : vector<2x256xf32>
    %189 = tpu.matmul %188, %150, %cst_87 {dimension_numbers = #tpu.dot_dimension_numbers<[1], [0], [0], [1], [0, 0, 1, 1], [], []>} : vector<2x64xbf16>, vector<64x256xbf16>, vector<2x256xf32> -> vector<2x256xf32>
    %190 = arith.addf %187, %189 : vector<2x256xf32>
    %191 = vector.extract_strided_slice %190 {offsets = [0, 0], sizes = [2, 64], strides = [1, 1]} : vector<2x256xf32> to vector<2x64xf32>
    %192 = arith.negf %191 : vector<2x64xf32>
    %193 = math.exp %192 : vector<2x64xf32>
    %cst_88 = arith.constant 1.000000e+00 : f32
    %194 = vector.broadcast %cst_88 : f32 to vector<2x64xf32>
    %195 = arith.addf %194, %193 : vector<2x64xf32>
    %196 = arith.divf %194, %195 : vector<2x64xf32>
    %197 = vector.extract_strided_slice %190 {offsets = [0, 64], sizes = [2, 64], strides = [1, 1]} : vector<2x256xf32> to vector<2x64xf32>
    %198 = arith.negf %197 : vector<2x64xf32>
    %199 = math.exp %198 : vector<2x64xf32>
    %cst_89 = arith.constant 1.000000e+00 : f32
    %200 = vector.broadcast %cst_89 : f32 to vector<2x64xf32>
    %201 = arith.addf %200, %199 : vector<2x64xf32>
    %202 = arith.divf %200, %201 : vector<2x64xf32>
    %203 = vector.extract_strided_slice %190 {offsets = [0, 128], sizes = [2, 64], strides = [1, 1]} : vector<2x256xf32> to vector<2x64xf32>
    %204 = math.tanh %203 : vector<2x64xf32>
    %205 = vector.extract_strided_slice %190 {offsets = [0, 192], sizes = [2, 64], strides = [1, 1]} : vector<2x256xf32> to vector<2x64xf32>
    %206 = arith.negf %205 : vector<2x64xf32>
    %207 = math.exp %206 : vector<2x64xf32>
    %cst_90 = arith.constant 1.000000e+00 : f32
    %208 = vector.broadcast %cst_90 : f32 to vector<2x64xf32>
    %209 = arith.addf %208, %207 : vector<2x64xf32>
    %210 = arith.divf %208, %209 : vector<2x64xf32>
    %211 = arith.mulf %202, %180 : vector<2x64xf32>
    %212 = arith.mulf %196, %204 : vector<2x64xf32>
    %213 = arith.addf %211, %212 : vector<2x64xf32>
    %214 = math.tanh %213 : vector<2x64xf32>
    %215 = arith.mulf %210, %214 : vector<2x64xf32>
    %c1_91 = arith.constant 1 : index
    %c0_92 = arith.constant 0 : index
    %c0_93 = arith.constant 0 : index
    %216 = vector.load %arg11[%c1_91, %c0_92, %c0_93] : memref<8x2x64xf32, #tpu.memory_space<vmem>>, vector<1x2x64xf32>
    %217 = vector.shape_cast %216 : vector<1x2x64xf32> to vector<2x64xf32>
    %218 = vector.shape_cast %215 : vector<2x64xf32> to vector<1x2x64xf32>
    tpu.vector_store %arg11[%c1_91, %c0_92, %c0_93], %218 {strides = array<i32>} : memref<8x2x64xf32, #tpu.memory_space<vmem>>, vector<1x2x64xf32>,
    %c2_94 = arith.constant 2 : index
    %c0_95 = arith.constant 0 : index
    %c0_96 = arith.constant 0 : index
    %219 = vector.load %arg10[%c2_94, %c0_95, %c0_96] : memref<8x2x256xf32, #tpu.memory_space<vmem>>, vector<1x2x256xf32>
    %220 = vector.shape_cast %219 : vector<1x2x256xf32> to vector<2x256xf32>
    %221 = arith.truncf %215 : vector<2x64xf32> to vector<2x64xbf16>
    %cst_97 = arith.constant dense<0.000000e+00> : vector<2x256xf32>
    %222 = tpu.matmul %221, %150, %cst_97 {dimension_numbers = #tpu.dot_dimension_numbers<[1], [0], [0], [1], [0, 0, 1, 1], [], []>} : vector<2x64xbf16>, vector<64x256xbf16>, vector<2x256xf32> -> vector<2x256xf32>
    %223 = arith.addf %220, %222 : vector<2x256xf32>
    %224 = vector.extract_strided_slice %223 {offsets = [0, 0], sizes = [2, 64], strides = [1, 1]} : vector<2x256xf32> to vector<2x64xf32>
    %225 = arith.negf %224 : vector<2x64xf32>
    %226 = math.exp %225 : vector<2x64xf32>
    %cst_98 = arith.constant 1.000000e+00 : f32
    %227 = vector.broadcast %cst_98 : f32 to vector<2x64xf32>
    %228 = arith.addf %227, %226 : vector<2x64xf32>
    %229 = arith.divf %227, %228 : vector<2x64xf32>
    %230 = vector.extract_strided_slice %223 {offsets = [0, 64], sizes = [2, 64], strides = [1, 1]} : vector<2x256xf32> to vector<2x64xf32>
    %231 = arith.negf %230 : vector<2x64xf32>
    %232 = math.exp %231 : vector<2x64xf32>
    %cst_99 = arith.constant 1.000000e+00 : f32
    %233 = vector.broadcast %cst_99 : f32 to vector<2x64xf32>
    %234 = arith.addf %233, %232 : vector<2x64xf32>
    %235 = arith.divf %233, %234 : vector<2x64xf32>
    %236 = vector.extract_strided_slice %223 {offsets = [0, 128], sizes = [2, 64], strides = [1, 1]} : vector<2x256xf32> to vector<2x64xf32>
    %237 = math.tanh %236 : vector<2x64xf32>
    %238 = vector.extract_strided_slice %223 {offsets = [0, 192], sizes = [2, 64], strides = [1, 1]} : vector<2x256xf32> to vector<2x64xf32>
    %239 = arith.negf %238 : vector<2x64xf32>
    %240 = math.exp %239 : vector<2x64xf32>
    %cst_100 = arith.constant 1.000000e+00 : f32
    %241 = vector.broadcast %cst_100 : f32 to vector<2x64xf32>
    %242 = arith.addf %241, %240 : vector<2x64xf32>
    %243 = arith.divf %241, %242 : vector<2x64xf32>
    %244 = arith.mulf %235, %213 : vector<2x64xf32>
    %245 = arith.mulf %229, %237 : vector<2x64xf32>
    %246 = arith.addf %244, %245 : vector<2x64xf32>
    %247 = math.tanh %246 : vector<2x64xf32>
    %248 = arith.mulf %243, %247 : vector<2x64xf32>
    %c2_101 = arith.constant 2 : index
    %c0_102 = arith.constant 0 : index
    %c0_103 = arith.constant 0 : index
    %249 = vector.load %arg11[%c2_101, %c0_102, %c0_103] : memref<8x2x64xf32, #tpu.memory_space<vmem>>, vector<1x2x64xf32>
    %250 = vector.shape_cast %249 : vector<1x2x64xf32> to vector<2x64xf32>
    %251 = vector.shape_cast %248 : vector<2x64xf32> to vector<1x2x64xf32>
    tpu.vector_store %arg11[%c2_101, %c0_102, %c0_103], %251 {strides = array<i32>} : memref<8x2x64xf32, #tpu.memory_space<vmem>>, vector<1x2x64xf32>,
    %c3_104 = arith.constant 3 : index
    %c0_105 = arith.constant 0 : index
    %c0_106 = arith.constant 0 : index
    %252 = vector.load %arg10[%c3_104, %c0_105, %c0_106] : memref<8x2x256xf32, #tpu.memory_space<vmem>>, vector<1x2x256xf32>
    %253 = vector.shape_cast %252 : vector<1x2x256xf32> to vector<2x256xf32>
    %254 = arith.truncf %248 : vector<2x64xf32> to vector<2x64xbf16>
    %cst_107 = arith.constant dense<0.000000e+00> : vector<2x256xf32>
    %255 = tpu.matmul %254, %150, %cst_107 {dimension_numbers = #tpu.dot_dimension_numbers<[1], [0], [0], [1], [0, 0, 1, 1], [], []>} : vector<2x64xbf16>, vector<64x256xbf16>, vector<2x256xf32> -> vector<2x256xf32>
    %256 = arith.addf %253, %255 : vector<2x256xf32>
    %257 = vector.extract_strided_slice %256 {offsets = [0, 0], sizes = [2, 64], strides = [1, 1]} : vector<2x256xf32> to vector<2x64xf32>
    %258 = arith.negf %257 : vector<2x64xf32>
    %259 = math.exp %258 : vector<2x64xf32>
    %cst_108 = arith.constant 1.000000e+00 : f32
    %260 = vector.broadcast %cst_108 : f32 to vector<2x64xf32>
    %261 = arith.addf %260, %259 : vector<2x64xf32>
    %262 = arith.divf %260, %261 : vector<2x64xf32>
    %263 = vector.extract_strided_slice %256 {offsets = [0, 64], sizes = [2, 64], strides = [1, 1]} : vector<2x256xf32> to vector<2x64xf32>
    %264 = arith.negf %263 : vector<2x64xf32>
    %265 = math.exp %264 : vector<2x64xf32>
    %cst_109 = arith.constant 1.000000e+00 : f32
    %266 = vector.broadcast %cst_109 : f32 to vector<2x64xf32>
    %267 = arith.addf %266, %265 : vector<2x64xf32>
    %268 = arith.divf %266, %267 : vector<2x64xf32>
    %269 = vector.extract_strided_slice %256 {offsets = [0, 128], sizes = [2, 64], strides = [1, 1]} : vector<2x256xf32> to vector<2x64xf32>
    %270 = math.tanh %269 : vector<2x64xf32>
    %271 = vector.extract_strided_slice %256 {offsets = [0, 192], sizes = [2, 64], strides = [1, 1]} : vector<2x256xf32> to vector<2x64xf32>
    %272 = arith.negf %271 : vector<2x64xf32>
    %273 = math.exp %272 : vector<2x64xf32>
    %cst_110 = arith.constant 1.000000e+00 : f32
    %274 = vector.broadcast %cst_110 : f32 to vector<2x64xf32>
    %275 = arith.addf %274, %273 : vector<2x64xf32>
    %276 = arith.divf %274, %275 : vector<2x64xf32>
    %277 = arith.mulf %268, %246 : vector<2x64xf32>
    %278 = arith.mulf %262, %270 : vector<2x64xf32>
    %279 = arith.addf %277, %278 : vector<2x64xf32>
    %280 = math.tanh %279 : vector<2x64xf32>
    %281 = arith.mulf %276, %280 : vector<2x64xf32>
    %c3_111 = arith.constant 3 : index
    %c0_112 = arith.constant 0 : index
    %c0_113 = arith.constant 0 : index
    %282 = vector.load %arg11[%c3_111, %c0_112, %c0_113] : memref<8x2x64xf32, #tpu.memory_space<vmem>>, vector<1x2x64xf32>
    %283 = vector.shape_cast %282 : vector<1x2x64xf32> to vector<2x64xf32>
    %284 = vector.shape_cast %281 : vector<2x64xf32> to vector<1x2x64xf32>
    tpu.vector_store %arg11[%c3_111, %c0_112, %c0_113], %284 {strides = array<i32>} : memref<8x2x64xf32, #tpu.memory_space<vmem>>, vector<1x2x64xf32>,
    %c4_114 = arith.constant 4 : index
    %c0_115 = arith.constant 0 : index
    %c0_116 = arith.constant 0 : index
    %285 = vector.load %arg10[%c4_114, %c0_115, %c0_116] : memref<8x2x256xf32, #tpu.memory_space<vmem>>, vector<1x2x256xf32>
    %286 = vector.shape_cast %285 : vector<1x2x256xf32> to vector<2x256xf32>
    %287 = arith.truncf %281 : vector<2x64xf32> to vector<2x64xbf16>
    %cst_117 = arith.constant dense<0.000000e+00> : vector<2x256xf32>
    %288 = tpu.matmul %287, %150, %cst_117 {dimension_numbers = #tpu.dot_dimension_numbers<[1], [0], [0], [1], [0, 0, 1, 1], [], []>} : vector<2x64xbf16>, vector<64x256xbf16>, vector<2x256xf32> -> vector<2x256xf32>
    %289 = arith.addf %286, %288 : vector<2x256xf32>
    %290 = vector.extract_strided_slice %289 {offsets = [0, 0], sizes = [2, 64], strides = [1, 1]} : vector<2x256xf32> to vector<2x64xf32>
    %291 = arith.negf %290 : vector<2x64xf32>
    %292 = math.exp %291 : vector<2x64xf32>
    %cst_118 = arith.constant 1.000000e+00 : f32
    %293 = vector.broadcast %cst_118 : f32 to vector<2x64xf32>
    %294 = arith.addf %293, %292 : vector<2x64xf32>
    %295 = arith.divf %293, %294 : vector<2x64xf32>
    %296 = vector.extract_strided_slice %289 {offsets = [0, 64], sizes = [2, 64], strides = [1, 1]} : vector<2x256xf32> to vector<2x64xf32>
    %297 = arith.negf %296 : vector<2x64xf32>
    %298 = math.exp %297 : vector<2x64xf32>
    %cst_119 = arith.constant 1.000000e+00 : f32
    %299 = vector.broadcast %cst_119 : f32 to vector<2x64xf32>
    %300 = arith.addf %299, %298 : vector<2x64xf32>
    %301 = arith.divf %299, %300 : vector<2x64xf32>
    %302 = vector.extract_strided_slice %289 {offsets = [0, 128], sizes = [2, 64], strides = [1, 1]} : vector<2x256xf32> to vector<2x64xf32>
    %303 = math.tanh %302 : vector<2x64xf32>
    %304 = vector.extract_strided_slice %289 {offsets = [0, 192], sizes = [2, 64], strides = [1, 1]} : vector<2x256xf32> to vector<2x64xf32>
    %305 = arith.negf %304 : vector<2x64xf32>
    %306 = math.exp %305 : vector<2x64xf32>
    %cst_120 = arith.constant 1.000000e+00 : f32
    %307 = vector.broadcast %cst_120 : f32 to vector<2x64xf32>
    %308 = arith.addf %307, %306 : vector<2x64xf32>
    %309 = arith.divf %307, %308 : vector<2x64xf32>
    %310 = arith.mulf %301, %279 : vector<2x64xf32>
    %311 = arith.mulf %295, %303 : vector<2x64xf32>
    %312 = arith.addf %310, %311 : vector<2x64xf32>
    %313 = math.tanh %312 : vector<2x64xf32>
    %314 = arith.mulf %309, %313 : vector<2x64xf32>
    %c4_121 = arith.constant 4 : index
    %c0_122 = arith.constant 0 : index
    %c0_123 = arith.constant 0 : index
    %315 = vector.load %arg11[%c4_121, %c0_122, %c0_123] : memref<8x2x64xf32, #tpu.memory_space<vmem>>, vector<1x2x64xf32>
    %316 = vector.shape_cast %315 : vector<1x2x64xf32> to vector<2x64xf32>
    %317 = vector.shape_cast %314 : vector<2x64xf32> to vector<1x2x64xf32>
    tpu.vector_store %arg11[%c4_121, %c0_122, %c0_123], %317 {strides = array<i32>} : memref<8x2x64xf32, #tpu.memory_space<vmem>>, vector<1x2x64xf32>,
    %c5_124 = arith.constant 5 : index
    %c0_125 = arith.constant 0 : index
    %c0_126 = arith.constant 0 : index
    %318 = vector.load %arg10[%c5_124, %c0_125, %c0_126] : memref<8x2x256xf32, #tpu.memory_space<vmem>>, vector<1x2x256xf32>
    %319 = vector.shape_cast %318 : vector<1x2x256xf32> to vector<2x256xf32>
    %320 = arith.truncf %314 : vector<2x64xf32> to vector<2x64xbf16>
    %cst_127 = arith.constant dense<0.000000e+00> : vector<2x256xf32>
    %321 = tpu.matmul %320, %150, %cst_127 {dimension_numbers = #tpu.dot_dimension_numbers<[1], [0], [0], [1], [0, 0, 1, 1], [], []>} : vector<2x64xbf16>, vector<64x256xbf16>, vector<2x256xf32> -> vector<2x256xf32>
    %322 = arith.addf %319, %321 : vector<2x256xf32>
    %323 = vector.extract_strided_slice %322 {offsets = [0, 0], sizes = [2, 64], strides = [1, 1]} : vector<2x256xf32> to vector<2x64xf32>
    %324 = arith.negf %323 : vector<2x64xf32>
    %325 = math.exp %324 : vector<2x64xf32>
    %cst_128 = arith.constant 1.000000e+00 : f32
    %326 = vector.broadcast %cst_128 : f32 to vector<2x64xf32>
    %327 = arith.addf %326, %325 : vector<2x64xf32>
    %328 = arith.divf %326, %327 : vector<2x64xf32>
    %329 = vector.extract_strided_slice %322 {offsets = [0, 64], sizes = [2, 64], strides = [1, 1]} : vector<2x256xf32> to vector<2x64xf32>
    %330 = arith.negf %329 : vector<2x64xf32>
    %331 = math.exp %330 : vector<2x64xf32>
    %cst_129 = arith.constant 1.000000e+00 : f32
    %332 = vector.broadcast %cst_129 : f32 to vector<2x64xf32>
    %333 = arith.addf %332, %331 : vector<2x64xf32>
    %334 = arith.divf %332, %333 : vector<2x64xf32>
    %335 = vector.extract_strided_slice %322 {offsets = [0, 128], sizes = [2, 64], strides = [1, 1]} : vector<2x256xf32> to vector<2x64xf32>
    %336 = math.tanh %335 : vector<2x64xf32>
    %337 = vector.extract_strided_slice %322 {offsets = [0, 192], sizes = [2, 64], strides = [1, 1]} : vector<2x256xf32> to vector<2x64xf32>
    %338 = arith.negf %337 : vector<2x64xf32>
    %339 = math.exp %338 : vector<2x64xf32>
    %cst_130 = arith.constant 1.000000e+00 : f32
    %340 = vector.broadcast %cst_130 : f32 to vector<2x64xf32>
    %341 = arith.addf %340, %339 : vector<2x64xf32>
    %342 = arith.divf %340, %341 : vector<2x64xf32>
    %343 = arith.mulf %334, %312 : vector<2x64xf32>
    %344 = arith.mulf %328, %336 : vector<2x64xf32>
    %345 = arith.addf %343, %344 : vector<2x64xf32>
    %346 = math.tanh %345 : vector<2x64xf32>
    %347 = arith.mulf %342, %346 : vector<2x64xf32>
    %c5_131 = arith.constant 5 : index
    %c0_132 = arith.constant 0 : index
    %c0_133 = arith.constant 0 : index
    %348 = vector.load %arg11[%c5_131, %c0_132, %c0_133] : memref<8x2x64xf32, #tpu.memory_space<vmem>>, vector<1x2x64xf32>
    %349 = vector.shape_cast %348 : vector<1x2x64xf32> to vector<2x64xf32>
    %350 = vector.shape_cast %347 : vector<2x64xf32> to vector<1x2x64xf32>
    tpu.vector_store %arg11[%c5_131, %c0_132, %c0_133], %350 {strides = array<i32>} : memref<8x2x64xf32, #tpu.memory_space<vmem>>, vector<1x2x64xf32>,
    %c6_134 = arith.constant 6 : index
    %c0_135 = arith.constant 0 : index
    %c0_136 = arith.constant 0 : index
    %351 = vector.load %arg10[%c6_134, %c0_135, %c0_136] : memref<8x2x256xf32, #tpu.memory_space<vmem>>, vector<1x2x256xf32>
    %352 = vector.shape_cast %351 : vector<1x2x256xf32> to vector<2x256xf32>
    %353 = arith.truncf %347 : vector<2x64xf32> to vector<2x64xbf16>
    %cst_137 = arith.constant dense<0.000000e+00> : vector<2x256xf32>
    %354 = tpu.matmul %353, %150, %cst_137 {dimension_numbers = #tpu.dot_dimension_numbers<[1], [0], [0], [1], [0, 0, 1, 1], [], []>} : vector<2x64xbf16>, vector<64x256xbf16>, vector<2x256xf32> -> vector<2x256xf32>
    %355 = arith.addf %352, %354 : vector<2x256xf32>
    %356 = vector.extract_strided_slice %355 {offsets = [0, 0], sizes = [2, 64], strides = [1, 1]} : vector<2x256xf32> to vector<2x64xf32>
    %357 = arith.negf %356 : vector<2x64xf32>
    %358 = math.exp %357 : vector<2x64xf32>
    %cst_138 = arith.constant 1.000000e+00 : f32
    %359 = vector.broadcast %cst_138 : f32 to vector<2x64xf32>
    %360 = arith.addf %359, %358 : vector<2x64xf32>
    %361 = arith.divf %359, %360 : vector<2x64xf32>
    %362 = vector.extract_strided_slice %355 {offsets = [0, 64], sizes = [2, 64], strides = [1, 1]} : vector<2x256xf32> to vector<2x64xf32>
    %363 = arith.negf %362 : vector<2x64xf32>
    %364 = math.exp %363 : vector<2x64xf32>
    %cst_139 = arith.constant 1.000000e+00 : f32
    %365 = vector.broadcast %cst_139 : f32 to vector<2x64xf32>
    %366 = arith.addf %365, %364 : vector<2x64xf32>
    %367 = arith.divf %365, %366 : vector<2x64xf32>
    %368 = vector.extract_strided_slice %355 {offsets = [0, 128], sizes = [2, 64], strides = [1, 1]} : vector<2x256xf32> to vector<2x64xf32>
    %369 = math.tanh %368 : vector<2x64xf32>
    %370 = vector.extract_strided_slice %355 {offsets = [0, 192], sizes = [2, 64], strides = [1, 1]} : vector<2x256xf32> to vector<2x64xf32>
    %371 = arith.negf %370 : vector<2x64xf32>
    %372 = math.exp %371 : vector<2x64xf32>
    %cst_140 = arith.constant 1.000000e+00 : f32
    %373 = vector.broadcast %cst_140 : f32 to vector<2x64xf32>
    %374 = arith.addf %373, %372 : vector<2x64xf32>
    %375 = arith.divf %373, %374 : vector<2x64xf32>
    %376 = arith.mulf %367, %345 : vector<2x64xf32>
    %377 = arith.mulf %361, %369 : vector<2x64xf32>
    %378 = arith.addf %376, %377 : vector<2x64xf32>
    %379 = math.tanh %378 : vector<2x64xf32>
    %380 = arith.mulf %375, %379 : vector<2x64xf32>
    %c6_141 = arith.constant 6 : index
    %c0_142 = arith.constant 0 : index
    %c0_143 = arith.constant 0 : index
    %381 = vector.load %arg11[%c6_141, %c0_142, %c0_143] : memref<8x2x64xf32, #tpu.memory_space<vmem>>, vector<1x2x64xf32>
    %382 = vector.shape_cast %381 : vector<1x2x64xf32> to vector<2x64xf32>
    %383 = vector.shape_cast %380 : vector<2x64xf32> to vector<1x2x64xf32>
    tpu.vector_store %arg11[%c6_141, %c0_142, %c0_143], %383 {strides = array<i32>} : memref<8x2x64xf32, #tpu.memory_space<vmem>>, vector<1x2x64xf32>,
    %c7_144 = arith.constant 7 : index
    %c0_145 = arith.constant 0 : index
    %c0_146 = arith.constant 0 : index
    %384 = vector.load %arg10[%c7_144, %c0_145, %c0_146] : memref<8x2x256xf32, #tpu.memory_space<vmem>>, vector<1x2x256xf32>
    %385 = vector.shape_cast %384 : vector<1x2x256xf32> to vector<2x256xf32>
    %386 = arith.truncf %380 : vector<2x64xf32> to vector<2x64xbf16>
    %cst_147 = arith.constant dense<0.000000e+00> : vector<2x256xf32>
    %387 = tpu.matmul %386, %150, %cst_147 {dimension_numbers = #tpu.dot_dimension_numbers<[1], [0], [0], [1], [0, 0, 1, 1], [], []>} : vector<2x64xbf16>, vector<64x256xbf16>, vector<2x256xf32> -> vector<2x256xf32>
    %388 = arith.addf %385, %387 : vector<2x256xf32>
    %389 = vector.extract_strided_slice %388 {offsets = [0, 0], sizes = [2, 64], strides = [1, 1]} : vector<2x256xf32> to vector<2x64xf32>
    %390 = arith.negf %389 : vector<2x64xf32>
    %391 = math.exp %390 : vector<2x64xf32>
    %cst_148 = arith.constant 1.000000e+00 : f32
    %392 = vector.broadcast %cst_148 : f32 to vector<2x64xf32>
    %393 = arith.addf %392, %391 : vector<2x64xf32>
    %394 = arith.divf %392, %393 : vector<2x64xf32>
    %395 = vector.extract_strided_slice %388 {offsets = [0, 64], sizes = [2, 64], strides = [1, 1]} : vector<2x256xf32> to vector<2x64xf32>
    %396 = arith.negf %395 : vector<2x64xf32>
    %397 = math.exp %396 : vector<2x64xf32>
    %cst_149 = arith.constant 1.000000e+00 : f32
    %398 = vector.broadcast %cst_149 : f32 to vector<2x64xf32>
    %399 = arith.addf %398, %397 : vector<2x64xf32>
    %400 = arith.divf %398, %399 : vector<2x64xf32>
    %401 = vector.extract_strided_slice %388 {offsets = [0, 128], sizes = [2, 64], strides = [1, 1]} : vector<2x256xf32> to vector<2x64xf32>
    %402 = math.tanh %401 : vector<2x64xf32>
    %403 = vector.extract_strided_slice %388 {offsets = [0, 192], sizes = [2, 64], strides = [1, 1]} : vector<2x256xf32> to vector<2x64xf32>
    %404 = arith.negf %403 : vector<2x64xf32>
    %405 = math.exp %404 : vector<2x64xf32>
    %cst_150 = arith.constant 1.000000e+00 : f32
    %406 = vector.broadcast %cst_150 : f32 to vector<2x64xf32>
    %407 = arith.addf %406, %405 : vector<2x64xf32>
    %408 = arith.divf %406, %407 : vector<2x64xf32>
    %409 = arith.mulf %400, %378 : vector<2x64xf32>
    %410 = arith.mulf %394, %402 : vector<2x64xf32>
    %411 = arith.addf %409, %410 : vector<2x64xf32>
    %412 = math.tanh %411 : vector<2x64xf32>
    %413 = arith.mulf %408, %412 : vector<2x64xf32>
    %c7_151 = arith.constant 7 : index
    %c0_152 = arith.constant 0 : index
    %c0_153 = arith.constant 0 : index
    %414 = vector.load %arg11[%c7_151, %c0_152, %c0_153] : memref<8x2x64xf32, #tpu.memory_space<vmem>>, vector<1x2x64xf32>
    %415 = vector.shape_cast %414 : vector<1x2x64xf32> to vector<2x64xf32>
    %416 = vector.shape_cast %413 : vector<2x64xf32> to vector<1x2x64xf32>
    tpu.vector_store %arg11[%c7_151, %c0_152, %c0_153], %416 {strides = array<i32>} : memref<8x2x64xf32, #tpu.memory_space<vmem>>, vector<1x2x64xf32>,
    %417 = tpu.iota {dimensions = array<i32: 1>} : vector<2x64xi32>
    %c32_i32_154 = arith.constant 32 : i32
    %418 = vector.broadcast %c32_i32_154 : i32 to vector<2x64xi32>
    %419 = arith.cmpi slt, %417, %418 : vector<2x64xi32>
    %c0_155 = arith.constant 0 : index
    %c0_156 = arith.constant 0 : index
    %c0_157 = arith.constant 0 : index
    %420 = vector.load %arg11[%c0_155, %c0_156, %c0_157] : memref<8x2x64xf32, #tpu.memory_space<vmem>>, vector<1x2x64xf32>
    %421 = vector.shape_cast %420 : vector<1x2x64xf32> to vector<2x64xf32>
    %c7_158 = arith.constant 7 : index
    %c0_159 = arith.constant 0 : index
    %c0_160 = arith.constant 0 : index
    %422 = vector.load %arg11[%c7_158, %c0_159, %c0_160] : memref<8x2x64xf32, #tpu.memory_space<vmem>>, vector<1x2x64xf32>
    %423 = vector.shape_cast %422 : vector<1x2x64xf32> to vector<2x64xf32>
    %424 = arith.select %419, %421, %423 : vector<2x64xi1>, vector<2x64xf32>
    %425 = vector.extract_strided_slice %424 {offsets = [0, 0], sizes = [1, 64], strides = [1, 1]} : vector<2x64xf32> to vector<1x64xf32>
    %426 = vector.extract_strided_slice %424 {offsets = [1, 0], sizes = [1, 64], strides = [1, 1]} : vector<2x64xf32> to vector<1x64xf32>
    %427 = tpu.concatenate %425, %426 in 1 : vector<1x64xf32>, vector<1x64xf32> -> vector<1x128xf32>
    %c1_161 = arith.constant 1 : index
    %c0_162 = arith.constant 0 : index
    %c0_163 = arith.constant 0 : index
    %428 = vector.load %arg11[%c1_161, %c0_162, %c0_163] : memref<8x2x64xf32, #tpu.memory_space<vmem>>, vector<1x2x64xf32>
    %429 = vector.shape_cast %428 : vector<1x2x64xf32> to vector<2x64xf32>
    %c6_164 = arith.constant 6 : index
    %c0_165 = arith.constant 0 : index
    %c0_166 = arith.constant 0 : index
    %430 = vector.load %arg11[%c6_164, %c0_165, %c0_166] : memref<8x2x64xf32, #tpu.memory_space<vmem>>, vector<1x2x64xf32>
    %431 = vector.shape_cast %430 : vector<1x2x64xf32> to vector<2x64xf32>
    %432 = arith.select %419, %429, %431 : vector<2x64xi1>, vector<2x64xf32>
    %433 = vector.extract_strided_slice %432 {offsets = [0, 0], sizes = [1, 64], strides = [1, 1]} : vector<2x64xf32> to vector<1x64xf32>
    %434 = vector.extract_strided_slice %432 {offsets = [1, 0], sizes = [1, 64], strides = [1, 1]} : vector<2x64xf32> to vector<1x64xf32>
    %435 = tpu.concatenate %433, %434 in 1 : vector<1x64xf32>, vector<1x64xf32> -> vector<1x128xf32>
    %c2_167 = arith.constant 2 : index
    %c0_168 = arith.constant 0 : index
    %c0_169 = arith.constant 0 : index
    %436 = vector.load %arg11[%c2_167, %c0_168, %c0_169] : memref<8x2x64xf32, #tpu.memory_space<vmem>>, vector<1x2x64xf32>
    %437 = vector.shape_cast %436 : vector<1x2x64xf32> to vector<2x64xf32>
    %c5_170 = arith.constant 5 : index
    %c0_171 = arith.constant 0 : index
    %c0_172 = arith.constant 0 : index
    %438 = vector.load %arg11[%c5_170, %c0_171, %c0_172] : memref<8x2x64xf32, #tpu.memory_space<vmem>>, vector<1x2x64xf32>
    %439 = vector.shape_cast %438 : vector<1x2x64xf32> to vector<2x64xf32>
    %440 = arith.select %419, %437, %439 : vector<2x64xi1>, vector<2x64xf32>
    %441 = vector.extract_strided_slice %440 {offsets = [0, 0], sizes = [1, 64], strides = [1, 1]} : vector<2x64xf32> to vector<1x64xf32>
    %442 = vector.extract_strided_slice %440 {offsets = [1, 0], sizes = [1, 64], strides = [1, 1]} : vector<2x64xf32> to vector<1x64xf32>
    %443 = tpu.concatenate %441, %442 in 1 : vector<1x64xf32>, vector<1x64xf32> -> vector<1x128xf32>
    %c3_173 = arith.constant 3 : index
    %c0_174 = arith.constant 0 : index
    %c0_175 = arith.constant 0 : index
    %444 = vector.load %arg11[%c3_173, %c0_174, %c0_175] : memref<8x2x64xf32, #tpu.memory_space<vmem>>, vector<1x2x64xf32>
    %445 = vector.shape_cast %444 : vector<1x2x64xf32> to vector<2x64xf32>
    %c4_176 = arith.constant 4 : index
    %c0_177 = arith.constant 0 : index
    %c0_178 = arith.constant 0 : index
    %446 = vector.load %arg11[%c4_176, %c0_177, %c0_178] : memref<8x2x64xf32, #tpu.memory_space<vmem>>, vector<1x2x64xf32>
    %447 = vector.shape_cast %446 : vector<1x2x64xf32> to vector<2x64xf32>
    %448 = arith.select %419, %445, %447 : vector<2x64xi1>, vector<2x64xf32>
    %449 = vector.extract_strided_slice %448 {offsets = [0, 0], sizes = [1, 64], strides = [1, 1]} : vector<2x64xf32> to vector<1x64xf32>
    %450 = vector.extract_strided_slice %448 {offsets = [1, 0], sizes = [1, 64], strides = [1, 1]} : vector<2x64xf32> to vector<1x64xf32>
    %451 = tpu.concatenate %449, %450 in 1 : vector<1x64xf32>, vector<1x64xf32> -> vector<1x128xf32>
    %c4_179 = arith.constant 4 : index
    %c0_180 = arith.constant 0 : index
    %c0_181 = arith.constant 0 : index
    %452 = vector.load %arg11[%c4_179, %c0_180, %c0_181] : memref<8x2x64xf32, #tpu.memory_space<vmem>>, vector<1x2x64xf32>
    %453 = vector.shape_cast %452 : vector<1x2x64xf32> to vector<2x64xf32>
    %c3_182 = arith.constant 3 : index
    %c0_183 = arith.constant 0 : index
    %c0_184 = arith.constant 0 : index
    %454 = vector.load %arg11[%c3_182, %c0_183, %c0_184] : memref<8x2x64xf32, #tpu.memory_space<vmem>>, vector<1x2x64xf32>
    %455 = vector.shape_cast %454 : vector<1x2x64xf32> to vector<2x64xf32>
    %456 = arith.select %419, %453, %455 : vector<2x64xi1>, vector<2x64xf32>
    %457 = vector.extract_strided_slice %456 {offsets = [0, 0], sizes = [1, 64], strides = [1, 1]} : vector<2x64xf32> to vector<1x64xf32>
    %458 = vector.extract_strided_slice %456 {offsets = [1, 0], sizes = [1, 64], strides = [1, 1]} : vector<2x64xf32> to vector<1x64xf32>
    %459 = tpu.concatenate %457, %458 in 1 : vector<1x64xf32>, vector<1x64xf32> -> vector<1x128xf32>
    %c5_185 = arith.constant 5 : index
    %c0_186 = arith.constant 0 : index
    %c0_187 = arith.constant 0 : index
    %460 = vector.load %arg11[%c5_185, %c0_186, %c0_187] : memref<8x2x64xf32, #tpu.memory_space<vmem>>, vector<1x2x64xf32>
    %461 = vector.shape_cast %460 : vector<1x2x64xf32> to vector<2x64xf32>
    %c2_188 = arith.constant 2 : index
    %c0_189 = arith.constant 0 : index
    %c0_190 = arith.constant 0 : index
    %462 = vector.load %arg11[%c2_188, %c0_189, %c0_190] : memref<8x2x64xf32, #tpu.memory_space<vmem>>, vector<1x2x64xf32>
    %463 = vector.shape_cast %462 : vector<1x2x64xf32> to vector<2x64xf32>
    %464 = arith.select %419, %461, %463 : vector<2x64xi1>, vector<2x64xf32>
    %465 = vector.extract_strided_slice %464 {offsets = [0, 0], sizes = [1, 64], strides = [1, 1]} : vector<2x64xf32> to vector<1x64xf32>
    %466 = vector.extract_strided_slice %464 {offsets = [1, 0], sizes = [1, 64], strides = [1, 1]} : vector<2x64xf32> to vector<1x64xf32>
    %467 = tpu.concatenate %465, %466 in 1 : vector<1x64xf32>, vector<1x64xf32> -> vector<1x128xf32>
    %c6_191 = arith.constant 6 : index
    %c0_192 = arith.constant 0 : index
    %c0_193 = arith.constant 0 : index
    %468 = vector.load %arg11[%c6_191, %c0_192, %c0_193] : memref<8x2x64xf32, #tpu.memory_space<vmem>>, vector<1x2x64xf32>
    %469 = vector.shape_cast %468 : vector<1x2x64xf32> to vector<2x64xf32>
    %c1_194 = arith.constant 1 : index
    %c0_195 = arith.constant 0 : index
    %c0_196 = arith.constant 0 : index
    %470 = vector.load %arg11[%c1_194, %c0_195, %c0_196] : memref<8x2x64xf32, #tpu.memory_space<vmem>>, vector<1x2x64xf32>
    %471 = vector.shape_cast %470 : vector<1x2x64xf32> to vector<2x64xf32>
    %472 = arith.select %419, %469, %471 : vector<2x64xi1>, vector<2x64xf32>
    %473 = vector.extract_strided_slice %472 {offsets = [0, 0], sizes = [1, 64], strides = [1, 1]} : vector<2x64xf32> to vector<1x64xf32>
    %474 = vector.extract_strided_slice %472 {offsets = [1, 0], sizes = [1, 64], strides = [1, 1]} : vector<2x64xf32> to vector<1x64xf32>
    %475 = tpu.concatenate %473, %474 in 1 : vector<1x64xf32>, vector<1x64xf32> -> vector<1x128xf32>
    %c7_197 = arith.constant 7 : index
    %c0_198 = arith.constant 0 : index
    %c0_199 = arith.constant 0 : index
    %476 = vector.load %arg11[%c7_197, %c0_198, %c0_199] : memref<8x2x64xf32, #tpu.memory_space<vmem>>, vector<1x2x64xf32>
    %477 = vector.shape_cast %476 : vector<1x2x64xf32> to vector<2x64xf32>
    %c0_200 = arith.constant 0 : index
    %c0_201 = arith.constant 0 : index
    %c0_202 = arith.constant 0 : index
    %478 = vector.load %arg11[%c0_200, %c0_201, %c0_202] : memref<8x2x64xf32, #tpu.memory_space<vmem>>, vector<1x2x64xf32>
    %479 = vector.shape_cast %478 : vector<1x2x64xf32> to vector<2x64xf32>
    %480 = arith.select %419, %477, %479 : vector<2x64xi1>, vector<2x64xf32>
    %481 = vector.extract_strided_slice %480 {offsets = [0, 0], sizes = [1, 64], strides = [1, 1]} : vector<2x64xf32> to vector<1x64xf32>
    %482 = vector.extract_strided_slice %480 {offsets = [1, 0], sizes = [1, 64], strides = [1, 1]} : vector<2x64xf32> to vector<1x64xf32>
    %483 = tpu.concatenate %481, %482 in 1 : vector<1x64xf32>, vector<1x64xf32> -> vector<1x128xf32>
    %484 = tpu.concatenate %427, %435, %443, %451, %459, %467, %475, %483 in 0 : vector<1x128xf32>, vector<1x128xf32>, vector<1x128xf32>, vector<1x128xf32>, vector<1x128xf32>, vector<1x128xf32>, vector<1x128xf32>, vector<1x128xf32> -> vector<8x128xf32>
    %c0_203 = arith.constant 0 : index
    %c0_204 = arith.constant 0 : index
    %485 = vector.load %arg8[%c0_203, %c0_204] : memref<8x128xf32, #tpu.memory_space<vmem>>, vector<8x128xf32>
    tpu.vector_store %arg8[%c0_203, %c0_204], %484 {strides = array<i32>} : memref<8x128xf32, #tpu.memory_space<vmem>>, vector<8x128xf32>,
    %486 = vector.extract_strided_slice %413 {offsets = [0, 0], sizes = [2, 32], strides = [1, 1]} : vector<2x64xf32> to vector<2x32xf32>
    %487 = vector.extract_strided_slice %413 {offsets = [0, 32], sizes = [2, 32], strides = [1, 1]} : vector<2x64xf32> to vector<2x32xf32>
    %488 = vector.extract_strided_slice %411 {offsets = [0, 0], sizes = [2, 32], strides = [1, 1]} : vector<2x64xf32> to vector<2x32xf32>
    %489 = vector.extract_strided_slice %411 {offsets = [0, 32], sizes = [2, 32], strides = [1, 1]} : vector<2x64xf32> to vector<2x32xf32>
    %490 = tpu.concatenate %486, %487, %488, %489 in 0 : vector<2x32xf32>, vector<2x32xf32>, vector<2x32xf32>, vector<2x32xf32> -> vector<8x32xf32>
    %cst_205 = arith.constant 0.000000e+00 : f32
    %491 = vector.broadcast %cst_205 : f32 to vector<8x32xf32>
    %492 = arith.maximumf %490, %491 : vector<8x32xf32>
    %c0_206 = arith.constant 0 : index
    %c0_207 = arith.constant 0 : index
    %493 = vector.load %arg6[%c0_206, %c0_207] : memref<32x32xf32, #tpu.memory_space<vmem>>, vector<32x32xf32>
    %cst_208 = arith.constant dense<0.000000e+00> : vector<8x32xf32>
    %494 = tpu.matmul %492, %493, %cst_208 {dimension_numbers = #tpu.dot_dimension_numbers<[1], [0], [0], [1], [0, 0, 1, 1], [], []>, precision = #tpu.contract_precision<fp32>} : vector<8x32xf32>, vector<32x32xf32>, vector<8x32xf32> -> vector<8x32xf32>
    %c0_209 = arith.constant 0 : index
    %c0_210 = arith.constant 0 : index
    %495 = vector.load %arg7[%c0_209, %c0_210] : memref<1x32xf32, #tpu.memory_space<vmem>>, vector<1x32xf32>
    %496 = vector.broadcast %495 : vector<1x32xf32> to vector<8x32xf32>
    %497 = arith.addf %494, %496 : vector<8x32xf32>
    %c0_211 = arith.constant 0 : index
    %c0_212 = arith.constant 0 : index
    %498 = vector.load %arg9[%c0_211, %c0_212] : memref<8x32xf32, #tpu.memory_space<vmem>>, vector<8x32xf32>
    tpu.vector_store %arg9[%c0_211, %c0_212], %497 {strides = array<i32>} : memref<8x32xf32, #tpu.memory_space<vmem>>, vector<8x32xf32>,
    return
  }
  func.func @transform_0(%arg0: i32, %arg1: memref<16xi32, #tpu.memory_space<smem>>) -> (i32, i32, i32) {
    %c0_i32 = arith.constant 0 : i32
    %c0_i32_0 = arith.constant 0 : i32
    %c0_i32_1 = arith.constant 0 : i32
    %c0_i32_2 = arith.constant 0 : i32
    return %c0_i32, %c0_i32_0, %c0_i32_1 : i32, i32, i32
  }
  func.func @transform_1(%arg0: i32, %arg1: memref<16xi32, #tpu.memory_space<smem>>) -> (i32, i32) {
    %c0_i32 = arith.constant 0 : i32
    %c0_i32_0 = arith.constant 0 : i32
    %c0_i32_1 = arith.constant 0 : i32
    return %c0_i32, %c0_i32_0 : i32, i32
  }
  func.func @transform_2(%arg0: i32, %arg1: memref<16xi32, #tpu.memory_space<smem>>) -> (i32, i32) {
    %c0_i32 = arith.constant 0 : i32
    %c0_i32_0 = arith.constant 0 : i32
    %c0_i32_1 = arith.constant 0 : i32
    return %c0_i32, %c0_i32_0 : i32, i32
  }
  func.func @transform_3(%arg0: i32, %arg1: memref<16xi32, #tpu.memory_space<smem>>) -> (i32, i32) {
    %c0_i32 = arith.constant 0 : i32
    %c0_i32_0 = arith.constant 0 : i32
    %c0_i32_1 = arith.constant 0 : i32
    return %c0_i32, %c0_i32_0 : i32, i32
  }
  func.func @transform_4(%arg0: i32, %arg1: memref<16xi32, #tpu.memory_space<smem>>) -> (i32, i32) {
    %c0_i32 = arith.constant 0 : i32
    %c0_i32_0 = arith.constant 0 : i32
    %c0_i32_1 = arith.constant 0 : i32
    return %c0_i32, %c0_i32_0 : i32, i32
  }
  func.func @transform_5(%arg0: i32, %arg1: memref<16xi32, #tpu.memory_space<smem>>) -> (i32, i32) {
    %c0_i32 = arith.constant 0 : i32
    %c0_i32_0 = arith.constant 0 : i32
    %c0_i32_1 = arith.constant 0 : i32
    return %c0_i32, %c0_i32_0 : i32, i32
  }
  func.func @transform_6(%arg0: i32, %arg1: memref<16xi32, #tpu.memory_space<smem>>) -> (i32, i32) {
    %c0_i32 = arith.constant 0 : i32
    %c0_i32_0 = arith.constant 0 : i32
    %c0_i32_1 = arith.constant 0 : i32
    return %c0_i32, %c0_i32_0 : i32, i32
  }
  func.func @transform_7(%arg0: i32, %arg1: memref<16xi32, #tpu.memory_space<smem>>) -> (i32, i32) {
    %c0_i32 = arith.constant 0 : i32
    %c0_i32_0 = arith.constant 0 : i32
    %c0_i32_1 = arith.constant 0 : i32
    return %c0_i32, %c0_i32_0 : i32, i32
  }
}

</mosaic_0001>

<llo_original>
// kernel: encoder_forward_pallas.1
$region0: #{encoder_forward_pallas.1}
  #allocation0 [shape = 'u32[]', space=smem, size = 0x4, offset = 0x4, fixed_abs, tag = 'smem constant byte address 0x4 - core index']
  #allocation1 [shape = 'u32[144,128]{1,0:T(1,128)}', space=vmem, size = 0x12000, scoped, tag = 'internal scratch']
  #allocation2 [shape = 'f32[8,2,256]{2,1,0:T(2,128)}', space=vmem, size = 0x4000, scoped, tag = 'scratch operand']
  #allocation3 [shape = 'f32[8,2,64]{2,1,0:T(2,128)}', space=vmem, size = 0x2000, scoped, tag = 'scratch operand']
  #allocation4 [shape = 's32[1]{0}', space=sflag, size = 0x4, scoped, tag = 'scoped memory for encoder_forward_pallas.1']
  #allocation5 [shape = 'u8[512]{0}', space=smem, size = 0x200, scoped, tag = 'prefetched SMEM operand 0']
  %s0 = inlined_call_operand.vmem [shape: s32[16], index: 0, kind: input, shape index: {}]
  %s1 = inlined_call_operand.vmem [shape: f32[50,1,32], index: 1, kind: input, shape index: {}]
  %s2 = inlined_call_operand.vmem [shape: f32[32,256], index: 2, kind: input, shape index: {}]
  %s3 = inlined_call_operand.hbm [shape: f32[64,256], index: 3, kind: input, shape index: {}]
  %s4 = inlined_call_operand.vmem [shape: f32[1,256], index: 4, kind: input, shape index: {}]
  %s5 = inlined_call_operand.hbm [shape: f32[32,32], index: 5, kind: input, shape index: {}]
  %s6 = inlined_call_operand.vmem [shape: f32[1,32], index: 6, kind: input, shape index: {}]
  %s7 = inlined_call_operand.vmem [shape: f32[8,128], index: 7, kind: output, shape index: {0}]
  %s8 = inlined_call_operand.vmem [shape: f32[8,32], index: 8, kind: output, shape index: {1}]
  %9 = xla_tuple %s7, %s8
  %s10 = sld [smem:[#allocation0]]
  $region50: #{encoder_forward_pallas.1} parent=0
    _
  %s12 = ssub.s32 1, %s10
  %s13 = scalar_select 0, %s12, %s10
  %s14 = sshll.u32 %s0, 4
  %s15 = int_to_ptr.vmem [resolvable:$true] %s14
  %17 = dma.vmem_to_smem %s15, 16, [#allocation5], [#allocation4]
  %18 = dma.done [#allocation4], 16
  %19 = sfence
  $region1: #{encoder_forward_pallas.1} parent=0
    #allocation6 [shape = 'u8[65536]{0}', space=vmem, size = 0x10000, scoped, tag = 'input window, operand 3, single buffered']
    #allocation7 [shape = 's32[1]{0}', space=sflag, size = 0x4, scoped, tag = 'scoped memory for encoder_forward_pallas.1']
    #allocation8 [shape = 'u8[16384]{0}', space=vmem, size = 0x4000, scoped, tag = 'input window, operand 5, single buffered']
    #allocation9 [shape = 's32[1]{0}', space=sflag, size = 0x4, scoped, tag = 'scoped memory for encoder_forward_pallas.1']
    %20 = vsyncpa [#allocation7], 0
    %21 = vsyncpa [#allocation9], 0
    // Predicated region
    $region2: #{encoder_forward_pallas.1} parent=1 // pred_check
      _
    $region3: #{encoder_forward_pallas.1} parent=1 // pred_check_branch
      %23 = sbr.rel (0) target = $region5
    $region4: #{encoder_forward_pallas.1} parent=1 // pred_region
      _
    $region5: #{encoder_forward_pallas.1} parent=1 // pred_fallthru
      _
    // Predicated region
    $region6: #{encoder_forward_pallas.1} parent=1 // pred_check
      _
    $region7: #{encoder_forward_pallas.1} parent=1 // pred_check_branch
      %25 = sbr.rel (0) target = $region9
    $region8: #{encoder_forward_pallas.1} parent=1 // pred_region
      _
    $region9: #{encoder_forward_pallas.1} parent=1 // pred_fallthru
      _
    // Predicated region
    $region10: #{encoder_forward_pallas.1} parent=1 // pred_check
      _
    $region11: #{encoder_forward_pallas.1} parent=1 // pred_check_branch
      %27 = sbr.rel (0) target = $region13
    $region12: #{encoder_forward_pallas.1} parent=1 // pred_region
      %s29 = ssub.s32 2048, 2048
      %30 = vsyncadd [#allocation7], %s29
      %s31 = sshll.u32 [#allocation6], 4
      %s32 = int_to_ptr.vmem [resolvable:$true] %s31
      %37 = dma.hbm_to_vmem [thread:$0]  %s3, 2048, %s32, [#allocation7], 256, 256, 16
    $region13: #{encoder_forward_pallas.1} parent=1 // pred_fallthru
      _
    // Predicated region
    $region14: #{encoder_forward_pallas.1} parent=1 // pred_check
      _
    $region15: #{encoder_forward_pallas.1} parent=1 // pred_check_branch
      %39 = sbr.rel (0) target = $region17
    $region16: #{encoder_forward_pallas.1} parent=1 // pred_region
      _
    $region17: #{encoder_forward_pallas.1} parent=1 // pred_fallthru
      _
    // Predicated region
    $region18: #{encoder_forward_pallas.1} parent=1 // pred_check
      _
    $region19: #{encoder_forward_pallas.1} parent=1 // pred_check_branch
      %41 = sbr.rel (0) target = $region21
    $region20: #{encoder_forward_pallas.1} parent=1 // pred_region
      %s43 = ssub.s32 512, 512
      %44 = vsyncadd [#allocation9], %s43
      %s45 = sshll.u32 [#allocation8], 4
      %s46 = int_to_ptr.vmem [resolvable:$true] %s45
      %51 = dma.hbm_to_vmem [thread:$0]  %s5, 512, %s46, [#allocation9], 128, 128, 8
    $region21: #{encoder_forward_pallas.1} parent=1 // pred_fallthru
      _
    // Predicated region
    $region22: #{encoder_forward_pallas.1} parent=1 // pred_check
      _
    $region23: #{encoder_forward_pallas.1} parent=1 // pred_check_branch
      %53 = sbr.rel (0) target = $region25
    $region24: #{encoder_forward_pallas.1} parent=1 // pred_region
      _
    $region25: #{encoder_forward_pallas.1} parent=1 // pred_fallthru
      _
    // Predicated region
    $region26: #{encoder_forward_pallas.1} parent=1 // pred_check
      _
    $region27: #{encoder_forward_pallas.1} parent=1 // pred_check_branch
      %55 = sbr.rel (0) target = $region29
    $region28: #{encoder_forward_pallas.1} parent=1 // pred_region
      %56 = dma.done [#allocation7], 2048
    $region29: #{encoder_forward_pallas.1} parent=1 // pred_fallthru
      _
    // Predicated region
    $region30: #{encoder_forward_pallas.1} parent=1 // pred_check
      _
    $region31: #{encoder_forward_pallas.1} parent=1 // pred_check_branch
      %58 = sbr.rel (0) target = $region33
    $region32: #{encoder_forward_pallas.1} parent=1 // pred_region
      %59 = dma.done [#allocation9], 512
    $region33: #{encoder_forward_pallas.1} parent=1 // pred_fallthru
      _
    %v61 = vld [vmem:[%s2] sm:$0xff]
    %v62 = vld [vmem:[%s2 + $0x8] sm:$0xff]
    %v63 = vld [vmem:[%s2 + $0x10] sm:$0xff]
    %v64 = vld [vmem:[%s2 + $0x18] sm:$0xff]
    %v65 = vld [vmem:[%s2 + $0x20] sm:$0xff]
    %v66 = vld [vmem:[%s2 + $0x28] sm:$0xff]
    %v67 = vld [vmem:[%s2 + $0x30] sm:$0xff]
    %v68 = vld [vmem:[%s2 + $0x38] sm:$0xff]
    %v69 = vld [vmem:[%s4] sm:$0x3]
    %v70 = vlaneseq
    %v71 = vand.u32 %v70, 127
    %v72 = vadd.s32 %v71, 128
    %vm73 = vcmp.lt.s32.totalorder %v71, 0
    %v74 = vsub.s32 0, %v71
    %v75 = vsel %vm73, %v74, %v71
    %v76 = vshrl.u32 %v75, 6
    %v77 = vand.u32 %v75, 63
    %v78 = vsub.s32 0, %v77
    %v79 = vsel %vm73, %v78, %v77
    %vm80 = vcmp.lt.s32.totalorder %v72, 0
    %v81 = vsub.s32 0, %v72
    %v82 = vsel %vm80, %v81, %v72
    %v83 = vshrl.u32 %v82, 6
    %v84 = vand.u32 %v82, 63
    %v85 = vsub.s32 0, %v84
    %v86 = vsel %vm80, %v85, %v84
    %vm87 = vcmp.ne.s32.totalorder %v79, 0
    %vm88 = vcmp.ne.s32.totalorder %v86, 0
    %vm89 = vcmp.lt.s32.totalorder %v79, 0
    %vm90 = vcmp.lt.s32.totalorder %v86, 0
    %vm91 = vmand %vm89, %vm87
    %vm92 = vmand %vm90, %vm88
    %v93 = vadd.s32 %v79, 64
    %v94 = vadd.s32 %v86, 64
    %v95 = vsel %vm91, %v93, %v79
    %v96 = vsel %vm92, %v94, %v86
    %vm97 = vcmp.lt.s32.totalorder %v95, 32
    %vm98 = vcmp.lt.s32.totalorder %v96, 32
    %s99 = sld [smem:[#allocation5]]
    %s100 = scalar_lea.vmem %s1, %s99
    %v101 = vld [vmem:[%s100] sm:$0x1]
    %s102 = sld [smem:[#allocation5 + $0x8]]
    %s103 = scalar_lea.vmem %s1, %s102
    %v104 = vld [vmem:[%s103] sm:$0x1]
    %v106 = vlaneseq
    %v107 = vshrl.u32 %v106, 7
    %v108 = vsub.s32 0, %v107
    %v109 = vrot.slane %v104, %v108
    %vm111 = vcmask 1040384
    %v112 = vsel %vm111, %v101, %v109
    %v114 = vlaneseq
    %v115 = vshrl.u32 %v114, 7
    %v116 = vsub.s32 0, %v115
    %v117 = vrot.slane %v69, %v116
    %v118 = vlaneseq
    %v119 = vshrl.u32 %v118, 7
    %v120 = vsub.s32 1, %v119
    %v121 = vrot.slane %v69, %v120
    %vm124 = vcmask 261120
    %v126 = vsel %vm124, %v112, 0
    %128 = vmatprep.subr.mxu0 0.0
    %129 = vmatpush1.msra.mxu0 0.0
    %130 = vmatprep.subr.mxu0 0.0
    %131 = vmatpush1.msra.mxu0 0.0
    %132 = vmatprep.subr.mxu0 0.0
    %133 = vmatpush1.msra.mxu0 0.0
    %134 = vmatprep.subr.mxu0 0.0
    %135 = vmatpush1.msra.mxu0 0.0
    %136 = vmatprep.subr.mxu0 0.0
    %137 = vmatpush1.msra.mxu0 0.0
    %138 = vmatprep.subr.mxu0 0.0
    %139 = vmatpush1.msra.mxu0 0.0
    %140 = vmatprep.subr.mxu0 0.0
    %141 = vmatpush1.msra.mxu0 0.0
    %142 = vmatprep.subr.mxu0 0.0
    %143 = vmatpush1.msra.mxu0 0.0
    %144 = vmatprep.subr.mxu0 0.0
    %145 = vmatpush1.msra.mxu0 0.0
    %146 = vmatprep.subr.mxu0 0.0
    %147 = vmatpush1.msra.mxu0 0.0
    %148 = vmatprep.subr.mxu0 0.0
    %149 = vmatpush1.msra.mxu0 0.0
    %150 = vmatprep.subr.mxu0 0.0
    %151 = vmatpush1.msra.mxu0 0.0
    %v152 = vand.u32 %v68, 4294901760
    %153 = vmatprep.subr.mxu0 %v152
    %v154 = vand.u32 %v67, 4294901760
    %155 = vmatpush1.msra.mxu0 %v154
    %v156 = vand.u32 %v66, 4294901760
    %157 = vmatprep.subr.mxu0 %v156
    %v158 = vand.u32 %v65, 4294901760
    %159 = vmatpush1.msra.mxu0 %v158
    %v160 = vand.u32 %v64, 4294901760
    %161 = vmatprep.subr.mxu0 %v160
    %v162 = vand.u32 %v63, 4294901760
    %163 = vmatpush1.msra.mxu0 %v162
    %v164 = vand.u32 %v62, 4294901760
    %165 = vmatprep.subr.mxu0 %v164
    %v166 = vand.u32 %v61, 4294901760
    %167 = vmatpush1.msra.mxu0 %v166
    %168 = vmatprep.subr.mxu0 0.0
    %169 = vmatpush2.msra.mxu0 0.0
    %170 = vmatprep.subr.mxu0 0.0
    %171 = vmatpush2.msra.mxu0 0.0
    %172 = vmatprep.subr.mxu0 0.0
    %173 = vmatpush2.msra.mxu0 0.0
    %174 = vmatprep.subr.mxu0 0.0
    %175 = vmatpush2.msra.mxu0 0.0
    %176 = vmatprep.subr.mxu0 0.0
    %177 = vmatpush2.msra.mxu0 0.0
    %178 = vmatprep.subr.mxu0 0.0
    %179 = vmatpush2.msra.mxu0 0.0
    %180 = vmatprep.subr.mxu0 0.0
    %181 = vmatpush2.msra.mxu0 0.0
    %182 = vmatprep.subr.mxu0 0.0
    %183 = vmatpush2.msra.mxu0 0.0
    %184 = vmatprep.subr.mxu0 0.0
    %185 = vmatpush2.msra.mxu0 0.0
    %186 = vmatprep.subr.mxu0 0.0
    %187 = vmatpush2.msra.mxu0 0.0
    %188 = vmatprep.subr.mxu0 0.0
    %189 = vmatpush2.msra.mxu0 0.0
    %190 = vmatprep.subr.mxu0 0.0
    %191 = vmatpush2.msra.mxu0 0.0
    %192 = vmatprep.subr.mxu0 0.0
    %193 = vmatpush2.msra.mxu0 0.0
    %194 = vmatprep.subr.mxu0 0.0
    %195 = vmatpush2.msra.mxu0 0.0
    %196 = vmatprep.subr.mxu0 0.0
    %197 = vmatpush2.msra.mxu0 0.0
    %198 = vmatprep.subr.mxu0 0.0
    %199 = vmatpush2.msra.mxu0 0.0
    %200 = vmatprep.mubr.f32.mxu0 0.0
    %v201 = vand.u32 %v126, 4294901760
    %v202 = vsub.f32 %v126, %v201
    %v203 = vand.u32 %v202, 4294901760
    %v204 = vsub.f32 %v202, %v203
    %v205 = vand.u32 %v204, 4294901760
    %206 = vmatmul.mubr.f32.gmra.mxu0 %v205
    %v207 = vpop.f32.mrf.mxu0
    %v208 = vadd.f32 %v117, %v207
    %v209 = vpop.f32.mrf.mxu0
    %v210 = vadd.f32 %v121, %v209
    %211 = vdwg.mxu0
    %212 = vmatprep.subr.mxu0 0.0
    %213 = vmatpush1.msra.mxu0 0.0
    %214 = vmatprep.subr.mxu0 0.0
    %215 = vmatpush1.msra.mxu0 0.0
    %216 = vmatprep.subr.mxu0 0.0
    %217 = vmatpush1.msra.mxu0 0.0
    %218 = vmatprep.subr.mxu0 0.0
    %219 = vmatpush1.msra.mxu0 0.0
    %220 = vmatprep.subr.mxu0 0.0
    %221 = vmatpush1.msra.mxu0 0.0
    %222 = vmatprep.subr.mxu0 0.0
    %223 = vmatpush1.msra.mxu0 0.0
    %224 = vmatprep.subr.mxu0 0.0
    %225 = vmatpush1.msra.mxu0 0.0
    %226 = vmatprep.subr.mxu0 0.0
    %227 = vmatpush1.msra.mxu0 0.0
    %228 = vmatprep.subr.mxu0 0.0
    %229 = vmatpush1.msra.mxu0 0.0
    %230 = vmatprep.subr.mxu0 0.0
    %231 = vmatpush1.msra.mxu0 0.0
    %232 = vmatprep.subr.mxu0 0.0
    %233 = vmatpush1.msra.mxu0 0.0
    %234 = vmatprep.subr.mxu0 0.0
    %235 = vmatpush1.msra.mxu0 0.0
    %v236 = vand.u32 %v68, 4294901760
    %v237 = vsub.f32 %v68, %v236
    %v238 = vand.u32 %v237, 4294901760
    %v239 = vsub.f32 %v237, %v238
    %v240 = vand.u32 %v239, 4294901760
    %241 = vmatprep.subr.mxu0 %v240
    %v242 = vand.u32 %v67, 4294901760
    %v243 = vsub.f32 %v67, %v242
    %v244 = vand.u32 %v243, 4294901760
    %v245 = vsub.f32 %v243, %v244
    %v246 = vand.u32 %v245, 4294901760
    %247 = vmatpush1.msra.mxu0 %v246
    %v248 = vand.u32 %v66, 4294901760
    %v249 = vsub.f32 %v66, %v248
    %v250 = vand.u32 %v249, 4294901760
    %v251 = vsub.f32 %v249, %v250
    %v252 = vand.u32 %v251, 4294901760
    %253 = vmatprep.subr.mxu0 %v252
    %v254 = vand.u32 %v65, 4294901760
    %v255 = vsub.f32 %v65, %v254
    %v256 = vand.u32 %v255, 4294901760
    %v257 = vsub.f32 %v255, %v256
    %v258 = vand.u32 %v257, 4294901760
    %259 = vmatpush1.msra.mxu0 %v258
    %v260 = vand.u32 %v64, 4294901760
    %v261 = vsub.f32 %v64, %v260
    %v262 = vand.u32 %v261, 4294901760
    %v263 = vsub.f32 %v261, %v262
    %v264 = vand.u32 %v263, 4294901760
    %265 = vmatprep.subr.mxu0 %v264
    %v266 = vand.u32 %v63, 4294901760
    %v267 = vsub.f32 %v63, %v266
    %v268 = vand.u32 %v267, 4294901760
    %v269 = vsub.f32 %v267, %v268
    %v270 = vand.u32 %v269, 4294901760
    %271 = vmatpush1.msra.mxu0 %v270
    %v272 = vand.u32 %v62, 4294901760
    %v273 = vsub.f32 %v62, %v272
    %v274 = vand.u32 %v273, 4294901760
    %v275 = vsub.f32 %v273, %v274
    %v276 = vand.u32 %v275, 4294901760
    %277 = vmatprep.subr.mxu0 %v276
    %v278 = vand.u32 %v61, 4294901760
    %v279 = vsub.f32 %v61, %v278
    %v280 = vand.u32 %v279, 4294901760
    %v281 = vsub.f32 %v279, %v280
    %v282 = vand.u32 %v281, 4294901760
    %283 = vmatpush1.msra.mxu0 %v282
    %284 = vmatprep.subr.mxu0 0.0
    %285 = vmatpush2.msra.mxu0 0.0
    %286 = vmatprep.subr.mxu0 0.0
    %287 = vmatpush2.msra.mxu0 0.0
    %288 = vmatprep.subr.mxu0 0.0
    %289 = vmatpush2.msra.mxu0 0.0
    %290 = vmatprep.subr.mxu0 0.0
    %291 = vmatpush2.msra.mxu0 0.0
    %292 = vmatprep.subr.mxu0 0.0
    %293 = vmatpush2.msra.mxu0 0.0
    %294 = vmatprep.subr.mxu0 0.0
    %295 = vmatpush2.msra.mxu0 0.0
    %296 = vmatprep.subr.mxu0 0.0
    %297 = vmatpush2.msra.mxu0 0.0
    %298 = vmatprep.subr.mxu0 0.0
    %299 = vmatpush2.msra.mxu0 0.0
    %300 = vmatprep.subr.mxu0 0.0
    %301 = vmatpush2.msra.mxu0 0.0
    %302 = vmatprep.subr.mxu0 0.0
    %303 = vmatpush2.msra.mxu0 0.0
    %304 = vmatprep.subr.mxu0 0.0
    %305 = vmatpush2.msra.mxu0 0.0
    %306 = vmatprep.subr.mxu0 0.0
    %307 = vmatpush2.msra.mxu0 0.0
    %308 = vmatprep.subr.mxu0 0.0
    %309 = vmatpush2.msra.mxu0 0.0
    %310 = vmatprep.subr.mxu0 0.0
    %311 = vmatpush2.msra.mxu0 0.0
    %312 = vmatprep.subr.mxu0 0.0
    %313 = vmatpush2.msra.mxu0 0.0
    %314 = vmatprep.subr.mxu0 0.0
    %315 = vmatpush2.msra.mxu0 0.0
    %316 = vmatprep.mubr.f32.mxu0 0.0
    %v317 = vand.u32 %v126, 4294901760
    %318 = vmatmul.mubr.f32.gmra.mxu0 %v317
    %v319 = vpop.f32.mrf.mxu0
    %v320 = vadd.f32 %v208, %v319
    %v321 = vpop.f32.mrf.mxu0
    %v322 = vadd.f32 %v210, %v321
    %323 = vdwg.mxu0
    %324 = vmatprep.subr.mxu0 0.0
    %325 = vmatpush1.msra.mxu0 0.0
    %326 = vmatprep.subr.mxu0 0.0
    %327 = vmatpush1.msra.mxu0 0.0
    %328 = vmatprep.subr.mxu0 0.0
    %329 = vmatpush1.msra.mxu0 0.0
    %330 = vmatprep.subr.mxu0 0.0
    %331 = vmatpush1.msra.mxu0 0.0
    %332 = vmatprep.subr.mxu0 0.0
    %333 = vmatpush1.msra.mxu0 0.0
    %334 = vmatprep.subr.mxu0 0.0
    %335 = vmatpush1.msra.mxu0 0.0
    %336 = vmatprep.subr.mxu0 0.0
    %337 = vmatpush1.msra.mxu0 0.0
    %338 = vmatprep.subr.mxu0 0.0
    %339 = vmatpush1.msra.mxu0 0.0
    %340 = vmatprep.subr.mxu0 0.0
    %341 = vmatpush1.msra.mxu0 0.0
    %342 = vmatprep.subr.mxu0 0.0
    %343 = vmatpush1.msra.mxu0 0.0
    %344 = vmatprep.subr.mxu0 0.0
    %345 = vmatpush1.msra.mxu0 0.0
    %346 = vmatprep.subr.mxu0 0.0
    %347 = vmatpush1.msra.mxu0 0.0
    %v348 = vand.u32 %v68, 4294901760
    %v349 = vsub.f32 %v68, %v348
    %350 = vmatprep.subr.mxu0 %v349
    %v351 = vand.u32 %v67, 4294901760
    %v352 = vsub.f32 %v67, %v351
    %353 = vmatpush1.msra.mxu0 %v352
    %v354 = vand.u32 %v66, 4294901760
    %v355 = vsub.f32 %v66, %v354
    %356 = vmatprep.subr.mxu0 %v355
    %v357 = vand.u32 %v65, 4294901760
    %v358 = vsub.f32 %v65, %v357
    %359 = vmatpush1.msra.mxu0 %v358
    %v360 = vand.u32 %v64, 4294901760
    %v361 = vsub.f32 %v64, %v360
    %362 = vmatprep.subr.mxu0 %v361
    %v363 = vand.u32 %v63, 4294901760
    %v364 = vsub.f32 %v63, %v363
    %365 = vmatpush1.msra.mxu0 %v364
    %v366 = vand.u32 %v62, 4294901760
    %v367 = vsub.f32 %v62, %v366
    %368 = vmatprep.subr.mxu0 %v367
    %v369 = vand.u32 %v61, 4294901760
    %v370 = vsub.f32 %v61, %v369
    %371 = vmatpush1.msra.mxu0 %v370
    %372 = vmatprep.subr.mxu0 0.0
    %373 = vmatpush2.msra.mxu0 0.0
    %374 = vmatprep.subr.mxu0 0.0
    %375 = vmatpush2.msra.mxu0 0.0
    %376 = vmatprep.subr.mxu0 0.0
    %377 = vmatpush2.msra.mxu0 0.0
    %378 = vmatprep.subr.mxu0 0.0
    %379 = vmatpush2.msra.mxu0 0.0
    %380 = vmatprep.subr.mxu0 0.0
    %381 = vmatpush2.msra.mxu0 0.0
    %382 = vmatprep.subr.mxu0 0.0
    %383 = vmatpush2.msra.mxu0 0.0
    %384 = vmatprep.subr.mxu0 0.0
    %385 = vmatpush2.msra.mxu0 0.0
    %386 = vmatprep.subr.mxu0 0.0
    %387 = vmatpush2.msra.mxu0 0.0
    %388 = vmatprep.subr.mxu0 0.0
    %389 = vmatpush2.msra.mxu0 0.0
    %390 = vmatprep.subr.mxu0 0.0
    %391 = vmatpush2.msra.mxu0 0.0
    %392 = vmatprep.subr.mxu0 0.0
    %393 = vmatpush2.msra.mxu0 0.0
    %394 = vmatprep.subr.mxu0 0.0
    %395 = vmatpush2.msra.mxu0 0.0
    %396 = vmatprep.subr.mxu0 0.0
    %397 = vmatpush2.msra.mxu0 0.0
    %398 = vmatprep.subr.mxu0 0.0
    %399 = vmatpush2.msra.mxu0 0.0
    %400 = vmatprep.subr.mxu0 0.0
    %401 = vmatpush2.msra.mxu0 0.0
    %402 = vmatprep.subr.mxu0 0.0
    %403 = vmatpush2.msra.mxu0 0.0
    %404 = vmatprep.mubr.f32.mxu0 0.0
    %v405 = vand.u32 %v126, 4294901760
    %v406 = vsub.f32 %v126, %v405
    %407 = vmatmul.mubr.f32.gmra.mxu0 %v406
    %v408 = vpop.f32.mrf.mxu0
    %v409 = vadd.f32 %v320, %v408
    %v410 = vpop.f32.mrf.mxu0
    %v411 = vadd.f32 %v322, %v410
    %412 = vdwg.mxu0
    %413 = vmatprep.subr.mxu0 0.0
    %414 = vmatpush1.msra.mxu0 0.0
    %415 = vmatprep.subr.mxu0 0.0
    %416 = vmatpush1.msra.mxu0 0.0
    %417 = vmatprep.subr.mxu0 0.0
    %418 = vmatpush1.msra.mxu0 0.0
    %419 = vmatprep.subr.mxu0 0.0
    %420 = vmatpush1.msra.mxu0 0.0
    %421 = vmatprep.subr.mxu0 0.0
    %422 = vmatpush1.msra.mxu0 0.0
    %423 = vmatprep.subr.mxu0 0.0
    %424 = vmatpush1.msra.mxu0 0.0
    %425 = vmatprep.subr.mxu0 0.0
    %426 = vmatpush1.msra.mxu0 0.0
    %427 = vmatprep.subr.mxu0 0.0
    %428 = vmatpush1.msra.mxu0 0.0
    %429 = vmatprep.subr.mxu0 0.0
    %430 = vmatpush1.msra.mxu0 0.0
    %431 = vmatprep.subr.mxu0 0.0
    %432 = vmatpush1.msra.mxu0 0.0
    %433 = vmatprep.subr.mxu0 0.0
    %434 = vmatpush1.msra.mxu0 0.0
    %435 = vmatprep.subr.mxu0 0.0
    %436 = vmatpush1.msra.mxu0 0.0
    %v437 = vand.u32 %v68, 4294901760
    %438 = vmatprep.subr.mxu0 %v437
    %v439 = vand.u32 %v67, 4294901760
    %440 = vmatpush1.msra.mxu0 %v439
    %v441 = vand.u32 %v66, 4294901760
    %442 = vmatprep.subr.mxu0 %v441
    %v443 = vand.u32 %v65, 4294901760
    %444 = vmatpush1.msra.mxu0 %v443
    %v445 = vand.u32 %v64, 4294901760
    %446 = vmatprep.subr.mxu0 %v445
    %v447 = vand.u32 %v63, 4294901760
    %448 = vmatpush1.msra.mxu0 %v447
    %v449 = vand.u32 %v62, 4294901760
    %450 = vmatprep.subr.mxu0 %v449
    %v451 = vand.u32 %v61, 4294901760
    %452 = vmatpush1.msra.mxu0 %v451
    %453 = vmatprep.subr.mxu0 0.0
    %454 = vmatpush2.msra.mxu0 0.0
    %455 = vmatprep.subr.mxu0 0.0
    %456 = vmatpush2.msra.mxu0 0.0
    %457 = vmatprep.subr.mxu0 0.0
    %458 = vmatpush2.msra.mxu0 0.0
    %459 = vmatprep.subr.mxu0 0.0
    %460 = vmatpush2.msra.mxu0 0.0
    %461 = vmatprep.subr.mxu0 0.0
    %462 = vmatpush2.msra.mxu0 0.0
    %463 = vmatprep.subr.mxu0 0.0
    %464 = vmatpush2.msra.mxu0 0.0
    %465 = vmatprep.subr.mxu0 0.0
    %466 = vmatpush2.msra.mxu0 0.0
    %467 = vmatprep.subr.mxu0 0.0
    %468 = vmatpush2.msra.mxu0 0.0
    %469 = vmatprep.subr.mxu0 0.0
    %470 = vmatpush2.msra.mxu0 0.0
    %471 = vmatprep.subr.mxu0 0.0
    %472 = vmatpush2.msra.mxu0 0.0
    %473 = vmatprep.subr.mxu0 0.0
    %474 = vmatpush2.msra.mxu0 0.0
    %475 = vmatprep.subr.mxu0 0.0
    %476 = vmatpush2.msra.mxu0 0.0
    %477 = vmatprep.subr.mxu0 0.0
    %478 = vmatpush2.msra.mxu0 0.0
    %479 = vmatprep.subr.mxu0 0.0
    %480 = vmatpush2.msra.mxu0 0.0
    %481 = vmatprep.subr.mxu0 0.0
    %482 = vmatpush2.msra.mxu0 0.0
    %483 = vmatprep.subr.mxu0 0.0
    %484 = vmatpush2.msra.mxu0 0.0
    %485 = vmatprep.mubr.f32.mxu0 0.0
    %v486 = vand.u32 %v126, 4294901760
    %v487 = vsub.f32 %v126, %v486
    %v488 = vand.u32 %v487, 4294901760
    %489 = vmatmul.mubr.f32.gmra.mxu0 %v488
    %v490 = vpop.f32.mrf.mxu0
    %v491 = vadd.f32 %v409, %v490
    %v492 = vpop.f32.mrf.mxu0
    %v493 = vadd.f32 %v411, %v492
    %494 = vdwg.mxu0
    %495 = vmatprep.subr.mxu0 0.0
    %496 = vmatpush1.msra.mxu0 0.0
    %497 = vmatprep.subr.mxu0 0.0
    %498 = vmatpush1.msra.mxu0 0.0
    %499 = vmatprep.subr.mxu0 0.0
    %500 = vmatpush1.msra.mxu0 0.0
    %501 = vmatprep.subr.mxu0 0.0
    %502 = vmatpush1.msra.mxu0 0.0
    %503 = vmatprep.subr.mxu0 0.0
    %504 = vmatpush1.msra.mxu0 0.0
    %505 = vmatprep.subr.mxu0 0.0
    %506 = vmatpush1.msra.mxu0 0.0
    %507 = vmatprep.subr.mxu0 0.0
    %508 = vmatpush1.msra.mxu0 0.0
    %509 = vmatprep.subr.mxu0 0.0
    %510 = vmatpush1.msra.mxu0 0.0
    %511 = vmatprep.subr.mxu0 0.0
    %512 = vmatpush1.msra.mxu0 0.0
    %513 = vmatprep.subr.mxu0 0.0
    %514 = vmatpush1.msra.mxu0 0.0
    %515 = vmatprep.subr.mxu0 0.0
    %516 = vmatpush1.msra.mxu0 0.0
    %517 = vmatprep.subr.mxu0 0.0
    %518 = vmatpush1.msra.mxu0 0.0
    %v519 = vand.u32 %v68, 4294901760
    %v520 = vsub.f32 %v68, %v519
    %v521 = vand.u32 %v520, 4294901760
    %522 = vmatprep.subr.mxu0 %v521
    %v523 = vand.u32 %v67, 4294901760
    %v524 = vsub.f32 %v67, %v523
    %v525 = vand.u32 %v524, 4294901760
    %526 = vmatpush1.msra.mxu0 %v525
    %v527 = vand.u32 %v66, 4294901760
    %v528 = vsub.f32 %v66, %v527
    %v529 = vand.u32 %v528, 4294901760
    %530 = vmatprep.subr.mxu0 %v529
    %v531 = vand.u32 %v65, 4294901760
    %v532 = vsub.f32 %v65, %v531
    %v533 = vand.u32 %v532, 4294901760
    %534 = vmatpush1.msra.mxu0 %v533
    %v535 = vand.u32 %v64, 4294901760
    %v536 = vsub.f32 %v64, %v535
    %v537 = vand.u32 %v536, 4294901760
    %538 = vmatprep.subr.mxu0 %v537
    %v539 = vand.u32 %v63, 4294901760
    %v540 = vsub.f32 %v63, %v539
    %v541 = vand.u32 %v540, 4294901760
    %542 = vmatpush1.msra.mxu0 %v541
    %v543 = vand.u32 %v62, 4294901760
    %v544 = vsub.f32 %v62, %v543
    %v545 = vand.u32 %v544, 4294901760
    %546 = vmatprep.subr.mxu0 %v545
    %v547 = vand.u32 %v61, 4294901760
    %v548 = vsub.f32 %v61, %v547
    %v549 = vand.u32 %v548, 4294901760
    %550 = vmatpush1.msra.mxu0 %v549
    %551 = vmatprep.subr.mxu0 0.0
    %552 = vmatpush2.msra.mxu0 0.0
    %553 = vmatprep.subr.mxu0 0.0
    %554 = vmatpush2.msra.mxu0 0.0
    %555 = vmatprep.subr.mxu0 0.0
    %556 = vmatpush2.msra.mxu0 0.0
    %557 = vmatprep.subr.mxu0 0.0
    %558 = vmatpush2.msra.mxu0 0.0
    %559 = vmatprep.subr.mxu0 0.0
    %560 = vmatpush2.msra.mxu0 0.0
    %561 = vmatprep.subr.mxu0 0.0
    %562 = vmatpush2.msra.mxu0 0.0
    %563 = vmatprep.subr.mxu0 0.0
    %564 = vmatpush2.msra.mxu0 0.0
    %565 = vmatprep.subr.mxu0 0.0
    %566 = vmatpush2.msra.mxu0 0.0
    %567 = vmatprep.subr.mxu0 0.0
    %568 = vmatpush2.msra.mxu0 0.0
    %569 = vmatprep.subr.mxu0 0.0
    %570 = vmatpush2.msra.mxu0 0.0
    %571 = vmatprep.subr.mxu0 0.0
    %572 = vmatpush2.msra.mxu0 0.0
    %573 = vmatprep.subr.mxu0 0.0
    %574 = vmatpush2.msra.mxu0 0.0
    %575 = vmatprep.subr.mxu0 0.0
    %576 = vmatpush2.msra.mxu0 0.0
    %577 = vmatprep.subr.mxu0 0.0
    %578 = vmatpush2.msra.mxu0 0.0
    %579 = vmatprep.subr.mxu0 0.0
    %580 = vmatpush2.msra.mxu0 0.0
    %581 = vmatprep.subr.mxu0 0.0
    %582 = vmatpush2.msra.mxu0 0.0
    %583 = vmatprep.mubr.f32.mxu0 0.0
    %v584 = vand.u32 %v126, 4294901760
    %585 = vmatmul.mubr.f32.gmra.mxu0 %v584
    %v586 = vpop.f32.mrf.mxu0
    %v587 = vadd.f32 %v491, %v586
    %v588 = vpop.f32.mrf.mxu0
    %v589 = vadd.f32 %v493, %v588
    %590 = vdwg.mxu0
    %591 = vmatprep.subr.mxu0 0.0
    %592 = vmatpush1.msra.mxu0 0.0
    %593 = vmatprep.subr.mxu0 0.0
    %594 = vmatpush1.msra.mxu0 0.0
    %595 = vmatprep.subr.mxu0 0.0
    %596 = vmatpush1.msra.mxu0 0.0
    %597 = vmatprep.subr.mxu0 0.0
    %598 = vmatpush1.msra.mxu0 0.0
    %599 = vmatprep.subr.mxu0 0.0
    %600 = vmatpush1.msra.mxu0 0.0
    %601 = vmatprep.subr.mxu0 0.0
    %602 = vmatpush1.msra.mxu0 0.0
    %603 = vmatprep.subr.mxu0 0.0
    %604 = vmatpush1.msra.mxu0 0.0
    %605 = vmatprep.subr.mxu0 0.0
    %606 = vmatpush1.msra.mxu0 0.0
    %607 = vmatprep.subr.mxu0 0.0
    %608 = vmatpush1.msra.mxu0 0.0
    %609 = vmatprep.subr.mxu0 0.0
    %610 = vmatpush1.msra.mxu0 0.0
    %611 = vmatprep.subr.mxu0 0.0
    %612 = vmatpush1.msra.mxu0 0.0
    %613 = vmatprep.subr.mxu0 0.0
    %614 = vmatpush1.msra.mxu0 0.0
    %v615 = vand.u32 %v68, 4294901760
    %616 = vmatprep.subr.mxu0 %v615
    %v617 = vand.u32 %v67, 4294901760
    %618 = vmatpush1.msra.mxu0 %v617
    %v619 = vand.u32 %v66, 4294901760
    %620 = vmatprep.subr.mxu0 %v619
    %v621 = vand.u32 %v65, 4294901760
    %622 = vmatpush1.msra.mxu0 %v621
    %v623 = vand.u32 %v64, 4294901760
    %624 = vmatprep.subr.mxu0 %v623
    %v625 = vand.u32 %v63, 4294901760
    %626 = vmatpush1.msra.mxu0 %v625
    %v627 = vand.u32 %v62, 4294901760
    %628 = vmatprep.subr.mxu0 %v627
    %v629 = vand.u32 %v61, 4294901760
    %630 = vmatpush1.msra.mxu0 %v629
    %631 = vmatprep.subr.mxu0 0.0
    %632 = vmatpush2.msra.mxu0 0.0
    %633 = vmatprep.subr.mxu0 0.0
    %634 = vmatpush2.msra.mxu0 0.0
    %635 = vmatprep.subr.mxu0 0.0
    %636 = vmatpush2.msra.mxu0 0.0
    %637 = vmatprep.subr.mxu0 0.0
    %638 = vmatpush2.msra.mxu0 0.0
    %639 = vmatprep.subr.mxu0 0.0
    %640 = vmatpush2.msra.mxu0 0.0
    %641 = vmatprep.subr.mxu0 0.0
    %642 = vmatpush2.msra.mxu0 0.0
    %643 = vmatprep.subr.mxu0 0.0
    %644 = vmatpush2.msra.mxu0 0.0
    %645 = vmatprep.subr.mxu0 0.0
    %646 = vmatpush2.msra.mxu0 0.0
    %647 = vmatprep.subr.mxu0 0.0
    %648 = vmatpush2.msra.mxu0 0.0
    %649 = vmatprep.subr.mxu0 0.0
    %650 = vmatpush2.msra.mxu0 0.0
    %651 = vmatprep.subr.mxu0 0.0
    %652 = vmatpush2.msra.mxu0 0.0
    %653 = vmatprep.subr.mxu0 0.0
    %654 = vmatpush2.msra.mxu0 0.0
    %655 = vmatprep.subr.mxu0 0.0
    %656 = vmatpush2.msra.mxu0 0.0
    %657 = vmatprep.subr.mxu0 0.0
    %658 = vmatpush2.msra.mxu0 0.0
    %659 = vmatprep.subr.mxu0 0.0
    %660 = vmatpush2.msra.mxu0 0.0
    %661 = vmatprep.subr.mxu0 0.0
    %662 = vmatpush2.msra.mxu0 0.0
    %663 = vmatprep.mubr.f32.mxu0 0.0
    %v664 = vand.u32 %v126, 4294901760
    %665 = vmatmul.mubr.f32.gmra.mxu0 %v664
    %v666 = vpop.f32.mrf.mxu0
    %v667 = vadd.f32 %v587, %v666
    %v668 = vpop.f32.mrf.mxu0
    %v669 = vadd.f32 %v589, %v668
    %670 = vdwg.mxu0
    %s671 = sld [smem:[#allocation5 + $0x7]]
    %s672 = scalar_lea.vmem %s1, %s671
    %v673 = vld [vmem:[%s672] sm:$0x1]
    %s674 = sld [smem:[#allocation5 + $0xf]]
    %s675 = scalar_lea.vmem %s1, %s674
    %v676 = vld [vmem:[%s675] sm:$0x1]
    %v678 = vlaneseq
    %v679 = vshrl.u32 %v678, 7
    %v680 = vsub.s32 0, %v679
    %v681 = vrot.slane %v676, %v680
    %v683 = vsel %vm111, %v673, %v681
    %v685 = vsel %vm124, %v683, 0
    %687 = vmatprep.subr.mxu0 0.0
    %688 = vmatpush1.msra.mxu0 0.0
    %689 = vmatprep.subr.mxu0 0.0
    %690 = vmatpush1.msra.mxu0 0.0
    %691 = vmatprep.subr.mxu0 0.0
    %692 = vmatpush1.msra.mxu0 0.0
    %693 = vmatprep.subr.mxu0 0.0
    %694 = vmatpush1.msra.mxu0 0.0
    %695 = vmatprep.subr.mxu0 0.0
    %696 = vmatpush1.msra.mxu0 0.0
    %697 = vmatprep.subr.mxu0 0.0
    %698 = vmatpush1.msra.mxu0 0.0
    %699 = vmatprep.subr.mxu0 0.0
    %700 = vmatpush1.msra.mxu0 0.0
    %701 = vmatprep.subr.mxu0 0.0
    %702 = vmatpush1.msra.mxu0 0.0
    %703 = vmatprep.subr.mxu0 0.0
    %704 = vmatpush1.msra.mxu0 0.0
    %705 = vmatprep.subr.mxu0 0.0
    %706 = vmatpush1.msra.mxu0 0.0
    %707 = vmatprep.subr.mxu0 0.0
    %708 = vmatpush1.msra.mxu0 0.0
    %709 = vmatprep.subr.mxu0 0.0
    %710 = vmatpush1.msra.mxu0 0.0
    %v711 = vand.u32 %v68, 4294901760
    %712 = vmatprep.subr.mxu0 %v711
    %v713 = vand.u32 %v67, 4294901760
    %714 = vmatpush1.msra.mxu0 %v713
    %v715 = vand.u32 %v66, 4294901760
    %716 = vmatprep.subr.mxu0 %v715
    %v717 = vand.u32 %v65, 4294901760
    %718 = vmatpush1.msra.mxu0 %v717
    %v719 = vand.u32 %v64, 4294901760
    %720 = vmatprep.subr.mxu0 %v719
    %v721 = vand.u32 %v63, 4294901760
    %722 = vmatpush1.msra.mxu0 %v721
    %v723 = vand.u32 %v62, 4294901760
    %724 = vmatprep.subr.mxu0 %v723
    %v725 = vand.u32 %v61, 4294901760
    %726 = vmatpush1.msra.mxu0 %v725
    %727 = vmatprep.subr.mxu0 0.0
    %728 = vmatpush2.msra.mxu0 0.0
    %729 = vmatprep.subr.mxu0 0.0
    %730 = vmatpush2.msra.mxu0 0.0
    %731 = vmatprep.subr.mxu0 0.0
    %732 = vmatpush2.msra.mxu0 0.0
    %733 = vmatprep.subr.mxu0 0.0
    %734 = vmatpush2.msra.mxu0 0.0
    %735 = vmatprep.subr.mxu0 0.0
    %736 = vmatpush2.msra.mxu0 0.0
    %737 = vmatprep.subr.mxu0 0.0
    %738 = vmatpush2.msra.mxu0 0.0
    %739 = vmatprep.subr.mxu0 0.0
    %740 = vmatpush2.msra.mxu0 0.0
    %741 = vmatprep.subr.mxu0 0.0
    %742 = vmatpush2.msra.mxu0 0.0
    %743 = vmatprep.subr.mxu0 0.0
    %744 = vmatpush2.msra.mxu0 0.0
    %745 = vmatprep.subr.mxu0 0.0
    %746 = vmatpush2.msra.mxu0 0.0
    %747 = vmatprep.subr.mxu0 0.0
    %748 = vmatpush2.msra.mxu0 0.0
    %749 = vmatprep.subr.mxu0 0.0
    %750 = vmatpush2.msra.mxu0 0.0
    %751 = vmatprep.subr.mxu0 0.0
    %752 = vmatpush2.msra.mxu0 0.0
    %753 = vmatprep.subr.mxu0 0.0
    %754 = vmatpush2.msra.mxu0 0.0
    %755 = vmatprep.subr.mxu0 0.0
    %756 = vmatpush2.msra.mxu0 0.0
    %757 = vmatprep.subr.mxu0 0.0
    %758 = vmatpush2.msra.mxu0 0.0
    %759 = vmatprep.mubr.f32.mxu0 0.0
    %v760 = vand.u32 %v685, 4294901760
    %v761 = vsub.f32 %v685, %v760
    %v762 = vand.u32 %v761, 4294901760
    %v763 = vsub.f32 %v761, %v762
    %v764 = vand.u32 %v763, 4294901760
    %765 = vmatmul.mubr.f32.gmra.mxu0 %v764
    %v766 = vpop.f32.mrf.mxu0
    %v767 = vadd.f32 %v117, %v766
    %v768 = vpop.f32.mrf.mxu0
    %v769 = vadd.f32 %v121, %v768
    %770 = vdwg.mxu0
    %771 = vmatprep.subr.mxu0 0.0
    %772 = vmatpush1.msra.mxu0 0.0
    %773 = vmatprep.subr.mxu0 0.0
    %774 = vmatpush1.msra.mxu0 0.0
    %775 = vmatprep.subr.mxu0 0.0
    %776 = vmatpush1.msra.mxu0 0.0
    %777 = vmatprep.subr.mxu0 0.0
    %778 = vmatpush1.msra.mxu0 0.0
    %779 = vmatprep.subr.mxu0 0.0
    %780 = vmatpush1.msra.mxu0 0.0
    %781 = vmatprep.subr.mxu0 0.0
    %782 = vmatpush1.msra.mxu0 0.0
    %783 = vmatprep.subr.mxu0 0.0
    %784 = vmatpush1.msra.mxu0 0.0
    %785 = vmatprep.subr.mxu0 0.0
    %786 = vmatpush1.msra.mxu0 0.0
    %787 = vmatprep.subr.mxu0 0.0
    %788 = vmatpush1.msra.mxu0 0.0
    %789 = vmatprep.subr.mxu0 0.0
    %790 = vmatpush1.msra.mxu0 0.0
    %791 = vmatprep.subr.mxu0 0.0
    %792 = vmatpush1.msra.mxu0 0.0
    %793 = vmatprep.subr.mxu0 0.0
    %794 = vmatpush1.msra.mxu0 0.0
    %v795 = vand.u32 %v68, 4294901760
    %v796 = vsub.f32 %v68, %v795
    %v797 = vand.u32 %v796, 4294901760
    %v798 = vsub.f32 %v796, %v797
    %v799 = vand.u32 %v798, 4294901760
    %800 = vmatprep.subr.mxu0 %v799
    %v801 = vand.u32 %v67, 4294901760
    %v802 = vsub.f32 %v67, %v801
    %v803 = vand.u32 %v802, 4294901760
    %v804 = vsub.f32 %v802, %v803
    %v805 = vand.u32 %v804, 4294901760
    %806 = vmatpush1.msra.mxu0 %v805
    %v807 = vand.u32 %v66, 4294901760
    %v808 = vsub.f32 %v66, %v807
    %v809 = vand.u32 %v808, 4294901760
    %v810 = vsub.f32 %v808, %v809
    %v811 = vand.u32 %v810, 4294901760
    %812 = vmatprep.subr.mxu0 %v811
    %v813 = vand.u32 %v65, 4294901760
    %v814 = vsub.f32 %v65, %v813
    %v815 = vand.u32 %v814, 4294901760
    %v816 = vsub.f32 %v814, %v815
    %v817 = vand.u32 %v816, 4294901760
    %818 = vmatpush1.msra.mxu0 %v817
    %v819 = vand.u32 %v64, 4294901760
    %v820 = vsub.f32 %v64, %v819
    %v821 = vand.u32 %v820, 4294901760
    %v822 = vsub.f32 %v820, %v821
    %v823 = vand.u32 %v822, 4294901760
    %824 = vmatprep.subr.mxu0 %v823
    %v825 = vand.u32 %v63, 4294901760
    %v826 = vsub.f32 %v63, %v825
    %v827 = vand.u32 %v826, 4294901760
    %v828 = vsub.f32 %v826, %v827
    %v829 = vand.u32 %v828, 4294901760
    %830 = vmatpush1.msra.mxu0 %v829
    %v831 = vand.u32 %v62, 4294901760
    %v832 = vsub.f32 %v62, %v831
    %v833 = vand.u32 %v832, 4294901760
    %v834 = vsub.f32 %v832, %v833
    %v835 = vand.u32 %v834, 4294901760
    %836 = vmatprep.subr.mxu0 %v835
    %v837 = vand.u32 %v61, 4294901760
    %v838 = vsub.f32 %v61, %v837
    %v839 = vand.u32 %v838, 4294901760
    %v840 = vsub.f32 %v838, %v839
    %v841 = vand.u32 %v840, 4294901760
    %842 = vmatpush1.msra.mxu0 %v841
    %843 = vmatprep.subr.mxu0 0.0
    %844 = vmatpush2.msra.mxu0 0.0
    %845 = vmatprep.subr.mxu0 0.0
    %846 = vmatpush2.msra.mxu0 0.0
    %847 = vmatprep.subr.mxu0 0.0
    %848 = vmatpush2.msra.mxu0 0.0
    %849 = vmatprep.subr.mxu0 0.0
    %850 = vmatpush2.msra.mxu0 0.0
    %851 = vmatprep.subr.mxu0 0.0
    %852 = vmatpush2.msra.mxu0 0.0
    %853 = vmatprep.subr.mxu0 0.0
    %854 = vmatpush2.msra.mxu0 0.0
    %855 = vmatprep.subr.mxu0 0.0
    %856 = vmatpush2.msra.mxu0 0.0
    %857 = vmatprep.subr.mxu0 0.0
    %858 = vmatpush2.msra.mxu0 0.0
    %859 = vmatprep.subr.mxu0 0.0
    %860 = vmatpush2.msra.mxu0 0.0
    %861 = vmatprep.subr.mxu0 0.0
    %862 = vmatpush2.msra.mxu0 0.0
    %863 = vmatprep.subr.mxu0 0.0
    %864 = vmatpush2.msra.mxu0 0.0
    %865 = vmatprep.subr.mxu0 0.0
    %866 = vmatpush2.msra.mxu0 0.0
    %867 = vmatprep.subr.mxu0 0.0
    %868 = vmatpush2.msra.mxu0 0.0
    %869 = vmatprep.subr.mxu0 0.0
    %870 = vmatpush2.msra.mxu0 0.0
    %871 = vmatprep.subr.mxu0 0.0
    %872 = vmatpush2.msra.mxu0 0.0
    %873 = vmatprep.subr.mxu0 0.0
    %874 = vmatpush2.msra.mxu0 0.0
    %875 = vmatprep.mubr.f32.mxu0 0.0
    %v876 = vand.u32 %v685, 4294901760
    %877 = vmatmul.mubr.f32.gmra.mxu0 %v876
    %v878 = vpop.f32.mrf.mxu0
    %v879 = vadd.f32 %v767, %v878
    %v880 = vpop.f32.mrf.mxu0
    %v881 = vadd.f32 %v769, %v880
    %882 = vdwg.mxu0
    %883 = vmatprep.subr.mxu0 0.0
    %884 = vmatpush1.msra.mxu0 0.0
    %885 = vmatprep.subr.mxu0 0.0
    %886 = vmatpush1.msra.mxu0 0.0
    %887 = vmatprep.subr.mxu0 0.0
    %888 = vmatpush1.msra.mxu0 0.0
    %889 = vmatprep.subr.mxu0 0.0
    %890 = vmatpush1.msra.mxu0 0.0
    %891 = vmatprep.subr.mxu0 0.0
    %892 = vmatpush1.msra.mxu0 0.0
    %893 = vmatprep.subr.mxu0 0.0
    %894 = vmatpush1.msra.mxu0 0.0
    %895 = vmatprep.subr.mxu0 0.0
    %896 = vmatpush1.msra.mxu0 0.0
    %897 = vmatprep.subr.mxu0 0.0
    %898 = vmatpush1.msra.mxu0 0.0
    %899 = vmatprep.subr.mxu0 0.0
    %900 = vmatpush1.msra.mxu0 0.0
    %901 = vmatprep.subr.mxu0 0.0
    %902 = vmatpush1.msra.mxu0 0.0
    %903 = vmatprep.subr.mxu0 0.0
    %904 = vmatpush1.msra.mxu0 0.0
    %905 = vmatprep.subr.mxu0 0.0
    %906 = vmatpush1.msra.mxu0 0.0
    %v907 = vand.u32 %v68, 4294901760
    %v908 = vsub.f32 %v68, %v907
    %909 = vmatprep.subr.mxu0 %v908
    %v910 = vand.u32 %v67, 4294901760
    %v911 = vsub.f32 %v67, %v910
    %912 = vmatpush1.msra.mxu0 %v911
    %v913 = vand.u32 %v66, 4294901760
    %v914 = vsub.f32 %v66, %v913
    %915 = vmatprep.subr.mxu0 %v914
    %v916 = vand.u32 %v65, 4294901760
    %v917 = vsub.f32 %v65, %v916
    %918 = vmatpush1.msra.mxu0 %v917
    %v919 = vand.u32 %v64, 4294901760
    %v920 = vsub.f32 %v64, %v919
    %921 = vmatprep.subr.mxu0 %v920
    %v922 = vand.u32 %v63, 4294901760
    %v923 = vsub.f32 %v63, %v922
    %924 = vmatpush1.msra.mxu0 %v923
    %v925 = vand.u32 %v62, 4294901760
    %v926 = vsub.f32 %v62, %v925
    %927 = vmatprep.subr.mxu0 %v926
    %v928 = vand.u32 %v61, 4294901760
    %v929 = vsub.f32 %v61, %v928
    %930 = vmatpush1.msra.mxu0 %v929
    %931 = vmatprep.subr.mxu0 0.0
    %932 = vmatpush2.msra.mxu0 0.0
    %933 = vmatprep.subr.mxu0 0.0
    %934 = vmatpush2.msra.mxu0 0.0
    %935 = vmatprep.subr.mxu0 0.0
    %936 = vmatpush2.msra.mxu0 0.0
    %937 = vmatprep.subr.mxu0 0.0
    %938 = vmatpush2.msra.mxu0 0.0
    %939 = vmatprep.subr.mxu0 0.0
    %940 = vmatpush2.msra.mxu0 0.0
    %941 = vmatprep.subr.mxu0 0.0
    %942 = vmatpush2.msra.mxu0 0.0
    %943 = vmatprep.subr.mxu0 0.0
    %944 = vmatpush2.msra.mxu0 0.0
    %945 = vmatprep.subr.mxu0 0.0
    %946 = vmatpush2.msra.mxu0 0.0
    %947 = vmatprep.subr.mxu0 0.0
    %948 = vmatpush2.msra.mxu0 0.0
    %949 = vmatprep.subr.mxu0 0.0
    %950 = vmatpush2.msra.mxu0 0.0
    %951 = vmatprep.subr.mxu0 0.0
    %952 = vmatpush2.msra.mxu0 0.0
    %953 = vmatprep.subr.mxu0 0.0
    %954 = vmatpush2.msra.mxu0 0.0
    %955 = vmatprep.subr.mxu0 0.0
    %956 = vmatpush2.msra.mxu0 0.0
    %957 = vmatprep.subr.mxu0 0.0
    %958 = vmatpush2.msra.mxu0 0.0
    %959 = vmatprep.subr.mxu0 0.0
    %960 = vmatpush2.msra.mxu0 0.0
    %961 = vmatprep.subr.mxu0 0.0
    %962 = vmatpush2.msra.mxu0 0.0
    %963 = vmatprep.mubr.f32.mxu0 0.0
    %v964 = vand.u32 %v685, 4294901760
    %v965 = vsub.f32 %v685, %v964
    %966 = vmatmul.mubr.f32.gmra.mxu0 %v965
    %v967 = vpop.f32.mrf.mxu0
    %v968 = vadd.f32 %v879, %v967
    %v969 = vpop.f32.mrf.mxu0
    %v970 = vadd.f32 %v881, %v969
    %971 = vdwg.mxu0
    %972 = vmatprep.subr.mxu0 0.0
    %973 = vmatpush1.msra.mxu0 0.0
    %974 = vmatprep.subr.mxu0 0.0
    %975 = vmatpush1.msra.mxu0 0.0
    %976 = vmatprep.subr.mxu0 0.0
    %977 = vmatpush1.msra.mxu0 0.0
    %978 = vmatprep.subr.mxu0 0.0
    %979 = vmatpush1.msra.mxu0 0.0
    %980 = vmatprep.subr.mxu0 0.0
    %981 = vmatpush1.msra.mxu0 0.0
    %982 = vmatprep.subr.mxu0 0.0
    %983 = vmatpush1.msra.mxu0 0.0
    %984 = vmatprep.subr.mxu0 0.0
    %985 = vmatpush1.msra.mxu0 0.0
    %986 = vmatprep.subr.mxu0 0.0
    %987 = vmatpush1.msra.mxu0 0.0
    %988 = vmatprep.subr.mxu0 0.0
    %989 = vmatpush1.msra.mxu0 0.0
    %990 = vmatprep.subr.mxu0 0.0
    %991 = vmatpush1.msra.mxu0 0.0
    %992 = vmatprep.subr.mxu0 0.0
    %993 = vmatpush1.msra.mxu0 0.0
    %994 = vmatprep.subr.mxu0 0.0
    %995 = vmatpush1.msra.mxu0 0.0
    %v996 = vand.u32 %v68, 4294901760
    %997 = vmatprep.subr.mxu0 %v996
    %v998 = vand.u32 %v67, 4294901760
    %999 = vmatpush1.msra.mxu0 %v998
    %v1000 = vand.u32 %v66, 4294901760
    %1001 = vmatprep.subr.mxu0 %v1000
    %v1002 = vand.u32 %v65, 4294901760
    %1003 = vmatpush1.msra.mxu0 %v1002
    %v1004 = vand.u32 %v64, 4294901760
    %1005 = vmatprep.subr.mxu0 %v1004
    %v1006 = vand.u32 %v63, 4294901760
    %1007 = vmatpush1.msra.mxu0 %v1006
    %v1008 = vand.u32 %v62, 4294901760
    %1009 = vmatprep.subr.mxu0 %v1008
    %v1010 = vand.u32 %v61, 4294901760
    %1011 = vmatpush1.msra.mxu0 %v1010
    %1012 = vmatprep.subr.mxu0 0.0
    %1013 = vmatpush2.msra.mxu0 0.0
    %1014 = vmatprep.subr.mxu0 0.0
    %1015 = vmatpush2.msra.mxu0 0.0
    %1016 = vmatprep.subr.mxu0 0.0
    %1017 = vmatpush2.msra.mxu0 0.0
    %1018 = vmatprep.subr.mxu0 0.0
    %1019 = vmatpush2.msra.mxu0 0.0
    %1020 = vmatprep.subr.mxu0 0.0
    %1021 = vmatpush2.msra.mxu0 0.0
    %1022 = vmatprep.subr.mxu0 0.0
    %1023 = vmatpush2.msra.mxu0 0.0
    %1024 = vmatprep.subr.mxu0 0.0
    %1025 = vmatpush2.msra.mxu0 0.0
    %1026 = vmatprep.subr.mxu0 0.0
    %1027 = vmatpush2.msra.mxu0 0.0
    %1028 = vmatprep.subr.mxu0 0.0
    %1029 = vmatpush2.msra.mxu0 0.0
    %1030 = vmatprep.subr.mxu0 0.0
    %1031 = vmatpush2.msra.mxu0 0.0
    %1032 = vmatprep.subr.mxu0 0.0
    %1033 = vmatpush2.msra.mxu0 0.0
    %1034 = vmatprep.subr.mxu0 0.0
    %1035 = vmatpush2.msra.mxu0 0.0
    %1036 = vmatprep.subr.mxu0 0.0
    %1037 = vmatpush2.msra.mxu0 0.0
    %1038 = vmatprep.subr.mxu0 0.0
    %1039 = vmatpush2.msra.mxu0 0.0
    %1040 = vmatprep.subr.mxu0 0.0
    %1041 = vmatpush2.msra.mxu0 0.0
    %1042 = vmatprep.subr.mxu0 0.0
    %1043 = vmatpush2.msra.mxu0 0.0
    %1044 = vmatprep.mubr.f32.mxu0 0.0
    %v1045 = vand.u32 %v685, 4294901760
    %v1046 = vsub.f32 %v685, %v1045
    %v1047 = vand.u32 %v1046, 4294901760
    %1048 = vmatmul.mubr.f32.gmra.mxu0 %v1047
    %v1049 = vpop.f32.mrf.mxu0
    %v1050 = vadd.f32 %v968, %v1049
    %v1051 = vpop.f32.mrf.mxu0
    %v1052 = vadd.f32 %v970, %v1051
    %1053 = vdwg.mxu0
    %1054 = vmatprep.subr.mxu0 0.0
    %1055 = vmatpush1.msra.mxu0 0.0
    %1056 = vmatprep.subr.mxu0 0.0
    %1057 = vmatpush1.msra.mxu0 0.0
    %1058 = vmatprep.subr.mxu0 0.0
    %1059 = vmatpush1.msra.mxu0 0.0
    %1060 = vmatprep.subr.mxu0 0.0
    %1061 = vmatpush1.msra.mxu0 0.0
    %1062 = vmatprep.subr.mxu0 0.0
    %1063 = vmatpush1.msra.mxu0 0.0
    %1064 = vmatprep.subr.mxu0 0.0
    %1065 = vmatpush1.msra.mxu0 0.0
    %1066 = vmatprep.subr.mxu0 0.0
    %1067 = vmatpush1.msra.mxu0 0.0
    %1068 = vmatprep.subr.mxu0 0.0
    %1069 = vmatpush1.msra.mxu0 0.0
    %1070 = vmatprep.subr.mxu0 0.0
    %1071 = vmatpush1.msra.mxu0 0.0
    %1072 = vmatprep.subr.mxu0 0.0
    %1073 = vmatpush1.msra.mxu0 0.0
    %1074 = vmatprep.subr.mxu0 0.0
    %1075 = vmatpush1.msra.mxu0 0.0
    %1076 = vmatprep.subr.mxu0 0.0
    %1077 = vmatpush1.msra.mxu0 0.0
    %v1078 = vand.u32 %v68, 4294901760
    %v1079 = vsub.f32 %v68, %v1078
    %v1080 = vand.u32 %v1079, 4294901760
    %1081 = vmatprep.subr.mxu0 %v1080
    %v1082 = vand.u32 %v67, 4294901760
    %v1083 = vsub.f32 %v67, %v1082
    %v1084 = vand.u32 %v1083, 4294901760
    %1085 = vmatpush1.msra.mxu0 %v1084
    %v1086 = vand.u32 %v66, 4294901760
    %v1087 = vsub.f32 %v66, %v1086
    %v1088 = vand.u32 %v1087, 4294901760
    %1089 = vmatprep.subr.mxu0 %v1088
    %v1090 = vand.u32 %v65, 4294901760
    %v1091 = vsub.f32 %v65, %v1090
    %v1092 = vand.u32 %v1091, 4294901760
    %1093 = vmatpush1.msra.mxu0 %v1092
    %v1094 = vand.u32 %v64, 4294901760
    %v1095 = vsub.f32 %v64, %v1094
    %v1096 = vand.u32 %v1095, 4294901760
    %1097 = vmatprep.subr.mxu0 %v1096
    %v1098 = vand.u32 %v63, 4294901760
    %v1099 = vsub.f32 %v63, %v1098
    %v1100 = vand.u32 %v1099, 4294901760
    %1101 = vmatpush1.msra.mxu0 %v1100
    %v1102 = vand.u32 %v62, 4294901760
    %v1103 = vsub.f32 %v62, %v1102
    %v1104 = vand.u32 %v1103, 4294901760
    %1105 = vmatprep.subr.mxu0 %v1104
    %v1106 = vand.u32 %v61, 4294901760
    %v1107 = vsub.f32 %v61, %v1106
    %v1108 = vand.u32 %v1107, 4294901760
    %1109 = vmatpush1.msra.mxu0 %v1108
    %1110 = vmatprep.subr.mxu0 0.0
    %1111 = vmatpush2.msra.mxu0 0.0
    %1112 = vmatprep.subr.mxu0 0.0
    %1113 = vmatpush2.msra.mxu0 0.0
    %1114 = vmatprep.subr.mxu0 0.0
    %1115 = vmatpush2.msra.mxu0 0.0
    %1116 = vmatprep.subr.mxu0 0.0
    %1117 = vmatpush2.msra.mxu0 0.0
    %1118 = vmatprep.subr.mxu0 0.0
    %1119 = vmatpush2.msra.mxu0 0.0
    %1120 = vmatprep.subr.mxu0 0.0
    %1121 = vmatpush2.msra.mxu0 0.0
    %1122 = vmatprep.subr.mxu0 0.0
    %1123 = vmatpush2.msra.mxu0 0.0
    %1124 = vmatprep.subr.mxu0 0.0
    %1125 = vmatpush2.msra.mxu0 0.0
    %1126 = vmatprep.subr.mxu0 0.0
    %1127 = vmatpush2.msra.mxu0 0.0
    %1128 = vmatprep.subr.mxu0 0.0
    %1129 = vmatpush2.msra.mxu0 0.0
    %1130 = vmatprep.subr.mxu0 0.0
    %1131 = vmatpush2.msra.mxu0 0.0
    %1132 = vmatprep.subr.mxu0 0.0
    %1133 = vmatpush2.msra.mxu0 0.0
    %1134 = vmatprep.subr.mxu0 0.0
    %1135 = vmatpush2.msra.mxu0 0.0
    %1136 = vmatprep.subr.mxu0 0.0
    %1137 = vmatpush2.msra.mxu0 0.0
    %1138 = vmatprep.subr.mxu0 0.0
    %1139 = vmatpush2.msra.mxu0 0.0
    %1140 = vmatprep.subr.mxu0 0.0
    %1141 = vmatpush2.msra.mxu0 0.0
    %1142 = vmatprep.mubr.f32.mxu0 0.0
    %v1143 = vand.u32 %v685, 4294901760
    %1144 = vmatmul.mubr.f32.gmra.mxu0 %v1143
    %v1145 = vpop.f32.mrf.mxu0
    %v1146 = vadd.f32 %v1050, %v1145
    %v1147 = vpop.f32.mrf.mxu0
    %v1148 = vadd.f32 %v1052, %v1147
    %1149 = vdwg.mxu0
    %1150 = vmatprep.subr.mxu0 0.0
    %1151 = vmatpush1.msra.mxu0 0.0
    %1152 = vmatprep.subr.mxu0 0.0
    %1153 = vmatpush1.msra.mxu0 0.0
    %1154 = vmatprep.subr.mxu0 0.0
    %1155 = vmatpush1.msra.mxu0 0.0
    %1156 = vmatprep.subr.mxu0 0.0
    %1157 = vmatpush1.msra.mxu0 0.0
    %1158 = vmatprep.subr.mxu0 0.0
    %1159 = vmatpush1.msra.mxu0 0.0
    %1160 = vmatprep.subr.mxu0 0.0
    %1161 = vmatpush1.msra.mxu0 0.0
    %1162 = vmatprep.subr.mxu0 0.0
    %1163 = vmatpush1.msra.mxu0 0.0
    %1164 = vmatprep.subr.mxu0 0.0
    %1165 = vmatpush1.msra.mxu0 0.0
    %1166 = vmatprep.subr.mxu0 0.0
    %1167 = vmatpush1.msra.mxu0 0.0
    %1168 = vmatprep.subr.mxu0 0.0
    %1169 = vmatpush1.msra.mxu0 0.0
    %1170 = vmatprep.subr.mxu0 0.0
    %1171 = vmatpush1.msra.mxu0 0.0
    %1172 = vmatprep.subr.mxu0 0.0
    %1173 = vmatpush1.msra.mxu0 0.0
    %v1174 = vand.u32 %v68, 4294901760
    %1175 = vmatprep.subr.mxu0 %v1174
    %v1176 = vand.u32 %v67, 4294901760
    %1177 = vmatpush1.msra.mxu0 %v1176
    %v1178 = vand.u32 %v66, 4294901760
    %1179 = vmatprep.subr.mxu0 %v1178
    %v1180 = vand.u32 %v65, 4294901760
    %1181 = vmatpush1.msra.mxu0 %v1180
    %v1182 = vand.u32 %v64, 4294901760
    %1183 = vmatprep.subr.mxu0 %v1182
    %v1184 = vand.u32 %v63, 4294901760
    %1185 = vmatpush1.msra.mxu0 %v1184
    %v1186 = vand.u32 %v62, 4294901760
    %1187 = vmatprep.subr.mxu0 %v1186
    %v1188 = vand.u32 %v61, 4294901760
    %1189 = vmatpush1.msra.mxu0 %v1188
    %1190 = vmatprep.subr.mxu0 0.0
    %1191 = vmatpush2.msra.mxu0 0.0
    %1192 = vmatprep.subr.mxu0 0.0
    %1193 = vmatpush2.msra.mxu0 0.0
    %1194 = vmatprep.subr.mxu0 0.0
    %1195 = vmatpush2.msra.mxu0 0.0
    %1196 = vmatprep.subr.mxu0 0.0
    %1197 = vmatpush2.msra.mxu0 0.0
    %1198 = vmatprep.subr.mxu0 0.0
    %1199 = vmatpush2.msra.mxu0 0.0
    %1200 = vmatprep.subr.mxu0 0.0
    %1201 = vmatpush2.msra.mxu0 0.0
    %1202 = vmatprep.subr.mxu0 0.0
    %1203 = vmatpush2.msra.mxu0 0.0
    %1204 = vmatprep.subr.mxu0 0.0
    %1205 = vmatpush2.msra.mxu0 0.0
    %1206 = vmatprep.subr.mxu0 0.0
    %1207 = vmatpush2.msra.mxu0 0.0
    %1208 = vmatprep.subr.mxu0 0.0
    %1209 = vmatpush2.msra.mxu0 0.0
    %1210 = vmatprep.subr.mxu0 0.0
    %1211 = vmatpush2.msra.mxu0 0.0
    %1212 = vmatprep.subr.mxu0 0.0
    %1213 = vmatpush2.msra.mxu0 0.0
    %1214 = vmatprep.subr.mxu0 0.0
    %1215 = vmatpush2.msra.mxu0 0.0
    %1216 = vmatprep.subr.mxu0 0.0
    %1217 = vmatpush2.msra.mxu0 0.0
    %1218 = vmatprep.subr.mxu0 0.0
    %1219 = vmatpush2.msra.mxu0 0.0
    %1220 = vmatprep.subr.mxu0 0.0
    %1221 = vmatpush2.msra.mxu0 0.0
    %1222 = vmatprep.mubr.f32.mxu0 0.0
    %v1223 = vand.u32 %v685, 4294901760
    %1224 = vmatmul.mubr.f32.gmra.mxu0 %v1223
    %v1225 = vpop.f32.mrf.mxu0
    %v1226 = vadd.f32 %v1146, %v1225
    %v1227 = vpop.f32.mrf.mxu0
    %v1228 = vadd.f32 %v1148, %v1227
    %1229 = vdwg.mxu0
    %v1230 = vsel %vm97, %v667, %v1226
    %v1231 = vsel %vm98, %v669, %v1228
    %v1234 = vcombine.low %v1230, %v1231
    %v1236 = vunpack.c.l.s4 1983009808
    %v1237 = vunpack.c.0.s8 %v1236
    %v1238 = vlaneseq
    %v1239 = vshrl.u32 %v1238, 7
    %v1240 = vsub.s32 %v1237, %v1239
    %v1241 = vrot.slane %v1234, %v1240
    %1243 = vst [vmem:[#allocation2] sm:$0xf] %v1241
    %v1244 = vsel %vm97, %v1226, %v667
    %v1245 = vsel %vm98, %v1228, %v669
    %v1248 = vcombine.low %v1244, %v1245
    %v1250 = vunpack.c.l.s4 1983009808
    %v1251 = vunpack.c.0.s8 %v1250
    %v1252 = vlaneseq
    %v1253 = vshrl.u32 %v1252, 7
    %v1254 = vsub.s32 %v1251, %v1253
    %v1255 = vrot.slane %v1248, %v1254
    %s1257 = scalar_lea.vmem [#allocation2], 28
    %1258 = vst [vmem:[%s1257] sm:$0xf] %v1255
    %s1259 = sld [smem:[#allocation5 + $0x1]]
    %s1260 = scalar_lea.vmem %s1, %s1259
    %v1261 = vld [vmem:[%s1260] sm:$0x1]
    %s1262 = sld [smem:[#allocation5 + $0x9]]
    %s1263 = scalar_lea.vmem %s1, %s1262
    %v1264 = vld [vmem:[%s1263] sm:$0x1]
    %v1266 = vlaneseq
    %v1267 = vshrl.u32 %v1266, 7
    %v1268 = vsub.s32 0, %v1267
    %v1269 = vrot.slane %v1264, %v1268
    %v1271 = vsel %vm111, %v1261, %v1269
    %v1273 = vsel %vm124, %v1271, 0
    %1275 = vmatprep.subr.mxu0 0.0
    %1276 = vmatpush1.msra.mxu0 0.0
    %1277 = vmatprep.subr.mxu0 0.0
    %1278 = vmatpush1.msra.mxu0 0.0
    %1279 = vmatprep.subr.mxu0 0.0
    %1280 = vmatpush1.msra.mxu0 0.0
    %1281 = vmatprep.subr.mxu0 0.0
    %1282 = vmatpush1.msra.mxu0 0.0
    %1283 = vmatprep.subr.mxu0 0.0
    %1284 = vmatpush1.msra.mxu0 0.0
    %1285 = vmatprep.subr.mxu0 0.0
    %1286 = vmatpush1.msra.mxu0 0.0
    %1287 = vmatprep.subr.mxu0 0.0
    %1288 = vmatpush1.msra.mxu0 0.0
    %1289 = vmatprep.subr.mxu0 0.0
    %1290 = vmatpush1.msra.mxu0 0.0
    %1291 = vmatprep.subr.mxu0 0.0
    %1292 = vmatpush1.msra.mxu0 0.0
    %1293 = vmatprep.subr.mxu0 0.0
    %1294 = vmatpush1.msra.mxu0 0.0
    %1295 = vmatprep.subr.mxu0 0.0
    %1296 = vmatpush1.msra.mxu0 0.0
    %1297 = vmatprep.subr.mxu0 0.0
    %1298 = vmatpush1.msra.mxu0 0.0
    %v1299 = vand.u32 %v68, 4294901760
    %1300 = vmatprep.subr.mxu0 %v1299
    %v1301 = vand.u32 %v67, 4294901760
    %1302 = vmatpush1.msra.mxu0 %v1301
    %v1303 = vand.u32 %v66, 4294901760
    %1304 = vmatprep.subr.mxu0 %v1303
    %v1305 = vand.u32 %v65, 4294901760
    %1306 = vmatpush1.msra.mxu0 %v1305
    %v1307 = vand.u32 %v64, 4294901760
    %1308 = vmatprep.subr.mxu0 %v1307
    %v1309 = vand.u32 %v63, 4294901760
    %1310 = vmatpush1.msra.mxu0 %v1309
    %v1311 = vand.u32 %v62, 4294901760
    %1312 = vmatprep.subr.mxu0 %v1311
    %v1313 = vand.u32 %v61, 4294901760
    %1314 = vmatpush1.msra.mxu0 %v1313
    %1315 = vmatprep.subr.mxu0 0.0
    %1316 = vmatpush2.msra.mxu0 0.0
    %1317 = vmatprep.subr.mxu0 0.0
    %1318 = vmatpush2.msra.mxu0 0.0
    %1319 = vmatprep.subr.mxu0 0.0
    %1320 = vmatpush2.msra.mxu0 0.0
    %1321 = vmatprep.subr.mxu0 0.0
    %1322 = vmatpush2.msra.mxu0 0.0
    %1323 = vmatprep.subr.mxu0 0.0
    %1324 = vmatpush2.msra.mxu0 0.0
    %1325 = vmatprep.subr.mxu0 0.0
    %1326 = vmatpush2.msra.mxu0 0.0
    %1327 = vmatprep.subr.mxu0 0.0
    %1328 = vmatpush2.msra.mxu0 0.0
    %1329 = vmatprep.subr.mxu0 0.0
    %1330 = vmatpush2.msra.mxu0 0.0
    %1331 = vmatprep.subr.mxu0 0.0
    %1332 = vmatpush2.msra.mxu0 0.0
    %1333 = vmatprep.subr.mxu0 0.0
    %1334 = vmatpush2.msra.mxu0 0.0
    %1335 = vmatprep.subr.mxu0 0.0
    %1336 = vmatpush2.msra.mxu0 0.0
    %1337 = vmatprep.subr.mxu0 0.0
    %1338 = vmatpush2.msra.mxu0 0.0
    %1339 = vmatprep.subr.mxu0 0.0
    %1340 = vmatpush2.msra.mxu0 0.0
    %1341 = vmatprep.subr.mxu0 0.0
    %1342 = vmatpush2.msra.mxu0 0.0
    %1343 = vmatprep.subr.mxu0 0.0
    %1344 = vmatpush2.msra.mxu0 0.0
    %1345 = vmatprep.subr.mxu0 0.0
    %1346 = vmatpush2.msra.mxu0 0.0
    %1347 = vmatprep.mubr.f32.mxu0 0.0
    %v1348 = vand.u32 %v1273, 4294901760
    %v1349 = vsub.f32 %v1273, %v1348
    %v1350 = vand.u32 %v1349, 4294901760
    %v1351 = vsub.f32 %v1349, %v1350
    %v1352 = vand.u32 %v1351, 4294901760
    %1353 = vmatmul.mubr.f32.gmra.mxu0 %v1352
    %v1354 = vpop.f32.mrf.mxu0
    %v1355 = vadd.f32 %v117, %v1354
    %v1356 = vpop.f32.mrf.mxu0
    %v1357 = vadd.f32 %v121, %v1356
    %1358 = vdwg.mxu0
    %1359 = vmatprep.subr.mxu0 0.0
    %1360 = vmatpush1.msra.mxu0 0.0
    %1361 = vmatprep.subr.mxu0 0.0
    %1362 = vmatpush1.msra.mxu0 0.0
    %1363 = vmatprep.subr.mxu0 0.0
    %1364 = vmatpush1.msra.mxu0 0.0
    %1365 = vmatprep.subr.mxu0 0.0
    %1366 = vmatpush1.msra.mxu0 0.0
    %1367 = vmatprep.subr.mxu0 0.0
    %1368 = vmatpush1.msra.mxu0 0.0
    %1369 = vmatprep.subr.mxu0 0.0
    %1370 = vmatpush1.msra.mxu0 0.0
    %1371 = vmatprep.subr.mxu0 0.0
    %1372 = vmatpush1.msra.mxu0 0.0
    %1373 = vmatprep.subr.mxu0 0.0
    %1374 = vmatpush1.msra.mxu0 0.0
    %1375 = vmatprep.subr.mxu0 0.0
    %1376 = vmatpush1.msra.mxu0 0.0
    %1377 = vmatprep.subr.mxu0 0.0
    %1378 = vmatpush1.msra.mxu0 0.0
    %1379 = vmatprep.subr.mxu0 0.0
    %1380 = vmatpush1.msra.mxu0 0.0
    %1381 = vmatprep.subr.mxu0 0.0
    %1382 = vmatpush1.msra.mxu0 0.0
    %v1383 = vand.u32 %v68, 4294901760
    %v1384 = vsub.f32 %v68, %v1383
    %v1385 = vand.u32 %v1384, 4294901760
    %v1386 = vsub.f32 %v1384, %v1385
    %v1387 = vand.u32 %v1386, 4294901760
    %1388 = vmatprep.subr.mxu0 %v1387
    %v1389 = vand.u32 %v67, 4294901760
    %v1390 = vsub.f32 %v67, %v1389
    %v1391 = vand.u32 %v1390, 4294901760
    %v1392 = vsub.f32 %v1390, %v1391
    %v1393 = vand.u32 %v1392, 4294901760
    %1394 = vmatpush1.msra.mxu0 %v1393
    %v1395 = vand.u32 %v66, 4294901760
    %v1396 = vsub.f32 %v66, %v1395
    %v1397 = vand.u32 %v1396, 4294901760
    %v1398 = vsub.f32 %v1396, %v1397
    %v1399 = vand.u32 %v1398, 4294901760
    %1400 = vmatprep.subr.mxu0 %v1399
    %v1401 = vand.u32 %v65, 4294901760
    %v1402 = vsub.f32 %v65, %v1401
    %v1403 = vand.u32 %v1402, 4294901760
    %v1404 = vsub.f32 %v1402, %v1403
    %v1405 = vand.u32 %v1404, 4294901760
    %1406 = vmatpush1.msra.mxu0 %v1405
    %v1407 = vand.u32 %v64, 4294901760
    %v1408 = vsub.f32 %v64, %v1407
    %v1409 = vand.u32 %v1408, 4294901760
    %v1410 = vsub.f32 %v1408, %v1409
    %v1411 = vand.u32 %v1410, 4294901760
    %1412 = vmatprep.subr.mxu0 %v1411
    %v1413 = vand.u32 %v63, 4294901760
    %v1414 = vsub.f32 %v63, %v1413
    %v1415 = vand.u32 %v1414, 4294901760
    %v1416 = vsub.f32 %v1414, %v1415
    %v1417 = vand.u32 %v1416, 4294901760
    %1418 = vmatpush1.msra.mxu0 %v1417
    %v1419 = vand.u32 %v62, 4294901760
    %v1420 = vsub.f32 %v62, %v1419
    %v1421 = vand.u32 %v1420, 4294901760
    %v1422 = vsub.f32 %v1420, %v1421
    %v1423 = vand.u32 %v1422, 4294901760
    %1424 = vmatprep.subr.mxu0 %v1423
    %v1425 = vand.u32 %v61, 4294901760
    %v1426 = vsub.f32 %v61, %v1425
    %v1427 = vand.u32 %v1426, 4294901760
    %v1428 = vsub.f32 %v1426, %v1427
    %v1429 = vand.u32 %v1428, 4294901760
    %1430 = vmatpush1.msra.mxu0 %v1429
    %1431 = vmatprep.subr.mxu0 0.0
    %1432 = vmatpush2.msra.mxu0 0.0
    %1433 = vmatprep.subr.mxu0 0.0
    %1434 = vmatpush2.msra.mxu0 0.0
    %1435 = vmatprep.subr.mxu0 0.0
    %1436 = vmatpush2.msra.mxu0 0.0
    %1437 = vmatprep.subr.mxu0 0.0
    %1438 = vmatpush2.msra.mxu0 0.0
    %1439 = vmatprep.subr.mxu0 0.0
    %1440 = vmatpush2.msra.mxu0 0.0
    %1441 = vmatprep.subr.mxu0 0.0
    %1442 = vmatpush2.msra.mxu0 0.0
    %1443 = vmatprep.subr.mxu0 0.0
    %1444 = vmatpush2.msra.mxu0 0.0
    %1445 = vmatprep.subr.mxu0 0.0
    %1446 = vmatpush2.msra.mxu0 0.0
    %1447 = vmatprep.subr.mxu0 0.0
    %1448 = vmatpush2.msra.mxu0 0.0
    %1449 = vmatprep.subr.mxu0 0.0
    %1450 = vmatpush2.msra.mxu0 0.0
    %1451 = vmatprep.subr.mxu0 0.0
    %1452 = vmatpush2.msra.mxu0 0.0
    %1453 = vmatprep.subr.mxu0 0.0
    %1454 = vmatpush2.msra.mxu0 0.0
    %1455 = vmatprep.subr.mxu0 0.0
    %1456 = vmatpush2.msra.mxu0 0.0
    %1457 = vmatprep.subr.mxu0 0.0
    %1458 = vmatpush2.msra.mxu0 0.0
    %1459 = vmatprep.subr.mxu0 0.0
    %1460 = vmatpush2.msra.mxu0 0.0
    %1461 = vmatprep.subr.mxu0 0.0
    %1462 = vmatpush2.msra.mxu0 0.0
    %1463 = vmatprep.mubr.f32.mxu0 0.0
    %v1464 = vand.u32 %v1273, 4294901760
    %1465 = vmatmul.mubr.f32.gmra.mxu0 %v1464
    %v1466 = vpop.f32.mrf.mxu0
    %v1467 = vadd.f32 %v1355, %v1466
    %v1468 = vpop.f32.mrf.mxu0
    %v1469 = vadd.f32 %v1357, %v1468
    %1470 = vdwg.mxu0
    %1471 = vmatprep.subr.mxu0 0.0
    %1472 = vmatpush1.msra.mxu0 0.0
    %1473 = vmatprep.subr.mxu0 0.0
    %1474 = vmatpush1.msra.mxu0 0.0
    %1475 = vmatprep.subr.mxu0 0.0
    %1476 = vmatpush1.msra.mxu0 0.0
    %1477 = vmatprep.subr.mxu0 0.0
    %1478 = vmatpush1.msra.mxu0 0.0
    %1479 = vmatprep.subr.mxu0 0.0
    %1480 = vmatpush1.msra.mxu0 0.0
    %1481 = vmatprep.subr.mxu0 0.0
    %1482 = vmatpush1.msra.mxu0 0.0
    %1483 = vmatprep.subr.mxu0 0.0
    %1484 = vmatpush1.msra.mxu0 0.0
    %1485 = vmatprep.subr.mxu0 0.0
    %1486 = vmatpush1.msra.mxu0 0.0
    %1487 = vmatprep.subr.mxu0 0.0
    %1488 = vmatpush1.msra.mxu0 0.0
    %1489 = vmatprep.subr.mxu0 0.0
    %1490 = vmatpush1.msra.mxu0 0.0
    %1491 = vmatprep.subr.mxu0 0.0
    %1492 = vmatpush1.msra.mxu0 0.0
    %1493 = vmatprep.subr.mxu0 0.0
    %1494 = vmatpush1.msra.mxu0 0.0
    %v1495 = vand.u32 %v68, 4294901760
    %v1496 = vsub.f32 %v68, %v1495
    %1497 = vmatprep.subr.mxu0 %v1496
    %v1498 = vand.u32 %v67, 4294901760
    %v1499 = vsub.f32 %v67, %v1498
    %1500 = vmatpush1.msra.mxu0 %v1499
    %v1501 = vand.u32 %v66, 4294901760
    %v1502 = vsub.f32 %v66, %v1501
    %1503 = vmatprep.subr.mxu0 %v1502
    %v1504 = vand.u32 %v65, 4294901760
    %v1505 = vsub.f32 %v65, %v1504
    %1506 = vmatpush1.msra.mxu0 %v1505
    %v1507 = vand.u32 %v64, 4294901760
    %v1508 = vsub.f32 %v64, %v1507
    %1509 = vmatprep.subr.mxu0 %v1508
    %v1510 = vand.u32 %v63, 4294901760
    %v1511 = vsub.f32 %v63, %v1510
    %1512 = vmatpush1.msra.mxu0 %v1511
    %v1513 = vand.u32 %v62, 4294901760
    %v1514 = vsub.f32 %v62, %v1513
    %1515 = vmatprep.subr.mxu0 %v1514
    %v1516 = vand.u32 %v61, 4294901760
    %v1517 = vsub.f32 %v61, %v1516
    %1518 = vmatpush1.msra.mxu0 %v1517
    %1519 = vmatprep.subr.mxu0 0.0
    %1520 = vmatpush2.msra.mxu0 0.0
    %1521 = vmatprep.subr.mxu0 0.0
    %1522 = vmatpush2.msra.mxu0 0.0
    %1523 = vmatprep.subr.mxu0 0.0
    %1524 = vmatpush2.msra.mxu0 0.0
    %1525 = vmatprep.subr.mxu0 0.0
    %1526 = vmatpush2.msra.mxu0 0.0
    %1527 = vmatprep.subr.mxu0 0.0
    %1528 = vmatpush2.msra.mxu0 0.0
    %1529 = vmatprep.subr.mxu0 0.0
    %1530 = vmatpush2.msra.mxu0 0.0
    %1531 = vmatprep.subr.mxu0 0.0
    %1532 = vmatpush2.msra.mxu0 0.0
    %1533 = vmatprep.subr.mxu0 0.0
    %1534 = vmatpush2.msra.mxu0 0.0
    %1535 = vmatprep.subr.mxu0 0.0
    %1536 = vmatpush2.msra.mxu0 0.0
    %1537 = vmatprep.subr.mxu0 0.0
    %1538 = vmatpush2.msra.mxu0 0.0
    %1539 = vmatprep.subr.mxu0 0.0
    %1540 = vmatpush2.msra.mxu0 0.0
    %1541 = vmatprep.subr.mxu0 0.0
    %1542 = vmatpush2.msra.mxu0 0.0
    %1543 = vmatprep.subr.mxu0 0.0
    %1544 = vmatpush2.msra.mxu0 0.0
    %1545 = vmatprep.subr.mxu0 0.0
    %1546 = vmatpush2.msra.mxu0 0.0
    %1547 = vmatprep.subr.mxu0 0.0
    %1548 = vmatpush2.msra.mxu0 0.0
    %1549 = vmatprep.subr.mxu0 0.0
    %1550 = vmatpush2.msra.mxu0 0.0
    %1551 = vmatprep.mubr.f32.mxu0 0.0
    %v1552 = vand.u32 %v1273, 4294901760
    %v1553 = vsub.f32 %v1273, %v1552
    %1554 = vmatmul.mubr.f32.gmra.mxu0 %v1553
    %v1555 = vpop.f32.mrf.mxu0
    %v1556 = vadd.f32 %v1467, %v1555
    %v1557 = vpop.f32.mrf.mxu0
    %v1558 = vadd.f32 %v1469, %v1557
    %1559 = vdwg.mxu0
    %1560 = vmatprep.subr.mxu0 0.0
    %1561 = vmatpush1.msra.mxu0 0.0
    %1562 = vmatprep.subr.mxu0 0.0
    %1563 = vmatpush1.msra.mxu0 0.0
    %1564 = vmatprep.subr.mxu0 0.0
    %1565 = vmatpush1.msra.mxu0 0.0
    %1566 = vmatprep.subr.mxu0 0.0
    %1567 = vmatpush1.msra.mxu0 0.0
    %1568 = vmatprep.subr.mxu0 0.0
    %1569 = vmatpush1.msra.mxu0 0.0
    %1570 = vmatprep.subr.mxu0 0.0
    %1571 = vmatpush1.msra.mxu0 0.0
    %1572 = vmatprep.subr.mxu0 0.0
    %1573 = vmatpush1.msra.mxu0 0.0
    %1574 = vmatprep.subr.mxu0 0.0
    %1575 = vmatpush1.msra.mxu0 0.0
    %1576 = vmatprep.subr.mxu0 0.0
    %1577 = vmatpush1.msra.mxu0 0.0
    %1578 = vmatprep.subr.mxu0 0.0
    %1579 = vmatpush1.msra.mxu0 0.0
    %1580 = vmatprep.subr.mxu0 0.0
    %1581 = vmatpush1.msra.mxu0 0.0
    %1582 = vmatprep.subr.mxu0 0.0
    %1583 = vmatpush1.msra.mxu0 0.0
    %v1584 = vand.u32 %v68, 4294901760
    %1585 = vmatprep.subr.mxu0 %v1584
    %v1586 = vand.u32 %v67, 4294901760
    %1587 = vmatpush1.msra.mxu0 %v1586
    %v1588 = vand.u32 %v66, 4294901760
    %1589 = vmatprep.subr.mxu0 %v1588
    %v1590 = vand.u32 %v65, 4294901760
    %1591 = vmatpush1.msra.mxu0 %v1590
    %v1592 = vand.u32 %v64, 4294901760
    %1593 = vmatprep.subr.mxu0 %v1592
    %v1594 = vand.u32 %v63, 4294901760
    %1595 = vmatpush1.msra.mxu0 %v1594
    %v1596 = vand.u32 %v62, 4294901760
    %1597 = vmatprep.subr.mxu0 %v1596
    %v1598 = vand.u32 %v61, 4294901760
    %1599 = vmatpush1.msra.mxu0 %v1598
    %1600 = vmatprep.subr.mxu0 0.0
    %1601 = vmatpush2.msra.mxu0 0.0
    %1602 = vmatprep.subr.mxu0 0.0
    %1603 = vmatpush2.msra.mxu0 0.0
    %1604 = vmatprep.subr.mxu0 0.0
    %1605 = vmatpush2.msra.mxu0 0.0
    %1606 = vmatprep.subr.mxu0 0.0
    %1607 = vmatpush2.msra.mxu0 0.0
    %1608 = vmatprep.subr.mxu0 0.0
    %1609 = vmatpush2.msra.mxu0 0.0
    %1610 = vmatprep.subr.mxu0 0.0
    %1611 = vmatpush2.msra.mxu0 0.0
    %1612 = vmatprep.subr.mxu0 0.0
    %1613 = vmatpush2.msra.mxu0 0.0
    %1614 = vmatprep.subr.mxu0 0.0
    %1615 = vmatpush2.msra.mxu0 0.0
    %1616 = vmatprep.subr.mxu0 0.0
    %1617 = vmatpush2.msra.mxu0 0.0
    %1618 = vmatprep.subr.mxu0 0.0
    %1619 = vmatpush2.msra.mxu0 0.0
    %1620 = vmatprep.subr.mxu0 0.0
    %1621 = vmatpush2.msra.mxu0 0.0
    %1622 = vmatprep.subr.mxu0 0.0
    %1623 = vmatpush2.msra.mxu0 0.0
    %1624 = vmatprep.subr.mxu0 0.0
    %1625 = vmatpush2.msra.mxu0 0.0
    %1626 = vmatprep.subr.mxu0 0.0
    %1627 = vmatpush2.msra.mxu0 0.0
    %1628 = vmatprep.subr.mxu0 0.0
    %1629 = vmatpush2.msra.mxu0 0.0
    %1630 = vmatprep.subr.mxu0 0.0
    %1631 = vmatpush2.msra.mxu0 0.0
    %1632 = vmatprep.mubr.f32.mxu0 0.0
    %v1633 = vand.u32 %v1273, 4294901760
    %v1634 = vsub.f32 %v1273, %v1633
    %v1635 = vand.u32 %v1634, 4294901760
    %1636 = vmatmul.mubr.f32.gmra.mxu0 %v1635
    %v1637 = vpop.f32.mrf.mxu0
    %v1638 = vadd.f32 %v1556, %v1637
    %v1639 = vpop.f32.mrf.mxu0
    %v1640 = vadd.f32 %v1558, %v1639
    %1641 = vdwg.mxu0
    %1642 = vmatprep.subr.mxu0 0.0
    %1643 = vmatpush1.msra.mxu0 0.0
    %1644 = vmatprep.subr.mxu0 0.0
    %1645 = vmatpush1.msra.mxu0 0.0
    %1646 = vmatprep.subr.mxu0 0.0
    %1647 = vmatpush1.msra.mxu0 0.0
    %1648 = vmatprep.subr.mxu0 0.0
    %1649 = vmatpush1.msra.mxu0 0.0
    %1650 = vmatprep.subr.mxu0 0.0
    %1651 = vmatpush1.msra.mxu0 0.0
    %1652 = vmatprep.subr.mxu0 0.0
    %1653 = vmatpush1.msra.mxu0 0.0
    %1654 = vmatprep.subr.mxu0 0.0
    %1655 = vmatpush1.msra.mxu0 0.0
    %1656 = vmatprep.subr.mxu0 0.0
    %1657 = vmatpush1.msra.mxu0 0.0
    %1658 = vmatprep.subr.mxu0 0.0
    %1659 = vmatpush1.msra.mxu0 0.0
    %1660 = vmatprep.subr.mxu0 0.0
    %1661 = vmatpush1.msra.mxu0 0.0
    %1662 = vmatprep.subr.mxu0 0.0
    %1663 = vmatpush1.msra.mxu0 0.0
    %1664 = vmatprep.subr.mxu0 0.0
    %1665 = vmatpush1.msra.mxu0 0.0
    %v1666 = vand.u32 %v68, 4294901760
    %v1667 = vsub.f32 %v68, %v1666
    %v1668 = vand.u32 %v1667, 4294901760
    %1669 = vmatprep.subr.mxu0 %v1668
    %v1670 = vand.u32 %v67, 4294901760
    %v1671 = vsub.f32 %v67, %v1670
    %v1672 = vand.u32 %v1671, 4294901760
    %1673 = vmatpush1.msra.mxu0 %v1672
    %v1674 = vand.u32 %v66, 4294901760
    %v1675 = vsub.f32 %v66, %v1674
    %v1676 = vand.u32 %v1675, 4294901760
    %1677 = vmatprep.subr.mxu0 %v1676
    %v1678 = vand.u32 %v65, 4294901760
    %v1679 = vsub.f32 %v65, %v1678
    %v1680 = vand.u32 %v1679, 4294901760
    %1681 = vmatpush1.msra.mxu0 %v1680
    %v1682 = vand.u32 %v64, 4294901760
    %v1683 = vsub.f32 %v64, %v1682
    %v1684 = vand.u32 %v1683, 4294901760
    %1685 = vmatprep.subr.mxu0 %v1684
    %v1686 = vand.u32 %v63, 4294901760
    %v1687 = vsub.f32 %v63, %v1686
    %v1688 = vand.u32 %v1687, 4294901760
    %1689 = vmatpush1.msra.mxu0 %v1688
    %v1690 = vand.u32 %v62, 4294901760
    %v1691 = vsub.f32 %v62, %v1690
    %v1692 = vand.u32 %v1691, 4294901760
    %1693 = vmatprep.subr.mxu0 %v1692
    %v1694 = vand.u32 %v61, 4294901760
    %v1695 = vsub.f32 %v61, %v1694
    %v1696 = vand.u32 %v1695, 4294901760
    %1697 = vmatpush1.msra.mxu0 %v1696
    %1698 = vmatprep.subr.mxu0 0.0
    %1699 = vmatpush2.msra.mxu0 0.0
    %1700 = vmatprep.subr.mxu0 0.0
    %1701 = vmatpush2.msra.mxu0 0.0
    %1702 = vmatprep.subr.mxu0 0.0
    %1703 = vmatpush2.msra.mxu0 0.0
    %1704 = vmatprep.subr.mxu0 0.0
    %1705 = vmatpush2.msra.mxu0 0.0
    %1706 = vmatprep.subr.mxu0 0.0
    %1707 = vmatpush2.msra.mxu0 0.0
    %1708 = vmatprep.subr.mxu0 0.0
    %1709 = vmatpush2.msra.mxu0 0.0
    %1710 = vmatprep.subr.mxu0 0.0
    %1711 = vmatpush2.msra.mxu0 0.0
    %1712 = vmatprep.subr.mxu0 0.0
    %1713 = vmatpush2.msra.mxu0 0.0
    %1714 = vmatprep.subr.mxu0 0.0
    %1715 = vmatpush2.msra.mxu0 0.0
    %1716 = vmatprep.subr.mxu0 0.0
    %1717 = vmatpush2.msra.mxu0 0.0
    %1718 = vmatprep.subr.mxu0 0.0
    %1719 = vmatpush2.msra.mxu0 0.0
    %1720 = vmatprep.subr.mxu0 0.0
    %1721 = vmatpush2.msra.mxu0 0.0
    %1722 = vmatprep.subr.mxu0 0.0
    %1723 = vmatpush2.msra.mxu0 0.0
    %1724 = vmatprep.subr.mxu0 0.0
    %1725 = vmatpush2.msra.mxu0 0.0
    %1726 = vmatprep.subr.mxu0 0.0
    %1727 = vmatpush2.msra.mxu0 0.0
    %1728 = vmatprep.subr.mxu0 0.0
    %1729 = vmatpush2.msra.mxu0 0.0
    %1730 = vmatprep.mubr.f32.mxu0 0.0
    %v1731 = vand.u32 %v1273, 4294901760
    %1732 = vmatmul.mubr.f32.gmra.mxu0 %v1731
    %v1733 = vpop.f32.mrf.mxu0
    %v1734 = vadd.f32 %v1638, %v1733
    %v1735 = vpop.f32.mrf.mxu0
    %v1736 = vadd.f32 %v1640, %v1735
    %1737 = vdwg.mxu0
    %1738 = vmatprep.subr.mxu0 0.0
    %1739 = vmatpush1.msra.mxu0 0.0
    %1740 = vmatprep.subr.mxu0 0.0
    %1741 = vmatpush1.msra.mxu0 0.0
    %1742 = vmatprep.subr.mxu0 0.0
    %1743 = vmatpush1.msra.mxu0 0.0
    %1744 = vmatprep.subr.mxu0 0.0
    %1745 = vmatpush1.msra.mxu0 0.0
    %1746 = vmatprep.subr.mxu0 0.0
    %1747 = vmatpush1.msra.mxu0 0.0
    %1748 = vmatprep.subr.mxu0 0.0
    %1749 = vmatpush1.msra.mxu0 0.0
    %1750 = vmatprep.subr.mxu0 0.0
    %1751 = vmatpush1.msra.mxu0 0.0
    %1752 = vmatprep.subr.mxu0 0.0
    %1753 = vmatpush1.msra.mxu0 0.0
    %1754 = vmatprep.subr.mxu0 0.0
    %1755 = vmatpush1.msra.mxu0 0.0
    %1756 = vmatprep.subr.mxu0 0.0
    %1757 = vmatpush1.msra.mxu0 0.0
    %1758 = vmatprep.subr.mxu0 0.0
    %1759 = vmatpush1.msra.mxu0 0.0
    %1760 = vmatprep.subr.mxu0 0.0
    %1761 = vmatpush1.msra.mxu0 0.0
    %v1762 = vand.u32 %v68, 4294901760
    %1763 = vmatprep.subr.mxu0 %v1762
    %v1764 = vand.u32 %v67, 4294901760
    %1765 = vmatpush1.msra.mxu0 %v1764
    %v1766 = vand.u32 %v66, 4294901760
    %1767 = vmatprep.subr.mxu0 %v1766
    %v1768 = vand.u32 %v65, 4294901760
    %1769 = vmatpush1.msra.mxu0 %v1768
    %v1770 = vand.u32 %v64, 4294901760
    %1771 = vmatprep.subr.mxu0 %v1770
    %v1772 = vand.u32 %v63, 4294901760
    %1773 = vmatpush1.msra.mxu0 %v1772
    %v1774 = vand.u32 %v62, 4294901760
    %1775 = vmatprep.subr.mxu0 %v1774
    %v1776 = vand.u32 %v61, 4294901760
    %1777 = vmatpush1.msra.mxu0 %v1776
    %1778 = vmatprep.subr.mxu0 0.0
    %1779 = vmatpush2.msra.mxu0 0.0
    %1780 = vmatprep.subr.mxu0 0.0
    %1781 = vmatpush2.msra.mxu0 0.0
    %1782 = vmatprep.subr.mxu0 0.0
    %1783 = vmatpush2.msra.mxu0 0.0
    %1784 = vmatprep.subr.mxu0 0.0
    %1785 = vmatpush2.msra.mxu0 0.0
    %1786 = vmatprep.subr.mxu0 0.0
    %1787 = vmatpush2.msra.mxu0 0.0
    %1788 = vmatprep.subr.mxu0 0.0
    %1789 = vmatpush2.msra.mxu0 0.0
    %1790 = vmatprep.subr.mxu0 0.0
    %1791 = vmatpush2.msra.mxu0 0.0
    %1792 = vmatprep.subr.mxu0 0.0
    %1793 = vmatpush2.msra.mxu0 0.0
    %1794 = vmatprep.subr.mxu0 0.0
    %1795 = vmatpush2.msra.mxu0 0.0
    %1796 = vmatprep.subr.mxu0 0.0
    %1797 = vmatpush2.msra.mxu0 0.0
    %1798 = vmatprep.subr.mxu0 0.0
    %1799 = vmatpush2.msra.mxu0 0.0
    %1800 = vmatprep.subr.mxu0 0.0
    %1801 = vmatpush2.msra.mxu0 0.0
    %1802 = vmatprep.subr.mxu0 0.0
    %1803 = vmatpush2.msra.mxu0 0.0
    %1804 = vmatprep.subr.mxu0 0.0
    %1805 = vmatpush2.msra.mxu0 0.0
    %1806 = vmatprep.subr.mxu0 0.0
    %1807 = vmatpush2.msra.mxu0 0.0
    %1808 = vmatprep.subr.mxu0 0.0
    %1809 = vmatpush2.msra.mxu0 0.0
    %1810 = vmatprep.mubr.f32.mxu0 0.0
    %v1811 = vand.u32 %v1273, 4294901760
    %1812 = vmatmul.mubr.f32.gmra.mxu0 %v1811
    %v1813 = vpop.f32.mrf.mxu0
    %v1814 = vadd.f32 %v1734, %v1813
    %v1815 = vpop.f32.mrf.mxu0
    %v1816 = vadd.f32 %v1736, %v1815
    %1817 = vdwg.mxu0
    %s1818 = sld [smem:[#allocation5 + $0x6]]
    %s1819 = scalar_lea.vmem %s1, %s1818
    %v1820 = vld [vmem:[%s1819] sm:$0x1]
    %s1821 = sld [smem:[#allocation5 + $0xe]]
    %s1822 = scalar_lea.vmem %s1, %s1821
    %v1823 = vld [vmem:[%s1822] sm:$0x1]
    %v1825 = vlaneseq
    %v1826 = vshrl.u32 %v1825, 7
    %v1827 = vsub.s32 0, %v1826
    %v1828 = vrot.slane %v1823, %v1827
    %v1830 = vsel %vm111, %v1820, %v1828
    %v1832 = vsel %vm124, %v1830, 0
    %1834 = vmatprep.subr.mxu0 0.0
    %1835 = vmatpush1.msra.mxu0 0.0
    %1836 = vmatprep.subr.mxu0 0.0
    %1837 = vmatpush1.msra.mxu0 0.0
    %1838 = vmatprep.subr.mxu0 0.0
    %1839 = vmatpush1.msra.mxu0 0.0
    %1840 = vmatprep.subr.mxu0 0.0
    %1841 = vmatpush1.msra.mxu0 0.0
    %1842 = vmatprep.subr.mxu0 0.0
    %1843 = vmatpush1.msra.mxu0 0.0
    %1844 = vmatprep.subr.mxu0 0.0
    %1845 = vmatpush1.msra.mxu0 0.0
    %1846 = vmatprep.subr.mxu0 0.0
    %1847 = vmatpush1.msra.mxu0 0.0
    %1848 = vmatprep.subr.mxu0 0.0
    %1849 = vmatpush1.msra.mxu0 0.0
    %1850 = vmatprep.subr.mxu0 0.0
    %1851 = vmatpush1.msra.mxu0 0.0
    %1852 = vmatprep.subr.mxu0 0.0
    %1853 = vmatpush1.msra.mxu0 0.0
    %1854 = vmatprep.subr.mxu0 0.0
    %1855 = vmatpush1.msra.mxu0 0.0
    %1856 = vmatprep.subr.mxu0 0.0
    %1857 = vmatpush1.msra.mxu0 0.0
    %v1858 = vand.u32 %v68, 4294901760
    %1859 = vmatprep.subr.mxu0 %v1858
    %v1860 = vand.u32 %v67, 4294901760
    %1861 = vmatpush1.msra.mxu0 %v1860
    %v1862 = vand.u32 %v66, 4294901760
    %1863 = vmatprep.subr.mxu0 %v1862
    %v1864 = vand.u32 %v65, 4294901760
    %1865 = vmatpush1.msra.mxu0 %v1864
    %v1866 = vand.u32 %v64, 4294901760
    %1867 = vmatprep.subr.mxu0 %v1866
    %v1868 = vand.u32 %v63, 4294901760
    %1869 = vmatpush1.msra.mxu0 %v1868
    %v1870 = vand.u32 %v62, 4294901760
    %1871 = vmatprep.subr.mxu0 %v1870
    %v1872 = vand.u32 %v61, 4294901760
    %1873 = vmatpush1.msra.mxu0 %v1872
    %1874 = vmatprep.subr.mxu0 0.0
    %1875 = vmatpush2.msra.mxu0 0.0
    %1876 = vmatprep.subr.mxu0 0.0
    %1877 = vmatpush2.msra.mxu0 0.0
    %1878 = vmatprep.subr.mxu0 0.0
    %1879 = vmatpush2.msra.mxu0 0.0
    %1880 = vmatprep.subr.mxu0 0.0
    %1881 = vmatpush2.msra.mxu0 0.0
    %1882 = vmatprep.subr.mxu0 0.0
    %1883 = vmatpush2.msra.mxu0 0.0
    %1884 = vmatprep.subr.mxu0 0.0
    %1885 = vmatpush2.msra.mxu0 0.0
    %1886 = vmatprep.subr.mxu0 0.0
    %1887 = vmatpush2.msra.mxu0 0.0
    %1888 = vmatprep.subr.mxu0 0.0
    %1889 = vmatpush2.msra.mxu0 0.0
    %1890 = vmatprep.subr.mxu0 0.0
    %1891 = vmatpush2.msra.mxu0 0.0
    %1892 = vmatprep.subr.mxu0 0.0
    %1893 = vmatpush2.msra.mxu0 0.0
    %1894 = vmatprep.subr.mxu0 0.0
    %1895 = vmatpush2.msra.mxu0 0.0
    %1896 = vmatprep.subr.mxu0 0.0
    %1897 = vmatpush2.msra.mxu0 0.0
    %1898 = vmatprep.subr.mxu0 0.0
    %1899 = vmatpush2.msra.mxu0 0.0
    %1900 = vmatprep.subr.mxu0 0.0
    %1901 = vmatpush2.msra.mxu0 0.0
    %1902 = vmatprep.subr.mxu0 0.0
    %1903 = vmatpush2.msra.mxu0 0.0
    %1904 = vmatprep.subr.mxu0 0.0
    %1905 = vmatpush2.msra.mxu0 0.0
    %1906 = vmatprep.mubr.f32.mxu0 0.0
    %v1907 = vand.u32 %v1832, 4294901760
    %v1908 = vsub.f32 %v1832, %v1907
    %v1909 = vand.u32 %v1908, 4294901760
    %v1910 = vsub.f32 %v1908, %v1909
    %v1911 = vand.u32 %v1910, 4294901760
    %1912 = vmatmul.mubr.f32.gmra.mxu0 %v1911
    %v1913 = vpop.f32.mrf.mxu0
    %v1914 = vadd.f32 %v117, %v1913
    %v1915 = vpop.f32.mrf.mxu0
    %v1916 = vadd.f32 %v121, %v1915
    %1917 = vdwg.mxu0
    %1918 = vmatprep.subr.mxu0 0.0
    %1919 = vmatpush1.msra.mxu0 0.0
    %1920 = vmatprep.subr.mxu0 0.0
    %1921 = vmatpush1.msra.mxu0 0.0
    %1922 = vmatprep.subr.mxu0 0.0
    %1923 = vmatpush1.msra.mxu0 0.0
    %1924 = vmatprep.subr.mxu0 0.0
    %1925 = vmatpush1.msra.mxu0 0.0
    %1926 = vmatprep.subr.mxu0 0.0
    %1927 = vmatpush1.msra.mxu0 0.0
    %1928 = vmatprep.subr.mxu0 0.0
    %1929 = vmatpush1.msra.mxu0 0.0
    %1930 = vmatprep.subr.mxu0 0.0
    %1931 = vmatpush1.msra.mxu0 0.0
    %1932 = vmatprep.subr.mxu0 0.0
    %1933 = vmatpush1.msra.mxu0 0.0
    %1934 = vmatprep.subr.mxu0 0.0
    %1935 = vmatpush1.msra.mxu0 0.0
    %1936 = vmatprep.subr.mxu0 0.0
    %1937 = vmatpush1.msra.mxu0 0.0
    %1938 = vmatprep.subr.mxu0 0.0
    %1939 = vmatpush1.msra.mxu0 0.0
    %1940 = vmatprep.subr.mxu0 0.0
    %1941 = vmatpush1.msra.mxu0 0.0
    %v1942 = vand.u32 %v68, 4294901760
    %v1943 = vsub.f32 %v68, %v1942
    %v1944 = vand.u32 %v1943, 4294901760
    %v1945 = vsub.f32 %v1943, %v1944
    %v1946 = vand.u32 %v1945, 4294901760
    %1947 = vmatprep.subr.mxu0 %v1946
    %v1948 = vand.u32 %v67, 4294901760
    %v1949 = vsub.f32 %v67, %v1948
    %v1950 = vand.u32 %v1949, 4294901760
    %v1951 = vsub.f32 %v1949, %v1950
    %v1952 = vand.u32 %v1951, 4294901760
    %1953 = vmatpush1.msra.mxu0 %v1952
    %v1954 = vand.u32 %v66, 4294901760
    %v1955 = vsub.f32 %v66, %v1954
    %v1956 = vand.u32 %v1955, 4294901760
    %v1957 = vsub.f32 %v1955, %v1956
    %v1958 = vand.u32 %v1957, 4294901760
    %1959 = vmatprep.subr.mxu0 %v1958
    %v1960 = vand.u32 %v65, 4294901760
    %v1961 = vsub.f32 %v65, %v1960
    %v1962 = vand.u32 %v1961, 4294901760
    %v1963 = vsub.f32 %v1961, %v1962
    %v1964 = vand.u32 %v1963, 4294901760
    %1965 = vmatpush1.msra.mxu0 %v1964
    %v1966 = vand.u32 %v64, 4294901760
    %v1967 = vsub.f32 %v64, %v1966
    %v1968 = vand.u32 %v1967, 4294901760
    %v1969 = vsub.f32 %v1967, %v1968
    %v1970 = vand.u32 %v1969, 4294901760
    %1971 = vmatprep.subr.mxu0 %v1970
    %v1972 = vand.u32 %v63, 4294901760
    %v1973 = vsub.f32 %v63, %v1972
    %v1974 = vand.u32 %v1973, 4294901760
    %v1975 = vsub.f32 %v1973, %v1974
    %v1976 = vand.u32 %v1975, 4294901760
    %1977 = vmatpush1.msra.mxu0 %v1976
    %v1978 = vand.u32 %v62, 4294901760
    %v1979 = vsub.f32 %v62, %v1978
    %v1980 = vand.u32 %v1979, 4294901760
    %v1981 = vsub.f32 %v1979, %v1980
    %v1982 = vand.u32 %v1981, 4294901760
    %1983 = vmatprep.subr.mxu0 %v1982
    %v1984 = vand.u32 %v61, 4294901760
    %v1985 = vsub.f32 %v61, %v1984
    %v1986 = vand.u32 %v1985, 4294901760
    %v1987 = vsub.f32 %v1985, %v1986
    %v1988 = vand.u32 %v1987, 4294901760
    %1989 = vmatpush1.msra.mxu0 %v1988
    %1990 = vmatprep.subr.mxu0 0.0
    %1991 = vmatpush2.msra.mxu0 0.0
    %1992 = vmatprep.subr.mxu0 0.0
    %1993 = vmatpush2.msra.mxu0 0.0
    %1994 = vmatprep.subr.mxu0 0.0
    %1995 = vmatpush2.msra.mxu0 0.0
    %1996 = vmatprep.subr.mxu0 0.0
    %1997 = vmatpush2.msra.mxu0 0.0
    %1998 = vmatprep.subr.mxu0 0.0
    %1999 = vmatpush2.msra.mxu0 0.0
    %2000 = vmatprep.subr.mxu0 0.0
    %2001 = vmatpush2.msra.mxu0 0.0
    %2002 = vmatprep.subr.mxu0 0.0
    %2003 = vmatpush2.msra.mxu0 0.0
    %2004 = vmatprep.subr.mxu0 0.0
    %2005 = vmatpush2.msra.mxu0 0.0
    %2006 = vmatprep.subr.mxu0 0.0
    %2007 = vmatpush2.msra.mxu0 0.0
    %2008 = vmatprep.subr.mxu0 0.0
    %2009 = vmatpush2.msra.mxu0 0.0
    %2010 = vmatprep.subr.mxu0 0.0
    %2011 = vmatpush2.msra.mxu0 0.0
    %2012 = vmatprep.subr.mxu0 0.0
    %2013 = vmatpush2.msra.mxu0 0.0
    %2014 = vmatprep.subr.mxu0 0.0
    %2015 = vmatpush2.msra.mxu0 0.0
    %2016 = vmatprep.subr.mxu0 0.0
    %2017 = vmatpush2.msra.mxu0 0.0
    %2018 = vmatprep.subr.mxu0 0.0
    %2019 = vmatpush2.msra.mxu0 0.0
    %2020 = vmatprep.subr.mxu0 0.0
    %2021 = vmatpush2.msra.mxu0 0.0
    %2022 = vmatprep.mubr.f32.mxu0 0.0
    %v2023 = vand.u32 %v1832, 4294901760
    %2024 = vmatmul.mubr.f32.gmra.mxu0 %v2023
    %v2025 = vpop.f32.mrf.mxu0
    %v2026 = vadd.f32 %v1914, %v2025
    %v2027 = vpop.f32.mrf.mxu0
    %v2028 = vadd.f32 %v1916, %v2027
    %2029 = vdwg.mxu0
    %2030 = vmatprep.subr.mxu0 0.0
    %2031 = vmatpush1.msra.mxu0 0.0
    %2032 = vmatprep.subr.mxu0 0.0
    %2033 = vmatpush1.msra.mxu0 0.0
    %2034 = vmatprep.subr.mxu0 0.0
    %2035 = vmatpush1.msra.mxu0 0.0
    %2036 = vmatprep.subr.mxu0 0.0
    %2037 = vmatpush1.msra.mxu0 0.0
    %2038 = vmatprep.subr.mxu0 0.0
    %2039 = vmatpush1.msra.mxu0 0.0
    %2040 = vmatprep.subr.mxu0 0.0
    %2041 = vmatpush1.msra.mxu0 0.0
    %2042 = vmatprep.subr.mxu0 0.0
    %2043 = vmatpush1.msra.mxu0 0.0
    %2044 = vmatprep.subr.mxu0 0.0
    %2045 = vmatpush1.msra.mxu0 0.0
    %2046 = vmatprep.subr.mxu0 0.0
    %2047 = vmatpush1.msra.mxu0 0.0
    %2048 = vmatprep.subr.mxu0 0.0
    %2049 = vmatpush1.msra.mxu0 0.0
    %2050 = vmatprep.subr.mxu0 0.0
    %2051 = vmatpush1.msra.mxu0 0.0
    %2052 = vmatprep.subr.mxu0 0.0
    %2053 = vmatpush1.msra.mxu0 0.0
    %v2054 = vand.u32 %v68, 4294901760
    %v2055 = vsub.f32 %v68, %v2054
    %2056 = vmatprep.subr.mxu0 %v2055
    %v2057 = vand.u32 %v67, 4294901760
    %v2058 = vsub.f32 %v67, %v2057
    %2059 = vmatpush1.msra.mxu0 %v2058
    %v2060 = vand.u32 %v66, 4294901760
    %v2061 = vsub.f32 %v66, %v2060
    %2062 = vmatprep.subr.mxu0 %v2061
    %v2063 = vand.u32 %v65, 4294901760
    %v2064 = vsub.f32 %v65, %v2063
    %2065 = vmatpush1.msra.mxu0 %v2064
    %v2066 = vand.u32 %v64, 4294901760
    %v2067 = vsub.f32 %v64, %v2066
    %2068 = vmatprep.subr.mxu0 %v2067
    %v2069 = vand.u32 %v63, 4294901760
    %v2070 = vsub.f32 %v63, %v2069
    %2071 = vmatpush1.msra.mxu0 %v2070
    %v2072 = vand.u32 %v62, 4294901760
    %v2073 = vsub.f32 %v62, %v2072
    %2074 = vmatprep.subr.mxu0 %v2073
    %v2075 = vand.u32 %v61, 4294901760
    %v2076 = vsub.f32 %v61, %v2075
    %2077 = vmatpush1.msra.mxu0 %v2076
    %2078 = vmatprep.subr.mxu0 0.0
    %2079 = vmatpush2.msra.mxu0 0.0
    %2080 = vmatprep.subr.mxu0 0.0
    %2081 = vmatpush2.msra.mxu0 0.0
    %2082 = vmatprep.subr.mxu0 0.0
    %2083 = vmatpush2.msra.mxu0 0.0
    %2084 = vmatprep.subr.mxu0 0.0
    %2085 = vmatpush2.msra.mxu0 0.0
    %2086 = vmatprep.subr.mxu0 0.0
    %2087 = vmatpush2.msra.mxu0 0.0
    %2088 = vmatprep.subr.mxu0 0.0
    %2089 = vmatpush2.msra.mxu0 0.0
    %2090 = vmatprep.subr.mxu0 0.0
    %2091 = vmatpush2.msra.mxu0 0.0
    %2092 = vmatprep.subr.mxu0 0.0
    %2093 = vmatpush2.msra.mxu0 0.0
    %2094 = vmatprep.subr.mxu0 0.0
    %2095 = vmatpush2.msra.mxu0 0.0
    %2096 = vmatprep.subr.mxu0 0.0
    %2097 = vmatpush2.msra.mxu0 0.0
    %2098 = vmatprep.subr.mxu0 0.0
    %2099 = vmatpush2.msra.mxu0 0.0
    %2100 = vmatprep.subr.mxu0 0.0
    %2101 = vmatpush2.msra.mxu0 0.0
    %2102 = vmatprep.subr.mxu0 0.0
    %2103 = vmatpush2.msra.mxu0 0.0
    %2104 = vmatprep.subr.mxu0 0.0
    %2105 = vmatpush2.msra.mxu0 0.0
    %2106 = vmatprep.subr.mxu0 0.0
    %2107 = vmatpush2.msra.mxu0 0.0
    %2108 = vmatprep.subr.mxu0 0.0
    %2109 = vmatpush2.msra.mxu0 0.0
    %2110 = vmatprep.mubr.f32.mxu0 0.0
    %v2111 = vand.u32 %v1832, 4294901760
    %v2112 = vsub.f32 %v1832, %v2111
    %2113 = vmatmul.mubr.f32.gmra.mxu0 %v2112
    %v2114 = vpop.f32.mrf.mxu0
    %v2115 = vadd.f32 %v2026, %v2114
    %v2116 = vpop.f32.mrf.mxu0
    %v2117 = vadd.f32 %v2028, %v2116
    %2118 = vdwg.mxu0
    %2119 = vmatprep.subr.mxu0 0.0
    %2120 = vmatpush1.msra.mxu0 0.0
    %2121 = vmatprep.subr.mxu0 0.0
    %2122 = vmatpush1.msra.mxu0 0.0
    %2123 = vmatprep.subr.mxu0 0.0
    %2124 = vmatpush1.msra.mxu0 0.0
    %2125 = vmatprep.subr.mxu0 0.0
    %2126 = vmatpush1.msra.mxu0 0.0
    %2127 = vmatprep.subr.mxu0 0.0
    %2128 = vmatpush1.msra.mxu0 0.0
    %2129 = vmatprep.subr.mxu0 0.0
    %2130 = vmatpush1.msra.mxu0 0.0
    %2131 = vmatprep.subr.mxu0 0.0
    %2132 = vmatpush1.msra.mxu0 0.0
    %2133 = vmatprep.subr.mxu0 0.0
    %2134 = vmatpush1.msra.mxu0 0.0
    %2135 = vmatprep.subr.mxu0 0.0
    %2136 = vmatpush1.msra.mxu0 0.0
    %2137 = vmatprep.subr.mxu0 0.0
    %2138 = vmatpush1.msra.mxu0 0.0
    %2139 = vmatprep.subr.mxu0 0.0
    %2140 = vmatpush1.msra.mxu0 0.0
    %2141 = vmatprep.subr.mxu0 0.0
    %2142 = vmatpush1.msra.mxu0 0.0
    %v2143 = vand.u32 %v68, 4294901760
    %2144 = vmatprep.subr.mxu0 %v2143
    %v2145 = vand.u32 %v67, 4294901760
    %2146 = vmatpush1.msra.mxu0 %v2145
    %v2147 = vand.u32 %v66, 4294901760
    %2148 = vmatprep.subr.mxu0 %v2147
    %v2149 = vand.u32 %v65, 4294901760
    %2150 = vmatpush1.msra.mxu0 %v2149
    %v2151 = vand.u32 %v64, 4294901760
    %2152 = vmatprep.subr.mxu0 %v2151
    %v2153 = vand.u32 %v63, 4294901760
    %2154 = vmatpush1.msra.mxu0 %v2153
    %v2155 = vand.u32 %v62, 4294901760
    %2156 = vmatprep.subr.mxu0 %v2155
    %v2157 = vand.u32 %v61, 4294901760
    %2158 = vmatpush1.msra.mxu0 %v2157
    %2159 = vmatprep.subr.mxu0 0.0
    %2160 = vmatpush2.msra.mxu0 0.0
    %2161 = vmatprep.subr.mxu0 0.0
    %2162 = vmatpush2.msra.mxu0 0.0
    %2163 = vmatprep.subr.mxu0 0.0
    %2164 = vmatpush2.msra.mxu0 0.0
    %2165 = vmatprep.subr.mxu0 0.0
    %2166 = vmatpush2.msra.mxu0 0.0
    %2167 = vmatprep.subr.mxu0 0.0
    %2168 = vmatpush2.msra.mxu0 0.0
    %2169 = vmatprep.subr.mxu0 0.0
    %2170 = vmatpush2.msra.mxu0 0.0
    %2171 = vmatprep.subr.mxu0 0.0
    %2172 = vmatpush2.msra.mxu0 0.0
    %2173 = vmatprep.subr.mxu0 0.0
    %2174 = vmatpush2.msra.mxu0 0.0
    %2175 = vmatprep.subr.mxu0 0.0
    %2176 = vmatpush2.msra.mxu0 0.0
    %2177 = vmatprep.subr.mxu0 0.0
    %2178 = vmatpush2.msra.mxu0 0.0
    %2179 = vmatprep.subr.mxu0 0.0
    %2180 = vmatpush2.msra.mxu0 0.0
    %2181 = vmatprep.subr.mxu0 0.0
    %2182 = vmatpush2.msra.mxu0 0.0
    %2183 = vmatprep.subr.mxu0 0.0
    %2184 = vmatpush2.msra.mxu0 0.0
    %2185 = vmatprep.subr.mxu0 0.0
    %2186 = vmatpush2.msra.mxu0 0.0
    %2187 = vmatprep.subr.mxu0 0.0
    %2188 = vmatpush2.msra.mxu0 0.0
    %2189 = vmatprep.subr.mxu0 0.0
    %2190 = vmatpush2.msra.mxu0 0.0
    %2191 = vmatprep.mubr.f32.mxu0 0.0
    %v2192 = vand.u32 %v1832, 4294901760
    %v2193 = vsub.f32 %v1832, %v2192
    %v2194 = vand.u32 %v2193, 4294901760
    %2195 = vmatmul.mubr.f32.gmra.mxu0 %v2194
    %v2196 = vpop.f32.mrf.mxu0
    %v2197 = vadd.f32 %v2115, %v2196
    %v2198 = vpop.f32.mrf.mxu0
    %v2199 = vadd.f32 %v2117, %v2198
    %2200 = vdwg.mxu0
    %2201 = vmatprep.subr.mxu0 0.0
    %2202 = vmatpush1.msra.mxu0 0.0
    %2203 = vmatprep.subr.mxu0 0.0
    %2204 = vmatpush1.msra.mxu0 0.0
    %2205 = vmatprep.subr.mxu0 0.0
    %2206 = vmatpush1.msra.mxu0 0.0
    %2207 = vmatprep.subr.mxu0 0.0
    %2208 = vmatpush1.msra.mxu0 0.0
    %2209 = vmatprep.subr.mxu0 0.0
    %2210 = vmatpush1.msra.mxu0 0.0
    %2211 = vmatprep.subr.mxu0 0.0
    %2212 = vmatpush1.msra.mxu0 0.0
    %2213 = vmatprep.subr.mxu0 0.0
    %2214 = vmatpush1.msra.mxu0 0.0
    %2215 = vmatprep.subr.mxu0 0.0
    %2216 = vmatpush1.msra.mxu0 0.0
    %2217 = vmatprep.subr.mxu0 0.0
    %2218 = vmatpush1.msra.mxu0 0.0
    %2219 = vmatprep.subr.mxu0 0.0
    %2220 = vmatpush1.msra.mxu0 0.0
    %2221 = vmatprep.subr.mxu0 0.0
    %2222 = vmatpush1.msra.mxu0 0.0
    %2223 = vmatprep.subr.mxu0 0.0
    %2224 = vmatpush1.msra.mxu0 0.0
    %v2225 = vand.u32 %v68, 4294901760
    %v2226 = vsub.f32 %v68, %v2225
    %v2227 = vand.u32 %v2226, 4294901760
    %2228 = vmatprep.subr.mxu0 %v2227
    %v2229 = vand.u32 %v67, 4294901760
    %v2230 = vsub.f32 %v67, %v2229
    %v2231 = vand.u32 %v2230, 4294901760
    %2232 = vmatpush1.msra.mxu0 %v2231
    %v2233 = vand.u32 %v66, 4294901760
    %v2234 = vsub.f32 %v66, %v2233
    %v2235 = vand.u32 %v2234, 4294901760
    %2236 = vmatprep.subr.mxu0 %v2235
    %v2237 = vand.u32 %v65, 4294901760
    %v2238 = vsub.f32 %v65, %v2237
    %v2239 = vand.u32 %v2238, 4294901760
    %2240 = vmatpush1.msra.mxu0 %v2239
    %v2241 = vand.u32 %v64, 4294901760
    %v2242 = vsub.f32 %v64, %v2241
    %v2243 = vand.u32 %v2242, 4294901760
    %2244 = vmatprep.subr.mxu0 %v2243
    %v2245 = vand.u32 %v63, 4294901760
    %v2246 = vsub.f32 %v63, %v2245
    %v2247 = vand.u32 %v2246, 4294901760
    %2248 = vmatpush1.msra.mxu0 %v2247
    %v2249 = vand.u32 %v62, 4294901760
    %v2250 = vsub.f32 %v62, %v2249
    %v2251 = vand.u32 %v2250, 4294901760
    %2252 = vmatprep.subr.mxu0 %v2251
    %v2253 = vand.u32 %v61, 4294901760
    %v2254 = vsub.f32 %v61, %v2253
    %v2255 = vand.u32 %v2254, 4294901760
    %2256 = vmatpush1.msra.mxu0 %v2255
    %2257 = vmatprep.subr.mxu0 0.0
    %2258 = vmatpush2.msra.mxu0 0.0
    %2259 = vmatprep.subr.mxu0 0.0
    %2260 = vmatpush2.msra.mxu0 0.0
    %2261 = vmatprep.subr.mxu0 0.0
    %2262 = vmatpush2.msra.mxu0 0.0
    %2263 = vmatprep.subr.mxu0 0.0
    %2264 = vmatpush2.msra.mxu0 0.0
    %2265 = vmatprep.subr.mxu0 0.0
    %2266 = vmatpush2.msra.mxu0 0.0
    %2267 = vmatprep.subr.mxu0 0.0
    %2268 = vmatpush2.msra.mxu0 0.0
    %2269 = vmatprep.subr.mxu0 0.0
    %2270 = vmatpush2.msra.mxu0 0.0
    %2271 = vmatprep.subr.mxu0 0.0
    %2272 = vmatpush2.msra.mxu0 0.0
    %2273 = vmatprep.subr.mxu0 0.0
    %2274 = vmatpush2.msra.mxu0 0.0
    %2275 = vmatprep.subr.mxu0 0.0
    %2276 = vmatpush2.msra.mxu0 0.0
    %2277 = vmatprep.subr.mxu0 0.0
    %2278 = vmatpush2.msra.mxu0 0.0
    %2279 = vmatprep.subr.mxu0 0.0
    %2280 = vmatpush2.msra.mxu0 0.0
    %2281 = vmatprep.subr.mxu0 0.0
    %2282 = vmatpush2.msra.mxu0 0.0
    %2283 = vmatprep.subr.mxu0 0.0
    %2284 = vmatpush2.msra.mxu0 0.0
    %2285 = vmatprep.subr.mxu0 0.0
    %2286 = vmatpush2.msra.mxu0 0.0
    %2287 = vmatprep.subr.mxu0 0.0
    %2288 = vmatpush2.msra.mxu0 0.0
    %2289 = vmatprep.mubr.f32.mxu0 0.0
    %v2290 = vand.u32 %v1832, 4294901760
    %2291 = vmatmul.mubr.f32.gmra.mxu0 %v2290
    %v2292 = vpop.f32.mrf.mxu0
    %v2293 = vadd.f32 %v2197, %v2292
    %v2294 = vpop.f32.mrf.mxu0
    %v2295 = vadd.f32 %v2199, %v2294
    %2296 = vdwg.mxu0
    %2297 = vmatprep.subr.mxu0 0.0
    %2298 = vmatpush1.msra.mxu0 0.0
    %2299 = vmatprep.subr.mxu0 0.0
    %2300 = vmatpush1.msra.mxu0 0.0
    %2301 = vmatprep.subr.mxu0 0.0
    %2302 = vmatpush1.msra.mxu0 0.0
    %2303 = vmatprep.subr.mxu0 0.0
    %2304 = vmatpush1.msra.mxu0 0.0
    %2305 = vmatprep.subr.mxu0 0.0
    %2306 = vmatpush1.msra.mxu0 0.0
    %2307 = vmatprep.subr.mxu0 0.0
    %2308 = vmatpush1.msra.mxu0 0.0
    %2309 = vmatprep.subr.mxu0 0.0
    %2310 = vmatpush1.msra.mxu0 0.0
    %2311 = vmatprep.subr.mxu0 0.0
    %2312 = vmatpush1.msra.mxu0 0.0
    %2313 = vmatprep.subr.mxu0 0.0
    %2314 = vmatpush1.msra.mxu0 0.0
    %2315 = vmatprep.subr.mxu0 0.0
    %2316 = vmatpush1.msra.mxu0 0.0
    %2317 = vmatprep.subr.mxu0 0.0
    %2318 = vmatpush1.msra.mxu0 0.0
    %2319 = vmatprep.subr.mxu0 0.0
    %2320 = vmatpush1.msra.mxu0 0.0
    %v2321 = vand.u32 %v68, 4294901760
    %2322 = vmatprep.subr.mxu0 %v2321
    %v2323 = vand.u32 %v67, 4294901760
    %2324 = vmatpush1.msra.mxu0 %v2323
    %v2325 = vand.u32 %v66, 4294901760
    %2326 = vmatprep.subr.mxu0 %v2325
    %v2327 = vand.u32 %v65, 4294901760
    %2328 = vmatpush1.msra.mxu0 %v2327
    %v2329 = vand.u32 %v64, 4294901760
    %2330 = vmatprep.subr.mxu0 %v2329
    %v2331 = vand.u32 %v63, 4294901760
    %2332 = vmatpush1.msra.mxu0 %v2331
    %v2333 = vand.u32 %v62, 4294901760
    %2334 = vmatprep.subr.mxu0 %v2333
    %v2335 = vand.u32 %v61, 4294901760
    %2336 = vmatpush1.msra.mxu0 %v2335
    %2337 = vmatprep.subr.mxu0 0.0
    %2338 = vmatpush2.msra.mxu0 0.0
    %2339 = vmatprep.subr.mxu0 0.0
    %2340 = vmatpush2.msra.mxu0 0.0
    %2341 = vmatprep.subr.mxu0 0.0
    %2342 = vmatpush2.msra.mxu0 0.0
    %2343 = vmatprep.subr.mxu0 0.0
    %2344 = vmatpush2.msra.mxu0 0.0
    %2345 = vmatprep.subr.mxu0 0.0
    %2346 = vmatpush2.msra.mxu0 0.0
    %2347 = vmatprep.subr.mxu0 0.0
    %2348 = vmatpush2.msra.mxu0 0.0
    %2349 = vmatprep.subr.mxu0 0.0
    %2350 = vmatpush2.msra.mxu0 0.0
    %2351 = vmatprep.subr.mxu0 0.0
    %2352 = vmatpush2.msra.mxu0 0.0
    %2353 = vmatprep.subr.mxu0 0.0
    %2354 = vmatpush2.msra.mxu0 0.0
    %2355 = vmatprep.subr.mxu0 0.0
    %2356 = vmatpush2.msra.mxu0 0.0
    %2357 = vmatprep.subr.mxu0 0.0
    %2358 = vmatpush2.msra.mxu0 0.0
    %2359 = vmatprep.subr.mxu0 0.0
    %2360 = vmatpush2.msra.mxu0 0.0
    %2361 = vmatprep.subr.mxu0 0.0
    %2362 = vmatpush2.msra.mxu0 0.0
    %2363 = vmatprep.subr.mxu0 0.0
    %2364 = vmatpush2.msra.mxu0 0.0
    %2365 = vmatprep.subr.mxu0 0.0
    %2366 = vmatpush2.msra.mxu0 0.0
    %2367 = vmatprep.subr.mxu0 0.0
    %2368 = vmatpush2.msra.mxu0 0.0
    %2369 = vmatprep.mubr.f32.mxu0 0.0
    %v2370 = vand.u32 %v1832, 4294901760
    %2371 = vmatmul.mubr.f32.gmra.mxu0 %v2370
    %v2372 = vpop.f32.mrf.mxu0
    %v2373 = vadd.f32 %v2293, %v2372
    %v2374 = vpop.f32.mrf.mxu0
    %v2375 = vadd.f32 %v2295, %v2374
    %2376 = vdwg.mxu0
    %v2377 = vsel %vm97, %v1814, %v2373
    %v2378 = vsel %vm98, %v1816, %v2375
    %v2381 = vcombine.low %v2377, %v2378
    %v2383 = vunpack.c.l.s4 1983009808
    %v2384 = vunpack.c.0.s8 %v2383
    %v2385 = vlaneseq
    %v2386 = vshrl.u32 %v2385, 7
    %v2387 = vsub.s32 %v2384, %v2386
    %v2388 = vrot.slane %v2381, %v2387
    %s2390 = scalar_lea.vmem [#allocation2], 4
    %2391 = vst [vmem:[%s2390] sm:$0xf] %v2388
    %v2392 = vsel %vm97, %v2373, %v1814
    %v2393 = vsel %vm98, %v2375, %v1816
    %v2396 = vcombine.low %v2392, %v2393
    %v2398 = vunpack.c.l.s4 1983009808
    %v2399 = vunpack.c.0.s8 %v2398
    %v2400 = vlaneseq
    %v2401 = vshrl.u32 %v2400, 7
    %v2402 = vsub.s32 %v2399, %v2401
    %v2403 = vrot.slane %v2396, %v2402
    %s2405 = scalar_lea.vmem [#allocation2], 24
    %2406 = vst [vmem:[%s2405] sm:$0xf] %v2403
    %s2407 = sld [smem:[#allocation5 + $0x2]]
    %s2408 = scalar_lea.vmem %s1, %s2407
    %v2409 = vld [vmem:[%s2408] sm:$0x1]
    %s2410 = sld [smem:[#allocation5 + $0xa]]
    %s2411 = scalar_lea.vmem %s1, %s2410
    %v2412 = vld [vmem:[%s2411] sm:$0x1]
    %v2414 = vlaneseq
    %v2415 = vshrl.u32 %v2414, 7
    %v2416 = vsub.s32 0, %v2415
    %v2417 = vrot.slane %v2412, %v2416
    %v2419 = vsel %vm111, %v2409, %v2417
    %v2421 = vsel %vm124, %v2419, 0
    %2423 = vmatprep.subr.mxu0 0.0
    %2424 = vmatpush1.msra.mxu0 0.0
    %2425 = vmatprep.subr.mxu0 0.0
    %2426 = vmatpush1.msra.mxu0 0.0
    %2427 = vmatprep.subr.mxu0 0.0
    %2428 = vmatpush1.msra.mxu0 0.0
    %2429 = vmatprep.subr.mxu0 0.0
    %2430 = vmatpush1.msra.mxu0 0.0
    %2431 = vmatprep.subr.mxu0 0.0
    %2432 = vmatpush1.msra.mxu0 0.0
    %2433 = vmatprep.subr.mxu0 0.0
    %2434 = vmatpush1.msra.mxu0 0.0
    %2435 = vmatprep.subr.mxu0 0.0
    %2436 = vmatpush1.msra.mxu0 0.0
    %2437 = vmatprep.subr.mxu0 0.0
    %2438 = vmatpush1.msra.mxu0 0.0
    %2439 = vmatprep.subr.mxu0 0.0
    %2440 = vmatpush1.msra.mxu0 0.0
    %2441 = vmatprep.subr.mxu0 0.0
    %2442 = vmatpush1.msra.mxu0 0.0
    %2443 = vmatprep.subr.mxu0 0.0
    %2444 = vmatpush1.msra.mxu0 0.0
    %2445 = vmatprep.subr.mxu0 0.0
    %2446 = vmatpush1.msra.mxu0 0.0
    %v2447 = vand.u32 %v68, 4294901760
    %2448 = vmatprep.subr.mxu0 %v2447
    %v2449 = vand.u32 %v67, 4294901760
    %2450 = vmatpush1.msra.mxu0 %v2449
    %v2451 = vand.u32 %v66, 4294901760
    %2452 = vmatprep.subr.mxu0 %v2451
    %v2453 = vand.u32 %v65, 4294901760
    %2454 = vmatpush1.msra.mxu0 %v2453
    %v2455 = vand.u32 %v64, 4294901760
    %2456 = vmatprep.subr.mxu0 %v2455
    %v2457 = vand.u32 %v63, 4294901760
    %2458 = vmatpush1.msra.mxu0 %v2457
    %v2459 = vand.u32 %v62, 4294901760
    %2460 = vmatprep.subr.mxu0 %v2459
    %v2461 = vand.u32 %v61, 4294901760
    %2462 = vmatpush1.msra.mxu0 %v2461
    %2463 = vmatprep.subr.mxu0 0.0
    %2464 = vmatpush2.msra.mxu0 0.0
    %2465 = vmatprep.subr.mxu0 0.0
    %2466 = vmatpush2.msra.mxu0 0.0
    %2467 = vmatprep.subr.mxu0 0.0
    %2468 = vmatpush2.msra.mxu0 0.0
    %2469 = vmatprep.subr.mxu0 0.0
    %2470 = vmatpush2.msra.mxu0 0.0
    %2471 = vmatprep.subr.mxu0 0.0
    %2472 = vmatpush2.msra.mxu0 0.0
    %2473 = vmatprep.subr.mxu0 0.0
    %2474 = vmatpush2.msra.mxu0 0.0
    %2475 = vmatprep.subr.mxu0 0.0
    %2476 = vmatpush2.msra.mxu0 0.0
    %2477 = vmatprep.subr.mxu0 0.0
    %2478 = vmatpush2.msra.mxu0 0.0
    %2479 = vmatprep.subr.mxu0 0.0
    %2480 = vmatpush2.msra.mxu0 0.0
    %2481 = vmatprep.subr.mxu0 0.0
    %2482 = vmatpush2.msra.mxu0 0.0
    %2483 = vmatprep.subr.mxu0 0.0
    %2484 = vmatpush2.msra.mxu0 0.0
    %2485 = vmatprep.subr.mxu0 0.0
    %2486 = vmatpush2.msra.mxu0 0.0
    %2487 = vmatprep.subr.mxu0 0.0
    %2488 = vmatpush2.msra.mxu0 0.0
    %2489 = vmatprep.subr.mxu0 0.0
    %2490 = vmatpush2.msra.mxu0 0.0
    %2491 = vmatprep.subr.mxu0 0.0
    %2492 = vmatpush2.msra.mxu0 0.0
    %2493 = vmatprep.subr.mxu0 0.0
    %2494 = vmatpush2.msra.mxu0 0.0
    %2495 = vmatprep.mubr.f32.mxu0 0.0
    %v2496 = vand.u32 %v2421, 4294901760
    %v2497 = vsub.f32 %v2421, %v2496
    %v2498 = vand.u32 %v2497, 4294901760
    %v2499 = vsub.f32 %v2497, %v2498
    %v2500 = vand.u32 %v2499, 4294901760
    %2501 = vmatmul.mubr.f32.gmra.mxu0 %v2500
    %v2502 = vpop.f32.mrf.mxu0
    %v2503 = vadd.f32 %v117, %v2502
    %v2504 = vpop.f32.mrf.mxu0
    %v2505 = vadd.f32 %v121, %v2504
    %2506 = vdwg.mxu0
    %2507 = vmatprep.subr.mxu0 0.0
    %2508 = vmatpush1.msra.mxu0 0.0
    %2509 = vmatprep.subr.mxu0 0.0
    %2510 = vmatpush1.msra.mxu0 0.0
    %2511 = vmatprep.subr.mxu0 0.0
    %2512 = vmatpush1.msra.mxu0 0.0
    %2513 = vmatprep.subr.mxu0 0.0
    %2514 = vmatpush1.msra.mxu0 0.0
    %2515 = vmatprep.subr.mxu0 0.0
    %2516 = vmatpush1.msra.mxu0 0.0
    %2517 = vmatprep.subr.mxu0 0.0
    %2518 = vmatpush1.msra.mxu0 0.0
    %2519 = vmatprep.subr.mxu0 0.0
    %2520 = vmatpush1.msra.mxu0 0.0
    %2521 = vmatprep.subr.mxu0 0.0
    %2522 = vmatpush1.msra.mxu0 0.0
    %2523 = vmatprep.subr.mxu0 0.0
    %2524 = vmatpush1.msra.mxu0 0.0
    %2525 = vmatprep.subr.mxu0 0.0
    %2526 = vmatpush1.msra.mxu0 0.0
    %2527 = vmatprep.subr.mxu0 0.0
    %2528 = vmatpush1.msra.mxu0 0.0
    %2529 = vmatprep.subr.mxu0 0.0
    %2530 = vmatpush1.msra.mxu0 0.0
    %v2531 = vand.u32 %v68, 4294901760
    %v2532 = vsub.f32 %v68, %v2531
    %v2533 = vand.u32 %v2532, 4294901760
    %v2534 = vsub.f32 %v2532, %v2533
    %v2535 = vand.u32 %v2534, 4294901760
    %2536 = vmatprep.subr.mxu0 %v2535
    %v2537 = vand.u32 %v67, 4294901760
    %v2538 = vsub.f32 %v67, %v2537
    %v2539 = vand.u32 %v2538, 4294901760
    %v2540 = vsub.f32 %v2538, %v2539
    %v2541 = vand.u32 %v2540, 4294901760
    %2542 = vmatpush1.msra.mxu0 %v2541
    %v2543 = vand.u32 %v66, 4294901760
    %v2544 = vsub.f32 %v66, %v2543
    %v2545 = vand.u32 %v2544, 4294901760
    %v2546 = vsub.f32 %v2544, %v2545
    %v2547 = vand.u32 %v2546, 4294901760
    %2548 = vmatprep.subr.mxu0 %v2547
    %v2549 = vand.u32 %v65, 4294901760
    %v2550 = vsub.f32 %v65, %v2549
    %v2551 = vand.u32 %v2550, 4294901760
    %v2552 = vsub.f32 %v2550, %v2551
    %v2553 = vand.u32 %v2552, 4294901760
    %2554 = vmatpush1.msra.mxu0 %v2553
    %v2555 = vand.u32 %v64, 4294901760
    %v2556 = vsub.f32 %v64, %v2555
    %v2557 = vand.u32 %v2556, 4294901760
    %v2558 = vsub.f32 %v2556, %v2557
    %v2559 = vand.u32 %v2558, 4294901760
    %2560 = vmatprep.subr.mxu0 %v2559
    %v2561 = vand.u32 %v63, 4294901760
    %v2562 = vsub.f32 %v63, %v2561
    %v2563 = vand.u32 %v2562, 4294901760
    %v2564 = vsub.f32 %v2562, %v2563
    %v2565 = vand.u32 %v2564, 4294901760
    %2566 = vmatpush1.msra.mxu0 %v2565
    %v2567 = vand.u32 %v62, 4294901760
    %v2568 = vsub.f32 %v62, %v2567
    %v2569 = vand.u32 %v2568, 4294901760
    %v2570 = vsub.f32 %v2568, %v2569
    %v2571 = vand.u32 %v2570, 4294901760
    %2572 = vmatprep.subr.mxu0 %v2571
    %v2573 = vand.u32 %v61, 4294901760
    %v2574 = vsub.f32 %v61, %v2573
    %v2575 = vand.u32 %v2574, 4294901760
    %v2576 = vsub.f32 %v2574, %v2575
    %v2577 = vand.u32 %v2576, 4294901760
    %2578 = vmatpush1.msra.mxu0 %v2577
    %2579 = vmatprep.subr.mxu0 0.0
    %2580 = vmatpush2.msra.mxu0 0.0
    %2581 = vmatprep.subr.mxu0 0.0
    %2582 = vmatpush2.msra.mxu0 0.0
    %2583 = vmatprep.subr.mxu0 0.0
    %2584 = vmatpush2.msra.mxu0 0.0
    %2585 = vmatprep.subr.mxu0 0.0
    %2586 = vmatpush2.msra.mxu0 0.0
    %2587 = vmatprep.subr.mxu0 0.0
    %2588 = vmatpush2.msra.mxu0 0.0
    %2589 = vmatprep.subr.mxu0 0.0
    %2590 = vmatpush2.msra.mxu0 0.0
    %2591 = vmatprep.subr.mxu0 0.0
    %2592 = vmatpush2.msra.mxu0 0.0
    %2593 = vmatprep.subr.mxu0 0.0
    %2594 = vmatpush2.msra.mxu0 0.0
    %2595 = vmatprep.subr.mxu0 0.0
    %2596 = vmatpush2.msra.mxu0 0.0
    %2597 = vmatprep.subr.mxu0 0.0
    %2598 = vmatpush2.msra.mxu0 0.0
    %2599 = vmatprep.subr.mxu0 0.0
    %2600 = vmatpush2.msra.mxu0 0.0
    %2601 = vmatprep.subr.mxu0 0.0
    %2602 = vmatpush2.msra.mxu0 0.0
    %2603 = vmatprep.subr.mxu0 0.0
    %2604 = vmatpush2.msra.mxu0 0.0
    %2605 = vmatprep.subr.mxu0 0.0
    %2606 = vmatpush2.msra.mxu0 0.0
    %2607 = vmatprep.subr.mxu0 0.0
    %2608 = vmatpush2.msra.mxu0 0.0
    %2609 = vmatprep.subr.mxu0 0.0
    %2610 = vmatpush2.msra.mxu0 0.0
    %2611 = vmatprep.mubr.f32.mxu0 0.0
    %v2612 = vand.u32 %v2421, 4294901760
    %2613 = vmatmul.mubr.f32.gmra.mxu0 %v2612
    %v2614 = vpop.f32.mrf.mxu0
    %v2615 = vadd.f32 %v2503, %v2614
    %v2616 = vpop.f32.mrf.mxu0
    %v2617 = vadd.f32 %v2505, %v2616
    %2618 = vdwg.mxu0
    %2619 = vmatprep.subr.mxu0 0.0
    %2620 = vmatpush1.msra.mxu0 0.0
    %2621 = vmatprep.subr.mxu0 0.0
    %2622 = vmatpush1.msra.mxu0 0.0
    %2623 = vmatprep.subr.mxu0 0.0
    %2624 = vmatpush1.msra.mxu0 0.0
    %2625 = vmatprep.subr.mxu0 0.0
    %2626 = vmatpush1.msra.mxu0 0.0
    %2627 = vmatprep.subr.mxu0 0.0
    %2628 = vmatpush1.msra.mxu0 0.0
    %2629 = vmatprep.subr.mxu0 0.0
    %2630 = vmatpush1.msra.mxu0 0.0
    %2631 = vmatprep.subr.mxu0 0.0
    %2632 = vmatpush1.msra.mxu0 0.0
    %2633 = vmatprep.subr.mxu0 0.0
    %2634 = vmatpush1.msra.mxu0 0.0
    %2635 = vmatprep.subr.mxu0 0.0
    %2636 = vmatpush1.msra.mxu0 0.0
    %2637 = vmatprep.subr.mxu0 0.0
    %2638 = vmatpush1.msra.mxu0 0.0
    %2639 = vmatprep.subr.mxu0 0.0
    %2640 = vmatpush1.msra.mxu0 0.0
    %2641 = vmatprep.subr.mxu0 0.0
    %2642 = vmatpush1.msra.mxu0 0.0
    %v2643 = vand.u32 %v68, 4294901760
    %v2644 = vsub.f32 %v68, %v2643
    %2645 = vmatprep.subr.mxu0 %v2644
    %v2646 = vand.u32 %v67, 4294901760
    %v2647 = vsub.f32 %v67, %v2646
    %2648 = vmatpush1.msra.mxu0 %v2647
    %v2649 = vand.u32 %v66, 4294901760
    %v2650 = vsub.f32 %v66, %v2649
    %2651 = vmatprep.subr.mxu0 %v2650
    %v2652 = vand.u32 %v65, 4294901760
    %v2653 = vsub.f32 %v65, %v2652
    %2654 = vmatpush1.msra.mxu0 %v2653
    %v2655 = vand.u32 %v64, 4294901760
    %v2656 = vsub.f32 %v64, %v2655
    %2657 = vmatprep.subr.mxu0 %v2656
    %v2658 = vand.u32 %v63, 4294901760
    %v2659 = vsub.f32 %v63, %v2658
    %2660 = vmatpush1.msra.mxu0 %v2659
    %v2661 = vand.u32 %v62, 4294901760
    %v2662 = vsub.f32 %v62, %v2661
    %2663 = vmatprep.subr.mxu0 %v2662
    %v2664 = vand.u32 %v61, 4294901760
    %v2665 = vsub.f32 %v61, %v2664
    %2666 = vmatpush1.msra.mxu0 %v2665
    %2667 = vmatprep.subr.mxu0 0.0
    %2668 = vmatpush2.msra.mxu0 0.0
    %2669 = vmatprep.subr.mxu0 0.0
    %2670 = vmatpush2.msra.mxu0 0.0
    %2671 = vmatprep.subr.mxu0 0.0
    %2672 = vmatpush2.msra.mxu0 0.0
    %2673 = vmatprep.subr.mxu0 0.0
    %2674 = vmatpush2.msra.mxu0 0.0
    %2675 = vmatprep.subr.mxu0 0.0
    %2676 = vmatpush2.msra.mxu0 0.0
    %2677 = vmatprep.subr.mxu0 0.0
    %2678 = vmatpush2.msra.mxu0 0.0
    %2679 = vmatprep.subr.mxu0 0.0
    %2680 = vmatpush2.msra.mxu0 0.0
    %2681 = vmatprep.subr.mxu0 0.0
    %2682 = vmatpush2.msra.mxu0 0.0
    %2683 = vmatprep.subr.mxu0 0.0
    %2684 = vmatpush2.msra.mxu0 0.0
    %2685 = vmatprep.subr.mxu0 0.0
    %2686 = vmatpush2.msra.mxu0 0.0
    %2687 = vmatprep.subr.mxu0 0.0
    %2688 = vmatpush2.msra.mxu0 0.0
    %2689 = vmatprep.subr.mxu0 0.0
    %2690 = vmatpush2.msra.mxu0 0.0
    %2691 = vmatprep.subr.mxu0 0.0
    %2692 = vmatpush2.msra.mxu0 0.0
    %2693 = vmatprep.subr.mxu0 0.0
    %2694 = vmatpush2.msra.mxu0 0.0
    %2695 = vmatprep.subr.mxu0 0.0
    %2696 = vmatpush2.msra.mxu0 0.0
    %2697 = vmatprep.subr.mxu0 0.0
    %2698 = vmatpush2.msra.mxu0 0.0
    %2699 = vmatprep.mubr.f32.mxu0 0.0
    %v2700 = vand.u32 %v2421, 4294901760
    %v2701 = vsub.f32 %v2421, %v2700
    %2702 = vmatmul.mubr.f32.gmra.mxu0 %v2701
    %v2703 = vpop.f32.mrf.mxu0
    %v2704 = vadd.f32 %v2615, %v2703
    %v2705 = vpop.f32.mrf.mxu0
    %v2706 = vadd.f32 %v2617, %v2705
    %2707 = vdwg.mxu0
    %2708 = vmatprep.subr.mxu0 0.0
    %2709 = vmatpush1.msra.mxu0 0.0
    %2710 = vmatprep.subr.mxu0 0.0
    %2711 = vmatpush1.msra.mxu0 0.0
    %2712 = vmatprep.subr.mxu0 0.0
    %2713 = vmatpush1.msra.mxu0 0.0
    %2714 = vmatprep.subr.mxu0 0.0
    %2715 = vmatpush1.msra.mxu0 0.0
    %2716 = vmatprep.subr.mxu0 0.0
    %2717 = vmatpush1.msra.mxu0 0.0
    %2718 = vmatprep.subr.mxu0 0.0
    %2719 = vmatpush1.msra.mxu0 0.0
    %2720 = vmatprep.subr.mxu0 0.0
    %2721 = vmatpush1.msra.mxu0 0.0
    %2722 = vmatprep.subr.mxu0 0.0
    %2723 = vmatpush1.msra.mxu0 0.0
    %2724 = vmatprep.subr.mxu0 0.0
    %2725 = vmatpush1.msra.mxu0 0.0
    %2726 = vmatprep.subr.mxu0 0.0
    %2727 = vmatpush1.msra.mxu0 0.0
    %2728 = vmatprep.subr.mxu0 0.0
    %2729 = vmatpush1.msra.mxu0 0.0
    %2730 = vmatprep.subr.mxu0 0.0
    %2731 = vmatpush1.msra.mxu0 0.0
    %v2732 = vand.u32 %v68, 4294901760
    %2733 = vmatprep.subr.mxu0 %v2732
    %v2734 = vand.u32 %v67, 4294901760
    %2735 = vmatpush1.msra.mxu0 %v2734
    %v2736 = vand.u32 %v66, 4294901760
    %2737 = vmatprep.subr.mxu0 %v2736
    %v2738 = vand.u32 %v65, 4294901760
    %2739 = vmatpush1.msra.mxu0 %v2738
    %v2740 = vand.u32 %v64, 4294901760
    %2741 = vmatprep.subr.mxu0 %v2740
    %v2742 = vand.u32 %v63, 4294901760
    %2743 = vmatpush1.msra.mxu0 %v2742
    %v2744 = vand.u32 %v62, 4294901760
    %2745 = vmatprep.subr.mxu0 %v2744
    %v2746 = vand.u32 %v61, 4294901760
    %2747 = vmatpush1.msra.mxu0 %v2746
    %2748 = vmatprep.subr.mxu0 0.0
    %2749 = vmatpush2.msra.mxu0 0.0
    %2750 = vmatprep.subr.mxu0 0.0
    %2751 = vmatpush2.msra.mxu0 0.0
    %2752 = vmatprep.subr.mxu0 0.0
    %2753 = vmatpush2.msra.mxu0 0.0
    %2754 = vmatprep.subr.mxu0 0.0
    %2755 = vmatpush2.msra.mxu0 0.0
    %2756 = vmatprep.subr.mxu0 0.0
    %2757 = vmatpush2.msra.mxu0 0.0
    %2758 = vmatprep.subr.mxu0 0.0
    %2759 = vmatpush2.msra.mxu0 0.0
    %2760 = vmatprep.subr.mxu0 0.0
    %2761 = vmatpush2.msra.mxu0 0.0
    %2762 = vmatprep.subr.mxu0 0.0
    %2763 = vmatpush2.msra.mxu0 0.0
    %2764 = vmatprep.subr.mxu0 0.0
    %2765 = vmatpush2.msra.mxu0 0.0
    %2766 = vmatprep.subr.mxu0 0.0
    %2767 = vmatpush2.msra.mxu0 0.0
    %2768 = vmatprep.subr.mxu0 0.0
    %2769 = vmatpush2.msra.mxu0 0.0
    %2770 = vmatprep.subr.mxu0 0.0
    %2771 = vmatpush2.msra.mxu0 0.0
    %2772 = vmatprep.subr.mxu0 0.0
    %2773 = vmatpush2.msra.mxu0 0.0
    %2774 = vmatprep.subr.mxu0 0.0
    %2775 = vmatpush2.msra.mxu0 0.0
    %2776 = vmatprep.subr.mxu0 0.0
    %2777 = vmatpush2.msra.mxu0 0.0
    %2778 = vmatprep.subr.mxu0 0.0
    %2779 = vmatpush2.msra.mxu0 0.0
    %2780 = vmatprep.mubr.f32.mxu0 0.0
    %v2781 = vand.u32 %v2421, 4294901760
    %v2782 = vsub.f32 %v2421, %v2781
    %v2783 = vand.u32 %v2782, 4294901760
    %2784 = vmatmul.mubr.f32.gmra.mxu0 %v2783
    %v2785 = vpop.f32.mrf.mxu0
    %v2786 = vadd.f32 %v2704, %v2785
    %v2787 = vpop.f32.mrf.mxu0
    %v2788 = vadd.f32 %v2706, %v2787
    %2789 = vdwg.mxu0
    %2790 = vmatprep.subr.mxu0 0.0
    %2791 = vmatpush1.msra.mxu0 0.0
    %2792 = vmatprep.subr.mxu0 0.0
    %2793 = vmatpush1.msra.mxu0 0.0
    %2794 = vmatprep.subr.mxu0 0.0
    %2795 = vmatpush1.msra.mxu0 0.0
    %2796 = vmatprep.subr.mxu0 0.0
    %2797 = vmatpush1.msra.mxu0 0.0
    %2798 = vmatprep.subr.mxu0 0.0
    %2799 = vmatpush1.msra.mxu0 0.0
    %2800 = vmatprep.subr.mxu0 0.0
    %2801 = vmatpush1.msra.mxu0 0.0
    %2802 = vmatprep.subr.mxu0 0.0
    %2803 = vmatpush1.msra.mxu0 0.0
    %2804 = vmatprep.subr.mxu0 0.0
    %2805 = vmatpush1.msra.mxu0 0.0
    %2806 = vmatprep.subr.mxu0 0.0
    %2807 = vmatpush1.msra.mxu0 0.0
    %2808 = vmatprep.subr.mxu0 0.0
    %2809 = vmatpush1.msra.mxu0 0.0
    %2810 = vmatprep.subr.mxu0 0.0
    %2811 = vmatpush1.msra.mxu0 0.0
    %2812 = vmatprep.subr.mxu0 0.0
    %2813 = vmatpush1.msra.mxu0 0.0
    %v2814 = vand.u32 %v68, 4294901760
    %v2815 = vsub.f32 %v68, %v2814
    %v2816 = vand.u32 %v2815, 4294901760
    %2817 = vmatprep.subr.mxu0 %v2816
    %v2818 = vand.u32 %v67, 4294901760
    %v2819 = vsub.f32 %v67, %v2818
    %v2820 = vand.u32 %v2819, 4294901760
    %2821 = vmatpush1.msra.mxu0 %v2820
    %v2822 = vand.u32 %v66, 4294901760
    %v2823 = vsub.f32 %v66, %v2822
    %v2824 = vand.u32 %v2823, 4294901760
    %2825 = vmatprep.subr.mxu0 %v2824
    %v2826 = vand.u32 %v65, 4294901760
    %v2827 = vsub.f32 %v65, %v2826
    %v2828 = vand.u32 %v2827, 4294901760
    %2829 = vmatpush1.msra.mxu0 %v2828
    %v2830 = vand.u32 %v64, 4294901760
    %v2831 = vsub.f32 %v64, %v2830
    %v2832 = vand.u32 %v2831, 4294901760
    %2833 = vmatprep.subr.mxu0 %v2832
    %v2834 = vand.u32 %v63, 4294901760
    %v2835 = vsub.f32 %v63, %v2834
    %v2836 = vand.u32 %v2835, 4294901760
    %2837 = vmatpush1.msra.mxu0 %v2836
    %v2838 = vand.u32 %v62, 4294901760
    %v2839 = vsub.f32 %v62, %v2838
    %v2840 = vand.u32 %v2839, 4294901760
    %2841 = vmatprep.subr.mxu0 %v2840
    %v2842 = vand.u32 %v61, 4294901760
    %v2843 = vsub.f32 %v61, %v2842
    %v2844 = vand.u32 %v2843, 4294901760
    %2845 = vmatpush1.msra.mxu0 %v2844
    %2846 = vmatprep.subr.mxu0 0.0
    %2847 = vmatpush2.msra.mxu0 0.0
    %2848 = vmatprep.subr.mxu0 0.0
    %2849 = vmatpush2.msra.mxu0 0.0
    %2850 = vmatprep.subr.mxu0 0.0
    %2851 = vmatpush2.msra.mxu0 0.0
    %2852 = vmatprep.subr.mxu0 0.0
    %2853 = vmatpush2.msra.mxu0 0.0
    %2854 = vmatprep.subr.mxu0 0.0
    %2855 = vmatpush2.msra.mxu0 0.0
    %2856 = vmatprep.subr.mxu0 0.0
    %2857 = vmatpush2.msra.mxu0 0.0
    %2858 = vmatprep.subr.mxu0 0.0
    %2859 = vmatpush2.msra.mxu0 0.0
    %2860 = vmatprep.subr.mxu0 0.0
    %2861 = vmatpush2.msra.mxu0 0.0
    %2862 = vmatprep.subr.mxu0 0.0
    %2863 = vmatpush2.msra.mxu0 0.0
    %2864 = vmatprep.subr.mxu0 0.0
    %2865 = vmatpush2.msra.mxu0 0.0
    %2866 = vmatprep.subr.mxu0 0.0
    %2867 = vmatpush2.msra.mxu0 0.0
    %2868 = vmatprep.subr.mxu0 0.0
    %2869 = vmatpush2.msra.mxu0 0.0
    %2870 = vmatprep.subr.mxu0 0.0
    %2871 = vmatpush2.msra.mxu0 0.0
    %2872 = vmatprep.subr.mxu0 0.0
    %2873 = vmatpush2.msra.mxu0 0.0
    %2874 = vmatprep.subr.mxu0 0.0
    %2875 = vmatpush2.msra.mxu0 0.0
    %2876 = vmatprep.subr.mxu0 0.0
    %2877 = vmatpush2.msra.mxu0 0.0
    %2878 = vmatprep.mubr.f32.mxu0 0.0
    %v2879 = vand.u32 %v2421, 4294901760
    %2880 = vmatmul.mubr.f32.gmra.mxu0 %v2879
    %v2881 = vpop.f32.mrf.mxu0
    %v2882 = vadd.f32 %v2786, %v2881
    %v2883 = vpop.f32.mrf.mxu0
    %v2884 = vadd.f32 %v2788, %v2883
    %2885 = vdwg.mxu0
    %2886 = vmatprep.subr.mxu0 0.0
    %2887 = vmatpush1.msra.mxu0 0.0
    %2888 = vmatprep.subr.mxu0 0.0
    %2889 = vmatpush1.msra.mxu0 0.0
    %2890 = vmatprep.subr.mxu0 0.0
    %2891 = vmatpush1.msra.mxu0 0.0
    %2892 = vmatprep.subr.mxu0 0.0
    %2893 = vmatpush1.msra.mxu0 0.0
    %2894 = vmatprep.subr.mxu0 0.0
    %2895 = vmatpush1.msra.mxu0 0.0
    %2896 = vmatprep.subr.mxu0 0.0
    %2897 = vmatpush1.msra.mxu0 0.0
    %2898 = vmatprep.subr.mxu0 0.0
    %2899 = vmatpush1.msra.mxu0 0.0
    %2900 = vmatprep.subr.mxu0 0.0
    %2901 = vmatpush1.msra.mxu0 0.0
    %2902 = vmatprep.subr.mxu0 0.0
    %2903 = vmatpush1.msra.mxu0 0.0
    %2904 = vmatprep.subr.mxu0 0.0
    %2905 = vmatpush1.msra.mxu0 0.0
    %2906 = vmatprep.subr.mxu0 0.0
    %2907 = vmatpush1.msra.mxu0 0.0
    %2908 = vmatprep.subr.mxu0 0.0
    %2909 = vmatpush1.msra.mxu0 0.0
    %v2910 = vand.u32 %v68, 4294901760
    %2911 = vmatprep.subr.mxu0 %v2910
    %v2912 = vand.u32 %v67, 4294901760
    %2913 = vmatpush1.msra.mxu0 %v2912
    %v2914 = vand.u32 %v66, 4294901760
    %2915 = vmatprep.subr.mxu0 %v2914
    %v2916 = vand.u32 %v65, 4294901760
    %2917 = vmatpush1.msra.mxu0 %v2916
    %v2918 = vand.u32 %v64, 4294901760
    %2919 = vmatprep.subr.mxu0 %v2918
    %v2920 = vand.u32 %v63, 4294901760
    %2921 = vmatpush1.msra.mxu0 %v2920
    %v2922 = vand.u32 %v62, 4294901760
    %2923 = vmatprep.subr.mxu0 %v2922
    %v2924 = vand.u32 %v61, 4294901760
    %2925 = vmatpush1.msra.mxu0 %v2924
    %2926 = vmatprep.subr.mxu0 0.0
    %2927 = vmatpush2.msra.mxu0 0.0
    %2928 = vmatprep.subr.mxu0 0.0
    %2929 = vmatpush2.msra.mxu0 0.0
    %2930 = vmatprep.subr.mxu0 0.0
    %2931 = vmatpush2.msra.mxu0 0.0
    %2932 = vmatprep.subr.mxu0 0.0
    %2933 = vmatpush2.msra.mxu0 0.0
    %2934 = vmatprep.subr.mxu0 0.0
    %2935 = vmatpush2.msra.mxu0 0.0
    %2936 = vmatprep.subr.mxu0 0.0
    %2937 = vmatpush2.msra.mxu0 0.0
    %2938 = vmatprep.subr.mxu0 0.0
    %2939 = vmatpush2.msra.mxu0 0.0
    %2940 = vmatprep.subr.mxu0 0.0
    %2941 = vmatpush2.msra.mxu0 0.0
    %2942 = vmatprep.subr.mxu0 0.0
    %2943 = vmatpush2.msra.mxu0 0.0
    %2944 = vmatprep.subr.mxu0 0.0
    %2945 = vmatpush2.msra.mxu0 0.0
    %2946 = vmatprep.subr.mxu0 0.0
    %2947 = vmatpush2.msra.mxu0 0.0
    %2948 = vmatprep.subr.mxu0 0.0
    %2949 = vmatpush2.msra.mxu0 0.0
    %2950 = vmatprep.subr.mxu0 0.0
    %2951 = vmatpush2.msra.mxu0 0.0
    %2952 = vmatprep.subr.mxu0 0.0
    %2953 = vmatpush2.msra.mxu0 0.0
    %2954 = vmatprep.subr.mxu0 0.0
    %2955 = vmatpush2.msra.mxu0 0.0
    %2956 = vmatprep.subr.mxu0 0.0
    %2957 = vmatpush2.msra.mxu0 0.0
    %2958 = vmatprep.mubr.f32.mxu0 0.0
    %v2959 = vand.u32 %v2421, 4294901760
    %2960 = vmatmul.mubr.f32.gmra.mxu0 %v2959
    %v2961 = vpop.f32.mrf.mxu0
    %v2962 = vadd.f32 %v2882, %v2961
    %v2963 = vpop.f32.mrf.mxu0
    %v2964 = vadd.f32 %v2884, %v2963
    %2965 = vdwg.mxu0
    %s2966 = sld [smem:[#allocation5 + $0x5]]
    %s2967 = scalar_lea.vmem %s1, %s2966
    %v2968 = vld [vmem:[%s2967] sm:$0x1]
    %s2969 = sld [smem:[#allocation5 + $0xd]]
    %s2970 = scalar_lea.vmem %s1, %s2969
    %v2971 = vld [vmem:[%s2970] sm:$0x1]
    %v2973 = vlaneseq
    %v2974 = vshrl.u32 %v2973, 7
    %v2975 = vsub.s32 0, %v2974
    %v2976 = vrot.slane %v2971, %v2975
    %v2978 = vsel %vm111, %v2968, %v2976
    %v2980 = vsel %vm124, %v2978, 0
    %2982 = vmatprep.subr.mxu0 0.0
    %2983 = vmatpush1.msra.mxu0 0.0
    %2984 = vmatprep.subr.mxu0 0.0
    %2985 = vmatpush1.msra.mxu0 0.0
    %2986 = vmatprep.subr.mxu0 0.0
    %2987 = vmatpush1.msra.mxu0 0.0
    %2988 = vmatprep.subr.mxu0 0.0
    %2989 = vmatpush1.msra.mxu0 0.0
    %2990 = vmatprep.subr.mxu0 0.0
    %2991 = vmatpush1.msra.mxu0 0.0
    %2992 = vmatprep.subr.mxu0 0.0
    %2993 = vmatpush1.msra.mxu0 0.0
    %2994 = vmatprep.subr.mxu0 0.0
    %2995 = vmatpush1.msra.mxu0 0.0
    %2996 = vmatprep.subr.mxu0 0.0
    %2997 = vmatpush1.msra.mxu0 0.0
    %2998 = vmatprep.subr.mxu0 0.0
    %2999 = vmatpush1.msra.mxu0 0.0
    %3000 = vmatprep.subr.mxu0 0.0
    %3001 = vmatpush1.msra.mxu0 0.0
    %3002 = vmatprep.subr.mxu0 0.0
    %3003 = vmatpush1.msra.mxu0 0.0
    %3004 = vmatprep.subr.mxu0 0.0
    %3005 = vmatpush1.msra.mxu0 0.0
    %v3006 = vand.u32 %v68, 4294901760
    %3007 = vmatprep.subr.mxu0 %v3006
    %v3008 = vand.u32 %v67, 4294901760
    %3009 = vmatpush1.msra.mxu0 %v3008
    %v3010 = vand.u32 %v66, 4294901760
    %3011 = vmatprep.subr.mxu0 %v3010
    %v3012 = vand.u32 %v65, 4294901760
    %3013 = vmatpush1.msra.mxu0 %v3012
    %v3014 = vand.u32 %v64, 4294901760
    %3015 = vmatprep.subr.mxu0 %v3014
    %v3016 = vand.u32 %v63, 4294901760
    %3017 = vmatpush1.msra.mxu0 %v3016
    %v3018 = vand.u32 %v62, 4294901760
    %3019 = vmatprep.subr.mxu0 %v3018
    %v3020 = vand.u32 %v61, 4294901760
    %3021 = vmatpush1.msra.mxu0 %v3020
    %3022 = vmatprep.subr.mxu0 0.0
    %3023 = vmatpush2.msra.mxu0 0.0
    %3024 = vmatprep.subr.mxu0 0.0
    %3025 = vmatpush2.msra.mxu0 0.0
    %3026 = vmatprep.subr.mxu0 0.0
    %3027 = vmatpush2.msra.mxu0 0.0
    %3028 = vmatprep.subr.mxu0 0.0
    %3029 = vmatpush2.msra.mxu0 0.0
    %3030 = vmatprep.subr.mxu0 0.0
    %3031 = vmatpush2.msra.mxu0 0.0
    %3032 = vmatprep.subr.mxu0 0.0
    %3033 = vmatpush2.msra.mxu0 0.0
    %3034 = vmatprep.subr.mxu0 0.0
    %3035 = vmatpush2.msra.mxu0 0.0
    %3036 = vmatprep.subr.mxu0 0.0
    %3037 = vmatpush2.msra.mxu0 0.0
    %3038 = vmatprep.subr.mxu0 0.0
    %3039 = vmatpush2.msra.mxu0 0.0
    %3040 = vmatprep.subr.mxu0 0.0
    %3041 = vmatpush2.msra.mxu0 0.0
    %3042 = vmatprep.subr.mxu0 0.0
    %3043 = vmatpush2.msra.mxu0 0.0
    %3044 = vmatprep.subr.mxu0 0.0
    %3045 = vmatpush2.msra.mxu0 0.0
    %3046 = vmatprep.subr.mxu0 0.0
    %3047 = vmatpush2.msra.mxu0 0.0
    %3048 = vmatprep.subr.mxu0 0.0
    %3049 = vmatpush2.msra.mxu0 0.0
    %3050 = vmatprep.subr.mxu0 0.0
    %3051 = vmatpush2.msra.mxu0 0.0
    %3052 = vmatprep.subr.mxu0 0.0
    %3053 = vmatpush2.msra.mxu0 0.0
    %3054 = vmatprep.mubr.f32.mxu0 0.0
    %v3055 = vand.u32 %v2980, 4294901760
    %v3056 = vsub.f32 %v2980, %v3055
    %v3057 = vand.u32 %v3056, 4294901760
    %v3058 = vsub.f32 %v3056, %v3057
    %v3059 = vand.u32 %v3058, 4294901760
    %3060 = vmatmul.mubr.f32.gmra.mxu0 %v3059
    %v3061 = vpop.f32.mrf.mxu0
    %v3062 = vadd.f32 %v117, %v3061
    %v3063 = vpop.f32.mrf.mxu0
    %v3064 = vadd.f32 %v121, %v3063
    %3065 = vdwg.mxu0
    %3066 = vmatprep.subr.mxu0 0.0
    %3067 = vmatpush1.msra.mxu0 0.0
    %3068 = vmatprep.subr.mxu0 0.0
    %3069 = vmatpush1.msra.mxu0 0.0
    %3070 = vmatprep.subr.mxu0 0.0
    %3071 = vmatpush1.msra.mxu0 0.0
    %3072 = vmatprep.subr.mxu0 0.0
    %3073 = vmatpush1.msra.mxu0 0.0
    %3074 = vmatprep.subr.mxu0 0.0
    %3075 = vmatpush1.msra.mxu0 0.0
    %3076 = vmatprep.subr.mxu0 0.0
    %3077 = vmatpush1.msra.mxu0 0.0
    %3078 = vmatprep.subr.mxu0 0.0
    %3079 = vmatpush1.msra.mxu0 0.0
    %3080 = vmatprep.subr.mxu0 0.0
    %3081 = vmatpush1.msra.mxu0 0.0
    %3082 = vmatprep.subr.mxu0 0.0
    %3083 = vmatpush1.msra.mxu0 0.0
    %3084 = vmatprep.subr.mxu0 0.0
    %3085 = vmatpush1.msra.mxu0 0.0
    %3086 = vmatprep.subr.mxu0 0.0
    %3087 = vmatpush1.msra.mxu0 0.0
    %3088 = vmatprep.subr.mxu0 0.0
    %3089 = vmatpush1.msra.mxu0 0.0
    %v3090 = vand.u32 %v68, 4294901760
    %v3091 = vsub.f32 %v68, %v3090
    %v3092 = vand.u32 %v3091, 4294901760
    %v3093 = vsub.f32 %v3091, %v3092
    %v3094 = vand.u32 %v3093, 4294901760
    %3095 = vmatprep.subr.mxu0 %v3094
    %v3096 = vand.u32 %v67, 4294901760
    %v3097 = vsub.f32 %v67, %v3096
    %v3098 = vand.u32 %v3097, 4294901760
    %v3099 = vsub.f32 %v3097, %v3098
    %v3100 = vand.u32 %v3099, 4294901760
    %3101 = vmatpush1.msra.mxu0 %v3100
    %v3102 = vand.u32 %v66, 4294901760
    %v3103 = vsub.f32 %v66, %v3102
    %v3104 = vand.u32 %v3103, 4294901760
    %v3105 = vsub.f32 %v3103, %v3104
    %v3106 = vand.u32 %v3105, 4294901760
    %3107 = vmatprep.subr.mxu0 %v3106
    %v3108 = vand.u32 %v65, 4294901760
    %v3109 = vsub.f32 %v65, %v3108
    %v3110 = vand.u32 %v3109, 4294901760
    %v3111 = vsub.f32 %v3109, %v3110
    %v3112 = vand.u32 %v3111, 4294901760
    %3113 = vmatpush1.msra.mxu0 %v3112
    %v3114 = vand.u32 %v64, 4294901760
    %v3115 = vsub.f32 %v64, %v3114
    %v3116 = vand.u32 %v3115, 4294901760
    %v3117 = vsub.f32 %v3115, %v3116
    %v3118 = vand.u32 %v3117, 4294901760
    %3119 = vmatprep.subr.mxu0 %v3118
    %v3120 = vand.u32 %v63, 4294901760
    %v3121 = vsub.f32 %v63, %v3120
    %v3122 = vand.u32 %v3121, 4294901760
    %v3123 = vsub.f32 %v3121, %v3122
    %v3124 = vand.u32 %v3123, 4294901760
    %3125 = vmatpush1.msra.mxu0 %v3124
    %v3126 = vand.u32 %v62, 4294901760
    %v3127 = vsub.f32 %v62, %v3126
    %v3128 = vand.u32 %v3127, 4294901760
    %v3129 = vsub.f32 %v3127, %v3128
    %v3130 = vand.u32 %v3129, 4294901760
    %3131 = vmatprep.subr.mxu0 %v3130
    %v3132 = vand.u32 %v61, 4294901760
    %v3133 = vsub.f32 %v61, %v3132
    %v3134 = vand.u32 %v3133, 4294901760
    %v3135 = vsub.f32 %v3133, %v3134
    %v3136 = vand.u32 %v3135, 4294901760
    %3137 = vmatpush1.msra.mxu0 %v3136
    %3138 = vmatprep.subr.mxu0 0.0
    %3139 = vmatpush2.msra.mxu0 0.0
    %3140 = vmatprep.subr.mxu0 0.0
    %3141 = vmatpush2.msra.mxu0 0.0
    %3142 = vmatprep.subr.mxu0 0.0
    %3143 = vmatpush2.msra.mxu0 0.0
    %3144 = vmatprep.subr.mxu0 0.0
    %3145 = vmatpush2.msra.mxu0 0.0
    %3146 = vmatprep.subr.mxu0 0.0
    %3147 = vmatpush2.msra.mxu0 0.0
    %3148 = vmatprep.subr.mxu0 0.0
    %3149 = vmatpush2.msra.mxu0 0.0
    %3150 = vmatprep.subr.mxu0 0.0
    %3151 = vmatpush2.msra.mxu0 0.0
    %3152 = vmatprep.subr.mxu0 0.0
    %3153 = vmatpush2.msra.mxu0 0.0
    %3154 = vmatprep.subr.mxu0 0.0
    %3155 = vmatpush2.msra.mxu0 0.0
    %3156 = vmatprep.subr.mxu0 0.0
    %3157 = vmatpush2.msra.mxu0 0.0
    %3158 = vmatprep.subr.mxu0 0.0
    %3159 = vmatpush2.msra.mxu0 0.0
    %3160 = vmatprep.subr.mxu0 0.0
    %3161 = vmatpush2.msra.mxu0 0.0
    %3162 = vmatprep.subr.mxu0 0.0
    %3163 = vmatpush2.msra.mxu0 0.0
    %3164 = vmatprep.subr.mxu0 0.0
    %3165 = vmatpush2.msra.mxu0 0.0
    %3166 = vmatprep.subr.mxu0 0.0
    %3167 = vmatpush2.msra.mxu0 0.0
    %3168 = vmatprep.subr.mxu0 0.0
    %3169 = vmatpush2.msra.mxu0 0.0
    %3170 = vmatprep.mubr.f32.mxu0 0.0
    %v3171 = vand.u32 %v2980, 4294901760
    %3172 = vmatmul.mubr.f32.gmra.mxu0 %v3171
    %v3173 = vpop.f32.mrf.mxu0
    %v3174 = vadd.f32 %v3062, %v3173
    %v3175 = vpop.f32.mrf.mxu0
    %v3176 = vadd.f32 %v3064, %v3175
    %3177 = vdwg.mxu0
    %3178 = vmatprep.subr.mxu0 0.0
    %3179 = vmatpush1.msra.mxu0 0.0
    %3180 = vmatprep.subr.mxu0 0.0
    %3181 = vmatpush1.msra.mxu0 0.0
    %3182 = vmatprep.subr.mxu0 0.0
    %3183 = vmatpush1.msra.mxu0 0.0
    %3184 = vmatprep.subr.mxu0 0.0
    %3185 = vmatpush1.msra.mxu0 0.0
    %3186 = vmatprep.subr.mxu0 0.0
    %3187 = vmatpush1.msra.mxu0 0.0
    %3188 = vmatprep.subr.mxu0 0.0
    %3189 = vmatpush1.msra.mxu0 0.0
    %3190 = vmatprep.subr.mxu0 0.0
    %3191 = vmatpush1.msra.mxu0 0.0
    %3192 = vmatprep.subr.mxu0 0.0
    %3193 = vmatpush1.msra.mxu0 0.0
    %3194 = vmatprep.subr.mxu0 0.0
    %3195 = vmatpush1.msra.mxu0 0.0
    %3196 = vmatprep.subr.mxu0 0.0
    %3197 = vmatpush1.msra.mxu0 0.0
    %3198 = vmatprep.subr.mxu0 0.0
    %3199 = vmatpush1.msra.mxu0 0.0
    %3200 = vmatprep.subr.mxu0 0.0
    %3201 = vmatpush1.msra.mxu0 0.0
    %v3202 = vand.u32 %v68, 4294901760
    %v3203 = vsub.f32 %v68, %v3202
    %3204 = vmatprep.subr.mxu0 %v3203
    %v3205 = vand.u32 %v67, 4294901760
    %v3206 = vsub.f32 %v67, %v3205
    %3207 = vmatpush1.msra.mxu0 %v3206
    %v3208 = vand.u32 %v66, 4294901760
    %v3209 = vsub.f32 %v66, %v3208
    %3210 = vmatprep.subr.mxu0 %v3209
    %v3211 = vand.u32 %v65, 4294901760
    %v3212 = vsub.f32 %v65, %v3211
    %3213 = vmatpush1.msra.mxu0 %v3212
    %v3214 = vand.u32 %v64, 4294901760
    %v3215 = vsub.f32 %v64, %v3214
    %3216 = vmatprep.subr.mxu0 %v3215
    %v3217 = vand.u32 %v63, 4294901760
    %v3218 = vsub.f32 %v63, %v3217
    %3219 = vmatpush1.msra.mxu0 %v3218
    %v3220 = vand.u32 %v62, 4294901760
    %v3221 = vsub.f32 %v62, %v3220
    %3222 = vmatprep.subr.mxu0 %v3221
    %v3223 = vand.u32 %v61, 4294901760
    %v3224 = vsub.f32 %v61, %v3223
    %3225 = vmatpush1.msra.mxu0 %v3224
    %3226 = vmatprep.subr.mxu0 0.0
    %3227 = vmatpush2.msra.mxu0 0.0
    %3228 = vmatprep.subr.mxu0 0.0
    %3229 = vmatpush2.msra.mxu0 0.0
    %3230 = vmatprep.subr.mxu0 0.0
    %3231 = vmatpush2.msra.mxu0 0.0
    %3232 = vmatprep.subr.mxu0 0.0
    %3233 = vmatpush2.msra.mxu0 0.0
    %3234 = vmatprep.subr.mxu0 0.0
    %3235 = vmatpush2.msra.mxu0 0.0
    %3236 = vmatprep.subr.mxu0 0.0
    %3237 = vmatpush2.msra.mxu0 0.0
    %3238 = vmatprep.subr.mxu0 0.0
    %3239 = vmatpush2.msra.mxu0 0.0
    %3240 = vmatprep.subr.mxu0 0.0
    %3241 = vmatpush2.msra.mxu0 0.0
    %3242 = vmatprep.subr.mxu0 0.0
    %3243 = vmatpush2.msra.mxu0 0.0
    %3244 = vmatprep.subr.mxu0 0.0
    %3245 = vmatpush2.msra.mxu0 0.0
    %3246 = vmatprep.subr.mxu0 0.0
    %3247 = vmatpush2.msra.mxu0 0.0
    %3248 = vmatprep.subr.mxu0 0.0
    %3249 = vmatpush2.msra.mxu0 0.0
    %3250 = vmatprep.subr.mxu0 0.0
    %3251 = vmatpush2.msra.mxu0 0.0
    %3252 = vmatprep.subr.mxu0 0.0
    %3253 = vmatpush2.msra.mxu0 0.0
    %3254 = vmatprep.subr.mxu0 0.0
    %3255 = vmatpush2.msra.mxu0 0.0
    %3256 = vmatprep.subr.mxu0 0.0
    %3257 = vmatpush2.msra.mxu0 0.0
    %3258 = vmatprep.mubr.f32.mxu0 0.0
    %v3259 = vand.u32 %v2980, 4294901760
    %v3260 = vsub.f32 %v2980, %v3259
    %3261 = vmatmul.mubr.f32.gmra.mxu0 %v3260
    %v3262 = vpop.f32.mrf.mxu0
    %v3263 = vadd.f32 %v3174, %v3262
    %v3264 = vpop.f32.mrf.mxu0
    %v3265 = vadd.f32 %v3176, %v3264
    %3266 = vdwg.mxu0
    %3267 = vmatprep.subr.mxu0 0.0
    %3268 = vmatpush1.msra.mxu0 0.0
    %3269 = vmatprep.subr.mxu0 0.0
    %3270 = vmatpush1.msra.mxu0 0.0
    %3271 = vmatprep.subr.mxu0 0.0
    %3272 = vmatpush1.msra.mxu0 0.0
    %3273 = vmatprep.subr.mxu0 0.0
    %3274 = vmatpush1.msra.mxu0 0.0
    %3275 = vmatprep.subr.mxu0 0.0
    %3276 = vmatpush1.msra.mxu0 0.0
    %3277 = vmatprep.subr.mxu0 0.0
    %3278 = vmatpush1.msra.mxu0 0.0
    %3279 = vmatprep.subr.mxu0 0.0
    %3280 = vmatpush1.msra.mxu0 0.0
    %3281 = vmatprep.subr.mxu0 0.0
    %3282 = vmatpush1.msra.mxu0 0.0
    %3283 = vmatprep.subr.mxu0 0.0
    %3284 = vmatpush1.msra.mxu0 0.0
    %3285 = vmatprep.subr.mxu0 0.0
    %3286 = vmatpush1.msra.mxu0 0.0
    %3287 = vmatprep.subr.mxu0 0.0
    %3288 = vmatpush1.msra.mxu0 0.0
    %3289 = vmatprep.subr.mxu0 0.0
    %3290 = vmatpush1.msra.mxu0 0.0
    %v3291 = vand.u32 %v68, 4294901760
    %3292 = vmatprep.subr.mxu0 %v3291
    %v3293 = vand.u32 %v67, 4294901760
    %3294 = vmatpush1.msra.mxu0 %v3293
    %v3295 = vand.u32 %v66, 4294901760
    %3296 = vmatprep.subr.mxu0 %v3295
    %v3297 = vand.u32 %v65, 4294901760
    %3298 = vmatpush1.msra.mxu0 %v3297
    %v3299 = vand.u32 %v64, 4294901760
    %3300 = vmatprep.subr.mxu0 %v3299
    %v3301 = vand.u32 %v63, 4294901760
    %3302 = vmatpush1.msra.mxu0 %v3301
    %v3303 = vand.u32 %v62, 4294901760
    %3304 = vmatprep.subr.mxu0 %v3303
    %v3305 = vand.u32 %v61, 4294901760
    %3306 = vmatpush1.msra.mxu0 %v3305
    %3307 = vmatprep.subr.mxu0 0.0
    %3308 = vmatpush2.msra.mxu0 0.0
    %3309 = vmatprep.subr.mxu0 0.0
    %3310 = vmatpush2.msra.mxu0 0.0
    %3311 = vmatprep.subr.mxu0 0.0
    %3312 = vmatpush2.msra.mxu0 0.0
    %3313 = vmatprep.subr.mxu0 0.0
    %3314 = vmatpush2.msra.mxu0 0.0
    %3315 = vmatprep.subr.mxu0 0.0
    %3316 = vmatpush2.msra.mxu0 0.0
    %3317 = vmatprep.subr.mxu0 0.0
    %3318 = vmatpush2.msra.mxu0 0.0
    %3319 = vmatprep.subr.mxu0 0.0
    %3320 = vmatpush2.msra.mxu0 0.0
    %3321 = vmatprep.subr.mxu0 0.0
    %3322 = vmatpush2.msra.mxu0 0.0
    %3323 = vmatprep.subr.mxu0 0.0
    %3324 = vmatpush2.msra.mxu0 0.0
    %3325 = vmatprep.subr.mxu0 0.0
    %3326 = vmatpush2.msra.mxu0 0.0
    %3327 = vmatprep.subr.mxu0 0.0
    %3328 = vmatpush2.msra.mxu0 0.0
    %3329 = vmatprep.subr.mxu0 0.0
    %3330 = vmatpush2.msra.mxu0 0.0
    %3331 = vmatprep.subr.mxu0 0.0
    %3332 = vmatpush2.msra.mxu0 0.0
    %3333 = vmatprep.subr.mxu0 0.0
    %3334 = vmatpush2.msra.mxu0 0.0
    %3335 = vmatprep.subr.mxu0 0.0
    %3336 = vmatpush2.msra.mxu0 0.0
    %3337 = vmatprep.subr.mxu0 0.0
    %3338 = vmatpush2.msra.mxu0 0.0
    %3339 = vmatprep.mubr.f32.mxu0 0.0
    %v3340 = vand.u32 %v2980, 4294901760
    %v3341 = vsub.f32 %v2980, %v3340
    %v3342 = vand.u32 %v3341, 4294901760
    %3343 = vmatmul.mubr.f32.gmra.mxu0 %v3342
    %v3344 = vpop.f32.mrf.mxu0
    %v3345 = vadd.f32 %v3263, %v3344
    %v3346 = vpop.f32.mrf.mxu0
    %v3347 = vadd.f32 %v3265, %v3346
    %3348 = vdwg.mxu0
    %3349 = vmatprep.subr.mxu0 0.0
    %3350 = vmatpush1.msra.mxu0 0.0
    %3351 = vmatprep.subr.mxu0 0.0
    %3352 = vmatpush1.msra.mxu0 0.0
    %3353 = vmatprep.subr.mxu0 0.0
    %3354 = vmatpush1.msra.mxu0 0.0
    %3355 = vmatprep.subr.mxu0 0.0
    %3356 = vmatpush1.msra.mxu0 0.0
    %3357 = vmatprep.subr.mxu0 0.0
    %3358 = vmatpush1.msra.mxu0 0.0
    %3359 = vmatprep.subr.mxu0 0.0
    %3360 = vmatpush1.msra.mxu0 0.0
    %3361 = vmatprep.subr.mxu0 0.0
    %3362 = vmatpush1.msra.mxu0 0.0
    %3363 = vmatprep.subr.mxu0 0.0
    %3364 = vmatpush1.msra.mxu0 0.0
    %3365 = vmatprep.subr.mxu0 0.0
    %3366 = vmatpush1.msra.mxu0 0.0
    %3367 = vmatprep.subr.mxu0 0.0
    %3368 = vmatpush1.msra.mxu0 0.0
    %3369 = vmatprep.subr.mxu0 0.0
    %3370 = vmatpush1.msra.mxu0 0.0
    %3371 = vmatprep.subr.mxu0 0.0
    %3372 = vmatpush1.msra.mxu0 0.0
    %v3373 = vand.u32 %v68, 4294901760
    %v3374 = vsub.f32 %v68, %v3373
    %v3375 = vand.u32 %v3374, 4294901760
    %3376 = vmatprep.subr.mxu0 %v3375
    %v3377 = vand.u32 %v67, 4294901760
    %v3378 = vsub.f32 %v67, %v3377
    %v3379 = vand.u32 %v3378, 4294901760
    %3380 = vmatpush1.msra.mxu0 %v3379
    %v3381 = vand.u32 %v66, 4294901760
    %v3382 = vsub.f32 %v66, %v3381
    %v3383 = vand.u32 %v3382, 4294901760
    %3384 = vmatprep.subr.mxu0 %v3383
    %v3385 = vand.u32 %v65, 4294901760
    %v3386 = vsub.f32 %v65, %v3385
    %v3387 = vand.u32 %v3386, 4294901760
    %3388 = vmatpush1.msra.mxu0 %v3387
    %v3389 = vand.u32 %v64, 4294901760
    %v3390 = vsub.f32 %v64, %v3389
    %v3391 = vand.u32 %v3390, 4294901760
    %3392 = vmatprep.subr.mxu0 %v3391
    %v3393 = vand.u32 %v63, 4294901760
    %v3394 = vsub.f32 %v63, %v3393
    %v3395 = vand.u32 %v3394, 4294901760
    %3396 = vmatpush1.msra.mxu0 %v3395
    %v3397 = vand.u32 %v62, 4294901760
    %v3398 = vsub.f32 %v62, %v3397
    %v3399 = vand.u32 %v3398, 4294901760
    %3400 = vmatprep.subr.mxu0 %v3399
    %v3401 = vand.u32 %v61, 4294901760
    %v3402 = vsub.f32 %v61, %v3401
    %v3403 = vand.u32 %v3402, 4294901760
    %3404 = vmatpush1.msra.mxu0 %v3403
    %3405 = vmatprep.subr.mxu0 0.0
    %3406 = vmatpush2.msra.mxu0 0.0
    %3407 = vmatprep.subr.mxu0 0.0
    %3408 = vmatpush2.msra.mxu0 0.0
    %3409 = vmatprep.subr.mxu0 0.0
    %3410 = vmatpush2.msra.mxu0 0.0
    %3411 = vmatprep.subr.mxu0 0.0
    %3412 = vmatpush2.msra.mxu0 0.0
    %3413 = vmatprep.subr.mxu0 0.0
    %3414 = vmatpush2.msra.mxu0 0.0
    %3415 = vmatprep.subr.mxu0 0.0
    %3416 = vmatpush2.msra.mxu0 0.0
    %3417 = vmatprep.subr.mxu0 0.0
    %3418 = vmatpush2.msra.mxu0 0.0
    %3419 = vmatprep.subr.mxu0 0.0
    %3420 = vmatpush2.msra.mxu0 0.0
    %3421 = vmatprep.subr.mxu0 0.0
    %3422 = vmatpush2.msra.mxu0 0.0
    %3423 = vmatprep.subr.mxu0 0.0
    %3424 = vmatpush2.msra.mxu0 0.0
    %3425 = vmatprep.subr.mxu0 0.0
    %3426 = vmatpush2.msra.mxu0 0.0
    %3427 = vmatprep.subr.mxu0 0.0
    %3428 = vmatpush2.msra.mxu0 0.0
    %3429 = vmatprep.subr.mxu0 0.0
    %3430 = vmatpush2.msra.mxu0 0.0
    %3431 = vmatprep.subr.mxu0 0.0
    %3432 = vmatpush2.msra.mxu0 0.0
    %3433 = vmatprep.subr.mxu0 0.0
    %3434 = vmatpush2.msra.mxu0 0.0
    %3435 = vmatprep.subr.mxu0 0.0
    %3436 = vmatpush2.msra.mxu0 0.0
    %3437 = vmatprep.mubr.f32.mxu0 0.0
    %v3438 = vand.u32 %v2980, 4294901760
    %3439 = vmatmul.mubr.f32.gmra.mxu0 %v3438
    %v3440 = vpop.f32.mrf.mxu0
    %v3441 = vadd.f32 %v3345, %v3440
    %v3442 = vpop.f32.mrf.mxu0
    %v3443 = vadd.f32 %v3347, %v3442
    %3444 = vdwg.mxu0
    %3445 = vmatprep.subr.mxu0 0.0
    %3446 = vmatpush1.msra.mxu0 0.0
    %3447 = vmatprep.subr.mxu0 0.0
    %3448 = vmatpush1.msra.mxu0 0.0
    %3449 = vmatprep.subr.mxu0 0.0
    %3450 = vmatpush1.msra.mxu0 0.0
    %3451 = vmatprep.subr.mxu0 0.0
    %3452 = vmatpush1.msra.mxu0 0.0
    %3453 = vmatprep.subr.mxu0 0.0
    %3454 = vmatpush1.msra.mxu0 0.0
    %3455 = vmatprep.subr.mxu0 0.0
    %3456 = vmatpush1.msra.mxu0 0.0
    %3457 = vmatprep.subr.mxu0 0.0
    %3458 = vmatpush1.msra.mxu0 0.0
    %3459 = vmatprep.subr.mxu0 0.0
    %3460 = vmatpush1.msra.mxu0 0.0
    %3461 = vmatprep.subr.mxu0 0.0
    %3462 = vmatpush1.msra.mxu0 0.0
    %3463 = vmatprep.subr.mxu0 0.0
    %3464 = vmatpush1.msra.mxu0 0.0
    %3465 = vmatprep.subr.mxu0 0.0
    %3466 = vmatpush1.msra.mxu0 0.0
    %3467 = vmatprep.subr.mxu0 0.0
    %3468 = vmatpush1.msra.mxu0 0.0
    %v3469 = vand.u32 %v68, 4294901760
    %3470 = vmatprep.subr.mxu0 %v3469
    %v3471 = vand.u32 %v67, 4294901760
    %3472 = vmatpush1.msra.mxu0 %v3471
    %v3473 = vand.u32 %v66, 4294901760
    %3474 = vmatprep.subr.mxu0 %v3473
    %v3475 = vand.u32 %v65, 4294901760
    %3476 = vmatpush1.msra.mxu0 %v3475
    %v3477 = vand.u32 %v64, 4294901760
    %3478 = vmatprep.subr.mxu0 %v3477
    %v3479 = vand.u32 %v63, 4294901760
    %3480 = vmatpush1.msra.mxu0 %v3479
    %v3481 = vand.u32 %v62, 4294901760
    %3482 = vmatprep.subr.mxu0 %v3481
    %v3483 = vand.u32 %v61, 4294901760
    %3484 = vmatpush1.msra.mxu0 %v3483
    %3485 = vmatprep.subr.mxu0 0.0
    %3486 = vmatpush2.msra.mxu0 0.0
    %3487 = vmatprep.subr.mxu0 0.0
    %3488 = vmatpush2.msra.mxu0 0.0
    %3489 = vmatprep.subr.mxu0 0.0
    %3490 = vmatpush2.msra.mxu0 0.0
    %3491 = vmatprep.subr.mxu0 0.0
    %3492 = vmatpush2.msra.mxu0 0.0
    %3493 = vmatprep.subr.mxu0 0.0
    %3494 = vmatpush2.msra.mxu0 0.0
    %3495 = vmatprep.subr.mxu0 0.0
    %3496 = vmatpush2.msra.mxu0 0.0
    %3497 = vmatprep.subr.mxu0 0.0
    %3498 = vmatpush2.msra.mxu0 0.0
    %3499 = vmatprep.subr.mxu0 0.0
    %3500 = vmatpush2.msra.mxu0 0.0
    %3501 = vmatprep.subr.mxu0 0.0
    %3502 = vmatpush2.msra.mxu0 0.0
    %3503 = vmatprep.subr.mxu0 0.0
    %3504 = vmatpush2.msra.mxu0 0.0
    %3505 = vmatprep.subr.mxu0 0.0
    %3506 = vmatpush2.msra.mxu0 0.0
    %3507 = vmatprep.subr.mxu0 0.0
    %3508 = vmatpush2.msra.mxu0 0.0
    %3509 = vmatprep.subr.mxu0 0.0
    %3510 = vmatpush2.msra.mxu0 0.0
    %3511 = vmatprep.subr.mxu0 0.0
    %3512 = vmatpush2.msra.mxu0 0.0
    %3513 = vmatprep.subr.mxu0 0.0
    %3514 = vmatpush2.msra.mxu0 0.0
    %3515 = vmatprep.subr.mxu0 0.0
    %3516 = vmatpush2.msra.mxu0 0.0
    %3517 = vmatprep.mubr.f32.mxu0 0.0
    %v3518 = vand.u32 %v2980, 4294901760
    %3519 = vmatmul.mubr.f32.gmra.mxu0 %v3518
    %v3520 = vpop.f32.mrf.mxu0
    %v3521 = vadd.f32 %v3441, %v3520
    %v3522 = vpop.f32.mrf.mxu0
    %v3523 = vadd.f32 %v3443, %v3522
    %3524 = vdwg.mxu0
    %v3525 = vsel %vm97, %v2962, %v3521
    %v3526 = vsel %vm98, %v2964, %v3523
    %v3529 = vcombine.low %v3525, %v3526
    %v3531 = vunpack.c.l.s4 1983009808
    %v3532 = vunpack.c.0.s8 %v3531
    %v3533 = vlaneseq
    %v3534 = vshrl.u32 %v3533, 7
    %v3535 = vsub.s32 %v3532, %v3534
    %v3536 = vrot.slane %v3529, %v3535
    %s3538 = scalar_lea.vmem [#allocation2], 8
    %3539 = vst [vmem:[%s3538] sm:$0xf] %v3536
    %v3540 = vsel %vm97, %v3521, %v2962
    %v3541 = vsel %vm98, %v3523, %v2964
    %v3544 = vcombine.low %v3540, %v3541
    %v3546 = vunpack.c.l.s4 1983009808
    %v3547 = vunpack.c.0.s8 %v3546
    %v3548 = vlaneseq
    %v3549 = vshrl.u32 %v3548, 7
    %v3550 = vsub.s32 %v3547, %v3549
    %v3551 = vrot.slane %v3544, %v3550
    %s3553 = scalar_lea.vmem [#allocation2], 20
    %3554 = vst [vmem:[%s3553] sm:$0xf] %v3551
    %s3555 = sld [smem:[#allocation5 + $0x3]]
    %s3556 = scalar_lea.vmem %s1, %s3555
    %v3557 = vld [vmem:[%s3556] sm:$0x1]
    %s3558 = sld [smem:[#allocation5 + $0xb]]
    %s3559 = scalar_lea.vmem %s1, %s3558
    %v3560 = vld [vmem:[%s3559] sm:$0x1]
    %v3562 = vlaneseq
    %v3563 = vshrl.u32 %v3562, 7
    %v3564 = vsub.s32 0, %v3563
    %v3565 = vrot.slane %v3560, %v3564
    %v3567 = vsel %vm111, %v3557, %v3565
    %v3569 = vsel %vm124, %v3567, 0
    %3571 = vmatprep.subr.mxu0 0.0
    %3572 = vmatpush1.msra.mxu0 0.0
    %3573 = vmatprep.subr.mxu0 0.0
    %3574 = vmatpush1.msra.mxu0 0.0
    %3575 = vmatprep.subr.mxu0 0.0
    %3576 = vmatpush1.msra.mxu0 0.0
    %3577 = vmatprep.subr.mxu0 0.0
    %3578 = vmatpush1.msra.mxu0 0.0
    %3579 = vmatprep.subr.mxu0 0.0
    %3580 = vmatpush1.msra.mxu0 0.0
    %3581 = vmatprep.subr.mxu0 0.0
    %3582 = vmatpush1.msra.mxu0 0.0
    %3583 = vmatprep.subr.mxu0 0.0
    %3584 = vmatpush1.msra.mxu0 0.0
    %3585 = vmatprep.subr.mxu0 0.0
    %3586 = vmatpush1.msra.mxu0 0.0
    %3587 = vmatprep.subr.mxu0 0.0
    %3588 = vmatpush1.msra.mxu0 0.0
    %3589 = vmatprep.subr.mxu0 0.0
    %3590 = vmatpush1.msra.mxu0 0.0
    %3591 = vmatprep.subr.mxu0 0.0
    %3592 = vmatpush1.msra.mxu0 0.0
    %3593 = vmatprep.subr.mxu0 0.0
    %3594 = vmatpush1.msra.mxu0 0.0
    %v3595 = vand.u32 %v68, 4294901760
    %3596 = vmatprep.subr.mxu0 %v3595
    %v3597 = vand.u32 %v67, 4294901760
    %3598 = vmatpush1.msra.mxu0 %v3597
    %v3599 = vand.u32 %v66, 4294901760
    %3600 = vmatprep.subr.mxu0 %v3599
    %v3601 = vand.u32 %v65, 4294901760
    %3602 = vmatpush1.msra.mxu0 %v3601
    %v3603 = vand.u32 %v64, 4294901760
    %3604 = vmatprep.subr.mxu0 %v3603
    %v3605 = vand.u32 %v63, 4294901760
    %3606 = vmatpush1.msra.mxu0 %v3605
    %v3607 = vand.u32 %v62, 4294901760
    %3608 = vmatprep.subr.mxu0 %v3607
    %v3609 = vand.u32 %v61, 4294901760
    %3610 = vmatpush1.msra.mxu0 %v3609
    %3611 = vmatprep.subr.mxu0 0.0
    %3612 = vmatpush2.msra.mxu0 0.0
    %3613 = vmatprep.subr.mxu0 0.0
    %3614 = vmatpush2.msra.mxu0 0.0
    %3615 = vmatprep.subr.mxu0 0.0
    %3616 = vmatpush2.msra.mxu0 0.0
    %3617 = vmatprep.subr.mxu0 0.0
    %3618 = vmatpush2.msra.mxu0 0.0
    %3619 = vmatprep.subr.mxu0 0.0
    %3620 = vmatpush2.msra.mxu0 0.0
    %3621 = vmatprep.subr.mxu0 0.0
    %3622 = vmatpush2.msra.mxu0 0.0
    %3623 = vmatprep.subr.mxu0 0.0
    %3624 = vmatpush2.msra.mxu0 0.0
    %3625 = vmatprep.subr.mxu0 0.0
    %3626 = vmatpush2.msra.mxu0 0.0
    %3627 = vmatprep.subr.mxu0 0.0
    %3628 = vmatpush2.msra.mxu0 0.0
    %3629 = vmatprep.subr.mxu0 0.0
    %3630 = vmatpush2.msra.mxu0 0.0
    %3631 = vmatprep.subr.mxu0 0.0
    %3632 = vmatpush2.msra.mxu0 0.0
    %3633 = vmatprep.subr.mxu0 0.0
    %3634 = vmatpush2.msra.mxu0 0.0
    %3635 = vmatprep.subr.mxu0 0.0
    %3636 = vmatpush2.msra.mxu0 0.0
    %3637 = vmatprep.subr.mxu0 0.0
    %3638 = vmatpush2.msra.mxu0 0.0
    %3639 = vmatprep.subr.mxu0 0.0
    %3640 = vmatpush2.msra.mxu0 0.0
    %3641 = vmatprep.subr.mxu0 0.0
    %3642 = vmatpush2.msra.mxu0 0.0
    %3643 = vmatprep.mubr.f32.mxu0 0.0
    %v3644 = vand.u32 %v3569, 4294901760
    %v3645 = vsub.f32 %v3569, %v3644
    %v3646 = vand.u32 %v3645, 4294901760
    %v3647 = vsub.f32 %v3645, %v3646
    %v3648 = vand.u32 %v3647, 4294901760
    %3649 = vmatmul.mubr.f32.gmra.mxu0 %v3648
    %v3650 = vpop.f32.mrf.mxu0
    %v3651 = vadd.f32 %v117, %v3650
    %v3652 = vpop.f32.mrf.mxu0
    %v3653 = vadd.f32 %v121, %v3652
    %3654 = vdwg.mxu0
    %3655 = vmatprep.subr.mxu0 0.0
    %3656 = vmatpush1.msra.mxu0 0.0
    %3657 = vmatprep.subr.mxu0 0.0
    %3658 = vmatpush1.msra.mxu0 0.0
    %3659 = vmatprep.subr.mxu0 0.0
    %3660 = vmatpush1.msra.mxu0 0.0
    %3661 = vmatprep.subr.mxu0 0.0
    %3662 = vmatpush1.msra.mxu0 0.0
    %3663 = vmatprep.subr.mxu0 0.0
    %3664 = vmatpush1.msra.mxu0 0.0
    %3665 = vmatprep.subr.mxu0 0.0
    %3666 = vmatpush1.msra.mxu0 0.0
    %3667 = vmatprep.subr.mxu0 0.0
    %3668 = vmatpush1.msra.mxu0 0.0
    %3669 = vmatprep.subr.mxu0 0.0
    %3670 = vmatpush1.msra.mxu0 0.0
    %3671 = vmatprep.subr.mxu0 0.0
    %3672 = vmatpush1.msra.mxu0 0.0
    %3673 = vmatprep.subr.mxu0 0.0
    %3674 = vmatpush1.msra.mxu0 0.0
    %3675 = vmatprep.subr.mxu0 0.0
    %3676 = vmatpush1.msra.mxu0 0.0
    %3677 = vmatprep.subr.mxu0 0.0
    %3678 = vmatpush1.msra.mxu0 0.0
    %v3679 = vand.u32 %v68, 4294901760
    %v3680 = vsub.f32 %v68, %v3679
    %v3681 = vand.u32 %v3680, 4294901760
    %v3682 = vsub.f32 %v3680, %v3681
    %v3683 = vand.u32 %v3682, 4294901760
    %3684 = vmatprep.subr.mxu0 %v3683
    %v3685 = vand.u32 %v67, 4294901760
    %v3686 = vsub.f32 %v67, %v3685
    %v3687 = vand.u32 %v3686, 4294901760
    %v3688 = vsub.f32 %v3686, %v3687
    %v3689 = vand.u32 %v3688, 4294901760
    %3690 = vmatpush1.msra.mxu0 %v3689
    %v3691 = vand.u32 %v66, 4294901760
    %v3692 = vsub.f32 %v66, %v3691
    %v3693 = vand.u32 %v3692, 4294901760
    %v3694 = vsub.f32 %v3692, %v3693
    %v3695 = vand.u32 %v3694, 4294901760
    %3696 = vmatprep.subr.mxu0 %v3695
    %v3697 = vand.u32 %v65, 4294901760
    %v3698 = vsub.f32 %v65, %v3697
    %v3699 = vand.u32 %v3698, 4294901760
    %v3700 = vsub.f32 %v3698, %v3699
    %v3701 = vand.u32 %v3700, 4294901760
    %3702 = vmatpush1.msra.mxu0 %v3701
    %v3703 = vand.u32 %v64, 4294901760
    %v3704 = vsub.f32 %v64, %v3703
    %v3705 = vand.u32 %v3704, 4294901760
    %v3706 = vsub.f32 %v3704, %v3705
    %v3707 = vand.u32 %v3706, 4294901760
    %3708 = vmatprep.subr.mxu0 %v3707
    %v3709 = vand.u32 %v63, 4294901760
    %v3710 = vsub.f32 %v63, %v3709
    %v3711 = vand.u32 %v3710, 4294901760
    %v3712 = vsub.f32 %v3710, %v3711
    %v3713 = vand.u32 %v3712, 4294901760
    %3714 = vmatpush1.msra.mxu0 %v3713
    %v3715 = vand.u32 %v62, 4294901760
    %v3716 = vsub.f32 %v62, %v3715
    %v3717 = vand.u32 %v3716, 4294901760
    %v3718 = vsub.f32 %v3716, %v3717
    %v3719 = vand.u32 %v3718, 4294901760
    %3720 = vmatprep.subr.mxu0 %v3719
    %v3721 = vand.u32 %v61, 4294901760
    %v3722 = vsub.f32 %v61, %v3721
    %v3723 = vand.u32 %v3722, 4294901760
    %v3724 = vsub.f32 %v3722, %v3723
    %v3725 = vand.u32 %v3724, 4294901760
    %3726 = vmatpush1.msra.mxu0 %v3725
    %3727 = vmatprep.subr.mxu0 0.0
    %3728 = vmatpush2.msra.mxu0 0.0
    %3729 = vmatprep.subr.mxu0 0.0
    %3730 = vmatpush2.msra.mxu0 0.0
    %3731 = vmatprep.subr.mxu0 0.0
    %3732 = vmatpush2.msra.mxu0 0.0
    %3733 = vmatprep.subr.mxu0 0.0
    %3734 = vmatpush2.msra.mxu0 0.0
    %3735 = vmatprep.subr.mxu0 0.0
    %3736 = vmatpush2.msra.mxu0 0.0
    %3737 = vmatprep.subr.mxu0 0.0
    %3738 = vmatpush2.msra.mxu0 0.0
    %3739 = vmatprep.subr.mxu0 0.0
    %3740 = vmatpush2.msra.mxu0 0.0
    %3741 = vmatprep.subr.mxu0 0.0
    %3742 = vmatpush2.msra.mxu0 0.0
    %3743 = vmatprep.subr.mxu0 0.0
    %3744 = vmatpush2.msra.mxu0 0.0
    %3745 = vmatprep.subr.mxu0 0.0
    %3746 = vmatpush2.msra.mxu0 0.0
    %3747 = vmatprep.subr.mxu0 0.0
    %3748 = vmatpush2.msra.mxu0 0.0
    %3749 = vmatprep.subr.mxu0 0.0
    %3750 = vmatpush2.msra.mxu0 0.0
    %3751 = vmatprep.subr.mxu0 0.0
    %3752 = vmatpush2.msra.mxu0 0.0
    %3753 = vmatprep.subr.mxu0 0.0
    %3754 = vmatpush2.msra.mxu0 0.0
    %3755 = vmatprep.subr.mxu0 0.0
    %3756 = vmatpush2.msra.mxu0 0.0
    %3757 = vmatprep.subr.mxu0 0.0
    %3758 = vmatpush2.msra.mxu0 0.0
    %3759 = vmatprep.mubr.f32.mxu0 0.0
    %v3760 = vand.u32 %v3569, 4294901760
    %3761 = vmatmul.mubr.f32.gmra.mxu0 %v3760
    %v3762 = vpop.f32.mrf.mxu0
    %v3763 = vadd.f32 %v3651, %v3762
    %v3764 = vpop.f32.mrf.mxu0
    %v3765 = vadd.f32 %v3653, %v3764
    %3766 = vdwg.mxu0
    %3767 = vmatprep.subr.mxu0 0.0
    %3768 = vmatpush1.msra.mxu0 0.0
    %3769 = vmatprep.subr.mxu0 0.0
    %3770 = vmatpush1.msra.mxu0 0.0
    %3771 = vmatprep.subr.mxu0 0.0
    %3772 = vmatpush1.msra.mxu0 0.0
    %3773 = vmatprep.subr.mxu0 0.0
    %3774 = vmatpush1.msra.mxu0 0.0
    %3775 = vmatprep.subr.mxu0 0.0
    %3776 = vmatpush1.msra.mxu0 0.0
    %3777 = vmatprep.subr.mxu0 0.0
    %3778 = vmatpush1.msra.mxu0 0.0
    %3779 = vmatprep.subr.mxu0 0.0
    %3780 = vmatpush1.msra.mxu0 0.0
    %3781 = vmatprep.subr.mxu0 0.0
    %3782 = vmatpush1.msra.mxu0 0.0
    %3783 = vmatprep.subr.mxu0 0.0
    %3784 = vmatpush1.msra.mxu0 0.0
    %3785 = vmatprep.subr.mxu0 0.0
    %3786 = vmatpush1.msra.mxu0 0.0
    %3787 = vmatprep.subr.mxu0 0.0
    %3788 = vmatpush1.msra.mxu0 0.0
    %3789 = vmatprep.subr.mxu0 0.0
    %3790 = vmatpush1.msra.mxu0 0.0
    %v3791 = vand.u32 %v68, 4294901760
    %v3792 = vsub.f32 %v68, %v3791
    %3793 = vmatprep.subr.mxu0 %v3792
    %v3794 = vand.u32 %v67, 4294901760
    %v3795 = vsub.f32 %v67, %v3794
    %3796 = vmatpush1.msra.mxu0 %v3795
    %v3797 = vand.u32 %v66, 4294901760
    %v3798 = vsub.f32 %v66, %v3797
    %3799 = vmatprep.subr.mxu0 %v3798
    %v3800 = vand.u32 %v65, 4294901760
    %v3801 = vsub.f32 %v65, %v3800
    %3802 = vmatpush1.msra.mxu0 %v3801
    %v3803 = vand.u32 %v64, 4294901760
    %v3804 = vsub.f32 %v64, %v3803
    %3805 = vmatprep.subr.mxu0 %v3804
    %v3806 = vand.u32 %v63, 4294901760
    %v3807 = vsub.f32 %v63, %v3806
    %3808 = vmatpush1.msra.mxu0 %v3807
    %v3809 = vand.u32 %v62, 4294901760
    %v3810 = vsub.f32 %v62, %v3809
    %3811 = vmatprep.subr.mxu0 %v3810
    %v3812 = vand.u32 %v61, 4294901760
    %v3813 = vsub.f32 %v61, %v3812
    %3814 = vmatpush1.msra.mxu0 %v3813
    %3815 = vmatprep.subr.mxu0 0.0
    %3816 = vmatpush2.msra.mxu0 0.0
    %3817 = vmatprep.subr.mxu0 0.0
    %3818 = vmatpush2.msra.mxu0 0.0
    %3819 = vmatprep.subr.mxu0 0.0
    %3820 = vmatpush2.msra.mxu0 0.0
    %3821 = vmatprep.subr.mxu0 0.0
    %3822 = vmatpush2.msra.mxu0 0.0
    %3823 = vmatprep.subr.mxu0 0.0
    %3824 = vmatpush2.msra.mxu0 0.0
    %3825 = vmatprep.subr.mxu0 0.0
    %3826 = vmatpush2.msra.mxu0 0.0
    %3827 = vmatprep.subr.mxu0 0.0
    %3828 = vmatpush2.msra.mxu0 0.0
    %3829 = vmatprep.subr.mxu0 0.0
    %3830 = vmatpush2.msra.mxu0 0.0
    %3831 = vmatprep.subr.mxu0 0.0
    %3832 = vmatpush2.msra.mxu0 0.0
    %3833 = vmatprep.subr.mxu0 0.0
    %3834 = vmatpush2.msra.mxu0 0.0
    %3835 = vmatprep.subr.mxu0 0.0
    %3836 = vmatpush2.msra.mxu0 0.0
    %3837 = vmatprep.subr.mxu0 0.0
    %3838 = vmatpush2.msra.mxu0 0.0
    %3839 = vmatprep.subr.mxu0 0.0
    %3840 = vmatpush2.msra.mxu0 0.0
    %3841 = vmatprep.subr.mxu0 0.0
    %3842 = vmatpush2.msra.mxu0 0.0
    %3843 = vmatprep.subr.mxu0 0.0
    %3844 = vmatpush2.msra.mxu0 0.0
    %3845 = vmatprep.subr.mxu0 0.0
    %3846 = vmatpush2.msra.mxu0 0.0
    %3847 = vmatprep.mubr.f32.mxu0 0.0
    %v3848 = vand.u32 %v3569, 4294901760
    %v3849 = vsub.f32 %v3569, %v3848
    %3850 = vmatmul.mubr.f32.gmra.mxu0 %v3849
    %v3851 = vpop.f32.mrf.mxu0
    %v3852 = vadd.f32 %v3763, %v3851
    %v3853 = vpop.f32.mrf.mxu0
    %v3854 = vadd.f32 %v3765, %v3853
    %3855 = vdwg.mxu0
    %3856 = vmatprep.subr.mxu0 0.0
    %3857 = vmatpush1.msra.mxu0 0.0
    %3858 = vmatprep.subr.mxu0 0.0
    %3859 = vmatpush1.msra.mxu0 0.0
    %3860 = vmatprep.subr.mxu0 0.0
    %3861 = vmatpush1.msra.mxu0 0.0
    %3862 = vmatprep.subr.mxu0 0.0
    %3863 = vmatpush1.msra.mxu0 0.0
    %3864 = vmatprep.subr.mxu0 0.0
    %3865 = vmatpush1.msra.mxu0 0.0
    %3866 = vmatprep.subr.mxu0 0.0
    %3867 = vmatpush1.msra.mxu0 0.0
    %3868 = vmatprep.subr.mxu0 0.0
    %3869 = vmatpush1.msra.mxu0 0.0
    %3870 = vmatprep.subr.mxu0 0.0
    %3871 = vmatpush1.msra.mxu0 0.0
    %3872 = vmatprep.subr.mxu0 0.0
    %3873 = vmatpush1.msra.mxu0 0.0
    %3874 = vmatprep.subr.mxu0 0.0
    %3875 = vmatpush1.msra.mxu0 0.0
    %3876 = vmatprep.subr.mxu0 0.0
    %3877 = vmatpush1.msra.mxu0 0.0
    %3878 = vmatprep.subr.mxu0 0.0
    %3879 = vmatpush1.msra.mxu0 0.0
    %v3880 = vand.u32 %v68, 4294901760
    %3881 = vmatprep.subr.mxu0 %v3880
    %v3882 = vand.u32 %v67, 4294901760
    %3883 = vmatpush1.msra.mxu0 %v3882
    %v3884 = vand.u32 %v66, 4294901760
    %3885 = vmatprep.subr.mxu0 %v3884
    %v3886 = vand.u32 %v65, 4294901760
    %3887 = vmatpush1.msra.mxu0 %v3886
    %v3888 = vand.u32 %v64, 4294901760
    %3889 = vmatprep.subr.mxu0 %v3888
    %v3890 = vand.u32 %v63, 4294901760
    %3891 = vmatpush1.msra.mxu0 %v3890
    %v3892 = vand.u32 %v62, 4294901760
    %3893 = vmatprep.subr.mxu0 %v3892
    %v3894 = vand.u32 %v61, 4294901760
    %3895 = vmatpush1.msra.mxu0 %v3894
    %3896 = vmatprep.subr.mxu0 0.0
    %3897 = vmatpush2.msra.mxu0 0.0
    %3898 = vmatprep.subr.mxu0 0.0
    %3899 = vmatpush2.msra.mxu0 0.0
    %3900 = vmatprep.subr.mxu0 0.0
    %3901 = vmatpush2.msra.mxu0 0.0
    %3902 = vmatprep.subr.mxu0 0.0
    %3903 = vmatpush2.msra.mxu0 0.0
    %3904 = vmatprep.subr.mxu0 0.0
    %3905 = vmatpush2.msra.mxu0 0.0
    %3906 = vmatprep.subr.mxu0 0.0
    %3907 = vmatpush2.msra.mxu0 0.0
    %3908 = vmatprep.subr.mxu0 0.0
    %3909 = vmatpush2.msra.mxu0 0.0
    %3910 = vmatprep.subr.mxu0 0.0
    %3911 = vmatpush2.msra.mxu0 0.0
    %3912 = vmatprep.subr.mxu0 0.0
    %3913 = vmatpush2.msra.mxu0 0.0
    %3914 = vmatprep.subr.mxu0 0.0
    %3915 = vmatpush2.msra.mxu0 0.0
    %3916 = vmatprep.subr.mxu0 0.0
    %3917 = vmatpush2.msra.mxu0 0.0
    %3918 = vmatprep.subr.mxu0 0.0
    %3919 = vmatpush2.msra.mxu0 0.0
    %3920 = vmatprep.subr.mxu0 0.0
    %3921 = vmatpush2.msra.mxu0 0.0
    %3922 = vmatprep.subr.mxu0 0.0
    %3923 = vmatpush2.msra.mxu0 0.0
    %3924 = vmatprep.subr.mxu0 0.0
    %3925 = vmatpush2.msra.mxu0 0.0
    %3926 = vmatprep.subr.mxu0 0.0
    %3927 = vmatpush2.msra.mxu0 0.0
    %3928 = vmatprep.mubr.f32.mxu0 0.0
    %v3929 = vand.u32 %v3569, 4294901760
    %v3930 = vsub.f32 %v3569, %v3929
    %v3931 = vand.u32 %v3930, 4294901760
    %3932 = vmatmul.mubr.f32.gmra.mxu0 %v3931
    %v3933 = vpop.f32.mrf.mxu0
    %v3934 = vadd.f32 %v3852, %v3933
    %v3935 = vpop.f32.mrf.mxu0
    %v3936 = vadd.f32 %v3854, %v3935
    %3937 = vdwg.mxu0
    %3938 = vmatprep.subr.mxu0 0.0
    %3939 = vmatpush1.msra.mxu0 0.0
    %3940 = vmatprep.subr.mxu0 0.0
    %3941 = vmatpush1.msra.mxu0 0.0
    %3942 = vmatprep.subr.mxu0 0.0
    %3943 = vmatpush1.msra.mxu0 0.0
    %3944 = vmatprep.subr.mxu0 0.0
    %3945 = vmatpush1.msra.mxu0 0.0
    %3946 = vmatprep.subr.mxu0 0.0
    %3947 = vmatpush1.msra.mxu0 0.0
    %3948 = vmatprep.subr.mxu0 0.0
    %3949 = vmatpush1.msra.mxu0 0.0
    %3950 = vmatprep.subr.mxu0 0.0
    %3951 = vmatpush1.msra.mxu0 0.0
    %3952 = vmatprep.subr.mxu0 0.0
    %3953 = vmatpush1.msra.mxu0 0.0
    %3954 = vmatprep.subr.mxu0 0.0
    %3955 = vmatpush1.msra.mxu0 0.0
    %3956 = vmatprep.subr.mxu0 0.0
    %3957 = vmatpush1.msra.mxu0 0.0
    %3958 = vmatprep.subr.mxu0 0.0
    %3959 = vmatpush1.msra.mxu0 0.0
    %3960 = vmatprep.subr.mxu0 0.0
    %3961 = vmatpush1.msra.mxu0 0.0
    %v3962 = vand.u32 %v68, 4294901760
    %v3963 = vsub.f32 %v68, %v3962
    %v3964 = vand.u32 %v3963, 4294901760
    %3965 = vmatprep.subr.mxu0 %v3964
    %v3966 = vand.u32 %v67, 4294901760
    %v3967 = vsub.f32 %v67, %v3966
    %v3968 = vand.u32 %v3967, 4294901760
    %3969 = vmatpush1.msra.mxu0 %v3968
    %v3970 = vand.u32 %v66, 4294901760
    %v3971 = vsub.f32 %v66, %v3970
    %v3972 = vand.u32 %v3971, 4294901760
    %3973 = vmatprep.subr.mxu0 %v3972
    %v3974 = vand.u32 %v65, 4294901760
    %v3975 = vsub.f32 %v65, %v3974
    %v3976 = vand.u32 %v3975, 4294901760
    %3977 = vmatpush1.msra.mxu0 %v3976
    %v3978 = vand.u32 %v64, 4294901760
    %v3979 = vsub.f32 %v64, %v3978
    %v3980 = vand.u32 %v3979, 4294901760
    %3981 = vmatprep.subr.mxu0 %v3980
    %v3982 = vand.u32 %v63, 4294901760
    %v3983 = vsub.f32 %v63, %v3982
    %v3984 = vand.u32 %v3983, 4294901760
    %3985 = vmatpush1.msra.mxu0 %v3984
    %v3986 = vand.u32 %v62, 4294901760
    %v3987 = vsub.f32 %v62, %v3986
    %v3988 = vand.u32 %v3987, 4294901760
    %3989 = vmatprep.subr.mxu0 %v3988
    %v3990 = vand.u32 %v61, 4294901760
    %v3991 = vsub.f32 %v61, %v3990
    %v3992 = vand.u32 %v3991, 4294901760
    %3993 = vmatpush1.msra.mxu0 %v3992
    %3994 = vmatprep.subr.mxu0 0.0
    %3995 = vmatpush2.msra.mxu0 0.0
    %3996 = vmatprep.subr.mxu0 0.0
    %3997 = vmatpush2.msra.mxu0 0.0
    %3998 = vmatprep.subr.mxu0 0.0
    %3999 = vmatpush2.msra.mxu0 0.0
    %4000 = vmatprep.subr.mxu0 0.0
    %4001 = vmatpush2.msra.mxu0 0.0
    %4002 = vmatprep.subr.mxu0 0.0
    %4003 = vmatpush2.msra.mxu0 0.0
    %4004 = vmatprep.subr.mxu0 0.0
    %4005 = vmatpush2.msra.mxu0 0.0
    %4006 = vmatprep.subr.mxu0 0.0
    %4007 = vmatpush2.msra.mxu0 0.0
    %4008 = vmatprep.subr.mxu0 0.0
    %4009 = vmatpush2.msra.mxu0 0.0
    %4010 = vmatprep.subr.mxu0 0.0
    %4011 = vmatpush2.msra.mxu0 0.0
    %4012 = vmatprep.subr.mxu0 0.0
    %4013 = vmatpush2.msra.mxu0 0.0
    %4014 = vmatprep.subr.mxu0 0.0
    %4015 = vmatpush2.msra.mxu0 0.0
    %4016 = vmatprep.subr.mxu0 0.0
    %4017 = vmatpush2.msra.mxu0 0.0
    %4018 = vmatprep.subr.mxu0 0.0
    %4019 = vmatpush2.msra.mxu0 0.0
    %4020 = vmatprep.subr.mxu0 0.0
    %4021 = vmatpush2.msra.mxu0 0.0
    %4022 = vmatprep.subr.mxu0 0.0
    %4023 = vmatpush2.msra.mxu0 0.0
    %4024 = vmatprep.subr.mxu0 0.0
    %4025 = vmatpush2.msra.mxu0 0.0
    %4026 = vmatprep.mubr.f32.mxu0 0.0
    %v4027 = vand.u32 %v3569, 4294901760
    %4028 = vmatmul.mubr.f32.gmra.mxu0 %v4027
    %v4029 = vpop.f32.mrf.mxu0
    %v4030 = vadd.f32 %v3934, %v4029
    %v4031 = vpop.f32.mrf.mxu0
    %v4032 = vadd.f32 %v3936, %v4031
    %4033 = vdwg.mxu0
    %4034 = vmatprep.subr.mxu0 0.0
    %4035 = vmatpush1.msra.mxu0 0.0
    %4036 = vmatprep.subr.mxu0 0.0
    %4037 = vmatpush1.msra.mxu0 0.0
    %4038 = vmatprep.subr.mxu0 0.0
    %4039 = vmatpush1.msra.mxu0 0.0
    %4040 = vmatprep.subr.mxu0 0.0
    %4041 = vmatpush1.msra.mxu0 0.0
    %4042 = vmatprep.subr.mxu0 0.0
    %4043 = vmatpush1.msra.mxu0 0.0
    %4044 = vmatprep.subr.mxu0 0.0
    %4045 = vmatpush1.msra.mxu0 0.0
    %4046 = vmatprep.subr.mxu0 0.0
    %4047 = vmatpush1.msra.mxu0 0.0
    %4048 = vmatprep.subr.mxu0 0.0
    %4049 = vmatpush1.msra.mxu0 0.0
    %4050 = vmatprep.subr.mxu0 0.0
    %4051 = vmatpush1.msra.mxu0 0.0
    %4052 = vmatprep.subr.mxu0 0.0
    %4053 = vmatpush1.msra.mxu0 0.0
    %4054 = vmatprep.subr.mxu0 0.0
    %4055 = vmatpush1.msra.mxu0 0.0
    %4056 = vmatprep.subr.mxu0 0.0
    %4057 = vmatpush1.msra.mxu0 0.0
    %v4058 = vand.u32 %v68, 4294901760
    %4059 = vmatprep.subr.mxu0 %v4058
    %v4060 = vand.u32 %v67, 4294901760
    %4061 = vmatpush1.msra.mxu0 %v4060
    %v4062 = vand.u32 %v66, 4294901760
    %4063 = vmatprep.subr.mxu0 %v4062
    %v4064 = vand.u32 %v65, 4294901760
    %4065 = vmatpush1.msra.mxu0 %v4064
    %v4066 = vand.u32 %v64, 4294901760
    %4067 = vmatprep.subr.mxu0 %v4066
    %v4068 = vand.u32 %v63, 4294901760
    %4069 = vmatpush1.msra.mxu0 %v4068
    %v4070 = vand.u32 %v62, 4294901760
    %4071 = vmatprep.subr.mxu0 %v4070
    %v4072 = vand.u32 %v61, 4294901760
    %4073 = vmatpush1.msra.mxu0 %v4072
    %4074 = vmatprep.subr.mxu0 0.0
    %4075 = vmatpush2.msra.mxu0 0.0
    %4076 = vmatprep.subr.mxu0 0.0
    %4077 = vmatpush2.msra.mxu0 0.0
    %4078 = vmatprep.subr.mxu0 0.0
    %4079 = vmatpush2.msra.mxu0 0.0
    %4080 = vmatprep.subr.mxu0 0.0
    %4081 = vmatpush2.msra.mxu0 0.0
    %4082 = vmatprep.subr.mxu0 0.0
    %4083 = vmatpush2.msra.mxu0 0.0
    %4084 = vmatprep.subr.mxu0 0.0
    %4085 = vmatpush2.msra.mxu0 0.0
    %4086 = vmatprep.subr.mxu0 0.0
    %4087 = vmatpush2.msra.mxu0 0.0
    %4088 = vmatprep.subr.mxu0 0.0
    %4089 = vmatpush2.msra.mxu0 0.0
    %4090 = vmatprep.subr.mxu0 0.0
    %4091 = vmatpush2.msra.mxu0 0.0
    %4092 = vmatprep.subr.mxu0 0.0
    %4093 = vmatpush2.msra.mxu0 0.0
    %4094 = vmatprep.subr.mxu0 0.0
    %4095 = vmatpush2.msra.mxu0 0.0
    %4096 = vmatprep.subr.mxu0 0.0
    %4097 = vmatpush2.msra.mxu0 0.0
    %4098 = vmatprep.subr.mxu0 0.0
    %4099 = vmatpush2.msra.mxu0 0.0
    %4100 = vmatprep.subr.mxu0 0.0
    %4101 = vmatpush2.msra.mxu0 0.0
    %4102 = vmatprep.subr.mxu0 0.0
    %4103 = vmatpush2.msra.mxu0 0.0
    %4104 = vmatprep.subr.mxu0 0.0
    %4105 = vmatpush2.msra.mxu0 0.0
    %4106 = vmatprep.mubr.f32.mxu0 0.0
    %v4107 = vand.u32 %v3569, 4294901760
    %4108 = vmatmul.mubr.f32.gmra.mxu0 %v4107
    %v4109 = vpop.f32.mrf.mxu0
    %v4110 = vadd.f32 %v4030, %v4109
    %v4111 = vpop.f32.mrf.mxu0
    %v4112 = vadd.f32 %v4032, %v4111
    %4113 = vdwg.mxu0
    %s4114 = sld [smem:[#allocation5 + $0x4]]
    %s4115 = scalar_lea.vmem %s1, %s4114
    %v4116 = vld [vmem:[%s4115] sm:$0x1]
    %s4117 = sld [smem:[#allocation5 + $0xc]]
    %s4118 = scalar_lea.vmem %s1, %s4117
    %v4119 = vld [vmem:[%s4118] sm:$0x1]
    %v4121 = vlaneseq
    %v4122 = vshrl.u32 %v4121, 7
    %v4123 = vsub.s32 0, %v4122
    %v4124 = vrot.slane %v4119, %v4123
    %v4126 = vsel %vm111, %v4116, %v4124
    %v4128 = vsel %vm124, %v4126, 0
    %4130 = vmatprep.subr.mxu0 0.0
    %4131 = vmatpush1.msra.mxu0 0.0
    %4132 = vmatprep.subr.mxu0 0.0
    %4133 = vmatpush1.msra.mxu0 0.0
    %4134 = vmatprep.subr.mxu0 0.0
    %4135 = vmatpush1.msra.mxu0 0.0
    %4136 = vmatprep.subr.mxu0 0.0
    %4137 = vmatpush1.msra.mxu0 0.0
    %4138 = vmatprep.subr.mxu0 0.0
    %4139 = vmatpush1.msra.mxu0 0.0
    %4140 = vmatprep.subr.mxu0 0.0
    %4141 = vmatpush1.msra.mxu0 0.0
    %4142 = vmatprep.subr.mxu0 0.0
    %4143 = vmatpush1.msra.mxu0 0.0
    %4144 = vmatprep.subr.mxu0 0.0
    %4145 = vmatpush1.msra.mxu0 0.0
    %4146 = vmatprep.subr.mxu0 0.0
    %4147 = vmatpush1.msra.mxu0 0.0
    %4148 = vmatprep.subr.mxu0 0.0
    %4149 = vmatpush1.msra.mxu0 0.0
    %4150 = vmatprep.subr.mxu0 0.0
    %4151 = vmatpush1.msra.mxu0 0.0
    %4152 = vmatprep.subr.mxu0 0.0
    %4153 = vmatpush1.msra.mxu0 0.0
    %v4154 = vand.u32 %v68, 4294901760
    %4155 = vmatprep.subr.mxu0 %v4154
    %v4156 = vand.u32 %v67, 4294901760
    %4157 = vmatpush1.msra.mxu0 %v4156
    %v4158 = vand.u32 %v66, 4294901760
    %4159 = vmatprep.subr.mxu0 %v4158
    %v4160 = vand.u32 %v65, 4294901760
    %4161 = vmatpush1.msra.mxu0 %v4160
    %v4162 = vand.u32 %v64, 4294901760
    %4163 = vmatprep.subr.mxu0 %v4162
    %v4164 = vand.u32 %v63, 4294901760
    %4165 = vmatpush1.msra.mxu0 %v4164
    %v4166 = vand.u32 %v62, 4294901760
    %4167 = vmatprep.subr.mxu0 %v4166
    %v4168 = vand.u32 %v61, 4294901760
    %4169 = vmatpush1.msra.mxu0 %v4168
    %4170 = vmatprep.subr.mxu0 0.0
    %4171 = vmatpush2.msra.mxu0 0.0
    %4172 = vmatprep.subr.mxu0 0.0
    %4173 = vmatpush2.msra.mxu0 0.0
    %4174 = vmatprep.subr.mxu0 0.0
    %4175 = vmatpush2.msra.mxu0 0.0
    %4176 = vmatprep.subr.mxu0 0.0
    %4177 = vmatpush2.msra.mxu0 0.0
    %4178 = vmatprep.subr.mxu0 0.0
    %4179 = vmatpush2.msra.mxu0 0.0
    %4180 = vmatprep.subr.mxu0 0.0
    %4181 = vmatpush2.msra.mxu0 0.0
    %4182 = vmatprep.subr.mxu0 0.0
    %4183 = vmatpush2.msra.mxu0 0.0
    %4184 = vmatprep.subr.mxu0 0.0
    %4185 = vmatpush2.msra.mxu0 0.0
    %4186 = vmatprep.subr.mxu0 0.0
    %4187 = vmatpush2.msra.mxu0 0.0
    %4188 = vmatprep.subr.mxu0 0.0
    %4189 = vmatpush2.msra.mxu0 0.0
    %4190 = vmatprep.subr.mxu0 0.0
    %4191 = vmatpush2.msra.mxu0 0.0
    %4192 = vmatprep.subr.mxu0 0.0
    %4193 = vmatpush2.msra.mxu0 0.0
    %4194 = vmatprep.subr.mxu0 0.0
    %4195 = vmatpush2.msra.mxu0 0.0
    %4196 = vmatprep.subr.mxu0 0.0
    %4197 = vmatpush2.msra.mxu0 0.0
    %4198 = vmatprep.subr.mxu0 0.0
    %4199 = vmatpush2.msra.mxu0 0.0
    %4200 = vmatprep.subr.mxu0 0.0
    %4201 = vmatpush2.msra.mxu0 0.0
    %4202 = vmatprep.mubr.f32.mxu0 0.0
    %v4203 = vand.u32 %v4128, 4294901760
    %v4204 = vsub.f32 %v4128, %v4203
    %v4205 = vand.u32 %v4204, 4294901760
    %v4206 = vsub.f32 %v4204, %v4205
    %v4207 = vand.u32 %v4206, 4294901760
    %4208 = vmatmul.mubr.f32.gmra.mxu0 %v4207
    %v4209 = vpop.f32.mrf.mxu0
    %v4210 = vadd.f32 %v117, %v4209
    %v4211 = vpop.f32.mrf.mxu0
    %v4212 = vadd.f32 %v121, %v4211
    %4213 = vdwg.mxu0
    %4214 = vmatprep.subr.mxu0 0.0
    %4215 = vmatpush1.msra.mxu0 0.0
    %4216 = vmatprep.subr.mxu0 0.0
    %4217 = vmatpush1.msra.mxu0 0.0
    %4218 = vmatprep.subr.mxu0 0.0
    %4219 = vmatpush1.msra.mxu0 0.0
    %4220 = vmatprep.subr.mxu0 0.0
    %4221 = vmatpush1.msra.mxu0 0.0
    %4222 = vmatprep.subr.mxu0 0.0
    %4223 = vmatpush1.msra.mxu0 0.0
    %4224 = vmatprep.subr.mxu0 0.0
    %4225 = vmatpush1.msra.mxu0 0.0
    %4226 = vmatprep.subr.mxu0 0.0
    %4227 = vmatpush1.msra.mxu0 0.0
    %4228 = vmatprep.subr.mxu0 0.0
    %4229 = vmatpush1.msra.mxu0 0.0
    %4230 = vmatprep.subr.mxu0 0.0
    %4231 = vmatpush1.msra.mxu0 0.0
    %4232 = vmatprep.subr.mxu0 0.0
    %4233 = vmatpush1.msra.mxu0 0.0
    %4234 = vmatprep.subr.mxu0 0.0
    %4235 = vmatpush1.msra.mxu0 0.0
    %4236 = vmatprep.subr.mxu0 0.0
    %4237 = vmatpush1.msra.mxu0 0.0
    %v4238 = vand.u32 %v68, 4294901760
    %v4239 = vsub.f32 %v68, %v4238
    %v4240 = vand.u32 %v4239, 4294901760
    %v4241 = vsub.f32 %v4239, %v4240
    %v4242 = vand.u32 %v4241, 4294901760
    %4243 = vmatprep.subr.mxu0 %v4242
    %v4244 = vand.u32 %v67, 4294901760
    %v4245 = vsub.f32 %v67, %v4244
    %v4246 = vand.u32 %v4245, 4294901760
    %v4247 = vsub.f32 %v4245, %v4246
    %v4248 = vand.u32 %v4247, 4294901760
    %4249 = vmatpush1.msra.mxu0 %v4248
    %v4250 = vand.u32 %v66, 4294901760
    %v4251 = vsub.f32 %v66, %v4250
    %v4252 = vand.u32 %v4251, 4294901760
    %v4253 = vsub.f32 %v4251, %v4252
    %v4254 = vand.u32 %v4253, 4294901760
    %4255 = vmatprep.subr.mxu0 %v4254
    %v4256 = vand.u32 %v65, 4294901760
    %v4257 = vsub.f32 %v65, %v4256
    %v4258 = vand.u32 %v4257, 4294901760
    %v4259 = vsub.f32 %v4257, %v4258
    %v4260 = vand.u32 %v4259, 4294901760
    %4261 = vmatpush1.msra.mxu0 %v4260
    %v4262 = vand.u32 %v64, 4294901760
    %v4263 = vsub.f32 %v64, %v4262
    %v4264 = vand.u32 %v4263, 4294901760
    %v4265 = vsub.f32 %v4263, %v4264
    %v4266 = vand.u32 %v4265, 4294901760
    %4267 = vmatprep.subr.mxu0 %v4266
    %v4268 = vand.u32 %v63, 4294901760
    %v4269 = vsub.f32 %v63, %v4268
    %v4270 = vand.u32 %v4269, 4294901760
    %v4271 = vsub.f32 %v4269, %v4270
    %v4272 = vand.u32 %v4271, 4294901760
    %4273 = vmatpush1.msra.mxu0 %v4272
    %v4274 = vand.u32 %v62, 4294901760
    %v4275 = vsub.f32 %v62, %v4274
    %v4276 = vand.u32 %v4275, 4294901760
    %v4277 = vsub.f32 %v4275, %v4276
    %v4278 = vand.u32 %v4277, 4294901760
    %4279 = vmatprep.subr.mxu0 %v4278
    %v4280 = vand.u32 %v61, 4294901760
    %v4281 = vsub.f32 %v61, %v4280
    %v4282 = vand.u32 %v4281, 4294901760
    %v4283 = vsub.f32 %v4281, %v4282
    %v4284 = vand.u32 %v4283, 4294901760
    %4285 = vmatpush1.msra.mxu0 %v4284
    %4286 = vmatprep.subr.mxu0 0.0
    %4287 = vmatpush2.msra.mxu0 0.0
    %4288 = vmatprep.subr.mxu0 0.0
    %4289 = vmatpush2.msra.mxu0 0.0
    %4290 = vmatprep.subr.mxu0 0.0
    %4291 = vmatpush2.msra.mxu0 0.0
    %4292 = vmatprep.subr.mxu0 0.0
    %4293 = vmatpush2.msra.mxu0 0.0
    %4294 = vmatprep.subr.mxu0 0.0
    %4295 = vmatpush2.msra.mxu0 0.0
    %4296 = vmatprep.subr.mxu0 0.0
    %4297 = vmatpush2.msra.mxu0 0.0
    %4298 = vmatprep.subr.mxu0 0.0
    %4299 = vmatpush2.msra.mxu0 0.0
    %4300 = vmatprep.subr.mxu0 0.0
    %4301 = vmatpush2.msra.mxu0 0.0
    %4302 = vmatprep.subr.mxu0 0.0
    %4303 = vmatpush2.msra.mxu0 0.0
    %4304 = vmatprep.subr.mxu0 0.0
    %4305 = vmatpush2.msra.mxu0 0.0
    %4306 = vmatprep.subr.mxu0 0.0
    %4307 = vmatpush2.msra.mxu0 0.0
    %4308 = vmatprep.subr.mxu0 0.0
    %4309 = vmatpush2.msra.mxu0 0.0
    %4310 = vmatprep.subr.mxu0 0.0
    %4311 = vmatpush2.msra.mxu0 0.0
    %4312 = vmatprep.subr.mxu0 0.0
    %4313 = vmatpush2.msra.mxu0 0.0
    %4314 = vmatprep.subr.mxu0 0.0
    %4315 = vmatpush2.msra.mxu0 0.0
    %4316 = vmatprep.subr.mxu0 0.0
    %4317 = vmatpush2.msra.mxu0 0.0
    %4318 = vmatprep.mubr.f32.mxu0 0.0
    %v4319 = vand.u32 %v4128, 4294901760
    %4320 = vmatmul.mubr.f32.gmra.mxu0 %v4319
    %v4321 = vpop.f32.mrf.mxu0
    %v4322 = vadd.f32 %v4210, %v4321
    %v4323 = vpop.f32.mrf.mxu0
    %v4324 = vadd.f32 %v4212, %v4323
    %4325 = vdwg.mxu0
    %4326 = vmatprep.subr.mxu0 0.0
    %4327 = vmatpush1.msra.mxu0 0.0
    %4328 = vmatprep.subr.mxu0 0.0
    %4329 = vmatpush1.msra.mxu0 0.0
    %4330 = vmatprep.subr.mxu0 0.0
    %4331 = vmatpush1.msra.mxu0 0.0
    %4332 = vmatprep.subr.mxu0 0.0
    %4333 = vmatpush1.msra.mxu0 0.0
    %4334 = vmatprep.subr.mxu0 0.0
    %4335 = vmatpush1.msra.mxu0 0.0
    %4336 = vmatprep.subr.mxu0 0.0
    %4337 = vmatpush1.msra.mxu0 0.0
    %4338 = vmatprep.subr.mxu0 0.0
    %4339 = vmatpush1.msra.mxu0 0.0
    %4340 = vmatprep.subr.mxu0 0.0
    %4341 = vmatpush1.msra.mxu0 0.0
    %4342 = vmatprep.subr.mxu0 0.0
    %4343 = vmatpush1.msra.mxu0 0.0
    %4344 = vmatprep.subr.mxu0 0.0
    %4345 = vmatpush1.msra.mxu0 0.0
    %4346 = vmatprep.subr.mxu0 0.0
    %4347 = vmatpush1.msra.mxu0 0.0
    %4348 = vmatprep.subr.mxu0 0.0
    %4349 = vmatpush1.msra.mxu0 0.0
    %v4350 = vand.u32 %v68, 4294901760
    %v4351 = vsub.f32 %v68, %v4350
    %4352 = vmatprep.subr.mxu0 %v4351
    %v4353 = vand.u32 %v67, 4294901760
    %v4354 = vsub.f32 %v67, %v4353
    %4355 = vmatpush1.msra.mxu0 %v4354
    %v4356 = vand.u32 %v66, 4294901760
    %v4357 = vsub.f32 %v66, %v4356
    %4358 = vmatprep.subr.mxu0 %v4357
    %v4359 = vand.u32 %v65, 4294901760
    %v4360 = vsub.f32 %v65, %v4359
    %4361 = vmatpush1.msra.mxu0 %v4360
    %v4362 = vand.u32 %v64, 4294901760
    %v4363 = vsub.f32 %v64, %v4362
    %4364 = vmatprep.subr.mxu0 %v4363
    %v4365 = vand.u32 %v63, 4294901760
    %v4366 = vsub.f32 %v63, %v4365
    %4367 = vmatpush1.msra.mxu0 %v4366
    %v4368 = vand.u32 %v62, 4294901760
    %v4369 = vsub.f32 %v62, %v4368
    %4370 = vmatprep.subr.mxu0 %v4369
    %v4371 = vand.u32 %v61, 4294901760
    %v4372 = vsub.f32 %v61, %v4371
    %4373 = vmatpush1.msra.mxu0 %v4372
    %4374 = vmatprep.subr.mxu0 0.0
    %4375 = vmatpush2.msra.mxu0 0.0
    %4376 = vmatprep.subr.mxu0 0.0
    %4377 = vmatpush2.msra.mxu0 0.0
    %4378 = vmatprep.subr.mxu0 0.0
    %4379 = vmatpush2.msra.mxu0 0.0
    %4380 = vmatprep.subr.mxu0 0.0
    %4381 = vmatpush2.msra.mxu0 0.0
    %4382 = vmatprep.subr.mxu0 0.0
    %4383 = vmatpush2.msra.mxu0 0.0
    %4384 = vmatprep.subr.mxu0 0.0
    %4385 = vmatpush2.msra.mxu0 0.0
    %4386 = vmatprep.subr.mxu0 0.0
    %4387 = vmatpush2.msra.mxu0 0.0
    %4388 = vmatprep.subr.mxu0 0.0
    %4389 = vmatpush2.msra.mxu0 0.0
    %4390 = vmatprep.subr.mxu0 0.0
    %4391 = vmatpush2.msra.mxu0 0.0
    %4392 = vmatprep.subr.mxu0 0.0
    %4393 = vmatpush2.msra.mxu0 0.0
    %4394 = vmatprep.subr.mxu0 0.0
    %4395 = vmatpush2.msra.mxu0 0.0
    %4396 = vmatprep.subr.mxu0 0.0
    %4397 = vmatpush2.msra.mxu0 0.0
    %4398 = vmatprep.subr.mxu0 0.0
    %4399 = vmatpush2.msra.mxu0 0.0
    %4400 = vmatprep.subr.mxu0 0.0
    %4401 = vmatpush2.msra.mxu0 0.0
    %4402 = vmatprep.subr.mxu0 0.0
    %4403 = vmatpush2.msra.mxu0 0.0
    %4404 = vmatprep.subr.mxu0 0.0
    %4405 = vmatpush2.msra.mxu0 0.0
    %4406 = vmatprep.mubr.f32.mxu0 0.0
    %v4407 = vand.u32 %v4128, 4294901760
    %v4408 = vsub.f32 %v4128, %v4407
    %4409 = vmatmul.mubr.f32.gmra.mxu0 %v4408
    %v4410 = vpop.f32.mrf.mxu0
    %v4411 = vadd.f32 %v4322, %v4410
    %v4412 = vpop.f32.mrf.mxu0
    %v4413 = vadd.f32 %v4324, %v4412
    %4414 = vdwg.mxu0
    %4415 = vmatprep.subr.mxu0 0.0
    %4416 = vmatpush1.msra.mxu0 0.0
    %4417 = vmatprep.subr.mxu0 0.0
    %4418 = vmatpush1.msra.mxu0 0.0
    %4419 = vmatprep.subr.mxu0 0.0
    %4420 = vmatpush1.msra.mxu0 0.0
    %4421 = vmatprep.subr.mxu0 0.0
    %4422 = vmatpush1.msra.mxu0 0.0
    %4423 = vmatprep.subr.mxu0 0.0
    %4424 = vmatpush1.msra.mxu0 0.0
    %4425 = vmatprep.subr.mxu0 0.0
    %4426 = vmatpush1.msra.mxu0 0.0
    %4427 = vmatprep.subr.mxu0 0.0
    %4428 = vmatpush1.msra.mxu0 0.0
    %4429 = vmatprep.subr.mxu0 0.0
    %4430 = vmatpush1.msra.mxu0 0.0
    %4431 = vmatprep.subr.mxu0 0.0
    %4432 = vmatpush1.msra.mxu0 0.0
    %4433 = vmatprep.subr.mxu0 0.0
    %4434 = vmatpush1.msra.mxu0 0.0
    %4435 = vmatprep.subr.mxu0 0.0
    %4436 = vmatpush1.msra.mxu0 0.0
    %4437 = vmatprep.subr.mxu0 0.0
    %4438 = vmatpush1.msra.mxu0 0.0
    %v4439 = vand.u32 %v68, 4294901760
    %4440 = vmatprep.subr.mxu0 %v4439
    %v4441 = vand.u32 %v67, 4294901760
    %4442 = vmatpush1.msra.mxu0 %v4441
    %v4443 = vand.u32 %v66, 4294901760
    %4444 = vmatprep.subr.mxu0 %v4443
    %v4445 = vand.u32 %v65, 4294901760
    %4446 = vmatpush1.msra.mxu0 %v4445
    %v4447 = vand.u32 %v64, 4294901760
    %4448 = vmatprep.subr.mxu0 %v4447
    %v4449 = vand.u32 %v63, 4294901760
    %4450 = vmatpush1.msra.mxu0 %v4449
    %v4451 = vand.u32 %v62, 4294901760
    %4452 = vmatprep.subr.mxu0 %v4451
    %v4453 = vand.u32 %v61, 4294901760
    %4454 = vmatpush1.msra.mxu0 %v4453
    %4455 = vmatprep.subr.mxu0 0.0
    %4456 = vmatpush2.msra.mxu0 0.0
    %4457 = vmatprep.subr.mxu0 0.0
    %4458 = vmatpush2.msra.mxu0 0.0
    %4459 = vmatprep.subr.mxu0 0.0
    %4460 = vmatpush2.msra.mxu0 0.0
    %4461 = vmatprep.subr.mxu0 0.0
    %4462 = vmatpush2.msra.mxu0 0.0
    %4463 = vmatprep.subr.mxu0 0.0
    %4464 = vmatpush2.msra.mxu0 0.0
    %4465 = vmatprep.subr.mxu0 0.0
    %4466 = vmatpush2.msra.mxu0 0.0
    %4467 = vmatprep.subr.mxu0 0.0
    %4468 = vmatpush2.msra.mxu0 0.0
    %4469 = vmatprep.subr.mxu0 0.0
    %4470 = vmatpush2.msra.mxu0 0.0
    %4471 = vmatprep.subr.mxu0 0.0
    %4472 = vmatpush2.msra.mxu0 0.0
    %4473 = vmatprep.subr.mxu0 0.0
    %4474 = vmatpush2.msra.mxu0 0.0
    %4475 = vmatprep.subr.mxu0 0.0
    %4476 = vmatpush2.msra.mxu0 0.0
    %4477 = vmatprep.subr.mxu0 0.0
    %4478 = vmatpush2.msra.mxu0 0.0
    %4479 = vmatprep.subr.mxu0 0.0
    %4480 = vmatpush2.msra.mxu0 0.0
    %4481 = vmatprep.subr.mxu0 0.0
    %4482 = vmatpush2.msra.mxu0 0.0
    %4483 = vmatprep.subr.mxu0 0.0
    %4484 = vmatpush2.msra.mxu0 0.0
    %4485 = vmatprep.subr.mxu0 0.0
    %4486 = vmatpush2.msra.mxu0 0.0
    %4487 = vmatprep.mubr.f32.mxu0 0.0
    %v4488 = vand.u32 %v4128, 4294901760
    %v4489 = vsub.f32 %v4128, %v4488
    %v4490 = vand.u32 %v4489, 4294901760
    %4491 = vmatmul.mubr.f32.gmra.mxu0 %v4490
    %v4492 = vpop.f32.mrf.mxu0
    %v4493 = vadd.f32 %v4411, %v4492
    %v4494 = vpop.f32.mrf.mxu0
    %v4495 = vadd.f32 %v4413, %v4494
    %4496 = vdwg.mxu0
    %4497 = vmatprep.subr.mxu0 0.0
    %4498 = vmatpush1.msra.mxu0 0.0
    %4499 = vmatprep.subr.mxu0 0.0
    %4500 = vmatpush1.msra.mxu0 0.0
    %4501 = vmatprep.subr.mxu0 0.0
    %4502 = vmatpush1.msra.mxu0 0.0
    %4503 = vmatprep.subr.mxu0 0.0
    %4504 = vmatpush1.msra.mxu0 0.0
    %4505 = vmatprep.subr.mxu0 0.0
    %4506 = vmatpush1.msra.mxu0 0.0
    %4507 = vmatprep.subr.mxu0 0.0
    %4508 = vmatpush1.msra.mxu0 0.0
    %4509 = vmatprep.subr.mxu0 0.0
    %4510 = vmatpush1.msra.mxu0 0.0
    %4511 = vmatprep.subr.mxu0 0.0
    %4512 = vmatpush1.msra.mxu0 0.0
    %4513 = vmatprep.subr.mxu0 0.0
    %4514 = vmatpush1.msra.mxu0 0.0
    %4515 = vmatprep.subr.mxu0 0.0
    %4516 = vmatpush1.msra.mxu0 0.0
    %4517 = vmatprep.subr.mxu0 0.0
    %4518 = vmatpush1.msra.mxu0 0.0
    %4519 = vmatprep.subr.mxu0 0.0
    %4520 = vmatpush1.msra.mxu0 0.0
    %v4521 = vand.u32 %v68, 4294901760
    %v4522 = vsub.f32 %v68, %v4521
    %v4523 = vand.u32 %v4522, 4294901760
    %4524 = vmatprep.subr.mxu0 %v4523
    %v4525 = vand.u32 %v67, 4294901760
    %v4526 = vsub.f32 %v67, %v4525
    %v4527 = vand.u32 %v4526, 4294901760
    %4528 = vmatpush1.msra.mxu0 %v4527
    %v4529 = vand.u32 %v66, 4294901760
    %v4530 = vsub.f32 %v66, %v4529
    %v4531 = vand.u32 %v4530, 4294901760
    %4532 = vmatprep.subr.mxu0 %v4531
    %v4533 = vand.u32 %v65, 4294901760
    %v4534 = vsub.f32 %v65, %v4533
    %v4535 = vand.u32 %v4534, 4294901760
    %4536 = vmatpush1.msra.mxu0 %v4535
    %v4537 = vand.u32 %v64, 4294901760
    %v4538 = vsub.f32 %v64, %v4537
    %v4539 = vand.u32 %v4538, 4294901760
    %4540 = vmatprep.subr.mxu0 %v4539
    %v4541 = vand.u32 %v63, 4294901760
    %v4542 = vsub.f32 %v63, %v4541
    %v4543 = vand.u32 %v4542, 4294901760
    %4544 = vmatpush1.msra.mxu0 %v4543
    %v4545 = vand.u32 %v62, 4294901760
    %v4546 = vsub.f32 %v62, %v4545
    %v4547 = vand.u32 %v4546, 4294901760
    %4548 = vmatprep.subr.mxu0 %v4547
    %v4549 = vand.u32 %v61, 4294901760
    %v4550 = vsub.f32 %v61, %v4549
    %v4551 = vand.u32 %v4550, 4294901760
    %4552 = vmatpush1.msra.mxu0 %v4551
    %4553 = vmatprep.subr.mxu0 0.0
    %4554 = vmatpush2.msra.mxu0 0.0
    %4555 = vmatprep.subr.mxu0 0.0
    %4556 = vmatpush2.msra.mxu0 0.0
    %4557 = vmatprep.subr.mxu0 0.0
    %4558 = vmatpush2.msra.mxu0 0.0
    %4559 = vmatprep.subr.mxu0 0.0
    %4560 = vmatpush2.msra.mxu0 0.0
    %4561 = vmatprep.subr.mxu0 0.0
    %4562 = vmatpush2.msra.mxu0 0.0
    %4563 = vmatprep.subr.mxu0 0.0
    %4564 = vmatpush2.msra.mxu0 0.0
    %4565 = vmatprep.subr.mxu0 0.0
    %4566 = vmatpush2.msra.mxu0 0.0
    %4567 = vmatprep.subr.mxu0 0.0
    %4568 = vmatpush2.msra.mxu0 0.0
    %4569 = vmatprep.subr.mxu0 0.0
    %4570 = vmatpush2.msra.mxu0 0.0
    %4571 = vmatprep.subr.mxu0 0.0
    %4572 = vmatpush2.msra.mxu0 0.0
    %4573 = vmatprep.subr.mxu0 0.0
    %4574 = vmatpush2.msra.mxu0 0.0
    %4575 = vmatprep.subr.mxu0 0.0
    %4576 = vmatpush2.msra.mxu0 0.0
    %4577 = vmatprep.subr.mxu0 0.0
    %4578 = vmatpush2.msra.mxu0 0.0
    %4579 = vmatprep.subr.mxu0 0.0
    %4580 = vmatpush2.msra.mxu0 0.0
    %4581 = vmatprep.subr.mxu0 0.0
    %4582 = vmatpush2.msra.mxu0 0.0
    %4583 = vmatprep.subr.mxu0 0.0
    %4584 = vmatpush2.msra.mxu0 0.0
    %4585 = vmatprep.mubr.f32.mxu0 0.0
    %v4586 = vand.u32 %v4128, 4294901760
    %4587 = vmatmul.mubr.f32.gmra.mxu0 %v4586
    %v4588 = vpop.f32.mrf.mxu0
    %v4589 = vadd.f32 %v4493, %v4588
    %v4590 = vpop.f32.mrf.mxu0
    %v4591 = vadd.f32 %v4495, %v4590
    %4592 = vdwg.mxu0
    %4593 = vmatprep.subr.mxu0 0.0
    %4594 = vmatpush1.msra.mxu0 0.0
    %4595 = vmatprep.subr.mxu0 0.0
    %4596 = vmatpush1.msra.mxu0 0.0
    %4597 = vmatprep.subr.mxu0 0.0
    %4598 = vmatpush1.msra.mxu0 0.0
    %4599 = vmatprep.subr.mxu0 0.0
    %4600 = vmatpush1.msra.mxu0 0.0
    %4601 = vmatprep.subr.mxu0 0.0
    %4602 = vmatpush1.msra.mxu0 0.0
    %4603 = vmatprep.subr.mxu0 0.0
    %4604 = vmatpush1.msra.mxu0 0.0
    %4605 = vmatprep.subr.mxu0 0.0
    %4606 = vmatpush1.msra.mxu0 0.0
    %4607 = vmatprep.subr.mxu0 0.0
    %4608 = vmatpush1.msra.mxu0 0.0
    %4609 = vmatprep.subr.mxu0 0.0
    %4610 = vmatpush1.msra.mxu0 0.0
    %4611 = vmatprep.subr.mxu0 0.0
    %4612 = vmatpush1.msra.mxu0 0.0
    %4613 = vmatprep.subr.mxu0 0.0
    %4614 = vmatpush1.msra.mxu0 0.0
    %4615 = vmatprep.subr.mxu0 0.0
    %4616 = vmatpush1.msra.mxu0 0.0
    %v4617 = vand.u32 %v68, 4294901760
    %4618 = vmatprep.subr.mxu0 %v4617
    %v4619 = vand.u32 %v67, 4294901760
    %4620 = vmatpush1.msra.mxu0 %v4619
    %v4621 = vand.u32 %v66, 4294901760
    %4622 = vmatprep.subr.mxu0 %v4621
    %v4623 = vand.u32 %v65, 4294901760
    %4624 = vmatpush1.msra.mxu0 %v4623
    %v4625 = vand.u32 %v64, 4294901760
    %4626 = vmatprep.subr.mxu0 %v4625
    %v4627 = vand.u32 %v63, 4294901760
    %4628 = vmatpush1.msra.mxu0 %v4627
    %v4629 = vand.u32 %v62, 4294901760
    %4630 = vmatprep.subr.mxu0 %v4629
    %v4631 = vand.u32 %v61, 4294901760
    %4632 = vmatpush1.msra.mxu0 %v4631
    %4633 = vmatprep.subr.mxu0 0.0
    %4634 = vmatpush2.msra.mxu0 0.0
    %4635 = vmatprep.subr.mxu0 0.0
    %4636 = vmatpush2.msra.mxu0 0.0
    %4637 = vmatprep.subr.mxu0 0.0
    %4638 = vmatpush2.msra.mxu0 0.0
    %4639 = vmatprep.subr.mxu0 0.0
    %4640 = vmatpush2.msra.mxu0 0.0
    %4641 = vmatprep.subr.mxu0 0.0
    %4642 = vmatpush2.msra.mxu0 0.0
    %4643 = vmatprep.subr.mxu0 0.0
    %4644 = vmatpush2.msra.mxu0 0.0
    %4645 = vmatprep.subr.mxu0 0.0
    %4646 = vmatpush2.msra.mxu0 0.0
    %4647 = vmatprep.subr.mxu0 0.0
    %4648 = vmatpush2.msra.mxu0 0.0
    %4649 = vmatprep.subr.mxu0 0.0
    %4650 = vmatpush2.msra.mxu0 0.0
    %4651 = vmatprep.subr.mxu0 0.0
    %4652 = vmatpush2.msra.mxu0 0.0
    %4653 = vmatprep.subr.mxu0 0.0
    %4654 = vmatpush2.msra.mxu0 0.0
    %4655 = vmatprep.subr.mxu0 0.0
    %4656 = vmatpush2.msra.mxu0 0.0
    %4657 = vmatprep.subr.mxu0 0.0
    %4658 = vmatpush2.msra.mxu0 0.0
    %4659 = vmatprep.subr.mxu0 0.0
    %4660 = vmatpush2.msra.mxu0 0.0
    %4661 = vmatprep.subr.mxu0 0.0
    %4662 = vmatpush2.msra.mxu0 0.0
    %4663 = vmatprep.subr.mxu0 0.0
    %4664 = vmatpush2.msra.mxu0 0.0
    %4665 = vmatprep.mubr.f32.mxu0 0.0
    %v4666 = vand.u32 %v4128, 4294901760
    %4667 = vmatmul.mubr.f32.gmra.mxu0 %v4666
    %v4668 = vpop.f32.mrf.mxu0
    %v4669 = vadd.f32 %v4589, %v4668
    %v4670 = vpop.f32.mrf.mxu0
    %v4671 = vadd.f32 %v4591, %v4670
    %4672 = vdwg.mxu0
    %v4673 = vsel %vm97, %v4110, %v4669
    %v4674 = vsel %vm98, %v4112, %v4671
    %v4677 = vcombine.low %v4673, %v4674
    %v4679 = vunpack.c.l.s4 1983009808
    %v4680 = vunpack.c.0.s8 %v4679
    %v4681 = vlaneseq
    %v4682 = vshrl.u32 %v4681, 7
    %v4683 = vsub.s32 %v4680, %v4682
    %v4684 = vrot.slane %v4677, %v4683
    %s4686 = scalar_lea.vmem [#allocation2], 12
    %4687 = vst [vmem:[%s4686] sm:$0xf] %v4684
    %v4688 = vsel %vm97, %v4669, %v4110
    %v4689 = vsel %vm98, %v4671, %v4112
    %v4692 = vcombine.low %v4688, %v4689
    %v4694 = vunpack.c.l.s4 1983009808
    %v4695 = vunpack.c.0.s8 %v4694
    %v4696 = vlaneseq
    %v4697 = vshrl.u32 %v4696, 7
    %v4698 = vsub.s32 %v4695, %v4697
    %v4699 = vrot.slane %v4692, %v4698
    %s4701 = scalar_lea.vmem [#allocation2], 16
    %4702 = vst [vmem:[%s4701] sm:$0xf] %v4699
    %v4703 = vld [vmem:[#allocation6] sm:$0xff]
    %v4704 = vld [vmem:[#allocation6 + $0x8] sm:$0xff]
    %v4705 = vld [vmem:[#allocation6 + $0x10] sm:$0xff]
    %v4706 = vld [vmem:[#allocation6 + $0x18] sm:$0xff]
    %v4707 = vld [vmem:[#allocation6 + $0x20] sm:$0xff]
    %v4708 = vld [vmem:[#allocation6 + $0x28] sm:$0xff]
    %v4709 = vld [vmem:[#allocation6 + $0x30] sm:$0xff]
    %v4710 = vld [vmem:[#allocation6 + $0x38] sm:$0xff]
    %v4711 = vld [vmem:[#allocation6 + $0x40] sm:$0xff]
    %v4712 = vld [vmem:[#allocation6 + $0x48] sm:$0xff]
    %v4713 = vld [vmem:[#allocation6 + $0x50] sm:$0xff]
    %v4714 = vld [vmem:[#allocation6 + $0x58] sm:$0xff]
    %v4715 = vld [vmem:[#allocation6 + $0x60] sm:$0xff]
    %v4716 = vld [vmem:[#allocation6 + $0x68] sm:$0xff]
    %v4717 = vld [vmem:[#allocation6 + $0x70] sm:$0xff]
    %v4718 = vld [vmem:[#allocation6 + $0x78] sm:$0xff]
    %v4719 = vpack.c.bf16 %v4705, %v4703
    %v4720 = vpack.c.bf16 %v4706, %v4704
    %v4721 = vpack.c.bf16 %v4709, %v4707
    %v4722 = vpack.c.bf16 %v4710, %v4708
    %v4723 = vpack.c.bf16 %v4713, %v4711
    %v4724 = vpack.c.bf16 %v4714, %v4712
    %v4725 = vpack.c.bf16 %v4717, %v4715
    %v4726 = vpack.c.bf16 %v4718, %v4716
    %v4727 = vld [vmem:[#allocation2] sm:$0xf]
    %vm4728 = vcmask 523264
    %v4730 = vsel %vm4728, 0, 0
    %4732 = vmatprep.subr.bf16.mxu0 0
    %4733 = vmatpush1.bf16.msra.mxu0 0
    %4734 = vmatprep.subr.bf16.mxu0 0
    %4735 = vmatpush1.bf16.msra.mxu0 0
    %4736 = vmatprep.subr.bf16.mxu0 0
    %4737 = vmatpush1.bf16.msra.mxu0 0
    %4738 = vmatprep.subr.bf16.mxu0 0
    %4739 = vmatpush1.bf16.msra.mxu0 0
    %4740 = vmatprep.subr.bf16.mxu0 %v4726
    %4741 = vmatpush1.bf16.msra.mxu0 %v4725
    %4742 = vmatprep.subr.bf16.mxu0 %v4724
    %4743 = vmatpush1.bf16.msra.mxu0 %v4723
    %4744 = vmatprep.subr.bf16.mxu0 %v4722
    %4745 = vmatpush1.bf16.msra.mxu0 %v4721
    %4746 = vmatprep.subr.bf16.mxu0 %v4720
    %4747 = vmatpush1.bf16.msra.mxu0 %v4719
    %4748 = vmatprep.subr.bf16.mxu0 0
    %4749 = vmatpush2.bf16.msra.mxu0 0
    %4750 = vmatprep.subr.bf16.mxu0 0
    %4751 = vmatpush2.bf16.msra.mxu0 0
    %4752 = vmatprep.subr.bf16.mxu0 0
    %4753 = vmatpush2.bf16.msra.mxu0 0
    %4754 = vmatprep.subr.bf16.mxu0 0
    %4755 = vmatpush2.bf16.msra.mxu0 0
    %4756 = vmatprep.subr.bf16.mxu0 0
    %4757 = vmatpush2.bf16.msra.mxu0 0
    %4758 = vmatprep.subr.bf16.mxu0 0
    %4759 = vmatpush2.bf16.msra.mxu0 0
    %4760 = vmatprep.subr.bf16.mxu0 0
    %4761 = vmatpush2.bf16.msra.mxu0 0
    %4762 = vmatprep.subr.bf16.mxu0 0
    %4763 = vmatpush2.bf16.msra.mxu0 0
    %4764 = vmatprep.mubr.bf16.mxu0 0
    %4765 = vmatmul.mubr.bf16.gmra.mxu0 %v4730
    %v4766 = vpop.f32.mrf.mxu0
    %v4767 = vadd.f32 0.0, %v4766
    %v4768 = vpop.f32.mrf.mxu0
    %v4769 = vadd.f32 0.0, %v4768
    %v4770 = vpop.f32.mrf.mxu0
    %v4771 = vpop.f32.mrf.mxu0
    %4772 = vdwg.mxu0
    %v4775 = vcombine.low %v4767, %v4769
    %v4777 = vunpack.c.l.s4 1983009808
    %v4778 = vunpack.c.0.s8 %v4777
    %v4779 = vlaneseq
    %v4780 = vshrl.u32 %v4779, 7
    %v4781 = vsub.s32 %v4778, %v4780
    %v4782 = vrot.slane %v4775, %v4781
    %v4784 = vadd.f32 %v4727, %v4782
    %v4785 = vxor.u32 %v4784, 2147483648
    %v4786 = vmul.f32 %v4785, 1.442695
    %v4787 = vpow.pop %v4786
    %v4788 = vadd.f32 %v4787, 1.0
    %v4789 = vrcp.pop %v4788
    %v4790 = vmul.f32 1.0, %v4789
    %v4792 = vrot.slane %v4784, 2
    %v4794 = vtanh.pop %v4792
    %4795 = vrot.lane.b32.xlu0 %v4784, 64
    %v4796 = vpop.permute.xlu0 %4795
    %v4797 = vrot.slane %v4796, 2
    %v4799 = vxor.u32 %v4797, 2147483648
    %v4800 = vmul.f32 %v4799, 1.442695
    %v4801 = vpow.pop %v4800
    %v4802 = vadd.f32 %v4801, 1.0
    %v4803 = vrcp.pop %v4802
    %v4804 = vmul.f32 1.0, %v4803
    %v4805 = vmul.f32 %v4790, 0.0
    %v4806 = vmul.f32 %v4790, %v4794
    %4808 = vrot.lane.b32.xlu0 %v4806, 64
    %v4809 = vpop.permute.xlu0 %4808
    %v4811 = vadd.f32 %v4805, %v4809
    %v4812 = vtanh.pop %v4811
    %4814 = vrot.lane.b32.xlu0 %v4812, 64
    %v4815 = vpop.permute.xlu0 %4814
    %v4817 = vmul.f32 %v4804, %v4815
    %vm4818 = vcmask 517120
    %4819 = vst.msk [vmem:[#allocation3] sm:$0x3] %vm4818, %v4817
    %v4820 = vld [vmem:[%s2390] sm:$0xf]
    %v4821 = vpack.c.bf16 %v4817, %v4817
    %v4823 = vsel %vm4728, %v4821, 0
    %4825 = vmatprep.subr.bf16.mxu0 0
    %4826 = vmatpush1.bf16.msra.mxu0 0
    %4827 = vmatprep.subr.bf16.mxu0 0
    %4828 = vmatpush1.bf16.msra.mxu0 0
    %4829 = vmatprep.subr.bf16.mxu0 0
    %4830 = vmatpush1.bf16.msra.mxu0 0
    %4831 = vmatprep.subr.bf16.mxu0 0
    %4832 = vmatpush1.bf16.msra.mxu0 0
    %4833 = vmatprep.subr.bf16.mxu0 %v4726
    %4834 = vmatpush1.bf16.msra.mxu0 %v4725
    %4835 = vmatprep.subr.bf16.mxu0 %v4724
    %4836 = vmatpush1.bf16.msra.mxu0 %v4723
    %4837 = vmatprep.subr.bf16.mxu0 %v4722
    %4838 = vmatpush1.bf16.msra.mxu0 %v4721
    %4839 = vmatprep.subr.bf16.mxu0 %v4720
    %4840 = vmatpush1.bf16.msra.mxu0 %v4719
    %4841 = vmatprep.subr.bf16.mxu0 0
    %4842 = vmatpush2.bf16.msra.mxu0 0
    %4843 = vmatprep.subr.bf16.mxu0 0
    %4844 = vmatpush2.bf16.msra.mxu0 0
    %4845 = vmatprep.subr.bf16.mxu0 0
    %4846 = vmatpush2.bf16.msra.mxu0 0
    %4847 = vmatprep.subr.bf16.mxu0 0
    %4848 = vmatpush2.bf16.msra.mxu0 0
    %4849 = vmatprep.subr.bf16.mxu0 0
    %4850 = vmatpush2.bf16.msra.mxu0 0
    %4851 = vmatprep.subr.bf16.mxu0 0
    %4852 = vmatpush2.bf16.msra.mxu0 0
    %4853 = vmatprep.subr.bf16.mxu0 0
    %4854 = vmatpush2.bf16.msra.mxu0 0
    %4855 = vmatprep.subr.bf16.mxu0 0
    %4856 = vmatpush2.bf16.msra.mxu0 0
    %4857 = vmatprep.mubr.bf16.mxu0 0
    %4858 = vmatmul.mubr.bf16.gmra.mxu0 %v4823
    %v4859 = vpop.f32.mrf.mxu0
    %v4860 = vadd.f32 0.0, %v4859
    %v4861 = vpop.f32.mrf.mxu0
    %v4862 = vadd.f32 0.0, %v4861
    %v4863 = vpop.f32.mrf.mxu0
    %v4864 = vpop.f32.mrf.mxu0
    %4865 = vdwg.mxu0
    %v4868 = vcombine.low %v4860, %v4862
    %v4870 = vunpack.c.l.s4 1983009808
    %v4871 = vunpack.c.0.s8 %v4870
    %v4872 = vlaneseq
    %v4873 = vshrl.u32 %v4872, 7
    %v4874 = vsub.s32 %v4871, %v4873
    %v4875 = vrot.slane %v4868, %v4874
    %v4877 = vadd.f32 %v4820, %v4875
    %v4878 = vxor.u32 %v4877, 2147483648
    %v4879 = vmul.f32 %v4878, 1.442695
    %v4880 = vpow.pop %v4879
    %v4881 = vadd.f32 %v4880, 1.0
    %v4882 = vrcp.pop %v4881
    %v4883 = vmul.f32 1.0, %v4882
    %v4885 = vrot.slane %v4877, 2
    %v4887 = vtanh.pop %v4885
    %4888 = vrot.lane.b32.xlu0 %v4877, 64
    %v4889 = vpop.permute.xlu0 %4888
    %v4890 = vrot.slane %v4889, 2
    %v4892 = vxor.u32 %v4890, 2147483648
    %v4893 = vmul.f32 %v4892, 1.442695
    %v4894 = vpow.pop %v4893
    %v4895 = vadd.f32 %v4894, 1.0
    %v4896 = vrcp.pop %v4895
    %v4897 = vmul.f32 1.0, %v4896
    %v4898 = vmul.f32 %v4883, %v4811
    %v4899 = vmul.f32 %v4883, %v4887
    %4901 = vrot.lane.b32.xlu0 %v4899, 64
    %v4902 = vpop.permute.xlu0 %4901
    %v4904 = vadd.f32 %v4898, %v4902
    %v4905 = vtanh.pop %v4904
    %4907 = vrot.lane.b32.xlu0 %v4905, 64
    %v4908 = vpop.permute.xlu0 %4907
    %v4910 = vmul.f32 %v4897, %v4908
    %s4911 = scalar_lea.vmem [#allocation3], 2
    %4912 = vst.msk [vmem:[%s4911] sm:$0x3] %vm4818, %v4910
    %v4913 = vld [vmem:[%s3538] sm:$0xf]
    %v4914 = vpack.c.bf16 %v4910, %v4910
    %v4916 = vsel %vm4728, %v4914, 0
    %4918 = vmatprep.subr.bf16.mxu0 0
    %4919 = vmatpush1.bf16.msra.mxu0 0
    %4920 = vmatprep.subr.bf16.mxu0 0
    %4921 = vmatpush1.bf16.msra.mxu0 0
    %4922 = vmatprep.subr.bf16.mxu0 0
    %4923 = vmatpush1.bf16.msra.mxu0 0
    %4924 = vmatprep.subr.bf16.mxu0 0
    %4925 = vmatpush1.bf16.msra.mxu0 0
    %4926 = vmatprep.subr.bf16.mxu0 %v4726
    %4927 = vmatpush1.bf16.msra.mxu0 %v4725
    %4928 = vmatprep.subr.bf16.mxu0 %v4724
    %4929 = vmatpush1.bf16.msra.mxu0 %v4723
    %4930 = vmatprep.subr.bf16.mxu0 %v4722
    %4931 = vmatpush1.bf16.msra.mxu0 %v4721
    %4932 = vmatprep.subr.bf16.mxu0 %v4720
    %4933 = vmatpush1.bf16.msra.mxu0 %v4719
    %4934 = vmatprep.subr.bf16.mxu0 0
    %4935 = vmatpush2.bf16.msra.mxu0 0
    %4936 = vmatprep.subr.bf16.mxu0 0
    %4937 = vmatpush2.bf16.msra.mxu0 0
    %4938 = vmatprep.subr.bf16.mxu0 0
    %4939 = vmatpush2.bf16.msra.mxu0 0
    %4940 = vmatprep.subr.bf16.mxu0 0
    %4941 = vmatpush2.bf16.msra.mxu0 0
    %4942 = vmatprep.subr.bf16.mxu0 0
    %4943 = vmatpush2.bf16.msra.mxu0 0
    %4944 = vmatprep.subr.bf16.mxu0 0
    %4945 = vmatpush2.bf16.msra.mxu0 0
    %4946 = vmatprep.subr.bf16.mxu0 0
    %4947 = vmatpush2.bf16.msra.mxu0 0
    %4948 = vmatprep.subr.bf16.mxu0 0
    %4949 = vmatpush2.bf16.msra.mxu0 0
    %4950 = vmatprep.mubr.bf16.mxu0 0
    %4951 = vmatmul.mubr.bf16.gmra.mxu0 %v4916
    %v4952 = vpop.f32.mrf.mxu0
    %v4953 = vadd.f32 0.0, %v4952
    %v4954 = vpop.f32.mrf.mxu0
    %v4955 = vadd.f32 0.0, %v4954
    %v4956 = vpop.f32.mrf.mxu0
    %v4957 = vpop.f32.mrf.mxu0
    %4958 = vdwg.mxu0
    %v4961 = vcombine.low %v4953, %v4955
    %v4963 = vunpack.c.l.s4 1983009808
    %v4964 = vunpack.c.0.s8 %v4963
    %v4965 = vlaneseq
    %v4966 = vshrl.u32 %v4965, 7
    %v4967 = vsub.s32 %v4964, %v4966
    %v4968 = vrot.slane %v4961, %v4967
    %v4970 = vadd.f32 %v4913, %v4968
    %v4971 = vxor.u32 %v4970, 2147483648
    %v4972 = vmul.f32 %v4971, 1.442695
    %v4973 = vpow.pop %v4972
    %v4974 = vadd.f32 %v4973, 1.0
    %v4975 = vrcp.pop %v4974
    %v4976 = vmul.f32 1.0, %v4975
    %v4978 = vrot.slane %v4970, 2
    %v4980 = vtanh.pop %v4978
    %4981 = vrot.lane.b32.xlu0 %v4970, 64
    %v4982 = vpop.permute.xlu0 %4981
    %v4983 = vrot.slane %v4982, 2
    %v4985 = vxor.u32 %v4983, 2147483648
    %v4986 = vmul.f32 %v4985, 1.442695
    %v4987 = vpow.pop %v4986
    %v4988 = vadd.f32 %v4987, 1.0
    %v4989 = vrcp.pop %v4988
    %v4990 = vmul.f32 1.0, %v4989
    %v4991 = vmul.f32 %v4976, %v4904
    %v4992 = vmul.f32 %v4976, %v4980
    %4994 = vrot.lane.b32.xlu0 %v4992, 64
    %v4995 = vpop.permute.xlu0 %4994
    %v4997 = vadd.f32 %v4991, %v4995
    %v4998 = vtanh.pop %v4997
    %5000 = vrot.lane.b32.xlu0 %v4998, 64
    %v5001 = vpop.permute.xlu0 %5000
    %v5003 = vmul.f32 %v4990, %v5001
    %s5004 = scalar_lea.vmem [#allocation3], 4
    %5005 = vst.msk [vmem:[%s5004] sm:$0x3] %vm4818, %v5003
    %v5006 = vld [vmem:[%s4686] sm:$0xf]
    %v5007 = vpack.c.bf16 %v5003, %v5003
    %v5009 = vsel %vm4728, %v5007, 0
    %5011 = vmatprep.subr.bf16.mxu0 0
    %5012 = vmatpush1.bf16.msra.mxu0 0
    %5013 = vmatprep.subr.bf16.mxu0 0
    %5014 = vmatpush1.bf16.msra.mxu0 0
    %5015 = vmatprep.subr.bf16.mxu0 0
    %5016 = vmatpush1.bf16.msra.mxu0 0
    %5017 = vmatprep.subr.bf16.mxu0 0
    %5018 = vmatpush1.bf16.msra.mxu0 0
    %5019 = vmatprep.subr.bf16.mxu0 %v4726
    %5020 = vmatpush1.bf16.msra.mxu0 %v4725
    %5021 = vmatprep.subr.bf16.mxu0 %v4724
    %5022 = vmatpush1.bf16.msra.mxu0 %v4723
    %5023 = vmatprep.subr.bf16.mxu0 %v4722
    %5024 = vmatpush1.bf16.msra.mxu0 %v4721
    %5025 = vmatprep.subr.bf16.mxu0 %v4720
    %5026 = vmatpush1.bf16.msra.mxu0 %v4719
    %5027 = vmatprep.subr.bf16.mxu0 0
    %5028 = vmatpush2.bf16.msra.mxu0 0
    %5029 = vmatprep.subr.bf16.mxu0 0
    %5030 = vmatpush2.bf16.msra.mxu0 0
    %5031 = vmatprep.subr.bf16.mxu0 0
    %5032 = vmatpush2.bf16.msra.mxu0 0
    %5033 = vmatprep.subr.bf16.mxu0 0
    %5034 = vmatpush2.bf16.msra.mxu0 0
    %5035 = vmatprep.subr.bf16.mxu0 0
    %5036 = vmatpush2.bf16.msra.mxu0 0
    %5037 = vmatprep.subr.bf16.mxu0 0
    %5038 = vmatpush2.bf16.msra.mxu0 0
    %5039 = vmatprep.subr.bf16.mxu0 0
    %5040 = vmatpush2.bf16.msra.mxu0 0
    %5041 = vmatprep.subr.bf16.mxu0 0
    %5042 = vmatpush2.bf16.msra.mxu0 0
    %5043 = vmatprep.mubr.bf16.mxu0 0
    %5044 = vmatmul.mubr.bf16.gmra.mxu0 %v5009
    %v5045 = vpop.f32.mrf.mxu0
    %v5046 = vadd.f32 0.0, %v5045
    %v5047 = vpop.f32.mrf.mxu0
    %v5048 = vadd.f32 0.0, %v5047
    %v5049 = vpop.f32.mrf.mxu0
    %v5050 = vpop.f32.mrf.mxu0
    %5051 = vdwg.mxu0
    %v5054 = vcombine.low %v5046, %v5048
    %v5056 = vunpack.c.l.s4 1983009808
    %v5057 = vunpack.c.0.s8 %v5056
    %v5058 = vlaneseq
    %v5059 = vshrl.u32 %v5058, 7
    %v5060 = vsub.s32 %v5057, %v5059
    %v5061 = vrot.slane %v5054, %v5060
    %v5063 = vadd.f32 %v5006, %v5061
    %v5064 = vxor.u32 %v5063, 2147483648
    %v5065 = vmul.f32 %v5064, 1.442695
    %v5066 = vpow.pop %v5065
    %v5067 = vadd.f32 %v5066, 1.0
    %v5068 = vrcp.pop %v5067
    %v5069 = vmul.f32 1.0, %v5068
    %v5071 = vrot.slane %v5063, 2
    %v5073 = vtanh.pop %v5071
    %5074 = vrot.lane.b32.xlu0 %v5063, 64
    %v5075 = vpop.permute.xlu0 %5074
    %v5076 = vrot.slane %v5075, 2
    %v5078 = vxor.u32 %v5076, 2147483648
    %v5079 = vmul.f32 %v5078, 1.442695
    %v5080 = vpow.pop %v5079
    %v5081 = vadd.f32 %v5080, 1.0
    %v5082 = vrcp.pop %v5081
    %v5083 = vmul.f32 1.0, %v5082
    %v5084 = vmul.f32 %v5069, %v4997
    %v5085 = vmul.f32 %v5069, %v5073
    %5087 = vrot.lane.b32.xlu0 %v5085, 64
    %v5088 = vpop.permute.xlu0 %5087
    %v5090 = vadd.f32 %v5084, %v5088
    %v5091 = vtanh.pop %v5090
    %5093 = vrot.lane.b32.xlu0 %v5091, 64
    %v5094 = vpop.permute.xlu0 %5093
    %v5096 = vmul.f32 %v5083, %v5094
    %s5097 = scalar_lea.vmem [#allocation3], 6
    %5098 = vst.msk [vmem:[%s5097] sm:$0x3] %vm4818, %v5096
    %v5099 = vld [vmem:[%s4701] sm:$0xf]
    %v5100 = vpack.c.bf16 %v5096, %v5096
    %v5102 = vsel %vm4728, %v5100, 0
    %5104 = vmatprep.subr.bf16.mxu0 0
    %5105 = vmatpush1.bf16.msra.mxu0 0
    %5106 = vmatprep.subr.bf16.mxu0 0
    %5107 = vmatpush1.bf16.msra.mxu0 0
    %5108 = vmatprep.subr.bf16.mxu0 0
    %5109 = vmatpush1.bf16.msra.mxu0 0
    %5110 = vmatprep.subr.bf16.mxu0 0
    %5111 = vmatpush1.bf16.msra.mxu0 0
    %5112 = vmatprep.subr.bf16.mxu0 %v4726
    %5113 = vmatpush1.bf16.msra.mxu0 %v4725
    %5114 = vmatprep.subr.bf16.mxu0 %v4724
    %5115 = vmatpush1.bf16.msra.mxu0 %v4723
    %5116 = vmatprep.subr.bf16.mxu0 %v4722
    %5117 = vmatpush1.bf16.msra.mxu0 %v4721
    %5118 = vmatprep.subr.bf16.mxu0 %v4720
    %5119 = vmatpush1.bf16.msra.mxu0 %v4719
    %5120 = vmatprep.subr.bf16.mxu0 0
    %5121 = vmatpush2.bf16.msra.mxu0 0
    %5122 = vmatprep.subr.bf16.mxu0 0
    %5123 = vmatpush2.bf16.msra.mxu0 0
    %5124 = vmatprep.subr.bf16.mxu0 0
    %5125 = vmatpush2.bf16.msra.mxu0 0
    %5126 = vmatprep.subr.bf16.mxu0 0
    %5127 = vmatpush2.bf16.msra.mxu0 0
    %5128 = vmatprep.subr.bf16.mxu0 0
    %5129 = vmatpush2.bf16.msra.mxu0 0
    %5130 = vmatprep.subr.bf16.mxu0 0
    %5131 = vmatpush2.bf16.msra.mxu0 0
    %5132 = vmatprep.subr.bf16.mxu0 0
    %5133 = vmatpush2.bf16.msra.mxu0 0
    %5134 = vmatprep.subr.bf16.mxu0 0
    %5135 = vmatpush2.bf16.msra.mxu0 0
    %5136 = vmatprep.mubr.bf16.mxu0 0
    %5137 = vmatmul.mubr.bf16.gmra.mxu0 %v5102
    %v5138 = vpop.f32.mrf.mxu0
    %v5139 = vadd.f32 0.0, %v5138
    %v5140 = vpop.f32.mrf.mxu0
    %v5141 = vadd.f32 0.0, %v5140
    %v5142 = vpop.f32.mrf.mxu0
    %v5143 = vpop.f32.mrf.mxu0
    %5144 = vdwg.mxu0
    %v5147 = vcombine.low %v5139, %v5141
    %v5149 = vunpack.c.l.s4 1983009808
    %v5150 = vunpack.c.0.s8 %v5149
    %v5151 = vlaneseq
    %v5152 = vshrl.u32 %v5151, 7
    %v5153 = vsub.s32 %v5150, %v5152
    %v5154 = vrot.slane %v5147, %v5153
    %v5156 = vadd.f32 %v5099, %v5154
    %v5157 = vxor.u32 %v5156, 2147483648
    %v5158 = vmul.f32 %v5157, 1.442695
    %v5159 = vpow.pop %v5158
    %v5160 = vadd.f32 %v5159, 1.0
    %v5161 = vrcp.pop %v5160
    %v5162 = vmul.f32 1.0, %v5161
    %v5164 = vrot.slane %v5156, 2
    %v5166 = vtanh.pop %v5164
    %5167 = vrot.lane.b32.xlu0 %v5156, 64
    %v5168 = vpop.permute.xlu0 %5167
    %v5169 = vrot.slane %v5168, 2
    %v5171 = vxor.u32 %v5169, 2147483648
    %v5172 = vmul.f32 %v5171, 1.442695
    %v5173 = vpow.pop %v5172
    %v5174 = vadd.f32 %v5173, 1.0
    %v5175 = vrcp.pop %v5174
    %v5176 = vmul.f32 1.0, %v5175
    %v5177 = vmul.f32 %v5162, %v5090
    %v5178 = vmul.f32 %v5162, %v5166
    %5180 = vrot.lane.b32.xlu0 %v5178, 64
    %v5181 = vpop.permute.xlu0 %5180
    %v5183 = vadd.f32 %v5177, %v5181
    %v5184 = vtanh.pop %v5183
    %5186 = vrot.lane.b32.xlu0 %v5184, 64
    %v5187 = vpop.permute.xlu0 %5186
    %v5189 = vmul.f32 %v5176, %v5187
    %s5190 = scalar_lea.vmem [#allocation3], 8
    %5191 = vst.msk [vmem:[%s5190] sm:$0x3] %vm4818, %v5189
    %v5192 = vld [vmem:[%s3553] sm:$0xf]
    %v5193 = vpack.c.bf16 %v5189, %v5189
    %v5195 = vsel %vm4728, %v5193, 0
    %5197 = vmatprep.subr.bf16.mxu0 0
    %5198 = vmatpush1.bf16.msra.mxu0 0
    %5199 = vmatprep.subr.bf16.mxu0 0
    %5200 = vmatpush1.bf16.msra.mxu0 0
    %5201 = vmatprep.subr.bf16.mxu0 0
    %5202 = vmatpush1.bf16.msra.mxu0 0
    %5203 = vmatprep.subr.bf16.mxu0 0
    %5204 = vmatpush1.bf16.msra.mxu0 0
    %5205 = vmatprep.subr.bf16.mxu0 %v4726
    %5206 = vmatpush1.bf16.msra.mxu0 %v4725
    %5207 = vmatprep.subr.bf16.mxu0 %v4724
    %5208 = vmatpush1.bf16.msra.mxu0 %v4723
    %5209 = vmatprep.subr.bf16.mxu0 %v4722
    %5210 = vmatpush1.bf16.msra.mxu0 %v4721
    %5211 = vmatprep.subr.bf16.mxu0 %v4720
    %5212 = vmatpush1.bf16.msra.mxu0 %v4719
    %5213 = vmatprep.subr.bf16.mxu0 0
    %5214 = vmatpush2.bf16.msra.mxu0 0
    %5215 = vmatprep.subr.bf16.mxu0 0
    %5216 = vmatpush2.bf16.msra.mxu0 0
    %5217 = vmatprep.subr.bf16.mxu0 0
    %5218 = vmatpush2.bf16.msra.mxu0 0
    %5219 = vmatprep.subr.bf16.mxu0 0
    %5220 = vmatpush2.bf16.msra.mxu0 0
    %5221 = vmatprep.subr.bf16.mxu0 0
    %5222 = vmatpush2.bf16.msra.mxu0 0
    %5223 = vmatprep.subr.bf16.mxu0 0
    %5224 = vmatpush2.bf16.msra.mxu0 0
    %5225 = vmatprep.subr.bf16.mxu0 0
    %5226 = vmatpush2.bf16.msra.mxu0 0
    %5227 = vmatprep.subr.bf16.mxu0 0
    %5228 = vmatpush2.bf16.msra.mxu0 0
    %5229 = vmatprep.mubr.bf16.mxu0 0
    %5230 = vmatmul.mubr.bf16.gmra.mxu0 %v5195
    %v5231 = vpop.f32.mrf.mxu0
    %v5232 = vadd.f32 0.0, %v5231
    %v5233 = vpop.f32.mrf.mxu0
    %v5234 = vadd.f32 0.0, %v5233
    %v5235 = vpop.f32.mrf.mxu0
    %v5236 = vpop.f32.mrf.mxu0
    %5237 = vdwg.mxu0
    %v5240 = vcombine.low %v5232, %v5234
    %v5242 = vunpack.c.l.s4 1983009808
    %v5243 = vunpack.c.0.s8 %v5242
    %v5244 = vlaneseq
    %v5245 = vshrl.u32 %v5244, 7
    %v5246 = vsub.s32 %v5243, %v5245
    %v5247 = vrot.slane %v5240, %v5246
    %v5249 = vadd.f32 %v5192, %v5247
    %v5250 = vxor.u32 %v5249, 2147483648
    %v5251 = vmul.f32 %v5250, 1.442695
    %v5252 = vpow.pop %v5251
    %v5253 = vadd.f32 %v5252, 1.0
    %v5254 = vrcp.pop %v5253
    %v5255 = vmul.f32 1.0, %v5254
    %v5257 = vrot.slane %v5249, 2
    %v5259 = vtanh.pop %v5257
    %5260 = vrot.lane.b32.xlu0 %v5249, 64
    %v5261 = vpop.permute.xlu0 %5260
    %v5262 = vrot.slane %v5261, 2
    %v5264 = vxor.u32 %v5262, 2147483648
    %v5265 = vmul.f32 %v5264, 1.442695
    %v5266 = vpow.pop %v5265
    %v5267 = vadd.f32 %v5266, 1.0
    %v5268 = vrcp.pop %v5267
    %v5269 = vmul.f32 1.0, %v5268
    %v5270 = vmul.f32 %v5255, %v5183
    %v5271 = vmul.f32 %v5255, %v5259
    %5273 = vrot.lane.b32.xlu0 %v5271, 64
    %v5274 = vpop.permute.xlu0 %5273
    %v5276 = vadd.f32 %v5270, %v5274
    %v5277 = vtanh.pop %v5276
    %5279 = vrot.lane.b32.xlu0 %v5277, 64
    %v5280 = vpop.permute.xlu0 %5279
    %v5282 = vmul.f32 %v5269, %v5280
    %s5283 = scalar_lea.vmem [#allocation3], 10
    %5284 = vst.msk [vmem:[%s5283] sm:$0x3] %vm4818, %v5282
    %v5285 = vld [vmem:[%s2405] sm:$0xf]
    %v5286 = vpack.c.bf16 %v5282, %v5282
    %v5288 = vsel %vm4728, %v5286, 0
    %5290 = vmatprep.subr.bf16.mxu0 0
    %5291 = vmatpush1.bf16.msra.mxu0 0
    %5292 = vmatprep.subr.bf16.mxu0 0
    %5293 = vmatpush1.bf16.msra.mxu0 0
    %5294 = vmatprep.subr.bf16.mxu0 0
    %5295 = vmatpush1.bf16.msra.mxu0 0
    %5296 = vmatprep.subr.bf16.mxu0 0
    %5297 = vmatpush1.bf16.msra.mxu0 0
    %5298 = vmatprep.subr.bf16.mxu0 %v4726
    %5299 = vmatpush1.bf16.msra.mxu0 %v4725
    %5300 = vmatprep.subr.bf16.mxu0 %v4724
    %5301 = vmatpush1.bf16.msra.mxu0 %v4723
    %5302 = vmatprep.subr.bf16.mxu0 %v4722
    %5303 = vmatpush1.bf16.msra.mxu0 %v4721
    %5304 = vmatprep.subr.bf16.mxu0 %v4720
    %5305 = vmatpush1.bf16.msra.mxu0 %v4719
    %5306 = vmatprep.subr.bf16.mxu0 0
    %5307 = vmatpush2.bf16.msra.mxu0 0
    %5308 = vmatprep.subr.bf16.mxu0 0
    %5309 = vmatpush2.bf16.msra.mxu0 0
    %5310 = vmatprep.subr.bf16.mxu0 0
    %5311 = vmatpush2.bf16.msra.mxu0 0
    %5312 = vmatprep.subr.bf16.mxu0 0
    %5313 = vmatpush2.bf16.msra.mxu0 0
    %5314 = vmatprep.subr.bf16.mxu0 0
    %5315 = vmatpush2.bf16.msra.mxu0 0
    %5316 = vmatprep.subr.bf16.mxu0 0
    %5317 = vmatpush2.bf16.msra.mxu0 0
    %5318 = vmatprep.subr.bf16.mxu0 0
    %5319 = vmatpush2.bf16.msra.mxu0 0
    %5320 = vmatprep.subr.bf16.mxu0 0
    %5321 = vmatpush2.bf16.msra.mxu0 0
    %5322 = vmatprep.mubr.bf16.mxu0 0
    %5323 = vmatmul.mubr.bf16.gmra.mxu0 %v5288
    %v5324 = vpop.f32.mrf.mxu0
    %v5325 = vadd.f32 0.0, %v5324
    %v5326 = vpop.f32.mrf.mxu0
    %v5327 = vadd.f32 0.0, %v5326
    %v5328 = vpop.f32.mrf.mxu0
    %v5329 = vpop.f32.mrf.mxu0
    %5330 = vdwg.mxu0
    %v5333 = vcombine.low %v5325, %v5327
    %v5335 = vunpack.c.l.s4 1983009808
    %v5336 = vunpack.c.0.s8 %v5335
    %v5337 = vlaneseq
    %v5338 = vshrl.u32 %v5337, 7
    %v5339 = vsub.s32 %v5336, %v5338
    %v5340 = vrot.slane %v5333, %v5339
    %v5342 = vadd.f32 %v5285, %v5340
    %v5343 = vxor.u32 %v5342, 2147483648
    %v5344 = vmul.f32 %v5343, 1.442695
    %v5345 = vpow.pop %v5344
    %v5346 = vadd.f32 %v5345, 1.0
    %v5347 = vrcp.pop %v5346
    %v5348 = vmul.f32 1.0, %v5347
    %v5350 = vrot.slane %v5342, 2
    %v5352 = vtanh.pop %v5350
    %5353 = vrot.lane.b32.xlu0 %v5342, 64
    %v5354 = vpop.permute.xlu0 %5353
    %v5355 = vrot.slane %v5354, 2
    %v5357 = vxor.u32 %v5355, 2147483648
    %v5358 = vmul.f32 %v5357, 1.442695
    %v5359 = vpow.pop %v5358
    %v5360 = vadd.f32 %v5359, 1.0
    %v5361 = vrcp.pop %v5360
    %v5362 = vmul.f32 1.0, %v5361
    %v5363 = vmul.f32 %v5348, %v5276
    %v5364 = vmul.f32 %v5348, %v5352
    %5366 = vrot.lane.b32.xlu0 %v5364, 64
    %v5367 = vpop.permute.xlu0 %5366
    %v5369 = vadd.f32 %v5363, %v5367
    %v5370 = vtanh.pop %v5369
    %5372 = vrot.lane.b32.xlu0 %v5370, 64
    %v5373 = vpop.permute.xlu0 %5372
    %v5375 = vmul.f32 %v5362, %v5373
    %s5376 = scalar_lea.vmem [#allocation3], 12
    %5377 = vst.msk [vmem:[%s5376] sm:$0x3] %vm4818, %v5375
    %v5378 = vld [vmem:[%s1257] sm:$0xf]
    %v5379 = vpack.c.bf16 %v5375, %v5375
    %v5381 = vsel %vm4728, %v5379, 0
    %5383 = vmatprep.subr.bf16.mxu0 0
    %5384 = vmatpush1.bf16.msra.mxu0 0
    %5385 = vmatprep.subr.bf16.mxu0 0
    %5386 = vmatpush1.bf16.msra.mxu0 0
    %5387 = vmatprep.subr.bf16.mxu0 0
    %5388 = vmatpush1.bf16.msra.mxu0 0
    %5389 = vmatprep.subr.bf16.mxu0 0
    %5390 = vmatpush1.bf16.msra.mxu0 0
    %5391 = vmatprep.subr.bf16.mxu0 %v4726
    %5392 = vmatpush1.bf16.msra.mxu0 %v4725
    %5393 = vmatprep.subr.bf16.mxu0 %v4724
    %5394 = vmatpush1.bf16.msra.mxu0 %v4723
    %5395 = vmatprep.subr.bf16.mxu0 %v4722
    %5396 = vmatpush1.bf16.msra.mxu0 %v4721
    %5397 = vmatprep.subr.bf16.mxu0 %v4720
    %5398 = vmatpush1.bf16.msra.mxu0 %v4719
    %5399 = vmatprep.subr.bf16.mxu0 0
    %5400 = vmatpush2.bf16.msra.mxu0 0
    %5401 = vmatprep.subr.bf16.mxu0 0
    %5402 = vmatpush2.bf16.msra.mxu0 0
    %5403 = vmatprep.subr.bf16.mxu0 0
    %5404 = vmatpush2.bf16.msra.mxu0 0
    %5405 = vmatprep.subr.bf16.mxu0 0
    %5406 = vmatpush2.bf16.msra.mxu0 0
    %5407 = vmatprep.subr.bf16.mxu0 0
    %5408 = vmatpush2.bf16.msra.mxu0 0
    %5409 = vmatprep.subr.bf16.mxu0 0
    %5410 = vmatpush2.bf16.msra.mxu0 0
    %5411 = vmatprep.subr.bf16.mxu0 0
    %5412 = vmatpush2.bf16.msra.mxu0 0
    %5413 = vmatprep.subr.bf16.mxu0 0
    %5414 = vmatpush2.bf16.msra.mxu0 0
    %5415 = vmatprep.mubr.bf16.mxu0 0
    %5416 = vmatmul.mubr.bf16.gmra.mxu0 %v5381
    %v5417 = vpop.f32.mrf.mxu0
    %v5418 = vadd.f32 0.0, %v5417
    %v5419 = vpop.f32.mrf.mxu0
    %v5420 = vadd.f32 0.0, %v5419
    %v5421 = vpop.f32.mrf.mxu0
    %v5422 = vpop.f32.mrf.mxu0
    %5423 = vdwg.mxu0
    %v5426 = vcombine.low %v5418, %v5420
    %v5428 = vunpack.c.l.s4 1983009808
    %v5429 = vunpack.c.0.s8 %v5428
    %v5430 = vlaneseq
    %v5431 = vshrl.u32 %v5430, 7
    %v5432 = vsub.s32 %v5429, %v5431
    %v5433 = vrot.slane %v5426, %v5432
    %v5435 = vadd.f32 %v5378, %v5433
    %v5436 = vxor.u32 %v5435, 2147483648
    %v5437 = vmul.f32 %v5436, 1.442695
    %v5438 = vpow.pop %v5437
    %v5439 = vadd.f32 %v5438, 1.0
    %v5440 = vrcp.pop %v5439
    %v5441 = vmul.f32 1.0, %v5440
    %v5443 = vrot.slane %v5435, 2
    %v5445 = vtanh.pop %v5443
    %5446 = vrot.lane.b32.xlu0 %v5435, 64
    %v5447 = vpop.permute.xlu0 %5446
    %v5448 = vrot.slane %v5447, 2
    %v5450 = vxor.u32 %v5448, 2147483648
    %v5451 = vmul.f32 %v5450, 1.442695
    %v5452 = vpow.pop %v5451
    %v5453 = vadd.f32 %v5452, 1.0
    %v5454 = vrcp.pop %v5453
    %v5455 = vmul.f32 1.0, %v5454
    %v5456 = vmul.f32 %v5441, %v5369
    %v5457 = vmul.f32 %v5441, %v5445
    %5459 = vrot.lane.b32.xlu0 %v5457, 64
    %v5460 = vpop.permute.xlu0 %5459
    %v5462 = vadd.f32 %v5456, %v5460
    %v5463 = vtanh.pop %v5462
    %5465 = vrot.lane.b32.xlu0 %v5463, 64
    %v5466 = vpop.permute.xlu0 %5465
    %v5468 = vmul.f32 %v5455, %v5466
    %s5469 = scalar_lea.vmem [#allocation3], 14
    %5470 = vst.msk [vmem:[%s5469] sm:$0x3] %vm4818, %v5468
    %vm5471 = vcmp.lt.s32.totalorder %v71, 32
    %v5472 = vld [vmem:[#allocation3] sm:$0x3]
    %v5473 = vld [vmem:[%s5469] sm:$0x3]
    %v5474 = vsel %vm5471, %v5472, %v5473
    %v5476 = vrot.slane %v5474, 1
    %5477 = vrot.lane.b32.xlu0 %v5476, 64
    %v5478 = vpop.permute.xlu0 %5477
    %v5480 = vsel %vm4728, %v5474, %v5478
    %v5481 = vld [vmem:[%s4911] sm:$0x3]
    %v5482 = vld [vmem:[%s5376] sm:$0x3]
    %v5483 = vsel %vm5471, %v5481, %v5482
    %v5485 = vrot.slane %v5483, 1
    %5486 = vrot.lane.b32.xlu0 %v5485, 64
    %v5487 = vpop.permute.xlu0 %5486
    %v5489 = vsel %vm4728, %v5483, %v5487
    %v5490 = vld [vmem:[%s5004] sm:$0x3]
    %v5491 = vld [vmem:[%s5283] sm:$0x3]
    %v5492 = vsel %vm5471, %v5490, %v5491
    %v5494 = vrot.slane %v5492, 1
    %5495 = vrot.lane.b32.xlu0 %v5494, 64
    %v5496 = vpop.permute.xlu0 %5495
    %v5498 = vsel %vm4728, %v5492, %v5496
    %v5499 = vld [vmem:[%s5097] sm:$0x3]
    %v5500 = vld [vmem:[%s5190] sm:$0x3]
    %v5501 = vsel %vm5471, %v5499, %v5500
    %v5503 = vrot.slane %v5501, 1
    %5504 = vrot.lane.b32.xlu0 %v5503, 64
    %v5505 = vpop.permute.xlu0 %5504
    %v5507 = vsel %vm4728, %v5501, %v5505
    %v5508 = vsel %vm5471, %v5500, %v5499
    %v5510 = vrot.slane %v5508, 1
    %5511 = vrot.lane.b32.xlu0 %v5510, 64
    %v5512 = vpop.permute.xlu0 %5511
    %v5514 = vsel %vm4728, %v5508, %v5512
    %v5515 = vsel %vm5471, %v5491, %v5490
    %v5517 = vrot.slane %v5515, 1
    %5518 = vrot.lane.b32.xlu0 %v5517, 64
    %v5519 = vpop.permute.xlu0 %5518
    %v5521 = vsel %vm4728, %v5515, %v5519
    %v5522 = vsel %vm5471, %v5482, %v5481
    %v5524 = vrot.slane %v5522, 1
    %5525 = vrot.lane.b32.xlu0 %v5524, 64
    %v5526 = vpop.permute.xlu0 %5525
    %v5528 = vsel %vm4728, %v5522, %v5526
    %v5529 = vsel %vm5471, %v5473, %v5472
    %v5531 = vrot.slane %v5529, 1
    %5532 = vrot.lane.b32.xlu0 %v5531, 64
    %v5533 = vpop.permute.xlu0 %5532
    %v5535 = vsel %vm4728, %v5529, %v5533
    %v5537 = vrot.slane %v5489, 7
    %v5540 = vrot.slane %v5498, 6
    %v5543 = vrot.slane %v5507, 5
    %v5546 = vrot.slane %v5514, 4
    %v5549 = vrot.slane %v5521, 3
    %v5552 = vrot.slane %v5528, 2
    %v5555 = vrot.slane %v5535, 1
    %v5557 = vsel %vm111, %v5480, %v5537
    %vm5558 = vcmask 1041408
    %v5559 = vsel %vm5558, %v5557, %v5540
    %vm5560 = vcmask 1042432
    %v5561 = vsel %vm5560, %v5559, %v5543
    %vm5562 = vcmask 1043456
    %v5563 = vsel %vm5562, %v5561, %v5546
    %vm5564 = vcmask 1044480
    %v5565 = vsel %vm5564, %v5563, %v5549
    %vm5566 = vcmask 1045504
    %v5567 = vsel %vm5566, %v5565, %v5552
    %vm5568 = vcmask 1046528
    %v5569 = vsel %vm5568, %v5567, %v5555
    %5570 = vst [vmem:[%s7] sm:$0xff] %v5569
    %v5572 = vcombine.low %v5468, %v5468
    %v5574 = vunpack.c.l.s4 1983009808
    %v5575 = vunpack.c.0.s8 %v5574
    %v5576 = vlaneseq
    %v5577 = vshrl.u32 %v5576, 7
    %v5578 = vsub.s32 %v5575, %v5577
    %v5579 = vrot.slane %v5572, %v5578
    %5580 = vrot.lane.b32.xlu0 %v5579, 96
    %v5581 = vpop.permute.xlu0 %5580
    %v5585 = vunpack.c.l.s4 1983009808
    %v5586 = vunpack.c.0.s8 %v5585
    %v5587 = vlaneseq
    %v5588 = vshrl.u32 %v5587, 7
    %v5589 = vsub.s32 %v5586, %v5588
    %v5590 = vrot.slane %v5462, %v5589
    %v5591 = vcombine.low %v5590, %v5590
    %5592 = vrot.lane.b32.xlu0 %v5591, 64
    %v5593 = vpop.permute.xlu0 %5592
    %v5595 = vcombine.low %v5462, %v5462
    %v5597 = vunpack.c.l.s4 1983009808
    %v5598 = vunpack.c.0.s8 %v5597
    %v5599 = vlaneseq
    %v5600 = vshrl.u32 %v5599, 7
    %v5601 = vsub.s32 %v5598, %v5600
    %v5602 = vrot.slane %v5595, %v5601
    %v5603 = vcombine.low %v5602, %v5602
    %5604 = vrot.lane.b32.xlu0 %v5603, 32
    %v5605 = vpop.permute.xlu0 %5604
    %v5607 = vsel %vm5558, %v5468, %v5581
    %v5608 = vsel %vm5562, %v5607, %v5593
    %v5609 = vsel %vm5566, %v5608, %v5605
    %v5610 = vmax.f32 %v5609, 0.0
    %v5611 = vld [vmem:[#allocation8] sm:$0xff]
    %v5612 = vld [vmem:[#allocation8 + $0x8] sm:$0xff]
    %v5613 = vld [vmem:[#allocation8 + $0x10] sm:$0xff]
    %v5614 = vld [vmem:[#allocation8 + $0x18] sm:$0xff]
    %v5615 = vld [vmem:[%s6] sm:$0x1]
    %v5617 = vlaneseq
    %v5618 = vshrl.u32 %v5617, 7
    %v5619 = vsub.s32 0, %v5618
    %v5620 = vrot.slane %v5615, %v5619
    %v5623 = vsel %vm124, %v5610, 0
    %5625 = vmatprep.subr.mxu0 0.0
    %5626 = vmatpush1.msra.mxu0 0.0
    %5627 = vmatprep.subr.mxu0 0.0
    %5628 = vmatpush1.msra.mxu0 0.0
    %5629 = vmatprep.subr.mxu0 0.0
    %5630 = vmatpush1.msra.mxu0 0.0
    %5631 = vmatprep.subr.mxu0 0.0
    %5632 = vmatpush1.msra.mxu0 0.0
    %5633 = vmatprep.subr.mxu0 0.0
    %5634 = vmatpush1.msra.mxu0 0.0
    %5635 = vmatprep.subr.mxu0 0.0
    %5636 = vmatpush1.msra.mxu0 0.0
    %5637 = vmatprep.subr.mxu0 0.0
    %5638 = vmatpush1.msra.mxu0 0.0
    %5639 = vmatprep.subr.mxu0 0.0
    %5640 = vmatpush1.msra.mxu0 0.0
    %5641 = vmatprep.subr.mxu0 0.0
    %5642 = vmatpush1.msra.mxu0 0.0
    %5643 = vmatprep.subr.mxu0 0.0
    %5644 = vmatpush1.msra.mxu0 0.0
    %5645 = vmatprep.subr.mxu0 0.0
    %5646 = vmatpush1.msra.mxu0 0.0
    %5647 = vmatprep.subr.mxu0 0.0
    %5648 = vmatpush1.msra.mxu0 0.0
    %5649 = vmatprep.subr.mxu0 0.0
    %v5650 = vand.u32 %v5614, 4294901760
    %5651 = vmatpush1.msra.mxu0 %v5650
    %5652 = vmatprep.subr.mxu0 0.0
    %v5653 = vand.u32 %v5613, 4294901760
    %5654 = vmatpush1.msra.mxu0 %v5653
    %5655 = vmatprep.subr.mxu0 0.0
    %v5656 = vand.u32 %v5612, 4294901760
    %5657 = vmatpush1.msra.mxu0 %v5656
    %5658 = vmatprep.subr.mxu0 0.0
    %v5659 = vand.u32 %v5611, 4294901760
    %5660 = vmatpush1.msra.mxu0 %v5659
    %5661 = vmatprep.subr.mxu0 0.0
    %5662 = vmatpush2.msra.mxu0 0.0
    %5663 = vmatprep.subr.mxu0 0.0
    %5664 = vmatpush2.msra.mxu0 0.0
    %5665 = vmatprep.subr.mxu0 0.0
    %5666 = vmatpush2.msra.mxu0 0.0
    %5667 = vmatprep.subr.mxu0 0.0
    %5668 = vmatpush2.msra.mxu0 0.0
    %5669 = vmatprep.subr.mxu0 0.0
    %5670 = vmatpush2.msra.mxu0 0.0
    %5671 = vmatprep.subr.mxu0 0.0
    %5672 = vmatpush2.msra.mxu0 0.0
    %5673 = vmatprep.subr.mxu0 0.0
    %5674 = vmatpush2.msra.mxu0 0.0
    %5675 = vmatprep.subr.mxu0 0.0
    %5676 = vmatpush2.msra.mxu0 0.0
    %5677 = vmatprep.subr.mxu0 0.0
    %5678 = vmatpush2.msra.mxu0 0.0
    %5679 = vmatprep.subr.mxu0 0.0
    %5680 = vmatpush2.msra.mxu0 0.0
    %5681 = vmatprep.subr.mxu0 0.0
    %5682 = vmatpush2.msra.mxu0 0.0
    %5683 = vmatprep.subr.mxu0 0.0
    %5684 = vmatpush2.msra.mxu0 0.0
    %5685 = vmatprep.subr.mxu0 0.0
    %5686 = vmatpush2.msra.mxu0 0.0
    %5687 = vmatprep.subr.mxu0 0.0
    %5688 = vmatpush2.msra.mxu0 0.0
    %5689 = vmatprep.subr.mxu0 0.0
    %5690 = vmatpush2.msra.mxu0 0.0
    %5691 = vmatprep.subr.mxu0 0.0
    %5692 = vmatpush2.msra.mxu0 0.0
    %5693 = vmatprep.mubr.f32.mxu0 0.0
    %v5694 = vand.u32 %v5623, 4294901760
    %v5695 = vsub.f32 %v5623, %v5694
    %v5696 = vand.u32 %v5695, 4294901760
    %v5697 = vsub.f32 %v5695, %v5696
    %v5698 = vand.u32 %v5697, 4294901760
    %5699 = vmatmul.mubr.f32.gmra.mxu0 %v5698
    %v5700 = vpop.f32.mrf.mxu0
    %v5701 = vadd.f32 %v5620, %v5700
    %v5702 = vpop.f32.mrf.mxu0
    %5703 = vdwg.mxu0
    %5704 = vmatprep.subr.mxu0 0.0
    %5705 = vmatpush1.msra.mxu0 0.0
    %5706 = vmatprep.subr.mxu0 0.0
    %5707 = vmatpush1.msra.mxu0 0.0
    %5708 = vmatprep.subr.mxu0 0.0
    %5709 = vmatpush1.msra.mxu0 0.0
    %5710 = vmatprep.subr.mxu0 0.0
    %5711 = vmatpush1.msra.mxu0 0.0
    %5712 = vmatprep.subr.mxu0 0.0
    %5713 = vmatpush1.msra.mxu0 0.0
    %5714 = vmatprep.subr.mxu0 0.0
    %5715 = vmatpush1.msra.mxu0 0.0
    %5716 = vmatprep.subr.mxu0 0.0
    %5717 = vmatpush1.msra.mxu0 0.0
    %5718 = vmatprep.subr.mxu0 0.0
    %5719 = vmatpush1.msra.mxu0 0.0
    %5720 = vmatprep.subr.mxu0 0.0
    %5721 = vmatpush1.msra.mxu0 0.0
    %5722 = vmatprep.subr.mxu0 0.0
    %5723 = vmatpush1.msra.mxu0 0.0
    %5724 = vmatprep.subr.mxu0 0.0
    %5725 = vmatpush1.msra.mxu0 0.0
    %5726 = vmatprep.subr.mxu0 0.0
    %5727 = vmatpush1.msra.mxu0 0.0
    %5728 = vmatprep.subr.mxu0 0.0
    %v5729 = vand.u32 %v5614, 4294901760
    %v5730 = vsub.f32 %v5614, %v5729
    %v5731 = vand.u32 %v5730, 4294901760
    %v5732 = vsub.f32 %v5730, %v5731
    %v5733 = vand.u32 %v5732, 4294901760
    %5734 = vmatpush1.msra.mxu0 %v5733
    %5735 = vmatprep.subr.mxu0 0.0
    %v5736 = vand.u32 %v5613, 4294901760
    %v5737 = vsub.f32 %v5613, %v5736
    %v5738 = vand.u32 %v5737, 4294901760
    %v5739 = vsub.f32 %v5737, %v5738
    %v5740 = vand.u32 %v5739, 4294901760
    %5741 = vmatpush1.msra.mxu0 %v5740
    %5742 = vmatprep.subr.mxu0 0.0
    %v5743 = vand.u32 %v5612, 4294901760
    %v5744 = vsub.f32 %v5612, %v5743
    %v5745 = vand.u32 %v5744, 4294901760
    %v5746 = vsub.f32 %v5744, %v5745
    %v5747 = vand.u32 %v5746, 4294901760
    %5748 = vmatpush1.msra.mxu0 %v5747
    %5749 = vmatprep.subr.mxu0 0.0
    %v5750 = vand.u32 %v5611, 4294901760
    %v5751 = vsub.f32 %v5611, %v5750
    %v5752 = vand.u32 %v5751, 4294901760
    %v5753 = vsub.f32 %v5751, %v5752
    %v5754 = vand.u32 %v5753, 4294901760
    %5755 = vmatpush1.msra.mxu0 %v5754
    %5756 = vmatprep.subr.mxu0 0.0
    %5757 = vmatpush2.msra.mxu0 0.0
    %5758 = vmatprep.subr.mxu0 0.0
    %5759 = vmatpush2.msra.mxu0 0.0
    %5760 = vmatprep.subr.mxu0 0.0
    %5761 = vmatpush2.msra.mxu0 0.0
    %5762 = vmatprep.subr.mxu0 0.0
    %5763 = vmatpush2.msra.mxu0 0.0
    %5764 = vmatprep.subr.mxu0 0.0
    %5765 = vmatpush2.msra.mxu0 0.0
    %5766 = vmatprep.subr.mxu0 0.0
    %5767 = vmatpush2.msra.mxu0 0.0
    %5768 = vmatprep.subr.mxu0 0.0
    %5769 = vmatpush2.msra.mxu0 0.0
    %5770 = vmatprep.subr.mxu0 0.0
    %5771 = vmatpush2.msra.mxu0 0.0
    %5772 = vmatprep.subr.mxu0 0.0
    %5773 = vmatpush2.msra.mxu0 0.0
    %5774 = vmatprep.subr.mxu0 0.0
    %5775 = vmatpush2.msra.mxu0 0.0
    %5776 = vmatprep.subr.mxu0 0.0
    %5777 = vmatpush2.msra.mxu0 0.0
    %5778 = vmatprep.subr.mxu0 0.0
    %5779 = vmatpush2.msra.mxu0 0.0
    %5780 = vmatprep.subr.mxu0 0.0
    %5781 = vmatpush2.msra.mxu0 0.0
    %5782 = vmatprep.subr.mxu0 0.0
    %5783 = vmatpush2.msra.mxu0 0.0
    %5784 = vmatprep.subr.mxu0 0.0
    %5785 = vmatpush2.msra.mxu0 0.0
    %5786 = vmatprep.subr.mxu0 0.0
    %5787 = vmatpush2.msra.mxu0 0.0
    %5788 = vmatprep.mubr.f32.mxu0 0.0
    %v5789 = vand.u32 %v5623, 4294901760
    %5790 = vmatmul.mubr.f32.gmra.mxu0 %v5789
    %v5791 = vpop.f32.mrf.mxu0
    %v5792 = vadd.f32 %v5701, %v5791
    %v5793 = vpop.f32.mrf.mxu0
    %5794 = vdwg.mxu0
    %5795 = vmatprep.subr.mxu0 0.0
    %5796 = vmatpush1.msra.mxu0 0.0
    %5797 = vmatprep.subr.mxu0 0.0
    %5798 = vmatpush1.msra.mxu0 0.0
    %5799 = vmatprep.subr.mxu0 0.0
    %5800 = vmatpush1.msra.mxu0 0.0
    %5801 = vmatprep.subr.mxu0 0.0
    %5802 = vmatpush1.msra.mxu0 0.0
    %5803 = vmatprep.subr.mxu0 0.0
    %5804 = vmatpush1.msra.mxu0 0.0
    %5805 = vmatprep.subr.mxu0 0.0
    %5806 = vmatpush1.msra.mxu0 0.0
    %5807 = vmatprep.subr.mxu0 0.0
    %5808 = vmatpush1.msra.mxu0 0.0
    %5809 = vmatprep.subr.mxu0 0.0
    %5810 = vmatpush1.msra.mxu0 0.0
    %5811 = vmatprep.subr.mxu0 0.0
    %5812 = vmatpush1.msra.mxu0 0.0
    %5813 = vmatprep.subr.mxu0 0.0
    %5814 = vmatpush1.msra.mxu0 0.0
    %5815 = vmatprep.subr.mxu0 0.0
    %5816 = vmatpush1.msra.mxu0 0.0
    %5817 = vmatprep.subr.mxu0 0.0
    %5818 = vmatpush1.msra.mxu0 0.0
    %5819 = vmatprep.subr.mxu0 0.0
    %v5820 = vand.u32 %v5614, 4294901760
    %v5821 = vsub.f32 %v5614, %v5820
    %5822 = vmatpush1.msra.mxu0 %v5821
    %5823 = vmatprep.subr.mxu0 0.0
    %v5824 = vand.u32 %v5613, 4294901760
    %v5825 = vsub.f32 %v5613, %v5824
    %5826 = vmatpush1.msra.mxu0 %v5825
    %5827 = vmatprep.subr.mxu0 0.0
    %v5828 = vand.u32 %v5612, 4294901760
    %v5829 = vsub.f32 %v5612, %v5828
    %5830 = vmatpush1.msra.mxu0 %v5829
    %5831 = vmatprep.subr.mxu0 0.0
    %v5832 = vand.u32 %v5611, 4294901760
    %v5833 = vsub.f32 %v5611, %v5832
    %5834 = vmatpush1.msra.mxu0 %v5833
    %5835 = vmatprep.subr.mxu0 0.0
    %5836 = vmatpush2.msra.mxu0 0.0
    %5837 = vmatprep.subr.mxu0 0.0
    %5838 = vmatpush2.msra.mxu0 0.0
    %5839 = vmatprep.subr.mxu0 0.0
    %5840 = vmatpush2.msra.mxu0 0.0
    %5841 = vmatprep.subr.mxu0 0.0
    %5842 = vmatpush2.msra.mxu0 0.0
    %5843 = vmatprep.subr.mxu0 0.0
    %5844 = vmatpush2.msra.mxu0 0.0
    %5845 = vmatprep.subr.mxu0 0.0
    %5846 = vmatpush2.msra.mxu0 0.0
    %5847 = vmatprep.subr.mxu0 0.0
    %5848 = vmatpush2.msra.mxu0 0.0
    %5849 = vmatprep.subr.mxu0 0.0
    %5850 = vmatpush2.msra.mxu0 0.0
    %5851 = vmatprep.subr.mxu0 0.0
    %5852 = vmatpush2.msra.mxu0 0.0
    %5853 = vmatprep.subr.mxu0 0.0
    %5854 = vmatpush2.msra.mxu0 0.0
    %5855 = vmatprep.subr.mxu0 0.0
    %5856 = vmatpush2.msra.mxu0 0.0
    %5857 = vmatprep.subr.mxu0 0.0
    %5858 = vmatpush2.msra.mxu0 0.0
    %5859 = vmatprep.subr.mxu0 0.0
    %5860 = vmatpush2.msra.mxu0 0.0
    %5861 = vmatprep.subr.mxu0 0.0
    %5862 = vmatpush2.msra.mxu0 0.0
    %5863 = vmatprep.subr.mxu0 0.0
    %5864 = vmatpush2.msra.mxu0 0.0
    %5865 = vmatprep.subr.mxu0 0.0
    %5866 = vmatpush2.msra.mxu0 0.0
    %5867 = vmatprep.mubr.f32.mxu0 0.0
    %v5868 = vand.u32 %v5623, 4294901760
    %v5869 = vsub.f32 %v5623, %v5868
    %5870 = vmatmul.mubr.f32.gmra.mxu0 %v5869
    %v5871 = vpop.f32.mrf.mxu0
    %v5872 = vadd.f32 %v5792, %v5871
    %v5873 = vpop.f32.mrf.mxu0
    %5874 = vdwg.mxu0
    %5875 = vmatprep.subr.mxu0 0.0
    %5876 = vmatpush1.msra.mxu0 0.0
    %5877 = vmatprep.subr.mxu0 0.0
    %5878 = vmatpush1.msra.mxu0 0.0
    %5879 = vmatprep.subr.mxu0 0.0
    %5880 = vmatpush1.msra.mxu0 0.0
    %5881 = vmatprep.subr.mxu0 0.0
    %5882 = vmatpush1.msra.mxu0 0.0
    %5883 = vmatprep.subr.mxu0 0.0
    %5884 = vmatpush1.msra.mxu0 0.0
    %5885 = vmatprep.subr.mxu0 0.0
    %5886 = vmatpush1.msra.mxu0 0.0
    %5887 = vmatprep.subr.mxu0 0.0
    %5888 = vmatpush1.msra.mxu0 0.0
    %5889 = vmatprep.subr.mxu0 0.0
    %5890 = vmatpush1.msra.mxu0 0.0
    %5891 = vmatprep.subr.mxu0 0.0
    %5892 = vmatpush1.msra.mxu0 0.0
    %5893 = vmatprep.subr.mxu0 0.0
    %5894 = vmatpush1.msra.mxu0 0.0
    %5895 = vmatprep.subr.mxu0 0.0
    %5896 = vmatpush1.msra.mxu0 0.0
    %5897 = vmatprep.subr.mxu0 0.0
    %5898 = vmatpush1.msra.mxu0 0.0
    %5899 = vmatprep.subr.mxu0 0.0
    %v5900 = vand.u32 %v5614, 4294901760
    %5901 = vmatpush1.msra.mxu0 %v5900
    %5902 = vmatprep.subr.mxu0 0.0
    %v5903 = vand.u32 %v5613, 4294901760
    %5904 = vmatpush1.msra.mxu0 %v5903
    %5905 = vmatprep.subr.mxu0 0.0
    %v5906 = vand.u32 %v5612, 4294901760
    %5907 = vmatpush1.msra.mxu0 %v5906
    %5908 = vmatprep.subr.mxu0 0.0
    %v5909 = vand.u32 %v5611, 4294901760
    %5910 = vmatpush1.msra.mxu0 %v5909
    %5911 = vmatprep.subr.mxu0 0.0
    %5912 = vmatpush2.msra.mxu0 0.0
    %5913 = vmatprep.subr.mxu0 0.0
    %5914 = vmatpush2.msra.mxu0 0.0
    %5915 = vmatprep.subr.mxu0 0.0
    %5916 = vmatpush2.msra.mxu0 0.0
    %5917 = vmatprep.subr.mxu0 0.0
    %5918 = vmatpush2.msra.mxu0 0.0
    %5919 = vmatprep.subr.mxu0 0.0
    %5920 = vmatpush2.msra.mxu0 0.0
    %5921 = vmatprep.subr.mxu0 0.0
    %5922 = vmatpush2.msra.mxu0 0.0
    %5923 = vmatprep.subr.mxu0 0.0
    %5924 = vmatpush2.msra.mxu0 0.0
    %5925 = vmatprep.subr.mxu0 0.0
    %5926 = vmatpush2.msra.mxu0 0.0
    %5927 = vmatprep.subr.mxu0 0.0
    %5928 = vmatpush2.msra.mxu0 0.0
    %5929 = vmatprep.subr.mxu0 0.0
    %5930 = vmatpush2.msra.mxu0 0.0
    %5931 = vmatprep.subr.mxu0 0.0
    %5932 = vmatpush2.msra.mxu0 0.0
    %5933 = vmatprep.subr.mxu0 0.0
    %5934 = vmatpush2.msra.mxu0 0.0
    %5935 = vmatprep.subr.mxu0 0.0
    %5936 = vmatpush2.msra.mxu0 0.0
    %5937 = vmatprep.subr.mxu0 0.0
    %5938 = vmatpush2.msra.mxu0 0.0
    %5939 = vmatprep.subr.mxu0 0.0
    %5940 = vmatpush2.msra.mxu0 0.0
    %5941 = vmatprep.subr.mxu0 0.0
    %5942 = vmatpush2.msra.mxu0 0.0
    %5943 = vmatprep.mubr.f32.mxu0 0.0
    %v5944 = vand.u32 %v5623, 4294901760
    %v5945 = vsub.f32 %v5623, %v5944
    %v5946 = vand.u32 %v5945, 4294901760
    %5947 = vmatmul.mubr.f32.gmra.mxu0 %v5946
    %v5948 = vpop.f32.mrf.mxu0
    %v5949 = vadd.f32 %v5872, %v5948
    %v5950 = vpop.f32.mrf.mxu0
    %5951 = vdwg.mxu0
    %5952 = vmatprep.subr.mxu0 0.0
    %5953 = vmatpush1.msra.mxu0 0.0
    %5954 = vmatprep.subr.mxu0 0.0
    %5955 = vmatpush1.msra.mxu0 0.0
    %5956 = vmatprep.subr.mxu0 0.0
    %5957 = vmatpush1.msra.mxu0 0.0
    %5958 = vmatprep.subr.mxu0 0.0
    %5959 = vmatpush1.msra.mxu0 0.0
    %5960 = vmatprep.subr.mxu0 0.0
    %5961 = vmatpush1.msra.mxu0 0.0
    %5962 = vmatprep.subr.mxu0 0.0
    %5963 = vmatpush1.msra.mxu0 0.0
    %5964 = vmatprep.subr.mxu0 0.0
    %5965 = vmatpush1.msra.mxu0 0.0
    %5966 = vmatprep.subr.mxu0 0.0
    %5967 = vmatpush1.msra.mxu0 0.0
    %5968 = vmatprep.subr.mxu0 0.0
    %5969 = vmatpush1.msra.mxu0 0.0
    %5970 = vmatprep.subr.mxu0 0.0
    %5971 = vmatpush1.msra.mxu0 0.0
    %5972 = vmatprep.subr.mxu0 0.0
    %5973 = vmatpush1.msra.mxu0 0.0
    %5974 = vmatprep.subr.mxu0 0.0
    %5975 = vmatpush1.msra.mxu0 0.0
    %5976 = vmatprep.subr.mxu0 0.0
    %v5977 = vand.u32 %v5614, 4294901760
    %v5978 = vsub.f32 %v5614, %v5977
    %v5979 = vand.u32 %v5978, 4294901760
    %5980 = vmatpush1.msra.mxu0 %v5979
    %5981 = vmatprep.subr.mxu0 0.0
    %v5982 = vand.u32 %v5613, 4294901760
    %v5983 = vsub.f32 %v5613, %v5982
    %v5984 = vand.u32 %v5983, 4294901760
    %5985 = vmatpush1.msra.mxu0 %v5984
    %5986 = vmatprep.subr.mxu0 0.0
    %v5987 = vand.u32 %v5612, 4294901760
    %v5988 = vsub.f32 %v5612, %v5987
    %v5989 = vand.u32 %v5988, 4294901760
    %5990 = vmatpush1.msra.mxu0 %v5989
    %5991 = vmatprep.subr.mxu0 0.0
    %v5992 = vand.u32 %v5611, 4294901760
    %v5993 = vsub.f32 %v5611, %v5992
    %v5994 = vand.u32 %v5993, 4294901760
    %5995 = vmatpush1.msra.mxu0 %v5994
    %5996 = vmatprep.subr.mxu0 0.0
    %5997 = vmatpush2.msra.mxu0 0.0
    %5998 = vmatprep.subr.mxu0 0.0
    %5999 = vmatpush2.msra.mxu0 0.0
    %6000 = vmatprep.subr.mxu0 0.0
    %6001 = vmatpush2.msra.mxu0 0.0
    %6002 = vmatprep.subr.mxu0 0.0
    %6003 = vmatpush2.msra.mxu0 0.0
    %6004 = vmatprep.subr.mxu0 0.0
    %6005 = vmatpush2.msra.mxu0 0.0
    %6006 = vmatprep.subr.mxu0 0.0
    %6007 = vmatpush2.msra.mxu0 0.0
    %6008 = vmatprep.subr.mxu0 0.0
    %6009 = vmatpush2.msra.mxu0 0.0
    %6010 = vmatprep.subr.mxu0 0.0
    %6011 = vmatpush2.msra.mxu0 0.0
    %6012 = vmatprep.subr.mxu0 0.0
    %6013 = vmatpush2.msra.mxu0 0.0
    %6014 = vmatprep.subr.mxu0 0.0
    %6015 = vmatpush2.msra.mxu0 0.0
    %6016 = vmatprep.subr.mxu0 0.0
    %6017 = vmatpush2.msra.mxu0 0.0
    %6018 = vmatprep.subr.mxu0 0.0
    %6019 = vmatpush2.msra.mxu0 0.0
    %6020 = vmatprep.subr.mxu0 0.0
    %6021 = vmatpush2.msra.mxu0 0.0
    %6022 = vmatprep.subr.mxu0 0.0
    %6023 = vmatpush2.msra.mxu0 0.0
    %6024 = vmatprep.subr.mxu0 0.0
    %6025 = vmatpush2.msra.mxu0 0.0
    %6026 = vmatprep.subr.mxu0 0.0
    %6027 = vmatpush2.msra.mxu0 0.0
    %6028 = vmatprep.mubr.f32.mxu0 0.0
    %v6029 = vand.u32 %v5623, 4294901760
    %6030 = vmatmul.mubr.f32.gmra.mxu0 %v6029
    %v6031 = vpop.f32.mrf.mxu0
    %v6032 = vadd.f32 %v5949, %v6031
    %v6033 = vpop.f32.mrf.mxu0
    %6034 = vdwg.mxu0
    %6035 = vmatprep.subr.mxu0 0.0
    %6036 = vmatpush1.msra.mxu0 0.0
    %6037 = vmatprep.subr.mxu0 0.0
    %6038 = vmatpush1.msra.mxu0 0.0
    %6039 = vmatprep.subr.mxu0 0.0
    %6040 = vmatpush1.msra.mxu0 0.0
    %6041 = vmatprep.subr.mxu0 0.0
    %6042 = vmatpush1.msra.mxu0 0.0
    %6043 = vmatprep.subr.mxu0 0.0
    %6044 = vmatpush1.msra.mxu0 0.0
    %6045 = vmatprep.subr.mxu0 0.0
    %6046 = vmatpush1.msra.mxu0 0.0
    %6047 = vmatprep.subr.mxu0 0.0
    %6048 = vmatpush1.msra.mxu0 0.0
    %6049 = vmatprep.subr.mxu0 0.0
    %6050 = vmatpush1.msra.mxu0 0.0
    %6051 = vmatprep.subr.mxu0 0.0
    %6052 = vmatpush1.msra.mxu0 0.0
    %6053 = vmatprep.subr.mxu0 0.0
    %6054 = vmatpush1.msra.mxu0 0.0
    %6055 = vmatprep.subr.mxu0 0.0
    %6056 = vmatpush1.msra.mxu0 0.0
    %6057 = vmatprep.subr.mxu0 0.0
    %6058 = vmatpush1.msra.mxu0 0.0
    %6059 = vmatprep.subr.mxu0 0.0
    %v6060 = vand.u32 %v5614, 4294901760
    %6061 = vmatpush1.msra.mxu0 %v6060
    %6062 = vmatprep.subr.mxu0 0.0
    %v6063 = vand.u32 %v5613, 4294901760
    %6064 = vmatpush1.msra.mxu0 %v6063
    %6065 = vmatprep.subr.mxu0 0.0
    %v6066 = vand.u32 %v5612, 4294901760
    %6067 = vmatpush1.msra.mxu0 %v6066
    %6068 = vmatprep.subr.mxu0 0.0
    %v6069 = vand.u32 %v5611, 4294901760
    %6070 = vmatpush1.msra.mxu0 %v6069
    %6071 = vmatprep.subr.mxu0 0.0
    %6072 = vmatpush2.msra.mxu0 0.0
    %6073 = vmatprep.subr.mxu0 0.0
    %6074 = vmatpush2.msra.mxu0 0.0
    %6075 = vmatprep.subr.mxu0 0.0
    %6076 = vmatpush2.msra.mxu0 0.0
    %6077 = vmatprep.subr.mxu0 0.0
    %6078 = vmatpush2.msra.mxu0 0.0
    %6079 = vmatprep.subr.mxu0 0.0
    %6080 = vmatpush2.msra.mxu0 0.0
    %6081 = vmatprep.subr.mxu0 0.0
    %6082 = vmatpush2.msra.mxu0 0.0
    %6083 = vmatprep.subr.mxu0 0.0
    %6084 = vmatpush2.msra.mxu0 0.0
    %6085 = vmatprep.subr.mxu0 0.0
    %6086 = vmatpush2.msra.mxu0 0.0
    %6087 = vmatprep.subr.mxu0 0.0
    %6088 = vmatpush2.msra.mxu0 0.0
    %6089 = vmatprep.subr.mxu0 0.0
    %6090 = vmatpush2.msra.mxu0 0.0
    %6091 = vmatprep.subr.mxu0 0.0
    %6092 = vmatpush2.msra.mxu0 0.0
    %6093 = vmatprep.subr.mxu0 0.0
    %6094 = vmatpush2.msra.mxu0 0.0
    %6095 = vmatprep.subr.mxu0 0.0
    %6096 = vmatpush2.msra.mxu0 0.0
    %6097 = vmatprep.subr.mxu0 0.0
    %6098 = vmatpush2.msra.mxu0 0.0
    %6099 = vmatprep.subr.mxu0 0.0
    %6100 = vmatpush2.msra.mxu0 0.0
    %6101 = vmatprep.subr.mxu0 0.0
    %6102 = vmatpush2.msra.mxu0 0.0
    %6103 = vmatprep.mubr.f32.mxu0 0.0
    %v6104 = vand.u32 %v5623, 4294901760
    %6105 = vmatmul.mubr.f32.gmra.mxu0 %v6104
    %v6106 = vpop.f32.mrf.mxu0
    %v6107 = vadd.f32 %v6032, %v6106
    %v6108 = vpop.f32.mrf.mxu0
    %6109 = vdwg.mxu0
    %6110 = vst.msk [vmem:[%s8] sm:$0xff] %vm124, %v6107
    // Predicated region
    $region34: #{encoder_forward_pallas.1} parent=1 // pred_check
      _
    $region35: #{encoder_forward_pallas.1} parent=1 // pred_check_branch
      %6112 = sbr.rel (0) target = $region37
    $region36: #{encoder_forward_pallas.1} parent=1 // pred_region
      _
    $region37: #{encoder_forward_pallas.1} parent=1 // pred_fallthru
      _
    // Predicated region
    $region38: #{encoder_forward_pallas.1} parent=1 // pred_check
      _
    $region39: #{encoder_forward_pallas.1} parent=1 // pred_check_branch
      %6114 = sbr.rel (0) target = $region41
    $region40: #{encoder_forward_pallas.1} parent=1 // pred_region
      _
    $region41: #{encoder_forward_pallas.1} parent=1 // pred_fallthru
      _
    // Predicated region
    $region42: #{encoder_forward_pallas.1} parent=1 // pred_check
      _
    $region43: #{encoder_forward_pallas.1} parent=1 // pred_check_branch
      %6116 = sbr.rel (0) target = $region45
    $region44: #{encoder_forward_pallas.1} parent=1 // pred_region
      _
    $region45: #{encoder_forward_pallas.1} parent=1 // pred_fallthru
      _
    // Predicated region
    $region46: #{encoder_forward_pallas.1} parent=1 // pred_check
      _
    $region47: #{encoder_forward_pallas.1} parent=1 // pred_check_branch
      %6118 = sbr.rel (0) target = $region49
    $region48: #{encoder_forward_pallas.1} parent=1 // pred_region
      _
    $region49: #{encoder_forward_pallas.1} parent=1 // pred_fallthru
      _
    %6119 = vsyncpa [#allocation7], 1
    %6120 = vsyncpa [#allocation9], 1

</llo_original>
